<compile_context>
chip_gen: v7x
topology: tpu7x:2x2x1
jax: 0.10.0
libtpu: 0.0.40
codegen_flags: <defaults>
</compile_context>

<pallas_src>
import functools

import jax
import jax.numpy as jnp
from jax.experimental import pallas as pl
from jax.experimental.pallas import tpu as pltpu


# ----------------------------------------------------------------------------
# Fused Pallas kernel: one batch element per grid step
# ----------------------------------------------------------------------------

def _imd_fused_kernel(x_ref, w1, b1, w2, b2, w3, b3, w4, b4, w5, b5,
                      cw1, cb1, cw2, cb2, o_ref, pad_ref, *, dc):
    H, W, C = x_ref.shape
    rc = C - dc
    HW = H * W

    x = x_ref[...].reshape(HW, C)                            # (HW, C) f32

    # Zero the halo scratch once per image; only the interior is rewritten per conv.
    pad_ref[...] = jnp.zeros_like(pad_ref)

    def mm1x1(a_f32, w_ref, b_ref, relu):
        y = jnp.dot(a_f32.astype(jnp.bfloat16), w_ref[...],
                    preferred_element_type=jnp.float32) + b_ref[...]
        return jnp.maximum(y, 0.0) if relu else y

    def conv3x3(r_f32, w_ref, b_ref, relu):
        # r_f32: (HW, rc) f32.  w_ref: (9, rc, cout) bf16.  b_ref: (1, cout) f32.
        cout = w_ref.shape[2]
        pad_ref[1:H + 1, 1:W + 1, :] = r_f32.reshape(H, W, rc)
        acc = jnp.zeros((HW, cout), jnp.float32)
        for t in range(9):        # static unroll: 9 accumulating MXU matmuls
            ty, tx = t // 3, t % 3
            win = pad_ref[ty:ty + H, tx:tx + W, :].reshape(HW, rc)
            acc = acc + jnp.dot(win.astype(jnp.bfloat16), w_ref[t],
                                preferred_element_type=jnp.float32)
        acc = acc + b_ref[...]
        return jnp.maximum(acc, 0.0) if relu else acc

    out_c1 = mm1x1(x, w1, b1, True)                          # (HW, C)
    d1, r1 = out_c1[:, :dc], out_c1[:, dc:]
    out_c2 = conv3x3(r1, w2, b2, True)
    d2, r2 = out_c2[:, :dc], out_c2[:, dc:]
    out_c3 = conv3x3(r2, w3, b3, True)
    d3, r3 = out_c3[:, :dc], out_c3[:, dc:]
    out_c4 = conv3x3(r3, w4, b4, False)                      # (HW, dc)

    fused = jnp.concatenate([d1, d2, d3, out_c4], axis=-1)   # (HW, 4*dc == C)

    # Contrast-aware channel attention — one-pass stats (var = E[x^2] - mean^2).
    s1 = jnp.sum(fused, axis=0, keepdims=True)               # (1, C)
    s2 = jnp.sum(fused * fused, axis=0, keepdims=True)       # (1, C)
    mean = s1 * (1.0 / HW)
    var = jnp.maximum(s2 * (1.0 / HW) - mean * mean, 0.0)
    y = jnp.sqrt(var) + mean                                 # (1, C)

    # Squeeze/excite MLP via broadcast-mul + reduce; weights stored as (Cr, C) rows.
    h = jnp.sum(cw1[...] * y, axis=1, keepdims=True) + cb1[...]     # (Cr, 1)
    h = jnp.maximum(h, 0.0)
    g = jnp.sum(h * cw2[...], axis=0, keepdims=True) + cb2[...]     # (1, C)
    gate = jax.nn.sigmoid(g)

    out5 = mm1x1(fused * gate, w5, b5, False)                # (HW, C)
    o_ref[...] = (out5 + x).reshape(H, W, C).astype(o_ref.dtype)


def imd_forward(x_nchw, params, dc):
    """IMDModule.forward; input/output NCHW to match PyTorch semantics."""
    N, C, H, W = x_nchw.shape
    rc = C - dc
    x = jnp.transpose(x_nchw, (0, 2, 3, 1)).astype(jnp.float32)   # NHWC

    def full(a):
        if a.ndim == 2:
            return pl.BlockSpec(a.shape, lambda n: (0, 0))
        return pl.BlockSpec(a.shape, lambda n: (0, 0, 0))

    weights = [params[k] for k in
               ("w1", "b1", "w2", "b2", "w3", "b3", "w4", "b4", "w5", "b5",
                "cca_w1", "cca_b1", "cca_w2", "cca_b2")]

    out = pl.pallas_call(
        functools.partial(_imd_fused_kernel, dc=dc),
        grid=(N,),
        in_specs=[pl.BlockSpec((None, H, W, C), lambda n: (n, 0, 0, 0))]
                 + [full(a) for a in weights],
        out_specs=pl.BlockSpec((None, H, W, C), lambda n: (n, 0, 0, 0)),
        out_shape=jax.ShapeDtypeStruct((N, H, W, C), jnp.float32),
        scratch_shapes=[pltpu.VMEM((H + 2, W + 2, rc), jnp.float32)],
        compiler_params=pltpu.CompilerParams(
            dimension_semantics=("parallel",)),
    )(x, *weights)
    return jnp.transpose(out, (0, 3, 1, 2))                       # back to NCHW


# ----------------------------------------------------------------------------
# Parameters (weights cast once at init; conv weights bf16, biases/CCA f32)
# ----------------------------------------------------------------------------

def init_imd_params(key, in_channels, distillation_rate=0.25, reduction=16):
    dc = int(in_channels * distillation_rate)
    rc = in_channels - dc
    cca_c = dc * 4
    assert cca_c == in_channels, "IMDModule requires 4*distilled == in_channels"
    cca_r = max(cca_c // reduction, 1)
    ks = jax.random.split(key, 14)
    s = 0.1

    def w(k, shape, dtype):
        return (jax.random.normal(k, shape, jnp.float32) * s).astype(dtype)

    bf16, f32 = jnp.bfloat16, jnp.float32
    params = {
        "w1": w(ks[0], (in_channels, in_channels), bf16),   # c1: 1x1 C->C
        "b1": w(ks[1], (1, in_channels), f32),
        "w2": w(ks[2], (9, rc, in_channels), bf16),         # c2: 3x3 rc->C (tap-major)
        "b2": w(ks[3], (1, in_channels), f32),
        "w3": w(ks[4], (9, rc, in_channels), bf16),         # c3: 3x3 rc->C
        "b3": w(ks[5], (1, in_channels), f32),
        "w4": w(ks[6], (9, rc, dc), bf16),                  # c4: 3x3 rc->dc (no act)
        "b4": w(ks[7], (1, dc), f32),
        "w5": w(ks[8], (cca_c, in_channels), bf16),         # c5: 1x1 4dc->C (no act)
        "b5": w(ks[9], (1, in_channels), f32),
        # CCA conv_du: stored as (Cr, C) rows so the in-kernel MLP is
        # broadcast-mul + reductions (no transposes / degenerate 1-row matmuls).
        "cca_w1": w(ks[10], (cca_r, cca_c), f32),           # maps C -> Cr
        "cca_b1": w(ks[11], (cca_r, 1), f32),
        "cca_w2": w(ks[12], (cca_r, cca_c), f32),           # maps Cr -> C (stored transposed)
        "cca_b2": w(ks[13], (1, cca_c), f32),
    }
    return params, dc, rc


# ----------------------------------------------------------------------------
# Pure-JAX reference (same math, same bf16 matmul rounding) for a sanity check
# ----------------------------------------------------------------------------

def _ref_conv1x1(x, w, b, relu):
    y = jnp.einsum("nhwc,co->nhwo", x.astype(jnp.bfloat16), w,
                   preferred_element_type=jnp.float32) + b.reshape(1, 1, 1, -1)
    return jnp.maximum(y, 0.0) if relu else y


def _ref_conv3x3(x, w9, b, relu):
    N, H, W, _ = x.shape
    xp = jnp.pad(x.astype(jnp.bfloat16), ((0, 0), (1, 1), (1, 1), (0, 0)))
    acc = jnp.zeros((N, H, W, w9.shape[-1]), jnp.float32)
    for t in range(9):
        ty, tx = t // 3, t % 3
        acc = acc + jnp.einsum("nhwc,co->nhwo", xp[:, ty:ty + H, tx:tx + W, :],
                               w9[t], preferred_element_type=jnp.float32)
    acc = acc + b.reshape(1, 1, 1, -1)
    return jnp.maximum(acc, 0.0) if relu else acc


def _ref_cca(x, w1t, b1, w2t, b2):
    mean = jnp.mean(x, axis=(1, 2), keepdims=True)
    var = jnp.mean((x - mean) ** 2, axis=(1, 2), keepdims=True)
    y = (jnp.sqrt(var) + mean)[:, 0, 0, :]                   # (N, C)
    h = jnp.maximum(y @ w1t.T + b1.reshape(1, -1), 0.0)      # (N, Cr)
    g = h @ w2t + b2.reshape(1, -1)                          # (N, C)
    return x * jax.nn.sigmoid(g)[:, None, None, :]


def imd_reference(x_nchw, params, dc):
    x = jnp.transpose(x_nchw, (0, 2, 3, 1)).astype(jnp.float32)
    o1 = _ref_conv1x1(x, params["w1"], params["b1"], True)
    d1, r1 = o1[..., :dc], o1[..., dc:]
    o2 = _ref_conv3x3(r1, params["w2"], params["b2"], True)
    d2, r2 = o2[..., :dc], o2[..., dc:]
    o3 = _ref_conv3x3(r2, params["w3"], params["b3"], True)
    d3, r3 = o3[..., :dc], o3[..., dc:]
    o4 = _ref_conv3x3(r3, params["w4"], params["b4"], False)
    out = jnp.concatenate([d1, d2, d3, o4], axis=-1)
    out = _ref_cca(out, params["cca_w1"], params["cca_b1"],
                   params["cca_w2"], params["cca_b2"])
    out = _ref_conv1x1(out, params["w5"], params["b5"], False) + x
    return jnp.transpose(out, (0, 3, 1, 2))


# ----------------------------------------------------------------------------
# Main
# ----------------------------------------------------------------------------

if __name__ == "__main__":
    # in_channels >= 16 so CCALayer(channel=4*dc, reduction=16) has >= 1 hidden channel.
    N, C, H, W = 2, 16, 16, 16
    key = jax.random.PRNGKey(0)
    k_x, k_p = jax.random.split(key)

    x = jax.random.normal(k_x, (N, C, H, W), jnp.float32)
    params, dc, rc = init_imd_params(k_p, in_channels=C)

    fwd = jax.jit(lambda a: imd_forward(a, params, dc))
    out = jax.block_until_ready(fwd(x))

    ref = imd_reference(x, params, dc)
    assert out.shape == (N, C, H, W)
    max_err = float(jnp.max(jnp.abs(out - ref)))
    assert max_err < 2e-2, f"mismatch vs reference (max abs err {max_err})"

    print("KERNEL_OK")
</pallas_src>

<mosaic_0001>
module attributes {stable_mosaic.version = 11 : i64} {
  func.func @_imd_fused_kernel(%arg0: i32, %arg1: memref<1x16x16x16xf32, #tpu.memory_space<vmem>>, %arg2: memref<16x16xbf16, #tpu.memory_space<vmem>>, %arg3: memref<1x16xf32, #tpu.memory_space<vmem>>, %arg4: memref<9x12x16xbf16, #tpu.memory_space<vmem>>, %arg5: memref<1x16xf32, #tpu.memory_space<vmem>>, %arg6: memref<9x12x16xbf16, #tpu.memory_space<vmem>>, %arg7: memref<1x16xf32, #tpu.memory_space<vmem>>, %arg8: memref<9x12x4xbf16, #tpu.memory_space<vmem>>, %arg9: memref<1x4xf32, #tpu.memory_space<vmem>>, %arg10: memref<16x16xbf16, #tpu.memory_space<vmem>>, %arg11: memref<1x16xf32, #tpu.memory_space<vmem>>, %arg12: memref<1x16xf32, #tpu.memory_space<vmem>>, %arg13: memref<1x1xf32, #tpu.memory_space<vmem>>, %arg14: memref<1x16xf32, #tpu.memory_space<vmem>>, %arg15: memref<1x16xf32, #tpu.memory_space<vmem>>, %arg16: memref<1x16x16x16xf32, #tpu.memory_space<vmem>>, %arg17: memref<18x18x12xf32, #tpu.memory_space<vmem>>) attributes {dimension_semantics = [#tpu.dimension_semantics<parallel>], iteration_bounds = array<i64: 2>, scalar_prefetch = 0 : i64, scratch_operands = 1 : i64, tpu.core_type = #tpu.core_type<tc>, window_params = [{transform_indices = @transform_0, window_bounds = array<i64: 1, 16, 16, 16>}, {pipeline_mode = #tpu.pipeline_mode<synchronous>, transform_indices = @transform_1, window_bounds = array<i64: 16, 16>}, {pipeline_mode = #tpu.pipeline_mode<synchronous>, transform_indices = @transform_2, window_bounds = array<i64: 1, 16>}, {pipeline_mode = #tpu.pipeline_mode<synchronous>, transform_indices = @transform_3, window_bounds = array<i64: 9, 12, 16>}, {pipeline_mode = #tpu.pipeline_mode<synchronous>, transform_indices = @transform_4, window_bounds = array<i64: 1, 16>}, {pipeline_mode = #tpu.pipeline_mode<synchronous>, transform_indices = @transform_5, window_bounds = array<i64: 9, 12, 16>}, {pipeline_mode = #tpu.pipeline_mode<synchronous>, transform_indices = @transform_6, window_bounds = array<i64: 1, 16>}, {pipeline_mode = #tpu.pipeline_mode<synchronous>, transform_indices = @transform_7, window_bounds = array<i64: 9, 12, 4>}, {pipeline_mode = #tpu.pipeline_mode<synchronous>, transform_indices = @transform_8, window_bounds = array<i64: 1, 4>}, {pipeline_mode = #tpu.pipeline_mode<synchronous>, transform_indices = @transform_9, window_bounds = array<i64: 16, 16>}, {pipeline_mode = #tpu.pipeline_mode<synchronous>, transform_indices = @transform_10, window_bounds = array<i64: 1, 16>}, {pipeline_mode = #tpu.pipeline_mode<synchronous>, transform_indices = @transform_11, window_bounds = array<i64: 1, 16>}, {pipeline_mode = #tpu.pipeline_mode<synchronous>, transform_indices = @transform_12, window_bounds = array<i64: 1, 1>}, {pipeline_mode = #tpu.pipeline_mode<synchronous>, transform_indices = @transform_13, window_bounds = array<i64: 1, 16>}, {pipeline_mode = #tpu.pipeline_mode<synchronous>, transform_indices = @transform_14, window_bounds = array<i64: 1, 16>}, {transform_indices = @transform_15, window_bounds = array<i64: 1, 16, 16, 16>}]} {
    %c0 = arith.constant 0 : index
    %c0_0 = arith.constant 0 : index
    %c0_1 = arith.constant 0 : index
    %c0_2 = arith.constant 0 : index
    %0 = vector.load %arg1[%c0, %c0_0, %c0_1, %c0_2] : memref<1x16x16x16xf32, #tpu.memory_space<vmem>>, vector<1x16x16x16xf32>
    %1 = vector.shape_cast %0 : vector<1x16x16x16xf32> to vector<16x16x16xf32>
    %2 = vector.shape_cast %1 : vector<16x16x16xf32> to vector<256x16xf32>
    %cst = arith.constant 0.000000e+00 : f32
    %3 = vector.broadcast %cst : f32 to vector<18x18x12xf32>
    %c0_3 = arith.constant 0 : index
    %c0_4 = arith.constant 0 : index
    %c0_5 = arith.constant 0 : index
    %4 = vector.load %arg17[%c0_3, %c0_4, %c0_5] : memref<18x18x12xf32, #tpu.memory_space<vmem>>, vector<18x18x12xf32>
    tpu.vector_store %arg17[%c0_3, %c0_4, %c0_5], %3 {strides = array<i32>} : memref<18x18x12xf32, #tpu.memory_space<vmem>>, vector<18x18x12xf32>,
    %5 = arith.truncf %2 : vector<256x16xf32> to vector<256x16xbf16>
    %c0_6 = arith.constant 0 : index
    %c0_7 = arith.constant 0 : index
    %6 = vector.load %arg2[%c0_6, %c0_7] : memref<16x16xbf16, #tpu.memory_space<vmem>>, vector<16x16xbf16>
    %cst_8 = arith.constant dense<0.000000e+00> : vector<256x16xf32>
    %7 = tpu.matmul %5, %6, %cst_8 {dimension_numbers = #tpu.dot_dimension_numbers<[1], [0], [0], [1], [0, 0, 1, 1], [], []>} : vector<256x16xbf16>, vector<16x16xbf16>, vector<256x16xf32> -> vector<256x16xf32>
    %c0_9 = arith.constant 0 : index
    %c0_10 = arith.constant 0 : index
    %8 = vector.load %arg3[%c0_9, %c0_10] : memref<1x16xf32, #tpu.memory_space<vmem>>, vector<1x16xf32>
    %9 = vector.broadcast %8 : vector<1x16xf32> to vector<256x16xf32>
    %10 = arith.addf %7, %9 : vector<256x16xf32>
    %cst_11 = arith.constant 0.000000e+00 : f32
    %11 = vector.broadcast %cst_11 : f32 to vector<256x16xf32>
    %12 = arith.maximumf %10, %11 : vector<256x16xf32>
    %13 = vector.extract_strided_slice %12 {offsets = [0, 0], sizes = [256, 4], strides = [1, 1]} : vector<256x16xf32> to vector<256x4xf32>
    %14 = vector.extract_strided_slice %12 {offsets = [0, 4], sizes = [256, 12], strides = [1, 1]} : vector<256x16xf32> to vector<256x12xf32>
    %15 = vector.shape_cast %14 : vector<256x12xf32> to vector<16x16x12xf32>
    %c1 = arith.constant 1 : index
    %c1_12 = arith.constant 1 : index
    %c0_13 = arith.constant 0 : index
    %16 = vector.load %arg17[%c1, %c1_12, %c0_13] : memref<18x18x12xf32, #tpu.memory_space<vmem>>, vector<16x16x12xf32>
    tpu.vector_store %arg17[%c1, %c1_12, %c0_13], %15 {strides = array<i32>} : memref<18x18x12xf32, #tpu.memory_space<vmem>>, vector<16x16x12xf32>,
    %cst_14 = arith.constant 0.000000e+00 : f32
    %17 = vector.broadcast %cst_14 : f32 to vector<256x16xf32>
    %c0_15 = arith.constant 0 : index
    %c0_16 = arith.constant 0 : index
    %c0_17 = arith.constant 0 : index
    %18 = vector.load %arg17[%c0_15, %c0_16, %c0_17] : memref<18x18x12xf32, #tpu.memory_space<vmem>>, vector<16x16x12xf32>
    %19 = vector.shape_cast %18 : vector<16x16x12xf32> to vector<256x12xf32>
    %20 = arith.truncf %19 : vector<256x12xf32> to vector<256x12xbf16>
    %c0_18 = arith.constant 0 : index
    %c0_19 = arith.constant 0 : index
    %c0_20 = arith.constant 0 : index
    %21 = vector.load %arg4[%c0_18, %c0_19, %c0_20] : memref<9x12x16xbf16, #tpu.memory_space<vmem>>, vector<1x12x16xbf16>
    %22 = vector.shape_cast %21 : vector<1x12x16xbf16> to vector<12x16xbf16>
    %cst_21 = arith.constant dense<0.000000e+00> : vector<256x16xf32>
    %23 = tpu.matmul %20, %22, %cst_21 {dimension_numbers = #tpu.dot_dimension_numbers<[1], [0], [0], [1], [0, 0, 1, 1], [], []>} : vector<256x12xbf16>, vector<12x16xbf16>, vector<256x16xf32> -> vector<256x16xf32>
    %24 = arith.addf %17, %23 : vector<256x16xf32>
    %c0_22 = arith.constant 0 : index
    %c1_23 = arith.constant 1 : index
    %c0_24 = arith.constant 0 : index
    %25 = vector.load %arg17[%c0_22, %c1_23, %c0_24] : memref<18x18x12xf32, #tpu.memory_space<vmem>>, vector<16x16x12xf32>
    %26 = vector.shape_cast %25 : vector<16x16x12xf32> to vector<256x12xf32>
    %27 = arith.truncf %26 : vector<256x12xf32> to vector<256x12xbf16>
    %c1_25 = arith.constant 1 : index
    %c0_26 = arith.constant 0 : index
    %c0_27 = arith.constant 0 : index
    %28 = vector.load %arg4[%c1_25, %c0_26, %c0_27] : memref<9x12x16xbf16, #tpu.memory_space<vmem>>, vector<1x12x16xbf16>
    %29 = vector.shape_cast %28 : vector<1x12x16xbf16> to vector<12x16xbf16>
    %cst_28 = arith.constant dense<0.000000e+00> : vector<256x16xf32>
    %30 = tpu.matmul %27, %29, %cst_28 {dimension_numbers = #tpu.dot_dimension_numbers<[1], [0], [0], [1], [0, 0, 1, 1], [], []>} : vector<256x12xbf16>, vector<12x16xbf16>, vector<256x16xf32> -> vector<256x16xf32>
    %31 = arith.addf %24, %30 : vector<256x16xf32>
    %c0_29 = arith.constant 0 : index
    %c2 = arith.constant 2 : index
    %c0_30 = arith.constant 0 : index
    %32 = vector.load %arg17[%c0_29, %c2, %c0_30] : memref<18x18x12xf32, #tpu.memory_space<vmem>>, vector<16x16x12xf32>
    %33 = vector.shape_cast %32 : vector<16x16x12xf32> to vector<256x12xf32>
    %34 = arith.truncf %33 : vector<256x12xf32> to vector<256x12xbf16>
    %c2_31 = arith.constant 2 : index
    %c0_32 = arith.constant 0 : index
    %c0_33 = arith.constant 0 : index
    %35 = vector.load %arg4[%c2_31, %c0_32, %c0_33] : memref<9x12x16xbf16, #tpu.memory_space<vmem>>, vector<1x12x16xbf16>
    %36 = vector.shape_cast %35 : vector<1x12x16xbf16> to vector<12x16xbf16>
    %cst_34 = arith.constant dense<0.000000e+00> : vector<256x16xf32>
    %37 = tpu.matmul %34, %36, %cst_34 {dimension_numbers = #tpu.dot_dimension_numbers<[1], [0], [0], [1], [0, 0, 1, 1], [], []>} : vector<256x12xbf16>, vector<12x16xbf16>, vector<256x16xf32> -> vector<256x16xf32>
    %38 = arith.addf %31, %37 : vector<256x16xf32>
    %c1_35 = arith.constant 1 : index
    %c0_36 = arith.constant 0 : index
    %c0_37 = arith.constant 0 : index
    %39 = vector.load %arg17[%c1_35, %c0_36, %c0_37] : memref<18x18x12xf32, #tpu.memory_space<vmem>>, vector<16x16x12xf32>
    %40 = vector.shape_cast %39 : vector<16x16x12xf32> to vector<256x12xf32>
    %41 = arith.truncf %40 : vector<256x12xf32> to vector<256x12xbf16>
    %c3 = arith.constant 3 : index
    %c0_38 = arith.constant 0 : index
    %c0_39 = arith.constant 0 : index
    %42 = vector.load %arg4[%c3, %c0_38, %c0_39] : memref<9x12x16xbf16, #tpu.memory_space<vmem>>, vector<1x12x16xbf16>
    %43 = vector.shape_cast %42 : vector<1x12x16xbf16> to vector<12x16xbf16>
    %cst_40 = arith.constant dense<0.000000e+00> : vector<256x16xf32>
    %44 = tpu.matmul %41, %43, %cst_40 {dimension_numbers = #tpu.dot_dimension_numbers<[1], [0], [0], [1], [0, 0, 1, 1], [], []>} : vector<256x12xbf16>, vector<12x16xbf16>, vector<256x16xf32> -> vector<256x16xf32>
    %45 = arith.addf %38, %44 : vector<256x16xf32>
    %c1_41 = arith.constant 1 : index
    %c1_42 = arith.constant 1 : index
    %c0_43 = arith.constant 0 : index
    %46 = vector.load %arg17[%c1_41, %c1_42, %c0_43] : memref<18x18x12xf32, #tpu.memory_space<vmem>>, vector<16x16x12xf32>
    %47 = vector.shape_cast %46 : vector<16x16x12xf32> to vector<256x12xf32>
    %48 = arith.truncf %47 : vector<256x12xf32> to vector<256x12xbf16>
    %c4 = arith.constant 4 : index
    %c0_44 = arith.constant 0 : index
    %c0_45 = arith.constant 0 : index
    %49 = vector.load %arg4[%c4, %c0_44, %c0_45] : memref<9x12x16xbf16, #tpu.memory_space<vmem>>, vector<1x12x16xbf16>
    %50 = vector.shape_cast %49 : vector<1x12x16xbf16> to vector<12x16xbf16>
    %cst_46 = arith.constant dense<0.000000e+00> : vector<256x16xf32>
    %51 = tpu.matmul %48, %50, %cst_46 {dimension_numbers = #tpu.dot_dimension_numbers<[1], [0], [0], [1], [0, 0, 1, 1], [], []>} : vector<256x12xbf16>, vector<12x16xbf16>, vector<256x16xf32> -> vector<256x16xf32>
    %52 = arith.addf %45, %51 : vector<256x16xf32>
    %c1_47 = arith.constant 1 : index
    %c2_48 = arith.constant 2 : index
    %c0_49 = arith.constant 0 : index
    %53 = vector.load %arg17[%c1_47, %c2_48, %c0_49] : memref<18x18x12xf32, #tpu.memory_space<vmem>>, vector<16x16x12xf32>
    %54 = vector.shape_cast %53 : vector<16x16x12xf32> to vector<256x12xf32>
    %55 = arith.truncf %54 : vector<256x12xf32> to vector<256x12xbf16>
    %c5 = arith.constant 5 : index
    %c0_50 = arith.constant 0 : index
    %c0_51 = arith.constant 0 : index
    %56 = vector.load %arg4[%c5, %c0_50, %c0_51] : memref<9x12x16xbf16, #tpu.memory_space<vmem>>, vector<1x12x16xbf16>
    %57 = vector.shape_cast %56 : vector<1x12x16xbf16> to vector<12x16xbf16>
    %cst_52 = arith.constant dense<0.000000e+00> : vector<256x16xf32>
    %58 = tpu.matmul %55, %57, %cst_52 {dimension_numbers = #tpu.dot_dimension_numbers<[1], [0], [0], [1], [0, 0, 1, 1], [], []>} : vector<256x12xbf16>, vector<12x16xbf16>, vector<256x16xf32> -> vector<256x16xf32>
    %59 = arith.addf %52, %58 : vector<256x16xf32>
    %c2_53 = arith.constant 2 : index
    %c0_54 = arith.constant 0 : index
    %c0_55 = arith.constant 0 : index
    %60 = vector.load %arg17[%c2_53, %c0_54, %c0_55] : memref<18x18x12xf32, #tpu.memory_space<vmem>>, vector<16x16x12xf32>
    %61 = vector.shape_cast %60 : vector<16x16x12xf32> to vector<256x12xf32>
    %62 = arith.truncf %61 : vector<256x12xf32> to vector<256x12xbf16>
    %c6 = arith.constant 6 : index
    %c0_56 = arith.constant 0 : index
    %c0_57 = arith.constant 0 : index
    %63 = vector.load %arg4[%c6, %c0_56, %c0_57] : memref<9x12x16xbf16, #tpu.memory_space<vmem>>, vector<1x12x16xbf16>
    %64 = vector.shape_cast %63 : vector<1x12x16xbf16> to vector<12x16xbf16>
    %cst_58 = arith.constant dense<0.000000e+00> : vector<256x16xf32>
    %65 = tpu.matmul %62, %64, %cst_58 {dimension_numbers = #tpu.dot_dimension_numbers<[1], [0], [0], [1], [0, 0, 1, 1], [], []>} : vector<256x12xbf16>, vector<12x16xbf16>, vector<256x16xf32> -> vector<256x16xf32>
    %66 = arith.addf %59, %65 : vector<256x16xf32>
    %c2_59 = arith.constant 2 : index
    %c1_60 = arith.constant 1 : index
    %c0_61 = arith.constant 0 : index
    %67 = vector.load %arg17[%c2_59, %c1_60, %c0_61] : memref<18x18x12xf32, #tpu.memory_space<vmem>>, vector<16x16x12xf32>
    %68 = vector.shape_cast %67 : vector<16x16x12xf32> to vector<256x12xf32>
    %69 = arith.truncf %68 : vector<256x12xf32> to vector<256x12xbf16>
    %c7 = arith.constant 7 : index
    %c0_62 = arith.constant 0 : index
    %c0_63 = arith.constant 0 : index
    %70 = vector.load %arg4[%c7, %c0_62, %c0_63] : memref<9x12x16xbf16, #tpu.memory_space<vmem>>, vector<1x12x16xbf16>
    %71 = vector.shape_cast %70 : vector<1x12x16xbf16> to vector<12x16xbf16>
    %cst_64 = arith.constant dense<0.000000e+00> : vector<256x16xf32>
    %72 = tpu.matmul %69, %71, %cst_64 {dimension_numbers = #tpu.dot_dimension_numbers<[1], [0], [0], [1], [0, 0, 1, 1], [], []>} : vector<256x12xbf16>, vector<12x16xbf16>, vector<256x16xf32> -> vector<256x16xf32>
    %73 = arith.addf %66, %72 : vector<256x16xf32>
    %c2_65 = arith.constant 2 : index
    %c2_66 = arith.constant 2 : index
    %c0_67 = arith.constant 0 : index
    %74 = vector.load %arg17[%c2_65, %c2_66, %c0_67] : memref<18x18x12xf32, #tpu.memory_space<vmem>>, vector<16x16x12xf32>
    %75 = vector.shape_cast %74 : vector<16x16x12xf32> to vector<256x12xf32>
    %76 = arith.truncf %75 : vector<256x12xf32> to vector<256x12xbf16>
    %c8 = arith.constant 8 : index
    %c0_68 = arith.constant 0 : index
    %c0_69 = arith.constant 0 : index
    %77 = vector.load %arg4[%c8, %c0_68, %c0_69] : memref<9x12x16xbf16, #tpu.memory_space<vmem>>, vector<1x12x16xbf16>
    %78 = vector.shape_cast %77 : vector<1x12x16xbf16> to vector<12x16xbf16>
    %cst_70 = arith.constant dense<0.000000e+00> : vector<256x16xf32>
    %79 = tpu.matmul %76, %78, %cst_70 {dimension_numbers = #tpu.dot_dimension_numbers<[1], [0], [0], [1], [0, 0, 1, 1], [], []>} : vector<256x12xbf16>, vector<12x16xbf16>, vector<256x16xf32> -> vector<256x16xf32>
    %80 = arith.addf %73, %79 : vector<256x16xf32>
    %c0_71 = arith.constant 0 : index
    %c0_72 = arith.constant 0 : index
    %81 = vector.load %arg5[%c0_71, %c0_72] : memref<1x16xf32, #tpu.memory_space<vmem>>, vector<1x16xf32>
    %82 = vector.broadcast %81 : vector<1x16xf32> to vector<256x16xf32>
    %83 = arith.addf %80, %82 : vector<256x16xf32>
    %cst_73 = arith.constant 0.000000e+00 : f32
    %84 = vector.broadcast %cst_73 : f32 to vector<256x16xf32>
    %85 = arith.maximumf %83, %84 : vector<256x16xf32>
    %86 = vector.extract_strided_slice %85 {offsets = [0, 0], sizes = [256, 4], strides = [1, 1]} : vector<256x16xf32> to vector<256x4xf32>
    %87 = vector.extract_strided_slice %85 {offsets = [0, 4], sizes = [256, 12], strides = [1, 1]} : vector<256x16xf32> to vector<256x12xf32>
    %88 = vector.shape_cast %87 : vector<256x12xf32> to vector<16x16x12xf32>
    %c1_74 = arith.constant 1 : index
    %c1_75 = arith.constant 1 : index
    %c0_76 = arith.constant 0 : index
    %89 = vector.load %arg17[%c1_74, %c1_75, %c0_76] : memref<18x18x12xf32, #tpu.memory_space<vmem>>, vector<16x16x12xf32>
    tpu.vector_store %arg17[%c1_74, %c1_75, %c0_76], %88 {strides = array<i32>} : memref<18x18x12xf32, #tpu.memory_space<vmem>>, vector<16x16x12xf32>,
    %cst_77 = arith.constant 0.000000e+00 : f32
    %90 = vector.broadcast %cst_77 : f32 to vector<256x16xf32>
    %c0_78 = arith.constant 0 : index
    %c0_79 = arith.constant 0 : index
    %c0_80 = arith.constant 0 : index
    %91 = vector.load %arg17[%c0_78, %c0_79, %c0_80] : memref<18x18x12xf32, #tpu.memory_space<vmem>>, vector<16x16x12xf32>
    %92 = vector.shape_cast %91 : vector<16x16x12xf32> to vector<256x12xf32>
    %93 = arith.truncf %92 : vector<256x12xf32> to vector<256x12xbf16>
    %c0_81 = arith.constant 0 : index
    %c0_82 = arith.constant 0 : index
    %c0_83 = arith.constant 0 : index
    %94 = vector.load %arg6[%c0_81, %c0_82, %c0_83] : memref<9x12x16xbf16, #tpu.memory_space<vmem>>, vector<1x12x16xbf16>
    %95 = vector.shape_cast %94 : vector<1x12x16xbf16> to vector<12x16xbf16>
    %cst_84 = arith.constant dense<0.000000e+00> : vector<256x16xf32>
    %96 = tpu.matmul %93, %95, %cst_84 {dimension_numbers = #tpu.dot_dimension_numbers<[1], [0], [0], [1], [0, 0, 1, 1], [], []>} : vector<256x12xbf16>, vector<12x16xbf16>, vector<256x16xf32> -> vector<256x16xf32>
    %97 = arith.addf %90, %96 : vector<256x16xf32>
    %c0_85 = arith.constant 0 : index
    %c1_86 = arith.constant 1 : index
    %c0_87 = arith.constant 0 : index
    %98 = vector.load %arg17[%c0_85, %c1_86, %c0_87] : memref<18x18x12xf32, #tpu.memory_space<vmem>>, vector<16x16x12xf32>
    %99 = vector.shape_cast %98 : vector<16x16x12xf32> to vector<256x12xf32>
    %100 = arith.truncf %99 : vector<256x12xf32> to vector<256x12xbf16>
    %c1_88 = arith.constant 1 : index
    %c0_89 = arith.constant 0 : index
    %c0_90 = arith.constant 0 : index
    %101 = vector.load %arg6[%c1_88, %c0_89, %c0_90] : memref<9x12x16xbf16, #tpu.memory_space<vmem>>, vector<1x12x16xbf16>
    %102 = vector.shape_cast %101 : vector<1x12x16xbf16> to vector<12x16xbf16>
    %cst_91 = arith.constant dense<0.000000e+00> : vector<256x16xf32>
    %103 = tpu.matmul %100, %102, %cst_91 {dimension_numbers = #tpu.dot_dimension_numbers<[1], [0], [0], [1], [0, 0, 1, 1], [], []>} : vector<256x12xbf16>, vector<12x16xbf16>, vector<256x16xf32> -> vector<256x16xf32>
    %104 = arith.addf %97, %103 : vector<256x16xf32>
    %c0_92 = arith.constant 0 : index
    %c2_93 = arith.constant 2 : index
    %c0_94 = arith.constant 0 : index
    %105 = vector.load %arg17[%c0_92, %c2_93, %c0_94] : memref<18x18x12xf32, #tpu.memory_space<vmem>>, vector<16x16x12xf32>
    %106 = vector.shape_cast %105 : vector<16x16x12xf32> to vector<256x12xf32>
    %107 = arith.truncf %106 : vector<256x12xf32> to vector<256x12xbf16>
    %c2_95 = arith.constant 2 : index
    %c0_96 = arith.constant 0 : index
    %c0_97 = arith.constant 0 : index
    %108 = vector.load %arg6[%c2_95, %c0_96, %c0_97] : memref<9x12x16xbf16, #tpu.memory_space<vmem>>, vector<1x12x16xbf16>
    %109 = vector.shape_cast %108 : vector<1x12x16xbf16> to vector<12x16xbf16>
    %cst_98 = arith.constant dense<0.000000e+00> : vector<256x16xf32>
    %110 = tpu.matmul %107, %109, %cst_98 {dimension_numbers = #tpu.dot_dimension_numbers<[1], [0], [0], [1], [0, 0, 1, 1], [], []>} : vector<256x12xbf16>, vector<12x16xbf16>, vector<256x16xf32> -> vector<256x16xf32>
    %111 = arith.addf %104, %110 : vector<256x16xf32>
    %c1_99 = arith.constant 1 : index
    %c0_100 = arith.constant 0 : index
    %c0_101 = arith.constant 0 : index
    %112 = vector.load %arg17[%c1_99, %c0_100, %c0_101] : memref<18x18x12xf32, #tpu.memory_space<vmem>>, vector<16x16x12xf32>
    %113 = vector.shape_cast %112 : vector<16x16x12xf32> to vector<256x12xf32>
    %114 = arith.truncf %113 : vector<256x12xf32> to vector<256x12xbf16>
    %c3_102 = arith.constant 3 : index
    %c0_103 = arith.constant 0 : index
    %c0_104 = arith.constant 0 : index
    %115 = vector.load %arg6[%c3_102, %c0_103, %c0_104] : memref<9x12x16xbf16, #tpu.memory_space<vmem>>, vector<1x12x16xbf16>
    %116 = vector.shape_cast %115 : vector<1x12x16xbf16> to vector<12x16xbf16>
    %cst_105 = arith.constant dense<0.000000e+00> : vector<256x16xf32>
    %117 = tpu.matmul %114, %116, %cst_105 {dimension_numbers = #tpu.dot_dimension_numbers<[1], [0], [0], [1], [0, 0, 1, 1], [], []>} : vector<256x12xbf16>, vector<12x16xbf16>, vector<256x16xf32> -> vector<256x16xf32>
    %118 = arith.addf %111, %117 : vector<256x16xf32>
    %c1_106 = arith.constant 1 : index
    %c1_107 = arith.constant 1 : index
    %c0_108 = arith.constant 0 : index
    %119 = vector.load %arg17[%c1_106, %c1_107, %c0_108] : memref<18x18x12xf32, #tpu.memory_space<vmem>>, vector<16x16x12xf32>
    %120 = vector.shape_cast %119 : vector<16x16x12xf32> to vector<256x12xf32>
    %121 = arith.truncf %120 : vector<256x12xf32> to vector<256x12xbf16>
    %c4_109 = arith.constant 4 : index
    %c0_110 = arith.constant 0 : index
    %c0_111 = arith.constant 0 : index
    %122 = vector.load %arg6[%c4_109, %c0_110, %c0_111] : memref<9x12x16xbf16, #tpu.memory_space<vmem>>, vector<1x12x16xbf16>
    %123 = vector.shape_cast %122 : vector<1x12x16xbf16> to vector<12x16xbf16>
    %cst_112 = arith.constant dense<0.000000e+00> : vector<256x16xf32>
    %124 = tpu.matmul %121, %123, %cst_112 {dimension_numbers = #tpu.dot_dimension_numbers<[1], [0], [0], [1], [0, 0, 1, 1], [], []>} : vector<256x12xbf16>, vector<12x16xbf16>, vector<256x16xf32> -> vector<256x16xf32>
    %125 = arith.addf %118, %124 : vector<256x16xf32>
    %c1_113 = arith.constant 1 : index
    %c2_114 = arith.constant 2 : index
    %c0_115 = arith.constant 0 : index
    %126 = vector.load %arg17[%c1_113, %c2_114, %c0_115] : memref<18x18x12xf32, #tpu.memory_space<vmem>>, vector<16x16x12xf32>
    %127 = vector.shape_cast %126 : vector<16x16x12xf32> to vector<256x12xf32>
    %128 = arith.truncf %127 : vector<256x12xf32> to vector<256x12xbf16>
    %c5_116 = arith.constant 5 : index
    %c0_117 = arith.constant 0 : index
    %c0_118 = arith.constant 0 : index
    %129 = vector.load %arg6[%c5_116, %c0_117, %c0_118] : memref<9x12x16xbf16, #tpu.memory_space<vmem>>, vector<1x12x16xbf16>
    %130 = vector.shape_cast %129 : vector<1x12x16xbf16> to vector<12x16xbf16>
    %cst_119 = arith.constant dense<0.000000e+00> : vector<256x16xf32>
    %131 = tpu.matmul %128, %130, %cst_119 {dimension_numbers = #tpu.dot_dimension_numbers<[1], [0], [0], [1], [0, 0, 1, 1], [], []>} : vector<256x12xbf16>, vector<12x16xbf16>, vector<256x16xf32> -> vector<256x16xf32>
    %132 = arith.addf %125, %131 : vector<256x16xf32>
    %c2_120 = arith.constant 2 : index
    %c0_121 = arith.constant 0 : index
    %c0_122 = arith.constant 0 : index
    %133 = vector.load %arg17[%c2_120, %c0_121, %c0_122] : memref<18x18x12xf32, #tpu.memory_space<vmem>>, vector<16x16x12xf32>
    %134 = vector.shape_cast %133 : vector<16x16x12xf32> to vector<256x12xf32>
    %135 = arith.truncf %134 : vector<256x12xf32> to vector<256x12xbf16>
    %c6_123 = arith.constant 6 : index
    %c0_124 = arith.constant 0 : index
    %c0_125 = arith.constant 0 : index
    %136 = vector.load %arg6[%c6_123, %c0_124, %c0_125] : memref<9x12x16xbf16, #tpu.memory_space<vmem>>, vector<1x12x16xbf16>
    %137 = vector.shape_cast %136 : vector<1x12x16xbf16> to vector<12x16xbf16>
    %cst_126 = arith.constant dense<0.000000e+00> : vector<256x16xf32>
    %138 = tpu.matmul %135, %137, %cst_126 {dimension_numbers = #tpu.dot_dimension_numbers<[1], [0], [0], [1], [0, 0, 1, 1], [], []>} : vector<256x12xbf16>, vector<12x16xbf16>, vector<256x16xf32> -> vector<256x16xf32>
    %139 = arith.addf %132, %138 : vector<256x16xf32>
    %c2_127 = arith.constant 2 : index
    %c1_128 = arith.constant 1 : index
    %c0_129 = arith.constant 0 : index
    %140 = vector.load %arg17[%c2_127, %c1_128, %c0_129] : memref<18x18x12xf32, #tpu.memory_space<vmem>>, vector<16x16x12xf32>
    %141 = vector.shape_cast %140 : vector<16x16x12xf32> to vector<256x12xf32>
    %142 = arith.truncf %141 : vector<256x12xf32> to vector<256x12xbf16>
    %c7_130 = arith.constant 7 : index
    %c0_131 = arith.constant 0 : index
    %c0_132 = arith.constant 0 : index
    %143 = vector.load %arg6[%c7_130, %c0_131, %c0_132] : memref<9x12x16xbf16, #tpu.memory_space<vmem>>, vector<1x12x16xbf16>
    %144 = vector.shape_cast %143 : vector<1x12x16xbf16> to vector<12x16xbf16>
    %cst_133 = arith.constant dense<0.000000e+00> : vector<256x16xf32>
    %145 = tpu.matmul %142, %144, %cst_133 {dimension_numbers = #tpu.dot_dimension_numbers<[1], [0], [0], [1], [0, 0, 1, 1], [], []>} : vector<256x12xbf16>, vector<12x16xbf16>, vector<256x16xf32> -> vector<256x16xf32>
    %146 = arith.addf %139, %145 : vector<256x16xf32>
    %c2_134 = arith.constant 2 : index
    %c2_135 = arith.constant 2 : index
    %c0_136 = arith.constant 0 : index
    %147 = vector.load %arg17[%c2_134, %c2_135, %c0_136] : memref<18x18x12xf32, #tpu.memory_space<vmem>>, vector<16x16x12xf32>
    %148 = vector.shape_cast %147 : vector<16x16x12xf32> to vector<256x12xf32>
    %149 = arith.truncf %148 : vector<256x12xf32> to vector<256x12xbf16>
    %c8_137 = arith.constant 8 : index
    %c0_138 = arith.constant 0 : index
    %c0_139 = arith.constant 0 : index
    %150 = vector.load %arg6[%c8_137, %c0_138, %c0_139] : memref<9x12x16xbf16, #tpu.memory_space<vmem>>, vector<1x12x16xbf16>
    %151 = vector.shape_cast %150 : vector<1x12x16xbf16> to vector<12x16xbf16>
    %cst_140 = arith.constant dense<0.000000e+00> : vector<256x16xf32>
    %152 = tpu.matmul %149, %151, %cst_140 {dimension_numbers = #tpu.dot_dimension_numbers<[1], [0], [0], [1], [0, 0, 1, 1], [], []>} : vector<256x12xbf16>, vector<12x16xbf16>, vector<256x16xf32> -> vector<256x16xf32>
    %153 = arith.addf %146, %152 : vector<256x16xf32>
    %c0_141 = arith.constant 0 : index
    %c0_142 = arith.constant 0 : index
    %154 = vector.load %arg7[%c0_141, %c0_142] : memref<1x16xf32, #tpu.memory_space<vmem>>, vector<1x16xf32>
    %155 = vector.broadcast %154 : vector<1x16xf32> to vector<256x16xf32>
    %156 = arith.addf %153, %155 : vector<256x16xf32>
    %cst_143 = arith.constant 0.000000e+00 : f32
    %157 = vector.broadcast %cst_143 : f32 to vector<256x16xf32>
    %158 = arith.maximumf %156, %157 : vector<256x16xf32>
    %159 = vector.extract_strided_slice %158 {offsets = [0, 0], sizes = [256, 4], strides = [1, 1]} : vector<256x16xf32> to vector<256x4xf32>
    %160 = vector.extract_strided_slice %158 {offsets = [0, 4], sizes = [256, 12], strides = [1, 1]} : vector<256x16xf32> to vector<256x12xf32>
    %161 = vector.shape_cast %160 : vector<256x12xf32> to vector<16x16x12xf32>
    %c1_144 = arith.constant 1 : index
    %c1_145 = arith.constant 1 : index
    %c0_146 = arith.constant 0 : index
    %162 = vector.load %arg17[%c1_144, %c1_145, %c0_146] : memref<18x18x12xf32, #tpu.memory_space<vmem>>, vector<16x16x12xf32>
    tpu.vector_store %arg17[%c1_144, %c1_145, %c0_146], %161 {strides = array<i32>} : memref<18x18x12xf32, #tpu.memory_space<vmem>>, vector<16x16x12xf32>,
    %cst_147 = arith.constant 0.000000e+00 : f32
    %163 = vector.broadcast %cst_147 : f32 to vector<256x4xf32>
    %c0_148 = arith.constant 0 : index
    %c0_149 = arith.constant 0 : index
    %c0_150 = arith.constant 0 : index
    %164 = vector.load %arg17[%c0_148, %c0_149, %c0_150] : memref<18x18x12xf32, #tpu.memory_space<vmem>>, vector<16x16x12xf32>
    %165 = vector.shape_cast %164 : vector<16x16x12xf32> to vector<256x12xf32>
    %166 = arith.truncf %165 : vector<256x12xf32> to vector<256x12xbf16>
    %c0_151 = arith.constant 0 : index
    %c0_152 = arith.constant 0 : index
    %c0_153 = arith.constant 0 : index
    %167 = vector.load %arg8[%c0_151, %c0_152, %c0_153] : memref<9x12x4xbf16, #tpu.memory_space<vmem>>, vector<1x12x4xbf16>
    %168 = vector.shape_cast %167 : vector<1x12x4xbf16> to vector<12x4xbf16>
    %cst_154 = arith.constant dense<0.000000e+00> : vector<256x4xf32>
    %169 = tpu.matmul %166, %168, %cst_154 {dimension_numbers = #tpu.dot_dimension_numbers<[1], [0], [0], [1], [0, 0, 1, 1], [], []>} : vector<256x12xbf16>, vector<12x4xbf16>, vector<256x4xf32> -> vector<256x4xf32>
    %170 = arith.addf %163, %169 : vector<256x4xf32>
    %c0_155 = arith.constant 0 : index
    %c1_156 = arith.constant 1 : index
    %c0_157 = arith.constant 0 : index
    %171 = vector.load %arg17[%c0_155, %c1_156, %c0_157] : memref<18x18x12xf32, #tpu.memory_space<vmem>>, vector<16x16x12xf32>
    %172 = vector.shape_cast %171 : vector<16x16x12xf32> to vector<256x12xf32>
    %173 = arith.truncf %172 : vector<256x12xf32> to vector<256x12xbf16>
    %c1_158 = arith.constant 1 : index
    %c0_159 = arith.constant 0 : index
    %c0_160 = arith.constant 0 : index
    %174 = vector.load %arg8[%c1_158, %c0_159, %c0_160] : memref<9x12x4xbf16, #tpu.memory_space<vmem>>, vector<1x12x4xbf16>
    %175 = vector.shape_cast %174 : vector<1x12x4xbf16> to vector<12x4xbf16>
    %cst_161 = arith.constant dense<0.000000e+00> : vector<256x4xf32>
    %176 = tpu.matmul %173, %175, %cst_161 {dimension_numbers = #tpu.dot_dimension_numbers<[1], [0], [0], [1], [0, 0, 1, 1], [], []>} : vector<256x12xbf16>, vector<12x4xbf16>, vector<256x4xf32> -> vector<256x4xf32>
    %177 = arith.addf %170, %176 : vector<256x4xf32>
    %c0_162 = arith.constant 0 : index
    %c2_163 = arith.constant 2 : index
    %c0_164 = arith.constant 0 : index
    %178 = vector.load %arg17[%c0_162, %c2_163, %c0_164] : memref<18x18x12xf32, #tpu.memory_space<vmem>>, vector<16x16x12xf32>
    %179 = vector.shape_cast %178 : vector<16x16x12xf32> to vector<256x12xf32>
    %180 = arith.truncf %179 : vector<256x12xf32> to vector<256x12xbf16>
    %c2_165 = arith.constant 2 : index
    %c0_166 = arith.constant 0 : index
    %c0_167 = arith.constant 0 : index
    %181 = vector.load %arg8[%c2_165, %c0_166, %c0_167] : memref<9x12x4xbf16, #tpu.memory_space<vmem>>, vector<1x12x4xbf16>
    %182 = vector.shape_cast %181 : vector<1x12x4xbf16> to vector<12x4xbf16>
    %cst_168 = arith.constant dense<0.000000e+00> : vector<256x4xf32>
    %183 = tpu.matmul %180, %182, %cst_168 {dimension_numbers = #tpu.dot_dimension_numbers<[1], [0], [0], [1], [0, 0, 1, 1], [], []>} : vector<256x12xbf16>, vector<12x4xbf16>, vector<256x4xf32> -> vector<256x4xf32>
    %184 = arith.addf %177, %183 : vector<256x4xf32>
    %c1_169 = arith.constant 1 : index
    %c0_170 = arith.constant 0 : index
    %c0_171 = arith.constant 0 : index
    %185 = vector.load %arg17[%c1_169, %c0_170, %c0_171] : memref<18x18x12xf32, #tpu.memory_space<vmem>>, vector<16x16x12xf32>
    %186 = vector.shape_cast %185 : vector<16x16x12xf32> to vector<256x12xf32>
    %187 = arith.truncf %186 : vector<256x12xf32> to vector<256x12xbf16>
    %c3_172 = arith.constant 3 : index
    %c0_173 = arith.constant 0 : index
    %c0_174 = arith.constant 0 : index
    %188 = vector.load %arg8[%c3_172, %c0_173, %c0_174] : memref<9x12x4xbf16, #tpu.memory_space<vmem>>, vector<1x12x4xbf16>
    %189 = vector.shape_cast %188 : vector<1x12x4xbf16> to vector<12x4xbf16>
    %cst_175 = arith.constant dense<0.000000e+00> : vector<256x4xf32>
    %190 = tpu.matmul %187, %189, %cst_175 {dimension_numbers = #tpu.dot_dimension_numbers<[1], [0], [0], [1], [0, 0, 1, 1], [], []>} : vector<256x12xbf16>, vector<12x4xbf16>, vector<256x4xf32> -> vector<256x4xf32>
    %191 = arith.addf %184, %190 : vector<256x4xf32>
    %c1_176 = arith.constant 1 : index
    %c1_177 = arith.constant 1 : index
    %c0_178 = arith.constant 0 : index
    %192 = vector.load %arg17[%c1_176, %c1_177, %c0_178] : memref<18x18x12xf32, #tpu.memory_space<vmem>>, vector<16x16x12xf32>
    %193 = vector.shape_cast %192 : vector<16x16x12xf32> to vector<256x12xf32>
    %194 = arith.truncf %193 : vector<256x12xf32> to vector<256x12xbf16>
    %c4_179 = arith.constant 4 : index
    %c0_180 = arith.constant 0 : index
    %c0_181 = arith.constant 0 : index
    %195 = vector.load %arg8[%c4_179, %c0_180, %c0_181] : memref<9x12x4xbf16, #tpu.memory_space<vmem>>, vector<1x12x4xbf16>
    %196 = vector.shape_cast %195 : vector<1x12x4xbf16> to vector<12x4xbf16>
    %cst_182 = arith.constant dense<0.000000e+00> : vector<256x4xf32>
    %197 = tpu.matmul %194, %196, %cst_182 {dimension_numbers = #tpu.dot_dimension_numbers<[1], [0], [0], [1], [0, 0, 1, 1], [], []>} : vector<256x12xbf16>, vector<12x4xbf16>, vector<256x4xf32> -> vector<256x4xf32>
    %198 = arith.addf %191, %197 : vector<256x4xf32>
    %c1_183 = arith.constant 1 : index
    %c2_184 = arith.constant 2 : index
    %c0_185 = arith.constant 0 : index
    %199 = vector.load %arg17[%c1_183, %c2_184, %c0_185] : memref<18x18x12xf32, #tpu.memory_space<vmem>>, vector<16x16x12xf32>
    %200 = vector.shape_cast %199 : vector<16x16x12xf32> to vector<256x12xf32>
    %201 = arith.truncf %200 : vector<256x12xf32> to vector<256x12xbf16>
    %c5_186 = arith.constant 5 : index
    %c0_187 = arith.constant 0 : index
    %c0_188 = arith.constant 0 : index
    %202 = vector.load %arg8[%c5_186, %c0_187, %c0_188] : memref<9x12x4xbf16, #tpu.memory_space<vmem>>, vector<1x12x4xbf16>
    %203 = vector.shape_cast %202 : vector<1x12x4xbf16> to vector<12x4xbf16>
    %cst_189 = arith.constant dense<0.000000e+00> : vector<256x4xf32>
    %204 = tpu.matmul %201, %203, %cst_189 {dimension_numbers = #tpu.dot_dimension_numbers<[1], [0], [0], [1], [0, 0, 1, 1], [], []>} : vector<256x12xbf16>, vector<12x4xbf16>, vector<256x4xf32> -> vector<256x4xf32>
    %205 = arith.addf %198, %204 : vector<256x4xf32>
    %c2_190 = arith.constant 2 : index
    %c0_191 = arith.constant 0 : index
    %c0_192 = arith.constant 0 : index
    %206 = vector.load %arg17[%c2_190, %c0_191, %c0_192] : memref<18x18x12xf32, #tpu.memory_space<vmem>>, vector<16x16x12xf32>
    %207 = vector.shape_cast %206 : vector<16x16x12xf32> to vector<256x12xf32>
    %208 = arith.truncf %207 : vector<256x12xf32> to vector<256x12xbf16>
    %c6_193 = arith.constant 6 : index
    %c0_194 = arith.constant 0 : index
    %c0_195 = arith.constant 0 : index
    %209 = vector.load %arg8[%c6_193, %c0_194, %c0_195] : memref<9x12x4xbf16, #tpu.memory_space<vmem>>, vector<1x12x4xbf16>
    %210 = vector.shape_cast %209 : vector<1x12x4xbf16> to vector<12x4xbf16>
    %cst_196 = arith.constant dense<0.000000e+00> : vector<256x4xf32>
    %211 = tpu.matmul %208, %210, %cst_196 {dimension_numbers = #tpu.dot_dimension_numbers<[1], [0], [0], [1], [0, 0, 1, 1], [], []>} : vector<256x12xbf16>, vector<12x4xbf16>, vector<256x4xf32> -> vector<256x4xf32>
    %212 = arith.addf %205, %211 : vector<256x4xf32>
    %c2_197 = arith.constant 2 : index
    %c1_198 = arith.constant 1 : index
    %c0_199 = arith.constant 0 : index
    %213 = vector.load %arg17[%c2_197, %c1_198, %c0_199] : memref<18x18x12xf32, #tpu.memory_space<vmem>>, vector<16x16x12xf32>
    %214 = vector.shape_cast %213 : vector<16x16x12xf32> to vector<256x12xf32>
    %215 = arith.truncf %214 : vector<256x12xf32> to vector<256x12xbf16>
    %c7_200 = arith.constant 7 : index
    %c0_201 = arith.constant 0 : index
    %c0_202 = arith.constant 0 : index
    %216 = vector.load %arg8[%c7_200, %c0_201, %c0_202] : memref<9x12x4xbf16, #tpu.memory_space<vmem>>, vector<1x12x4xbf16>
    %217 = vector.shape_cast %216 : vector<1x12x4xbf16> to vector<12x4xbf16>
    %cst_203 = arith.constant dense<0.000000e+00> : vector<256x4xf32>
    %218 = tpu.matmul %215, %217, %cst_203 {dimension_numbers = #tpu.dot_dimension_numbers<[1], [0], [0], [1], [0, 0, 1, 1], [], []>} : vector<256x12xbf16>, vector<12x4xbf16>, vector<256x4xf32> -> vector<256x4xf32>
    %219 = arith.addf %212, %218 : vector<256x4xf32>
    %c2_204 = arith.constant 2 : index
    %c2_205 = arith.constant 2 : index
    %c0_206 = arith.constant 0 : index
    %220 = vector.load %arg17[%c2_204, %c2_205, %c0_206] : memref<18x18x12xf32, #tpu.memory_space<vmem>>, vector<16x16x12xf32>
    %221 = vector.shape_cast %220 : vector<16x16x12xf32> to vector<256x12xf32>
    %222 = arith.truncf %221 : vector<256x12xf32> to vector<256x12xbf16>
    %c8_207 = arith.constant 8 : index
    %c0_208 = arith.constant 0 : index
    %c0_209 = arith.constant 0 : index
    %223 = vector.load %arg8[%c8_207, %c0_208, %c0_209] : memref<9x12x4xbf16, #tpu.memory_space<vmem>>, vector<1x12x4xbf16>
    %224 = vector.shape_cast %223 : vector<1x12x4xbf16> to vector<12x4xbf16>
    %cst_210 = arith.constant dense<0.000000e+00> : vector<256x4xf32>
    %225 = tpu.matmul %222, %224, %cst_210 {dimension_numbers = #tpu.dot_dimension_numbers<[1], [0], [0], [1], [0, 0, 1, 1], [], []>} : vector<256x12xbf16>, vector<12x4xbf16>, vector<256x4xf32> -> vector<256x4xf32>
    %226 = arith.addf %219, %225 : vector<256x4xf32>
    %c0_211 = arith.constant 0 : index
    %c0_212 = arith.constant 0 : index
    %227 = vector.load %arg9[%c0_211, %c0_212] : memref<1x4xf32, #tpu.memory_space<vmem>>, vector<1x4xf32>
    %228 = vector.broadcast %227 : vector<1x4xf32> to vector<256x4xf32>
    %229 = arith.addf %226, %228 : vector<256x4xf32>
    %230 = tpu.concatenate %13, %86, %159, %229 in 1 : vector<256x4xf32>, vector<256x4xf32>, vector<256x4xf32>, vector<256x4xf32> -> vector<256x16xf32>
    %cst_213 = arith.constant dense<0.000000e+00> : vector<16xf32>
    %231 = vector.multi_reduction <add>, %230, %cst_213 [0] : vector<256x16xf32> to vector<16xf32>
    %232 = vector.shape_cast %231 : vector<16xf32> to vector<1x16xf32>
    %233 = arith.mulf %230, %230 : vector<256x16xf32>
    %cst_214 = arith.constant dense<0.000000e+00> : vector<16xf32>
    %234 = vector.multi_reduction <add>, %233, %cst_214 [0] : vector<256x16xf32> to vector<16xf32>
    %235 = vector.shape_cast %234 : vector<16xf32> to vector<1x16xf32>
    %cst_215 = arith.constant 3.906250e-03 : f32
    %236 = vector.broadcast %cst_215 : f32 to vector<1x16xf32>
    %237 = arith.mulf %232, %236 : vector<1x16xf32>
    %cst_216 = arith.constant 3.906250e-03 : f32
    %238 = vector.broadcast %cst_216 : f32 to vector<1x16xf32>
    %239 = arith.mulf %235, %238 : vector<1x16xf32>
    %240 = arith.mulf %237, %237 : vector<1x16xf32>
    %241 = arith.subf %239, %240 : vector<1x16xf32>
    %cst_217 = arith.constant 0.000000e+00 : f32
    %242 = vector.broadcast %cst_217 : f32 to vector<1x16xf32>
    %243 = arith.maximumf %241, %242 : vector<1x16xf32>
    %244 = math.sqrt %243 : vector<1x16xf32>
    %245 = arith.addf %244, %237 : vector<1x16xf32>
    %c0_218 = arith.constant 0 : index
    %c0_219 = arith.constant 0 : index
    %246 = vector.load %arg12[%c0_218, %c0_219] : memref<1x16xf32, #tpu.memory_space<vmem>>, vector<1x16xf32>
    %247 = arith.mulf %246, %245 : vector<1x16xf32>
    %cst_220 = arith.constant dense<0.000000e+00> : vector<1xf32>
    %248 = vector.multi_reduction <add>, %247, %cst_220 [1] : vector<1x16xf32> to vector<1xf32>
    %249 = vector.shape_cast %248 : vector<1xf32> to vector<1x1xf32>
    %c0_221 = arith.constant 0 : index
    %c0_222 = arith.constant 0 : index
    %250 = vector.load %arg13[%c0_221, %c0_222] : memref<1x1xf32, #tpu.memory_space<vmem>>, vector<1x1xf32>
    %251 = arith.addf %249, %250 : vector<1x1xf32>
    %cst_223 = arith.constant 0.000000e+00 : f32
    %252 = vector.broadcast %cst_223 : f32 to vector<1x1xf32>
    %253 = arith.maximumf %251, %252 : vector<1x1xf32>
    %c0_224 = arith.constant 0 : index
    %c0_225 = arith.constant 0 : index
    %254 = vector.load %arg14[%c0_224, %c0_225] : memref<1x16xf32, #tpu.memory_space<vmem>>, vector<1x16xf32>
    %255 = vector.broadcast %253 : vector<1x1xf32> to vector<1x16xf32>
    %256 = arith.mulf %255, %254 : vector<1x16xf32>
    %cst_226 = arith.constant dense<0.000000e+00> : vector<16xf32>
    %257 = vector.multi_reduction <add>, %256, %cst_226 [0] : vector<1x16xf32> to vector<16xf32>
    %258 = vector.shape_cast %257 : vector<16xf32> to vector<1x16xf32>
    %c0_227 = arith.constant 0 : index
    %c0_228 = arith.constant 0 : index
    %259 = vector.load %arg15[%c0_227, %c0_228] : memref<1x16xf32, #tpu.memory_space<vmem>>, vector<1x16xf32>
    %260 = arith.addf %258, %259 : vector<1x16xf32>
    %261 = arith.negf %260 : vector<1x16xf32>
    %262 = math.exp %261 : vector<1x16xf32>
    %cst_229 = arith.constant 1.000000e+00 : f32
    %263 = vector.broadcast %cst_229 : f32 to vector<1x16xf32>
    %264 = arith.addf %263, %262 : vector<1x16xf32>
    %265 = arith.divf %263, %264 : vector<1x16xf32>
    %266 = vector.broadcast %265 : vector<1x16xf32> to vector<256x16xf32>
    %267 = arith.mulf %230, %266 : vector<256x16xf32>
    %268 = arith.truncf %267 : vector<256x16xf32> to vector<256x16xbf16>
    %c0_230 = arith.constant 0 : index
    %c0_231 = arith.constant 0 : index
    %269 = vector.load %arg10[%c0_230, %c0_231] : memref<16x16xbf16, #tpu.memory_space<vmem>>, vector<16x16xbf16>
    %cst_232 = arith.constant dense<0.000000e+00> : vector<256x16xf32>
    %270 = tpu.matmul %268, %269, %cst_232 {dimension_numbers = #tpu.dot_dimension_numbers<[1], [0], [0], [1], [0, 0, 1, 1], [], []>} : vector<256x16xbf16>, vector<16x16xbf16>, vector<256x16xf32> -> vector<256x16xf32>
    %c0_233 = arith.constant 0 : index
    %c0_234 = arith.constant 0 : index
    %271 = vector.load %arg11[%c0_233, %c0_234] : memref<1x16xf32, #tpu.memory_space<vmem>>, vector<1x16xf32>
    %272 = vector.broadcast %271 : vector<1x16xf32> to vector<256x16xf32>
    %273 = arith.addf %270, %272 : vector<256x16xf32>
    %274 = arith.addf %273, %2 : vector<256x16xf32>
    %275 = vector.shape_cast %274 : vector<256x16xf32> to vector<16x16x16xf32>
    %c0_235 = arith.constant 0 : index
    %c0_236 = arith.constant 0 : index
    %c0_237 = arith.constant 0 : index
    %c0_238 = arith.constant 0 : index
    %276 = vector.load %arg16[%c0_235, %c0_236, %c0_237, %c0_238] : memref<1x16x16x16xf32, #tpu.memory_space<vmem>>, vector<1x16x16x16xf32>
    %277 = vector.shape_cast %276 : vector<1x16x16x16xf32> to vector<16x16x16xf32>
    %278 = vector.shape_cast %275 : vector<16x16x16xf32> to vector<1x16x16x16xf32>
    tpu.vector_store %arg16[%c0_235, %c0_236, %c0_237, %c0_238], %278 {strides = array<i32>} : memref<1x16x16x16xf32, #tpu.memory_space<vmem>>, vector<1x16x16x16xf32>,
    return
  }
  func.func @transform_0(%arg0: i32) -> (i32, i32, i32, i32) {
    %c0_i32 = arith.constant 0 : i32
    %c0_i32_0 = arith.constant 0 : i32
    %c0_i32_1 = arith.constant 0 : i32
    %c0_i32_2 = arith.constant 0 : i32
    return %arg0, %c0_i32, %c0_i32_0, %c0_i32_1 : i32, i32, i32, i32
  }
  func.func @transform_1(%arg0: i32) -> (i32, i32) {
    %c0_i32 = arith.constant 0 : i32
    %c0_i32_0 = arith.constant 0 : i32
    %c0_i32_1 = arith.constant 0 : i32
    return %c0_i32, %c0_i32_0 : i32, i32
  }
  func.func @transform_2(%arg0: i32) -> (i32, i32) {
    %c0_i32 = arith.constant 0 : i32
    %c0_i32_0 = arith.constant 0 : i32
    %c0_i32_1 = arith.constant 0 : i32
    return %c0_i32, %c0_i32_0 : i32, i32
  }
  func.func @transform_3(%arg0: i32) -> (i32, i32, i32) {
    %c0_i32 = arith.constant 0 : i32
    %c0_i32_0 = arith.constant 0 : i32
    %c0_i32_1 = arith.constant 0 : i32
    %c0_i32_2 = arith.constant 0 : i32
    return %c0_i32, %c0_i32_0, %c0_i32_1 : i32, i32, i32
  }
  func.func @transform_4(%arg0: i32) -> (i32, i32) {
    %c0_i32 = arith.constant 0 : i32
    %c0_i32_0 = arith.constant 0 : i32
    %c0_i32_1 = arith.constant 0 : i32
    return %c0_i32, %c0_i32_0 : i32, i32
  }
  func.func @transform_5(%arg0: i32) -> (i32, i32, i32) {
    %c0_i32 = arith.constant 0 : i32
    %c0_i32_0 = arith.constant 0 : i32
    %c0_i32_1 = arith.constant 0 : i32
    %c0_i32_2 = arith.constant 0 : i32
    return %c0_i32, %c0_i32_0, %c0_i32_1 : i32, i32, i32
  }
  func.func @transform_6(%arg0: i32) -> (i32, i32) {
    %c0_i32 = arith.constant 0 : i32
    %c0_i32_0 = arith.constant 0 : i32
    %c0_i32_1 = arith.constant 0 : i32
    return %c0_i32, %c0_i32_0 : i32, i32
  }
  func.func @transform_7(%arg0: i32) -> (i32, i32, i32) {
    %c0_i32 = arith.constant 0 : i32
    %c0_i32_0 = arith.constant 0 : i32
    %c0_i32_1 = arith.constant 0 : i32
    %c0_i32_2 = arith.constant 0 : i32
    return %c0_i32, %c0_i32_0, %c0_i32_1 : i32, i32, i32
  }
  func.func @transform_8(%arg0: i32) -> (i32, i32) {
    %c0_i32 = arith.constant 0 : i32
    %c0_i32_0 = arith.constant 0 : i32
    %c0_i32_1 = arith.constant 0 : i32
    return %c0_i32, %c0_i32_0 : i32, i32
  }
  func.func @transform_9(%arg0: i32) -> (i32, i32) {
    %c0_i32 = arith.constant 0 : i32
    %c0_i32_0 = arith.constant 0 : i32
    %c0_i32_1 = arith.constant 0 : i32
    return %c0_i32, %c0_i32_0 : i32, i32
  }
  func.func @transform_10(%arg0: i32) -> (i32, i32) {
    %c0_i32 = arith.constant 0 : i32
    %c0_i32_0 = arith.constant 0 : i32
    %c0_i32_1 = arith.constant 0 : i32
    return %c0_i32, %c0_i32_0 : i32, i32
  }
  func.func @transform_11(%arg0: i32) -> (i32, i32) {
    %c0_i32 = arith.constant 0 : i32
    %c0_i32_0 = arith.constant 0 : i32
    %c0_i32_1 = arith.constant 0 : i32
    return %c0_i32, %c0_i32_0 : i32, i32
  }
  func.func @transform_12(%arg0: i32) -> (i32, i32) {
    %c0_i32 = arith.constant 0 : i32
    %c0_i32_0 = arith.constant 0 : i32
    %c0_i32_1 = arith.constant 0 : i32
    return %c0_i32, %c0_i32_0 : i32, i32
  }
  func.func @transform_13(%arg0: i32) -> (i32, i32) {
    %c0_i32 = arith.constant 0 : i32
    %c0_i32_0 = arith.constant 0 : i32
    %c0_i32_1 = arith.constant 0 : i32
    return %c0_i32, %c0_i32_0 : i32, i32
  }
  func.func @transform_14(%arg0: i32) -> (i32, i32) {
    %c0_i32 = arith.constant 0 : i32
    %c0_i32_0 = arith.constant 0 : i32
    %c0_i32_1 = arith.constant 0 : i32
    return %c0_i32, %c0_i32_0 : i32, i32
  }
  func.func @transform_15(%arg0: i32) -> (i32, i32, i32, i32) {
    %c0_i32 = arith.constant 0 : i32
    %c0_i32_0 = arith.constant 0 : i32
    %c0_i32_1 = arith.constant 0 : i32
    %c0_i32_2 = arith.constant 0 : i32
    return %arg0, %c0_i32, %c0_i32_0, %c0_i32_1 : i32, i32, i32, i32
  }
}

</mosaic_0001>

<llo_original>
// kernel: _lambda_.1
$region0: #{_lambda_.1}
  #allocation0 [shape = 'u32[]', space=smem, size = 0x4, offset = 0x4, fixed_abs, tag = 'smem constant byte address 0x4 - core index']
  #allocation1 [shape = 'u32[144,128]{1,0:T(1,128)}', space=vmem, size = 0x12000, scoped, tag = 'internal scratch']
  #allocation2 [shape = 'f32[18,18,12]{2,1,0:T(8,128)}', space=vmem, size = 0x36000, scoped, tag = 'scratch operand']
  #allocation3 [shape = 'f32[1,1]{1,0:T(1,128)S(1)}', space=vmem, size = 0x200, scoped, tag = 'scoped memory for _lambda_.1']
  %s0 = inlined_call_operand.vmem [shape: f32[2,16,16,16], index: 0, kind: input, shape index: {}]
  %s1 = inlined_call_operand.vmem [shape: bf16[16,16], index: 1, kind: input, shape index: {}]
  %s2 = inlined_call_operand.vmem [shape: f32[1,16], index: 2, kind: input, shape index: {}]
  %s3 = inlined_call_operand.vmem [shape: bf16[9,12,16], index: 3, kind: input, shape index: {}]
  %s4 = inlined_call_operand.vmem [shape: f32[1,16], index: 4, kind: input, shape index: {}]
  %s5 = inlined_call_operand.vmem [shape: bf16[9,12,16], index: 5, kind: input, shape index: {}]
  %s6 = inlined_call_operand.vmem [shape: f32[1,16], index: 6, kind: input, shape index: {}]
  %s7 = inlined_call_operand.vmem [shape: bf16[9,12,4], index: 7, kind: input, shape index: {}]
  %s8 = inlined_call_operand.vmem [shape: f32[1,4], index: 8, kind: input, shape index: {}]
  %s9 = inlined_call_operand.vmem [shape: bf16[16,16], index: 9, kind: input, shape index: {}]
  %s10 = inlined_call_operand.vmem [shape: f32[1,16], index: 10, kind: input, shape index: {}]
  %s11 = inlined_call_operand.vmem [shape: f32[1,16], index: 11, kind: input, shape index: {}]
  %s12 = inlined_call_operand.<no memory space> [shape: f32[1,1], index: 12, kind: input, shape index: {}]
  %s13 = inlined_call_operand.vmem [shape: f32[1,16], index: 13, kind: input, shape index: {}]
  %s14 = inlined_call_operand.vmem [shape: f32[1,16], index: 14, kind: input, shape index: {}]
  %s15 = inlined_call_operand.vmem [shape: f32[2,16,16,16], index: 15, kind: output, shape index: {}]
  %s16 = sld [smem:[#allocation0]]
  $region93: #{_lambda_.1} parent=0
    _
  %s18 = ssub.s32 1, %s16
  %s19 = scalar_select 0, %s18, %s16
  %v20 = vstv %s12
  %21 = vst [vmem:[#allocation3] sm:$0x1] %v20
  loop: start=0, step=1, limit=4
  $region2: #{_lambda_.1} parent=0 // loop_pre_header
    _
  $region3: #{_lambda_.1} parent=0 // loop_header
    %s23 = sphi 0, %s27
    %p24 = scmp.ge.s32.totalorder %s23, 4
    %s33 = sphi 0, %s35
    %s36 = sphi 0, %s33
    %s37 = sphi 0, %s36
    %s53 = sphi 0, %s37
    %s57 = sphi 0, %s57
    %s59 = sphi 0, %s57
    %s60 = sphi 0, %s59
    %s74 = sphi 0, %s60
    %s78 = sphi 0, %s78
    %s80 = sphi 0, %s78
    %s81 = sphi 0, %s80
    %s95 = sphi 0, %s81
    %s99 = sphi 0, %s99
    %s101 = sphi 0, %s99
    %s102 = sphi 0, %s101
    %s116 = sphi 0, %s102
    %s120 = sphi 0, %s120
    %s122 = sphi 0, %s120
    %s123 = sphi 0, %s122
    %s137 = sphi 0, %s123
    %s141 = sphi 0, %s141
    %s143 = sphi 0, %s141
    %s144 = sphi 0, %s143
    %s158 = sphi 0, %s144
    %s162 = sphi 0, %s162
    %s164 = sphi 0, %s162
    %s165 = sphi 0, %s164
    %s179 = sphi 0, %s165
    %s183 = sphi 0, %s183
    %s185 = sphi 0, %s183
    %s186 = sphi 0, %s185
    %s200 = sphi 0, %s186
    %s204 = sphi 0, %s204
    %s206 = sphi 0, %s204
    %s207 = sphi 0, %s206
    %s221 = sphi 0, %s207
    %s225 = sphi 0, %s225
    %s227 = sphi 0, %s225
    %s228 = sphi 0, %s227
    %s242 = sphi 0, %s228
    %s246 = sphi 0, %s246
    %s248 = sphi 0, %s246
    %s249 = sphi 0, %s248
    %s263 = sphi 0, %s249
    %s267 = sphi 0, %s267
    %s269 = sphi 0, %s267
    %s270 = sphi 0, %s269
    %s284 = sphi 0, %s270
    %s288 = sphi 0, %s288
    %s290 = sphi 0, %s288
    %s291 = sphi 0, %s290
    %s305 = sphi 0, %s291
    %s309 = sphi 0, %s309
    %s311 = sphi 0, %s309
    %s312 = sphi 0, %s311
    %s326 = sphi 0, %s312
    %s330 = sphi 0, %s330
    %s332 = sphi 0, %s330
    %s333 = sphi 0, %s332
    %s347 = sphi 0, %s333
    %s353 = sphi 0, %s355
    %s356 = sphi 0, %s353
    %s357 = sphi 0, %s356
    %s373 = sphi 0, %s357
  $region4: #{_lambda_.1} parent=0 // loop_header_branch
    %26 = sbr.rel (%p24) target = $region8
  $region5: #{_lambda_.1} parent=0 // loop_body
    %s28 = ssub.s32 %s23, 1
    %s29 = ssub.s32 %s23, 2
    %s30 = sadd.s32 %s23, 1
    %s31 = ssub.s32 %s23, %s30
    %p32 = scmp.eq.s32.totalorder %s31, 0
    %s34 = sadd.s32 %s33, 1
    %s35 = scalar_select %p32, %s33, %s34
    %p38 = pneg %p32
    %p39 = scmp.eq.s32.totalorder %s23, 1
    %p40 = por %p38, %p39
    %p41 = scmp.ne.s32.totalorder %s33, %s36
    %p42 = scmp.eq.s32.totalorder %s23, 0
    %p43 = por %p41, %p42
    %p44 = scmp.ne.s32.totalorder %s33, %s36
    %p45 = scmp.eq.s32.totalorder %s28, 1
    %p46 = por %p44, %p45
    %p47 = scmp.ne.s32.totalorder %s36, %s37
    %p48 = scmp.eq.s32.totalorder %s28, 0
    %p49 = por %p47, %p48
    %p50 = scmp.ne.s32.totalorder %s36, %s37
    %p51 = scmp.eq.s32.totalorder %s29, 1
    %p52 = por %p50, %p51
    %p54 = scmp.ne.s32.totalorder %s37, %s53
    %p55 = scmp.eq.s32.totalorder %s29, 0
    %p56 = por %p54, %p55
    %s58 = sadd.s32 %s57, 1
    %p61 = scmp.eq.s32.totalorder %s23, 1
    %p62 = scmp.ne.s32.totalorder %s57, %s59
    %p63 = scmp.eq.s32.totalorder %s23, 0
    %p64 = por %p62, %p63
    %p65 = scmp.ne.s32.totalorder %s57, %s59
    %p66 = scmp.eq.s32.totalorder %s28, 1
    %p67 = por %p65, %p66
    %p68 = scmp.ne.s32.totalorder %s59, %s60
    %p69 = scmp.eq.s32.totalorder %s28, 0
    %p70 = por %p68, %p69
    %p71 = scmp.ne.s32.totalorder %s59, %s60
    %p72 = scmp.eq.s32.totalorder %s29, 1
    %p73 = por %p71, %p72
    %p75 = scmp.ne.s32.totalorder %s60, %s74
    %p76 = scmp.eq.s32.totalorder %s29, 0
    %p77 = por %p75, %p76
    %s79 = sadd.s32 %s78, 1
    %p82 = scmp.eq.s32.totalorder %s23, 1
    %p83 = scmp.ne.s32.totalorder %s78, %s80
    %p84 = scmp.eq.s32.totalorder %s23, 0
    %p85 = por %p83, %p84
    %p86 = scmp.ne.s32.totalorder %s78, %s80
    %p87 = scmp.eq.s32.totalorder %s28, 1
    %p88 = por %p86, %p87
    %p89 = scmp.ne.s32.totalorder %s80, %s81
    %p90 = scmp.eq.s32.totalorder %s28, 0
    %p91 = por %p89, %p90
    %p92 = scmp.ne.s32.totalorder %s80, %s81
    %p93 = scmp.eq.s32.totalorder %s29, 1
    %p94 = por %p92, %p93
    %p96 = scmp.ne.s32.totalorder %s81, %s95
    %p97 = scmp.eq.s32.totalorder %s29, 0
    %p98 = por %p96, %p97
    %s100 = sadd.s32 %s99, 1
    %p103 = scmp.eq.s32.totalorder %s23, 1
    %p104 = scmp.ne.s32.totalorder %s99, %s101
    %p105 = scmp.eq.s32.totalorder %s23, 0
    %p106 = por %p104, %p105
    %p107 = scmp.ne.s32.totalorder %s99, %s101
    %p108 = scmp.eq.s32.totalorder %s28, 1
    %p109 = por %p107, %p108
    %p110 = scmp.ne.s32.totalorder %s101, %s102
    %p111 = scmp.eq.s32.totalorder %s28, 0
    %p112 = por %p110, %p111
    %p113 = scmp.ne.s32.totalorder %s101, %s102
    %p114 = scmp.eq.s32.totalorder %s29, 1
    %p115 = por %p113, %p114
    %p117 = scmp.ne.s32.totalorder %s102, %s116
    %p118 = scmp.eq.s32.totalorder %s29, 0
    %p119 = por %p117, %p118
    %s121 = sadd.s32 %s120, 1
    %p124 = scmp.eq.s32.totalorder %s23, 1
    %p125 = scmp.ne.s32.totalorder %s120, %s122
    %p126 = scmp.eq.s32.totalorder %s23, 0
    %p127 = por %p125, %p126
    %p128 = scmp.ne.s32.totalorder %s120, %s122
    %p129 = scmp.eq.s32.totalorder %s28, 1
    %p130 = por %p128, %p129
    %p131 = scmp.ne.s32.totalorder %s122, %s123
    %p132 = scmp.eq.s32.totalorder %s28, 0
    %p133 = por %p131, %p132
    %p134 = scmp.ne.s32.totalorder %s122, %s123
    %p135 = scmp.eq.s32.totalorder %s29, 1
    %p136 = por %p134, %p135
    %p138 = scmp.ne.s32.totalorder %s123, %s137
    %p139 = scmp.eq.s32.totalorder %s29, 0
    %p140 = por %p138, %p139
    %s142 = sadd.s32 %s141, 1
    %p145 = scmp.eq.s32.totalorder %s23, 1
    %p146 = scmp.ne.s32.totalorder %s141, %s143
    %p147 = scmp.eq.s32.totalorder %s23, 0
    %p148 = por %p146, %p147
    %p149 = scmp.ne.s32.totalorder %s141, %s143
    %p150 = scmp.eq.s32.totalorder %s28, 1
    %p151 = por %p149, %p150
    %p152 = scmp.ne.s32.totalorder %s143, %s144
    %p153 = scmp.eq.s32.totalorder %s28, 0
    %p154 = por %p152, %p153
    %p155 = scmp.ne.s32.totalorder %s143, %s144
    %p156 = scmp.eq.s32.totalorder %s29, 1
    %p157 = por %p155, %p156
    %p159 = scmp.ne.s32.totalorder %s144, %s158
    %p160 = scmp.eq.s32.totalorder %s29, 0
    %p161 = por %p159, %p160
    %s163 = sadd.s32 %s162, 1
    %p166 = scmp.eq.s32.totalorder %s23, 1
    %p167 = scmp.ne.s32.totalorder %s162, %s164
    %p168 = scmp.eq.s32.totalorder %s23, 0
    %p169 = por %p167, %p168
    %p170 = scmp.ne.s32.totalorder %s162, %s164
    %p171 = scmp.eq.s32.totalorder %s28, 1
    %p172 = por %p170, %p171
    %p173 = scmp.ne.s32.totalorder %s164, %s165
    %p174 = scmp.eq.s32.totalorder %s28, 0
    %p175 = por %p173, %p174
    %p176 = scmp.ne.s32.totalorder %s164, %s165
    %p177 = scmp.eq.s32.totalorder %s29, 1
    %p178 = por %p176, %p177
    %p180 = scmp.ne.s32.totalorder %s165, %s179
    %p181 = scmp.eq.s32.totalorder %s29, 0
    %p182 = por %p180, %p181
    %s184 = sadd.s32 %s183, 1
    %p187 = scmp.eq.s32.totalorder %s23, 1
    %p188 = scmp.ne.s32.totalorder %s183, %s185
    %p189 = scmp.eq.s32.totalorder %s23, 0
    %p190 = por %p188, %p189
    %p191 = scmp.ne.s32.totalorder %s183, %s185
    %p192 = scmp.eq.s32.totalorder %s28, 1
    %p193 = por %p191, %p192
    %p194 = scmp.ne.s32.totalorder %s185, %s186
    %p195 = scmp.eq.s32.totalorder %s28, 0
    %p196 = por %p194, %p195
    %p197 = scmp.ne.s32.totalorder %s185, %s186
    %p198 = scmp.eq.s32.totalorder %s29, 1
    %p199 = por %p197, %p198
    %p201 = scmp.ne.s32.totalorder %s186, %s200
    %p202 = scmp.eq.s32.totalorder %s29, 0
    %p203 = por %p201, %p202
    %s205 = sadd.s32 %s204, 1
    %p208 = scmp.eq.s32.totalorder %s23, 1
    %p209 = scmp.ne.s32.totalorder %s204, %s206
    %p210 = scmp.eq.s32.totalorder %s23, 0
    %p211 = por %p209, %p210
    %p212 = scmp.ne.s32.totalorder %s204, %s206
    %p213 = scmp.eq.s32.totalorder %s28, 1
    %p214 = por %p212, %p213
    %p215 = scmp.ne.s32.totalorder %s206, %s207
    %p216 = scmp.eq.s32.totalorder %s28, 0
    %p217 = por %p215, %p216
    %p218 = scmp.ne.s32.totalorder %s206, %s207
    %p219 = scmp.eq.s32.totalorder %s29, 1
    %p220 = por %p218, %p219
    %p222 = scmp.ne.s32.totalorder %s207, %s221
    %p223 = scmp.eq.s32.totalorder %s29, 0
    %p224 = por %p222, %p223
    %s226 = sadd.s32 %s225, 1
    %p229 = scmp.eq.s32.totalorder %s23, 1
    %p230 = scmp.ne.s32.totalorder %s225, %s227
    %p231 = scmp.eq.s32.totalorder %s23, 0
    %p232 = por %p230, %p231
    %p233 = scmp.ne.s32.totalorder %s225, %s227
    %p234 = scmp.eq.s32.totalorder %s28, 1
    %p235 = por %p233, %p234
    %p236 = scmp.ne.s32.totalorder %s227, %s228
    %p237 = scmp.eq.s32.totalorder %s28, 0
    %p238 = por %p236, %p237
    %p239 = scmp.ne.s32.totalorder %s227, %s228
    %p240 = scmp.eq.s32.totalorder %s29, 1
    %p241 = por %p239, %p240
    %p243 = scmp.ne.s32.totalorder %s228, %s242
    %p244 = scmp.eq.s32.totalorder %s29, 0
    %p245 = por %p243, %p244
    %s247 = sadd.s32 %s246, 1
    %p250 = scmp.eq.s32.totalorder %s23, 1
    %p251 = scmp.ne.s32.totalorder %s246, %s248
    %p252 = scmp.eq.s32.totalorder %s23, 0
    %p253 = por %p251, %p252
    %p254 = scmp.ne.s32.totalorder %s246, %s248
    %p255 = scmp.eq.s32.totalorder %s28, 1
    %p256 = por %p254, %p255
    %p257 = scmp.ne.s32.totalorder %s248, %s249
    %p258 = scmp.eq.s32.totalorder %s28, 0
    %p259 = por %p257, %p258
    %p260 = scmp.ne.s32.totalorder %s248, %s249
    %p261 = scmp.eq.s32.totalorder %s29, 1
    %p262 = por %p260, %p261
    %p264 = scmp.ne.s32.totalorder %s249, %s263
    %p265 = scmp.eq.s32.totalorder %s29, 0
    %p266 = por %p264, %p265
    %s268 = sadd.s32 %s267, 1
    %p271 = scmp.eq.s32.totalorder %s23, 1
    %p272 = scmp.ne.s32.totalorder %s267, %s269
    %p273 = scmp.eq.s32.totalorder %s23, 0
    %p274 = por %p272, %p273
    %p275 = scmp.ne.s32.totalorder %s267, %s269
    %p276 = scmp.eq.s32.totalorder %s28, 1
    %p277 = por %p275, %p276
    %p278 = scmp.ne.s32.totalorder %s269, %s270
    %p279 = scmp.eq.s32.totalorder %s28, 0
    %p280 = por %p278, %p279
    %p281 = scmp.ne.s32.totalorder %s269, %s270
    %p282 = scmp.eq.s32.totalorder %s29, 1
    %p283 = por %p281, %p282
    %p285 = scmp.ne.s32.totalorder %s270, %s284
    %p286 = scmp.eq.s32.totalorder %s29, 0
    %p287 = por %p285, %p286
    %s289 = sadd.s32 %s288, 1
    %p292 = scmp.eq.s32.totalorder %s23, 1
    %p293 = scmp.ne.s32.totalorder %s288, %s290
    %p294 = scmp.eq.s32.totalorder %s23, 0
    %p295 = por %p293, %p294
    %p296 = scmp.ne.s32.totalorder %s288, %s290
    %p297 = scmp.eq.s32.totalorder %s28, 1
    %p298 = por %p296, %p297
    %p299 = scmp.ne.s32.totalorder %s290, %s291
    %p300 = scmp.eq.s32.totalorder %s28, 0
    %p301 = por %p299, %p300
    %p302 = scmp.ne.s32.totalorder %s290, %s291
    %p303 = scmp.eq.s32.totalorder %s29, 1
    %p304 = por %p302, %p303
    %p306 = scmp.ne.s32.totalorder %s291, %s305
    %p307 = scmp.eq.s32.totalorder %s29, 0
    %p308 = por %p306, %p307
    %s310 = sadd.s32 %s309, 1
    %p313 = scmp.eq.s32.totalorder %s23, 1
    %p314 = scmp.ne.s32.totalorder %s309, %s311
    %p315 = scmp.eq.s32.totalorder %s23, 0
    %p316 = por %p314, %p315
    %p317 = scmp.ne.s32.totalorder %s309, %s311
    %p318 = scmp.eq.s32.totalorder %s28, 1
    %p319 = por %p317, %p318
    %p320 = scmp.ne.s32.totalorder %s311, %s312
    %p321 = scmp.eq.s32.totalorder %s28, 0
    %p322 = por %p320, %p321
    %p323 = scmp.ne.s32.totalorder %s311, %s312
    %p324 = scmp.eq.s32.totalorder %s29, 1
    %p325 = por %p323, %p324
    %p327 = scmp.ne.s32.totalorder %s312, %s326
    %p328 = scmp.eq.s32.totalorder %s29, 0
    %p329 = por %p327, %p328
    %s331 = sadd.s32 %s330, 1
    %p334 = scmp.eq.s32.totalorder %s23, 1
    %p335 = scmp.ne.s32.totalorder %s330, %s332
    %p336 = scmp.eq.s32.totalorder %s23, 0
    %p337 = por %p335, %p336
    %p338 = scmp.ne.s32.totalorder %s330, %s332
    %p339 = scmp.eq.s32.totalorder %s28, 1
    %p340 = por %p338, %p339
    %p341 = scmp.ne.s32.totalorder %s332, %s333
    %p342 = scmp.eq.s32.totalorder %s28, 0
    %p343 = por %p341, %p342
    %p344 = scmp.ne.s32.totalorder %s332, %s333
    %p345 = scmp.eq.s32.totalorder %s29, 1
    %p346 = por %p344, %p345
    %p348 = scmp.ne.s32.totalorder %s333, %s347
    %p349 = scmp.eq.s32.totalorder %s29, 0
    %p350 = por %p348, %p349
    %s351 = ssub.s32 %s23, %s30
    %p352 = scmp.eq.s32.totalorder %s351, 0
    %s354 = sadd.s32 %s353, 1
    %s355 = scalar_select %p352, %s353, %s354
    %p358 = pneg %p352
    %p359 = scmp.eq.s32.totalorder %s23, 1
    %p360 = por %p358, %p359
    %p361 = scmp.ne.s32.totalorder %s353, %s356
    %p362 = scmp.eq.s32.totalorder %s23, 0
    %p363 = por %p361, %p362
    %p364 = scmp.ne.s32.totalorder %s353, %s356
    %p365 = scmp.eq.s32.totalorder %s28, 1
    %p366 = por %p364, %p365
    %p367 = scmp.ne.s32.totalorder %s356, %s357
    %p368 = scmp.eq.s32.totalorder %s28, 0
    %p369 = por %p367, %p368
    %p370 = scmp.ne.s32.totalorder %s356, %s357
    %p371 = scmp.eq.s32.totalorder %s29, 1
    %p372 = por %p370, %p371
    %p374 = scmp.ne.s32.totalorder %s357, %s373
    %p375 = scmp.eq.s32.totalorder %s29, 0
    %p376 = por %p374, %p375
    %p377 = scmp.le.s32.totalorder 1, %s23
    %p378 = scmp.lt.s32.totalorder %s23, 3
    %p379 = pnand %p377, %p378
    %p380 = pneg %p379
    // Predicated region
    $region9: #{_lambda_.1} parent=5 // pred_check
      _
    $region10: #{_lambda_.1} parent=5 // pred_check_branch
      %382 = sbr.rel (%p379) target = $region12
    $region11: #{_lambda_.1} parent=5 // pred_region
      %s383 = ssub.s32 %s23, 1
      // Predicated region
      $region13: #{_lambda_.1} parent=11 // pred_check
        %p384 = pneg %p70
      $region14: #{_lambda_.1} parent=11 // pred_check_branch
        %386 = sbr.rel (%p384) target = $region16
      $region15: #{_lambda_.1} parent=11 // pred_region
        _
      $region16: #{_lambda_.1} parent=11 // pred_fallthru
        _
      // Predicated region
      $region17: #{_lambda_.1} parent=11 // pred_check
        %p387 = pneg %p91
      $region18: #{_lambda_.1} parent=11 // pred_check_branch
        %389 = sbr.rel (%p387) target = $region20
      $region19: #{_lambda_.1} parent=11 // pred_region
        _
      $region20: #{_lambda_.1} parent=11 // pred_fallthru
        _
      // Predicated region
      $region21: #{_lambda_.1} parent=11 // pred_check
        %p390 = pneg %p112
      $region22: #{_lambda_.1} parent=11 // pred_check_branch
        %392 = sbr.rel (%p390) target = $region24
      $region23: #{_lambda_.1} parent=11 // pred_region
        _
      $region24: #{_lambda_.1} parent=11 // pred_fallthru
        _
      // Predicated region
      $region25: #{_lambda_.1} parent=11 // pred_check
        %p393 = pneg %p133
      $region26: #{_lambda_.1} parent=11 // pred_check_branch
        %395 = sbr.rel (%p393) target = $region28
      $region27: #{_lambda_.1} parent=11 // pred_region
        _
      $region28: #{_lambda_.1} parent=11 // pred_fallthru
        _
      // Predicated region
      $region29: #{_lambda_.1} parent=11 // pred_check
        %p396 = pneg %p154
      $region30: #{_lambda_.1} parent=11 // pred_check_branch
        %398 = sbr.rel (%p396) target = $region32
      $region31: #{_lambda_.1} parent=11 // pred_region
        _
      $region32: #{_lambda_.1} parent=11 // pred_fallthru
        _
      // Predicated region
      $region33: #{_lambda_.1} parent=11 // pred_check
        %p399 = pneg %p175
      $region34: #{_lambda_.1} parent=11 // pred_check_branch
        %401 = sbr.rel (%p399) target = $region36
      $region35: #{_lambda_.1} parent=11 // pred_region
        _
      $region36: #{_lambda_.1} parent=11 // pred_fallthru
        _
      // Predicated region
      $region37: #{_lambda_.1} parent=11 // pred_check
        %p402 = pneg %p196
      $region38: #{_lambda_.1} parent=11 // pred_check_branch
        %404 = sbr.rel (%p402) target = $region40
      $region39: #{_lambda_.1} parent=11 // pred_region
        _
      $region40: #{_lambda_.1} parent=11 // pred_fallthru
        _
      // Predicated region
      $region41: #{_lambda_.1} parent=11 // pred_check
        %p405 = pneg %p217
      $region42: #{_lambda_.1} parent=11 // pred_check_branch
        %407 = sbr.rel (%p405) target = $region44
      $region43: #{_lambda_.1} parent=11 // pred_region
        _
      $region44: #{_lambda_.1} parent=11 // pred_fallthru
        _
      // Predicated region
      $region45: #{_lambda_.1} parent=11 // pred_check
        %p408 = pneg %p238
      $region46: #{_lambda_.1} parent=11 // pred_check_branch
        %410 = sbr.rel (%p408) target = $region48
      $region47: #{_lambda_.1} parent=11 // pred_region
        _
      $region48: #{_lambda_.1} parent=11 // pred_fallthru
        _
      // Predicated region
      $region49: #{_lambda_.1} parent=11 // pred_check
        %p411 = pneg %p259
      $region50: #{_lambda_.1} parent=11 // pred_check_branch
        %413 = sbr.rel (%p411) target = $region52
      $region51: #{_lambda_.1} parent=11 // pred_region
        _
      $region52: #{_lambda_.1} parent=11 // pred_fallthru
        _
      // Predicated region
      $region53: #{_lambda_.1} parent=11 // pred_check
        %p414 = pneg %p280
      $region54: #{_lambda_.1} parent=11 // pred_check_branch
        %416 = sbr.rel (%p414) target = $region56
      $region55: #{_lambda_.1} parent=11 // pred_region
        _
      $region56: #{_lambda_.1} parent=11 // pred_fallthru
        _
      // Predicated region
      $region57: #{_lambda_.1} parent=11 // pred_check
        %p417 = pneg %p301
      $region58: #{_lambda_.1} parent=11 // pred_check_branch
        %419 = sbr.rel (%p417) target = $region60
      $region59: #{_lambda_.1} parent=11 // pred_region
        _
      $region60: #{_lambda_.1} parent=11 // pred_fallthru
        _
      // Predicated region
      $region61: #{_lambda_.1} parent=11 // pred_check
        %p420 = pneg %p322
      $region62: #{_lambda_.1} parent=11 // pred_check_branch
        %422 = sbr.rel (%p420) target = $region64
      $region63: #{_lambda_.1} parent=11 // pred_region
        _
      $region64: #{_lambda_.1} parent=11 // pred_fallthru
        _
      // Predicated region
      $region65: #{_lambda_.1} parent=11 // pred_check
        %p423 = pneg %p343
      $region66: #{_lambda_.1} parent=11 // pred_check_branch
        %425 = sbr.rel (%p423) target = $region68
      $region67: #{_lambda_.1} parent=11 // pred_region
        _
      $region68: #{_lambda_.1} parent=11 // pred_fallthru
        _
    $region12: #{_lambda_.1} parent=5 // pred_fallthru
      _
    %p426 = scmp.lt.s32.totalorder %s23, 2
    // Predicated region
    $region69: #{_lambda_.1} parent=5 // pred_check
      %p427 = pneg %p426
    $region70: #{_lambda_.1} parent=5 // pred_check_branch
      %429 = sbr.rel (%p427) target = $region72
    $region71: #{_lambda_.1} parent=5 // pred_region
      // Predicated region
      $region73: #{_lambda_.1} parent=71 // pred_check
        %p430 = pneg %p43
      $region74: #{_lambda_.1} parent=71 // pred_check_branch
        %432 = sbr.rel (%p430) target = $region76
      $region75: #{_lambda_.1} parent=71 // pred_region
        %p433 = scmp.lt.s32.totalorder %s23, 1
        %s434 = scalar_select %p433, %s23, 1
        %s435 = smul.addr %s434, 32
        %s436 = smul.addr %s435, 8
        %s437 = scalar_lea.vmem %s0, %s436
      $region76: #{_lambda_.1} parent=71 // pred_fallthru
        _
    $region72: #{_lambda_.1} parent=5 // pred_fallthru
      _
    %p438 = scmp.le.s32.totalorder 1, %s23
    %p439 = scmp.lt.s32.totalorder %s23, 3
    %p440 = pnand %p438, %p439
    %p441 = pneg %p440
    // Predicated region
    $region77: #{_lambda_.1} parent=5 // pred_check
      _
    $region78: #{_lambda_.1} parent=5 // pred_check_branch
      %443 = sbr.rel (%p440) target = $region80
    $region79: #{_lambda_.1} parent=5 // pred_region
      %s444 = ssub.s32 %s23, 1
      %p445 = scmp.lt.s32.totalorder %s28, 1
      %s446 = scalar_select %p445, %s28, 1
      %s447 = smul.addr %s446, 32
      %s448 = smul.addr %s447, 8
      %s449 = scalar_lea.vmem %s0, %s448
      %p450 = pneg %p49
      %p451 = pneg %p46
      %p452 = pneg %p70
      %p453 = pneg %p67
      %p454 = pneg %p91
      %p455 = pneg %p88
      %p456 = pneg %p112
      %p457 = pneg %p109
      %p458 = pneg %p133
      %p459 = pneg %p130
      %p460 = pneg %p154
      %p461 = pneg %p151
      %p462 = pneg %p175
      %p463 = pneg %p172
      %p464 = pneg %p196
      %p465 = pneg %p193
      %p466 = pneg %p217
      %p467 = pneg %p214
      %p468 = pneg %p238
      %p469 = pneg %p235
      %p470 = pneg %p259
      %p471 = pneg %p256
      %p472 = pneg %p280
      %p473 = pneg %p277
      %p474 = pneg %p301
      %p475 = pneg %p298
      %p476 = pneg %p322
      %p477 = pneg %p319
      %p478 = pneg %p343
      %p479 = pneg %p340
      %p480 = pneg %p369
      %p481 = pneg %p366
      %p482 = scmp.lt.s32.totalorder %s28, 1
      %s483 = scalar_select %p482, %s28, 1
      %s484 = smul.addr %s483, 32
      %s485 = smul.addr %s484, 8
      %s486 = scalar_lea.vmem %s15, %s485
      %p487 = scmp.lt.s32.totalorder %s28, 1
      %s488 = scalar_select %p487, %s28, 1
      %s489 = smul.addr %s488, 32
      %s490 = smul.addr %s489, 8
      %s491 = scalar_lea.vmem %s0, %s490
      %p492 = scmp.lt.s32.totalorder %s28, 1
      %s493 = scalar_select %p492, %s28, 1
      %s494 = smul.addr %s493, 32
      %s495 = smul.addr %s494, 8
      %s496 = scalar_lea.vmem %s15, %s495
      %v498 = vld [vmem:[%s491] sm:$0xff]
      %v499 = vld [vmem:[%s491 + $0x8] sm:$0xff]
      %v500 = vld [vmem:[%s491 + $0x10] sm:$0xff]
      %v501 = vld [vmem:[%s491 + $0x18] sm:$0xff]
      %v502 = vld [vmem:[%s491 + $0x20] sm:$0xff]
      %v503 = vld [vmem:[%s491 + $0x28] sm:$0xff]
      %v504 = vld [vmem:[%s491 + $0x30] sm:$0xff]
      %v505 = vld [vmem:[%s491 + $0x38] sm:$0xff]
      %v506 = vld [vmem:[%s491 + $0x40] sm:$0xff]
      %v507 = vld [vmem:[%s491 + $0x48] sm:$0xff]
      %v508 = vld [vmem:[%s491 + $0x50] sm:$0xff]
      %v509 = vld [vmem:[%s491 + $0x58] sm:$0xff]
      %v510 = vld [vmem:[%s491 + $0x60] sm:$0xff]
      %v511 = vld [vmem:[%s491 + $0x68] sm:$0xff]
      %v512 = vld [vmem:[%s491 + $0x70] sm:$0xff]
      %v513 = vld [vmem:[%s491 + $0x78] sm:$0xff]
      %v514 = vld [vmem:[%s491 + $0x80] sm:$0xff]
      %v515 = vld [vmem:[%s491 + $0x88] sm:$0xff]
      %v516 = vld [vmem:[%s491 + $0x90] sm:$0xff]
      %v517 = vld [vmem:[%s491 + $0x98] sm:$0xff]
      %v518 = vld [vmem:[%s491 + $0xa0] sm:$0xff]
      %v519 = vld [vmem:[%s491 + $0xa8] sm:$0xff]
      %v520 = vld [vmem:[%s491 + $0xb0] sm:$0xff]
      %v521 = vld [vmem:[%s491 + $0xb8] sm:$0xff]
      %v522 = vld [vmem:[%s491 + $0xc0] sm:$0xff]
      %v523 = vld [vmem:[%s491 + $0xc8] sm:$0xff]
      %v524 = vld [vmem:[%s491 + $0xd0] sm:$0xff]
      %v525 = vld [vmem:[%s491 + $0xd8] sm:$0xff]
      %v526 = vld [vmem:[%s491 + $0xe0] sm:$0xff]
      %v527 = vld [vmem:[%s491 + $0xe8] sm:$0xff]
      %v528 = vld [vmem:[%s491 + $0xf0] sm:$0xff]
      %v529 = vld [vmem:[%s491 + $0xf8] sm:$0xff]
      %vm530 = vcmask 97280
      %531 = vst.msk [vmem:[#allocation2] sm:$0xff] %vm530, 0.0
      %532 = vst.msk [vmem:[#allocation2 + $0x8] sm:$0xff] %vm530, 0.0
      %vm533 = vcmask 91136
      %534 = vst.msk [vmem:[#allocation2 + $0x10] sm:$0x3] %vm533, 0.0
      %535 = vst.msk [vmem:[#allocation2 + $0x18] sm:$0xff] %vm530, 0.0
      %536 = vst.msk [vmem:[#allocation2 + $0x20] sm:$0xff] %vm530, 0.0
      %537 = vst.msk [vmem:[#allocation2 + $0x28] sm:$0x3] %vm533, 0.0
      %538 = vst.msk [vmem:[#allocation2 + $0x30] sm:$0xff] %vm530, 0.0
      %539 = vst.msk [vmem:[#allocation2 + $0x38] sm:$0xff] %vm530, 0.0
      %540 = vst.msk [vmem:[#allocation2 + $0x40] sm:$0x3] %vm533, 0.0
      %541 = vst.msk [vmem:[#allocation2 + $0x48] sm:$0xff] %vm530, 0.0
      %542 = vst.msk [vmem:[#allocation2 + $0x50] sm:$0xff] %vm530, 0.0
      %543 = vst.msk [vmem:[#allocation2 + $0x58] sm:$0x3] %vm533, 0.0
      %544 = vst.msk [vmem:[#allocation2 + $0x60] sm:$0xff] %vm530, 0.0
      %545 = vst.msk [vmem:[#allocation2 + $0x68] sm:$0xff] %vm530, 0.0
      %546 = vst.msk [vmem:[#allocation2 + $0x70] sm:$0x3] %vm533, 0.0
      %547 = vst.msk [vmem:[#allocation2 + $0x78] sm:$0xff] %vm530, 0.0
      %548 = vst.msk [vmem:[#allocation2 + $0x80] sm:$0xff] %vm530, 0.0
      %549 = vst.msk [vmem:[#allocation2 + $0x88] sm:$0x3] %vm533, 0.0
      %550 = vst.msk [vmem:[#allocation2 + $0x90] sm:$0xff] %vm530, 0.0
      %551 = vst.msk [vmem:[#allocation2 + $0x98] sm:$0xff] %vm530, 0.0
      %552 = vst.msk [vmem:[#allocation2 + $0xa0] sm:$0x3] %vm533, 0.0
      %553 = vst.msk [vmem:[#allocation2 + $0xa8] sm:$0xff] %vm530, 0.0
      %554 = vst.msk [vmem:[#allocation2 + $0xb0] sm:$0xff] %vm530, 0.0
      %555 = vst.msk [vmem:[#allocation2 + $0xb8] sm:$0x3] %vm533, 0.0
      %556 = vst.msk [vmem:[#allocation2 + $0xc0] sm:$0xff] %vm530, 0.0
      %557 = vst.msk [vmem:[#allocation2 + $0xc8] sm:$0xff] %vm530, 0.0
      %558 = vst.msk [vmem:[#allocation2 + $0xd0] sm:$0x3] %vm533, 0.0
      %559 = vst.msk [vmem:[#allocation2 + $0xd8] sm:$0xff] %vm530, 0.0
      %560 = vst.msk [vmem:[#allocation2 + $0xe0] sm:$0xff] %vm530, 0.0
      %561 = vst.msk [vmem:[#allocation2 + $0xe8] sm:$0x3] %vm533, 0.0
      %562 = vst.msk [vmem:[#allocation2 + $0xf0] sm:$0xff] %vm530, 0.0
      %563 = vst.msk [vmem:[#allocation2 + $0xf8] sm:$0xff] %vm530, 0.0
      %564 = vst.msk [vmem:[#allocation2 + $0x100] sm:$0x3] %vm533, 0.0
      %565 = vst.msk [vmem:[#allocation2 + $0x108] sm:$0xff] %vm530, 0.0
      %566 = vst.msk [vmem:[#allocation2 + $0x110] sm:$0xff] %vm530, 0.0
      %567 = vst.msk [vmem:[#allocation2 + $0x118] sm:$0x3] %vm533, 0.0
      %568 = vst.msk [vmem:[#allocation2 + $0x120] sm:$0xff] %vm530, 0.0
      %569 = vst.msk [vmem:[#allocation2 + $0x128] sm:$0xff] %vm530, 0.0
      %570 = vst.msk [vmem:[#allocation2 + $0x130] sm:$0x3] %vm533, 0.0
      %571 = vst.msk [vmem:[#allocation2 + $0x138] sm:$0xff] %vm530, 0.0
      %572 = vst.msk [vmem:[#allocation2 + $0x140] sm:$0xff] %vm530, 0.0
      %573 = vst.msk [vmem:[#allocation2 + $0x148] sm:$0x3] %vm533, 0.0
      %574 = vst.msk [vmem:[#allocation2 + $0x150] sm:$0xff] %vm530, 0.0
      %575 = vst.msk [vmem:[#allocation2 + $0x158] sm:$0xff] %vm530, 0.0
      %576 = vst.msk [vmem:[#allocation2 + $0x160] sm:$0x3] %vm533, 0.0
      %577 = vst.msk [vmem:[#allocation2 + $0x168] sm:$0xff] %vm530, 0.0
      %578 = vst.msk [vmem:[#allocation2 + $0x170] sm:$0xff] %vm530, 0.0
      %579 = vst.msk [vmem:[#allocation2 + $0x178] sm:$0x3] %vm533, 0.0
      %580 = vst.msk [vmem:[#allocation2 + $0x180] sm:$0xff] %vm530, 0.0
      %581 = vst.msk [vmem:[#allocation2 + $0x188] sm:$0xff] %vm530, 0.0
      %582 = vst.msk [vmem:[#allocation2 + $0x190] sm:$0x3] %vm533, 0.0
      %583 = vst.msk [vmem:[#allocation2 + $0x198] sm:$0xff] %vm530, 0.0
      %584 = vst.msk [vmem:[#allocation2 + $0x1a0] sm:$0xff] %vm530, 0.0
      %585 = vst.msk [vmem:[#allocation2 + $0x1a8] sm:$0x3] %vm533, 0.0
      %v586 = vpack.c.bf16 %v499, %v498
      %v587 = vpack.c.bf16 %v501, %v500
      %v588 = vpack.c.bf16 %v503, %v502
      %v589 = vpack.c.bf16 %v505, %v504
      %v590 = vpack.c.bf16 %v507, %v506
      %v591 = vpack.c.bf16 %v509, %v508
      %v592 = vpack.c.bf16 %v511, %v510
      %v593 = vpack.c.bf16 %v513, %v512
      %v594 = vpack.c.bf16 %v515, %v514
      %v595 = vpack.c.bf16 %v517, %v516
      %v596 = vpack.c.bf16 %v519, %v518
      %v597 = vpack.c.bf16 %v521, %v520
      %v598 = vpack.c.bf16 %v523, %v522
      %v599 = vpack.c.bf16 %v525, %v524
      %v600 = vpack.c.bf16 %v527, %v526
      %v601 = vpack.c.bf16 %v529, %v528
      %v602 = vld [vmem:[%s1] sm:$0xf]
      %v603 = vld [vmem:[%s1 + $0x4] sm:$0xf]
      %v604 = vld [vmem:[%s2] sm:$0x1]
      %v606 = vlaneseq
      %v607 = vshrl.u32 %v606, 7
      %v608 = vsub.s32 0, %v607
      %v609 = vrot.slane %v604, %v608
      %v613 = vunpack.c.l.b16 %v602
      %v614 = vunpack.c.l.b16 %v603
      %v615 = vpack.c.b16 %v614, %v613
      %vm617 = vcmask 130048
      %v619 = vsel %vm617, %v586, 0
      %v622 = vsel %vm617, %v587, 0
      %v625 = vsel %vm617, %v588, 0
      %v628 = vsel %vm617, %v589, 0
      %v631 = vsel %vm617, %v590, 0
      %v634 = vsel %vm617, %v591, 0
      %v637 = vsel %vm617, %v592, 0
      %v640 = vsel %vm617, %v593, 0
      %v643 = vsel %vm617, %v594, 0
      %v646 = vsel %vm617, %v595, 0
      %v649 = vsel %vm617, %v596, 0
      %v652 = vsel %vm617, %v597, 0
      %v655 = vsel %vm617, %v598, 0
      %v658 = vsel %vm617, %v599, 0
      %v661 = vsel %vm617, %v600, 0
      %v664 = vsel %vm617, %v601, 0
      %666 = vmatprep.subr.bf16.mxu0 0
      %667 = vmatpush1.bf16.msra.mxu0 %v615
      %668 = vmatprep.subr.bf16.mxu0 0
      %669 = vmatpush1.bf16.msra.mxu0 0
      %670 = vmatprep.subr.bf16.mxu0 0
      %671 = vmatpush1.bf16.msra.mxu0 0
      %672 = vmatprep.subr.bf16.mxu0 0
      %673 = vmatpush1.bf16.msra.mxu0 0
      %674 = vmatprep.subr.bf16.mxu0 0
      %675 = vmatpush1.bf16.msra.mxu0 0
      %676 = vmatprep.subr.bf16.mxu0 0
      %677 = vmatpush1.bf16.msra.mxu0 0
      %678 = vmatprep.subr.bf16.mxu0 0
      %679 = vmatpush1.bf16.msra.mxu0 0
      %680 = vmatprep.subr.bf16.mxu0 0
      %681 = vmatpush1.bf16.msra.mxu0 0
      %682 = vmatprep.subr.bf16.mxu0 0
      %683 = vmatpush1.bf16.msra.mxu0 0
      %684 = vmatprep.subr.bf16.mxu0 0
      %685 = vmatpush1.bf16.msra.mxu0 0
      %686 = vmatprep.subr.bf16.mxu0 0
      %687 = vmatpush1.bf16.msra.mxu0 0
      %688 = vmatprep.subr.bf16.mxu0 0
      %689 = vmatpush1.bf16.msra.mxu0 0
      %690 = vmatprep.subr.bf16.mxu0 0
      %691 = vmatpush1.bf16.msra.mxu0 0
      %692 = vmatprep.subr.bf16.mxu0 0
      %693 = vmatpush1.bf16.msra.mxu0 0
      %694 = vmatprep.subr.bf16.mxu0 0
      %695 = vmatpush1.bf16.msra.mxu0 0
      %696 = vmatprep.subr.bf16.mxu0 0
      %697 = vmatpush1.bf16.msra.mxu0 0
      %698 = vmatprep.mubr.bf16.mxu0 0
      %699 = vmatmul.mubr.bf16.gmra.mrb[0].mxu0 %v619
      %v700 = vpop.f32.mrb[0].mxu0
      %v701 = vadd.f32 %v609, %v700
      %v702 = vpop.f32.mrb[0].mxu0
      %v703 = vpop.f32.mrb[0].mxu0
      %v704 = vadd.f32 %v609, %v703
      %v705 = vpop.f32.mrb[0].mxu0
      %706 = vmatprep.mubr.bf16.mxu0 0
      %707 = vmatmul.mubr.bf16.gmra.mrb[0].mxu0 %v622
      %v708 = vpop.f32.mrb[0].mxu0
      %v709 = vadd.f32 %v609, %v708
      %v710 = vpop.f32.mrb[0].mxu0
      %v711 = vpop.f32.mrb[0].mxu0
      %v712 = vadd.f32 %v609, %v711
      %v713 = vpop.f32.mrb[0].mxu0
      %714 = vmatprep.mubr.bf16.mxu0 0
      %715 = vmatmul.mubr.bf16.gmra.mrb[0].mxu0 %v625
      %v716 = vpop.f32.mrb[0].mxu0
      %v717 = vadd.f32 %v609, %v716
      %v718 = vpop.f32.mrb[0].mxu0
      %v719 = vpop.f32.mrb[0].mxu0
      %v720 = vadd.f32 %v609, %v719
      %v721 = vpop.f32.mrb[0].mxu0
      %722 = vmatprep.mubr.bf16.mxu0 0
      %723 = vmatmul.mubr.bf16.gmra.mrb[0].mxu0 %v628
      %v724 = vpop.f32.mrb[0].mxu0
      %v725 = vadd.f32 %v609, %v724
      %v726 = vpop.f32.mrb[0].mxu0
      %v727 = vpop.f32.mrb[0].mxu0
      %v728 = vadd.f32 %v609, %v727
      %v729 = vpop.f32.mrb[0].mxu0
      %730 = vmatprep.mubr.bf16.mxu0 0
      %731 = vmatmul.mubr.bf16.gmra.mrb[0].mxu0 %v631
      %v732 = vpop.f32.mrb[0].mxu0
      %v733 = vadd.f32 %v609, %v732
      %v734 = vpop.f32.mrb[0].mxu0
      %v735 = vpop.f32.mrb[0].mxu0
      %v736 = vadd.f32 %v609, %v735
      %v737 = vpop.f32.mrb[0].mxu0
      %738 = vmatprep.mubr.bf16.mxu0 0
      %739 = vmatmul.mubr.bf16.gmra.mrb[0].mxu0 %v634
      %v740 = vpop.f32.mrb[0].mxu0
      %v741 = vadd.f32 %v609, %v740
      %v742 = vpop.f32.mrb[0].mxu0
      %v743 = vpop.f32.mrb[0].mxu0
      %v744 = vadd.f32 %v609, %v743
      %v745 = vpop.f32.mrb[0].mxu0
      %746 = vmatprep.mubr.bf16.mxu0 0
      %747 = vmatmul.mubr.bf16.gmra.mrb[0].mxu0 %v637
      %v748 = vpop.f32.mrb[0].mxu0
      %v749 = vadd.f32 %v609, %v748
      %v750 = vpop.f32.mrb[0].mxu0
      %v751 = vpop.f32.mrb[0].mxu0
      %v752 = vadd.f32 %v609, %v751
      %v753 = vpop.f32.mrb[0].mxu0
      %754 = vmatprep.mubr.bf16.mxu0 0
      %755 = vmatmul.mubr.bf16.gmra.mrb[0].mxu0 %v640
      %v756 = vpop.f32.mrb[0].mxu0
      %v757 = vadd.f32 %v609, %v756
      %v758 = vpop.f32.mrb[0].mxu0
      %v759 = vpop.f32.mrb[0].mxu0
      %v760 = vadd.f32 %v609, %v759
      %v761 = vpop.f32.mrb[0].mxu0
      %762 = vmatprep.mubr.bf16.mxu0 0
      %763 = vmatmul.mubr.bf16.gmra.mrb[0].mxu0 %v643
      %v764 = vpop.f32.mrb[0].mxu0
      %v765 = vadd.f32 %v609, %v764
      %v766 = vpop.f32.mrb[0].mxu0
      %v767 = vpop.f32.mrb[0].mxu0
      %v768 = vadd.f32 %v609, %v767
      %v769 = vpop.f32.mrb[0].mxu0
      %770 = vmatprep.mubr.bf16.mxu0 0
      %771 = vmatmul.mubr.bf16.gmra.mrb[0].mxu0 %v646
      %v772 = vpop.f32.mrb[0].mxu0
      %v773 = vadd.f32 %v609, %v772
      %v774 = vpop.f32.mrb[0].mxu0
      %v775 = vpop.f32.mrb[0].mxu0
      %v776 = vadd.f32 %v609, %v775
      %v777 = vpop.f32.mrb[0].mxu0
      %778 = vmatprep.mubr.bf16.mxu0 0
      %779 = vmatmul.mubr.bf16.gmra.mrb[0].mxu0 %v649
      %v780 = vpop.f32.mrb[0].mxu0
      %v781 = vadd.f32 %v609, %v780
      %v782 = vpop.f32.mrb[0].mxu0
      %v783 = vpop.f32.mrb[0].mxu0
      %v784 = vadd.f32 %v609, %v783
      %v785 = vpop.f32.mrb[0].mxu0
      %786 = vmatprep.mubr.bf16.mxu0 0
      %787 = vmatmul.mubr.bf16.gmra.mrb[0].mxu0 %v652
      %v788 = vpop.f32.mrb[0].mxu0
      %v789 = vadd.f32 %v609, %v788
      %v790 = vpop.f32.mrb[0].mxu0
      %v791 = vpop.f32.mrb[0].mxu0
      %v792 = vadd.f32 %v609, %v791
      %v793 = vpop.f32.mrb[0].mxu0
      %794 = vmatprep.mubr.bf16.mxu0 0
      %795 = vmatmul.mubr.bf16.gmra.mrb[0].mxu0 %v655
      %v796 = vpop.f32.mrb[0].mxu0
      %v797 = vadd.f32 %v609, %v796
      %v798 = vpop.f32.mrb[0].mxu0
      %v799 = vpop.f32.mrb[0].mxu0
      %v800 = vadd.f32 %v609, %v799
      %v801 = vpop.f32.mrb[0].mxu0
      %802 = vmatprep.mubr.bf16.mxu0 0
      %803 = vmatmul.mubr.bf16.gmra.mrb[0].mxu0 %v658
      %v804 = vpop.f32.mrb[0].mxu0
      %v805 = vadd.f32 %v609, %v804
      %v806 = vpop.f32.mrb[0].mxu0
      %v807 = vpop.f32.mrb[0].mxu0
      %v808 = vadd.f32 %v609, %v807
      %v809 = vpop.f32.mrb[0].mxu0
      %810 = vmatprep.mubr.bf16.mxu0 0
      %811 = vmatmul.mubr.bf16.gmra.mrb[0].mxu0 %v661
      %v812 = vpop.f32.mrb[0].mxu0
      %v813 = vadd.f32 %v609, %v812
      %v814 = vpop.f32.mrb[0].mxu0
      %v815 = vpop.f32.mrb[0].mxu0
      %v816 = vadd.f32 %v609, %v815
      %v817 = vpop.f32.mrb[0].mxu0
      %818 = vmatprep.mubr.bf16.mxu0 0
      %819 = vmatmul.mubr.bf16.gmra.mrb[0].mxu0 %v664
      %v820 = vpop.f32.mrb[0].mxu0
      %v821 = vadd.f32 %v609, %v820
      %v822 = vpop.f32.mrb[0].mxu0
      %v823 = vpop.f32.mrb[0].mxu0
      %v824 = vadd.f32 %v609, %v823
      %v825 = vpop.f32.mrb[0].mxu0
      %826 = vdwg.mxu0
      %v827 = vmax.f32 %v701, 0.0
      %v828 = vmax.f32 %v704, 0.0
      %v829 = vmax.f32 %v709, 0.0
      %v830 = vmax.f32 %v712, 0.0
      %v831 = vmax.f32 %v717, 0.0
      %v832 = vmax.f32 %v720, 0.0
      %v833 = vmax.f32 %v725, 0.0
      %v834 = vmax.f32 %v728, 0.0
      %v835 = vmax.f32 %v733, 0.0
      %v836 = vmax.f32 %v736, 0.0
      %v837 = vmax.f32 %v741, 0.0
      %v838 = vmax.f32 %v744, 0.0
      %v839 = vmax.f32 %v749, 0.0
      %v840 = vmax.f32 %v752, 0.0
      %v841 = vmax.f32 %v757, 0.0
      %v842 = vmax.f32 %v760, 0.0
      %v843 = vmax.f32 %v765, 0.0
      %v844 = vmax.f32 %v768, 0.0
      %v845 = vmax.f32 %v773, 0.0
      %v846 = vmax.f32 %v776, 0.0
      %v847 = vmax.f32 %v781, 0.0
      %v848 = vmax.f32 %v784, 0.0
      %v849 = vmax.f32 %v789, 0.0
      %v850 = vmax.f32 %v792, 0.0
      %v851 = vmax.f32 %v797, 0.0
      %v852 = vmax.f32 %v800, 0.0
      %v853 = vmax.f32 %v805, 0.0
      %v854 = vmax.f32 %v808, 0.0
      %v855 = vmax.f32 %v813, 0.0
      %v856 = vmax.f32 %v816, 0.0
      %v857 = vmax.f32 %v821, 0.0
      %v858 = vmax.f32 %v824, 0.0
      %891 = vrot.lane.b32.xlu0 %v827, 124
      %v892 = vpop.permute.xlu0 %891
      %893 = vrot.lane.b32.xlu0 %v828, 124
      %v894 = vpop.permute.xlu0 %893
      %895 = vrot.lane.b32.xlu0 %v829, 124
      %v896 = vpop.permute.xlu0 %895
      %897 = vrot.lane.b32.xlu0 %v830, 124
      %v898 = vpop.permute.xlu0 %897
      %899 = vrot.lane.b32.xlu0 %v831, 124
      %v900 = vpop.permute.xlu0 %899
      %901 = vrot.lane.b32.xlu0 %v832, 124
      %v902 = vpop.permute.xlu0 %901
      %903 = vrot.lane.b32.xlu0 %v833, 124
      %v904 = vpop.permute.xlu0 %903
      %905 = vrot.lane.b32.xlu0 %v834, 124
      %v906 = vpop.permute.xlu0 %905
      %907 = vrot.lane.b32.xlu0 %v835, 124
      %v908 = vpop.permute.xlu0 %907
      %909 = vrot.lane.b32.xlu0 %v836, 124
      %v910 = vpop.permute.xlu0 %909
      %911 = vrot.lane.b32.xlu0 %v837, 124
      %v912 = vpop.permute.xlu0 %911
      %913 = vrot.lane.b32.xlu0 %v838, 124
      %v914 = vpop.permute.xlu0 %913
      %915 = vrot.lane.b32.xlu0 %v839, 124
      %v916 = vpop.permute.xlu0 %915
      %917 = vrot.lane.b32.xlu0 %v840, 124
      %v918 = vpop.permute.xlu0 %917
      %919 = vrot.lane.b32.xlu0 %v841, 124
      %v920 = vpop.permute.xlu0 %919
      %921 = vrot.lane.b32.xlu0 %v842, 124
      %v922 = vpop.permute.xlu0 %921
      %923 = vrot.lane.b32.xlu0 %v843, 124
      %v924 = vpop.permute.xlu0 %923
      %925 = vrot.lane.b32.xlu0 %v844, 124
      %v926 = vpop.permute.xlu0 %925
      %927 = vrot.lane.b32.xlu0 %v845, 124
      %v928 = vpop.permute.xlu0 %927
      %929 = vrot.lane.b32.xlu0 %v846, 124
      %v930 = vpop.permute.xlu0 %929
      %931 = vrot.lane.b32.xlu0 %v847, 124
      %v932 = vpop.permute.xlu0 %931
      %933 = vrot.lane.b32.xlu0 %v848, 124
      %v934 = vpop.permute.xlu0 %933
      %935 = vrot.lane.b32.xlu0 %v849, 124
      %v936 = vpop.permute.xlu0 %935
      %937 = vrot.lane.b32.xlu0 %v850, 124
      %v938 = vpop.permute.xlu0 %937
      %939 = vrot.lane.b32.xlu0 %v851, 124
      %v940 = vpop.permute.xlu0 %939
      %941 = vrot.lane.b32.xlu0 %v852, 124
      %v942 = vpop.permute.xlu0 %941
      %943 = vrot.lane.b32.xlu0 %v853, 124
      %v944 = vpop.permute.xlu0 %943
      %945 = vrot.lane.b32.xlu0 %v854, 124
      %v946 = vpop.permute.xlu0 %945
      %947 = vrot.lane.b32.xlu0 %v855, 124
      %v948 = vpop.permute.xlu0 %947
      %949 = vrot.lane.b32.xlu0 %v856, 124
      %v950 = vpop.permute.xlu0 %949
      %951 = vrot.lane.b32.xlu0 %v857, 124
      %v952 = vpop.permute.xlu0 %951
      %953 = vrot.lane.b32.xlu0 %v858, 124
      %v954 = vpop.permute.xlu0 %953
      %s987 = scalar_lea.vmem [#allocation2], 24
      %988 = vst.msk [vmem:[%s987 + $0x1] sm:$0xff] %vm530, %v892
      %989 = vst.msk [vmem:[%s987 + $0x9] sm:$0xff] %vm530, %v894
      %990 = vst.msk [vmem:[%s987 + $0x19] sm:$0xff] %vm530, %v896
      %991 = vst.msk [vmem:[%s987 + $0x21] sm:$0xff] %vm530, %v898
      %992 = vst.msk [vmem:[%s987 + $0x31] sm:$0xff] %vm530, %v900
      %993 = vst.msk [vmem:[%s987 + $0x39] sm:$0xff] %vm530, %v902
      %994 = vst.msk [vmem:[%s987 + $0x49] sm:$0xff] %vm530, %v904
      %995 = vst.msk [vmem:[%s987 + $0x51] sm:$0xff] %vm530, %v906
      %996 = vst.msk [vmem:[%s987 + $0x61] sm:$0xff] %vm530, %v908
      %997 = vst.msk [vmem:[%s987 + $0x69] sm:$0xff] %vm530, %v910
      %998 = vst.msk [vmem:[%s987 + $0x79] sm:$0xff] %vm530, %v912
      %999 = vst.msk [vmem:[%s987 + $0x81] sm:$0xff] %vm530, %v914
      %1000 = vst.msk [vmem:[%s987 + $0x91] sm:$0xff] %vm530, %v916
      %1001 = vst.msk [vmem:[%s987 + $0x99] sm:$0xff] %vm530, %v918
      %1002 = vst.msk [vmem:[%s987 + $0xa9] sm:$0xff] %vm530, %v920
      %1003 = vst.msk [vmem:[%s987 + $0xb1] sm:$0xff] %vm530, %v922
      %1004 = vst.msk [vmem:[%s987 + $0xc1] sm:$0xff] %vm530, %v924
      %1005 = vst.msk [vmem:[%s987 + $0xc9] sm:$0xff] %vm530, %v926
      %1006 = vst.msk [vmem:[%s987 + $0xd9] sm:$0xff] %vm530, %v928
      %1007 = vst.msk [vmem:[%s987 + $0xe1] sm:$0xff] %vm530, %v930
      %1008 = vst.msk [vmem:[%s987 + $0xf1] sm:$0xff] %vm530, %v932
      %1009 = vst.msk [vmem:[%s987 + $0xf9] sm:$0xff] %vm530, %v934
      %1010 = vst.msk [vmem:[%s987 + $0x109] sm:$0xff] %vm530, %v936
      %1011 = vst.msk [vmem:[%s987 + $0x111] sm:$0xff] %vm530, %v938
      %1012 = vst.msk [vmem:[%s987 + $0x121] sm:$0xff] %vm530, %v940
      %1013 = vst.msk [vmem:[%s987 + $0x129] sm:$0xff] %vm530, %v942
      %1014 = vst.msk [vmem:[%s987 + $0x139] sm:$0xff] %vm530, %v944
      %1015 = vst.msk [vmem:[%s987 + $0x141] sm:$0xff] %vm530, %v946
      %1016 = vst.msk [vmem:[%s987 + $0x151] sm:$0xff] %vm530, %v948
      %1017 = vst.msk [vmem:[%s987 + $0x159] sm:$0xff] %vm530, %v950
      %1018 = vst.msk [vmem:[%s987 + $0x169] sm:$0xff] %vm530, %v952
      %1019 = vst.msk [vmem:[%s987 + $0x171] sm:$0xff] %vm530, %v954
      %v1020 = vld [vmem:[#allocation2] sm:$0xff]
      %v1021 = vld [vmem:[#allocation2 + $0x8] sm:$0xff]
      %v1022 = vld [vmem:[#allocation2 + $0x18] sm:$0xff]
      %v1023 = vld [vmem:[#allocation2 + $0x20] sm:$0xff]
      %v1024 = vld [vmem:[#allocation2 + $0x30] sm:$0xff]
      %v1025 = vld [vmem:[#allocation2 + $0x38] sm:$0xff]
      %v1026 = vld [vmem:[#allocation2 + $0x48] sm:$0xff]
      %v1027 = vld [vmem:[#allocation2 + $0x50] sm:$0xff]
      %v1028 = vld [vmem:[#allocation2 + $0x60] sm:$0xff]
      %v1029 = vld [vmem:[#allocation2 + $0x68] sm:$0xff]
      %v1030 = vld [vmem:[#allocation2 + $0x78] sm:$0xff]
      %v1031 = vld [vmem:[#allocation2 + $0x80] sm:$0xff]
      %v1032 = vld [vmem:[#allocation2 + $0x90] sm:$0xff]
      %v1033 = vld [vmem:[#allocation2 + $0x98] sm:$0xff]
      %v1034 = vld [vmem:[#allocation2 + $0xa8] sm:$0xff]
      %v1035 = vld [vmem:[#allocation2 + $0xb0] sm:$0xff]
      %v1036 = vld [vmem:[#allocation2 + $0xc0] sm:$0xff]
      %v1037 = vld [vmem:[#allocation2 + $0xc8] sm:$0xff]
      %v1038 = vld [vmem:[#allocation2 + $0xd8] sm:$0xff]
      %v1039 = vld [vmem:[#allocation2 + $0xe0] sm:$0xff]
      %v1040 = vld [vmem:[#allocation2 + $0xf0] sm:$0xff]
      %v1041 = vld [vmem:[#allocation2 + $0xf8] sm:$0xff]
      %v1042 = vld [vmem:[#allocation2 + $0x108] sm:$0xff]
      %v1043 = vld [vmem:[#allocation2 + $0x110] sm:$0xff]
      %v1044 = vld [vmem:[#allocation2 + $0x120] sm:$0xff]
      %v1045 = vld [vmem:[#allocation2 + $0x128] sm:$0xff]
      %v1046 = vld [vmem:[#allocation2 + $0x138] sm:$0xff]
      %v1047 = vld [vmem:[#allocation2 + $0x140] sm:$0xff]
      %v1048 = vld [vmem:[#allocation2 + $0x150] sm:$0xff]
      %v1049 = vld [vmem:[#allocation2 + $0x158] sm:$0xff]
      %v1050 = vld [vmem:[#allocation2 + $0x168] sm:$0xff]
      %v1051 = vld [vmem:[#allocation2 + $0x170] sm:$0xff]
      %v1052 = vpack.c.bf16 %v1021, %v1020
      %v1053 = vpack.c.bf16 %v1023, %v1022
      %v1054 = vpack.c.bf16 %v1025, %v1024
      %v1055 = vpack.c.bf16 %v1027, %v1026
      %v1056 = vpack.c.bf16 %v1029, %v1028
      %v1057 = vpack.c.bf16 %v1031, %v1030
      %v1058 = vpack.c.bf16 %v1033, %v1032
      %v1059 = vpack.c.bf16 %v1035, %v1034
      %v1060 = vpack.c.bf16 %v1037, %v1036
      %v1061 = vpack.c.bf16 %v1039, %v1038
      %v1062 = vpack.c.bf16 %v1041, %v1040
      %v1063 = vpack.c.bf16 %v1043, %v1042
      %v1064 = vpack.c.bf16 %v1045, %v1044
      %v1065 = vpack.c.bf16 %v1047, %v1046
      %v1066 = vpack.c.bf16 %v1049, %v1048
      %v1067 = vpack.c.bf16 %v1051, %v1050
      %v1068 = vld [vmem:[%s3] sm:$0xf]
      %v1069 = vld [vmem:[%s3 + $0x4] sm:$0x3]
      %v1070 = vld [vmem:[#allocation2 + $0x1] sm:$0xff]
      %v1071 = vld [vmem:[#allocation2 + $0x9] sm:$0xff]
      %v1072 = vld [vmem:[#allocation2 + $0x19] sm:$0xff]
      %v1073 = vld [vmem:[#allocation2 + $0x21] sm:$0xff]
      %v1074 = vld [vmem:[#allocation2 + $0x31] sm:$0xff]
      %v1075 = vld [vmem:[#allocation2 + $0x39] sm:$0xff]
      %v1076 = vld [vmem:[#allocation2 + $0x49] sm:$0xff]
      %v1077 = vld [vmem:[#allocation2 + $0x51] sm:$0xff]
      %v1078 = vld [vmem:[#allocation2 + $0x61] sm:$0xff]
      %v1079 = vld [vmem:[#allocation2 + $0x69] sm:$0xff]
      %v1080 = vld [vmem:[#allocation2 + $0x79] sm:$0xff]
      %v1081 = vld [vmem:[#allocation2 + $0x81] sm:$0xff]
      %v1082 = vld [vmem:[#allocation2 + $0x91] sm:$0xff]
      %v1083 = vld [vmem:[#allocation2 + $0x99] sm:$0xff]
      %v1084 = vld [vmem:[#allocation2 + $0xa9] sm:$0xff]
      %v1085 = vld [vmem:[#allocation2 + $0xb1] sm:$0xff]
      %v1086 = vld [vmem:[#allocation2 + $0xc1] sm:$0xff]
      %v1087 = vld [vmem:[#allocation2 + $0xc9] sm:$0xff]
      %v1088 = vld [vmem:[#allocation2 + $0xd9] sm:$0xff]
      %v1089 = vld [vmem:[#allocation2 + $0xe1] sm:$0xff]
      %v1090 = vld [vmem:[#allocation2 + $0xf1] sm:$0xff]
      %v1091 = vld [vmem:[#allocation2 + $0xf9] sm:$0xff]
      %v1092 = vld [vmem:[#allocation2 + $0x109] sm:$0xff]
      %v1093 = vld [vmem:[#allocation2 + $0x111] sm:$0xff]
      %v1094 = vld [vmem:[#allocation2 + $0x121] sm:$0xff]
      %v1095 = vld [vmem:[#allocation2 + $0x129] sm:$0xff]
      %v1096 = vld [vmem:[#allocation2 + $0x139] sm:$0xff]
      %v1097 = vld [vmem:[#allocation2 + $0x141] sm:$0xff]
      %v1098 = vld [vmem:[#allocation2 + $0x151] sm:$0xff]
      %v1099 = vld [vmem:[#allocation2 + $0x159] sm:$0xff]
      %v1100 = vld [vmem:[#allocation2 + $0x169] sm:$0xff]
      %v1101 = vld [vmem:[#allocation2 + $0x171] sm:$0xff]
      %v1102 = vpack.c.bf16 %v1071, %v1070
      %v1103 = vpack.c.bf16 %v1073, %v1072
      %v1104 = vpack.c.bf16 %v1075, %v1074
      %v1105 = vpack.c.bf16 %v1077, %v1076
      %v1106 = vpack.c.bf16 %v1079, %v1078
      %v1107 = vpack.c.bf16 %v1081, %v1080
      %v1108 = vpack.c.bf16 %v1083, %v1082
      %v1109 = vpack.c.bf16 %v1085, %v1084
      %v1110 = vpack.c.bf16 %v1087, %v1086
      %v1111 = vpack.c.bf16 %v1089, %v1088
      %v1112 = vpack.c.bf16 %v1091, %v1090
      %v1113 = vpack.c.bf16 %v1093, %v1092
      %v1114 = vpack.c.bf16 %v1095, %v1094
      %v1115 = vpack.c.bf16 %v1097, %v1096
      %v1116 = vpack.c.bf16 %v1099, %v1098
      %v1117 = vpack.c.bf16 %v1101, %v1100
      %s1118 = scalar_lea.vmem %s3, 8
      %v1119 = vld [vmem:[%s1118] sm:$0xf]
      %v1120 = vld [vmem:[%s1118 + $0x4] sm:$0x3]
      %v1123 = vunpack.c.l.b16 %v1119
      %v1124 = vunpack.c.l.b16 %v1120
      %v1125 = vpack.c.b16 %v1124, %v1123
      %v1127 = vsel %vm530, %v1102, 0
      %v1130 = vsel %vm530, %v1103, 0
      %v1133 = vsel %vm530, %v1104, 0
      %v1136 = vsel %vm530, %v1105, 0
      %v1139 = vsel %vm530, %v1106, 0
      %v1142 = vsel %vm530, %v1107, 0
      %v1145 = vsel %vm530, %v1108, 0
      %v1148 = vsel %vm530, %v1109, 0
      %v1151 = vsel %vm530, %v1110, 0
      %v1154 = vsel %vm530, %v1111, 0
      %v1157 = vsel %vm530, %v1112, 0
      %v1160 = vsel %vm530, %v1113, 0
      %v1163 = vsel %vm530, %v1114, 0
      %v1166 = vsel %vm530, %v1115, 0
      %v1169 = vsel %vm530, %v1116, 0
      %v1172 = vsel %vm530, %v1117, 0
      %vm1174 = vcmask 1045504
      %v1176 = vsel %vm1174, %v1125, 0
      %1178 = vmatprep.subr.bf16.mxu0 0
      %1179 = vmatpush1.bf16.msra.mxu0 %v1176
      %1180 = vmatprep.subr.bf16.mxu0 0
      %1181 = vmatpush1.bf16.msra.mxu0 0
      %1182 = vmatprep.subr.bf16.mxu0 0
      %1183 = vmatpush1.bf16.msra.mxu0 0
      %1184 = vmatprep.subr.bf16.mxu0 0
      %1185 = vmatpush1.bf16.msra.mxu0 0
      %1186 = vmatprep.subr.bf16.mxu0 0
      %1187 = vmatpush1.bf16.msra.mxu0 0
      %1188 = vmatprep.subr.bf16.mxu0 0
      %1189 = vmatpush1.bf16.msra.mxu0 0
      %1190 = vmatprep.subr.bf16.mxu0 0
      %1191 = vmatpush1.bf16.msra.mxu0 0
      %1192 = vmatprep.subr.bf16.mxu0 0
      %1193 = vmatpush1.bf16.msra.mxu0 0
      %1194 = vmatprep.subr.bf16.mxu0 0
      %1195 = vmatpush1.bf16.msra.mxu0 0
      %1196 = vmatprep.subr.bf16.mxu0 0
      %1197 = vmatpush1.bf16.msra.mxu0 0
      %1198 = vmatprep.subr.bf16.mxu0 0
      %1199 = vmatpush1.bf16.msra.mxu0 0
      %1200 = vmatprep.subr.bf16.mxu0 0
      %1201 = vmatpush1.bf16.msra.mxu0 0
      %1202 = vmatprep.subr.bf16.mxu0 0
      %1203 = vmatpush1.bf16.msra.mxu0 0
      %1204 = vmatprep.subr.bf16.mxu0 0
      %1205 = vmatpush1.bf16.msra.mxu0 0
      %1206 = vmatprep.subr.bf16.mxu0 0
      %1207 = vmatpush1.bf16.msra.mxu0 0
      %1208 = vmatprep.subr.bf16.mxu0 0
      %1209 = vmatpush1.bf16.msra.mxu0 0
      %1210 = vmatprep.mubr.bf16.mxu0 0
      %1211 = vmatmul.mubr.bf16.gmra.mrb[0].mxu0 %v1127
      %v1212 = vpop.f32.mrb[0].mxu0
      %v1213 = vadd.f32 0.0, %v1212
      %v1214 = vpop.f32.mrb[0].mxu0
      %v1215 = vpop.f32.mrb[0].mxu0
      %v1216 = vadd.f32 0.0, %v1215
      %v1217 = vpop.f32.mrb[0].mxu0
      %1218 = vmatprep.mubr.bf16.mxu0 0
      %1219 = vmatmul.mubr.bf16.gmra.mrb[0].mxu0 %v1130
      %v1220 = vpop.f32.mrb[0].mxu0
      %v1221 = vadd.f32 0.0, %v1220
      %v1222 = vpop.f32.mrb[0].mxu0
      %v1223 = vpop.f32.mrb[0].mxu0
      %v1224 = vadd.f32 0.0, %v1223
      %v1225 = vpop.f32.mrb[0].mxu0
      %1226 = vmatprep.mubr.bf16.mxu0 0
      %1227 = vmatmul.mubr.bf16.gmra.mrb[0].mxu0 %v1133
      %v1228 = vpop.f32.mrb[0].mxu0
      %v1229 = vadd.f32 0.0, %v1228
      %v1230 = vpop.f32.mrb[0].mxu0
      %v1231 = vpop.f32.mrb[0].mxu0
      %v1232 = vadd.f32 0.0, %v1231
      %v1233 = vpop.f32.mrb[0].mxu0
      %1234 = vmatprep.mubr.bf16.mxu0 0
      %1235 = vmatmul.mubr.bf16.gmra.mrb[0].mxu0 %v1136
      %v1236 = vpop.f32.mrb[0].mxu0
      %v1237 = vadd.f32 0.0, %v1236
      %v1238 = vpop.f32.mrb[0].mxu0
      %v1239 = vpop.f32.mrb[0].mxu0
      %v1240 = vadd.f32 0.0, %v1239
      %v1241 = vpop.f32.mrb[0].mxu0
      %1242 = vmatprep.mubr.bf16.mxu0 0
      %1243 = vmatmul.mubr.bf16.gmra.mrb[0].mxu0 %v1139
      %v1244 = vpop.f32.mrb[0].mxu0
      %v1245 = vadd.f32 0.0, %v1244
      %v1246 = vpop.f32.mrb[0].mxu0
      %v1247 = vpop.f32.mrb[0].mxu0
      %v1248 = vadd.f32 0.0, %v1247
      %v1249 = vpop.f32.mrb[0].mxu0
      %1250 = vmatprep.mubr.bf16.mxu0 0
      %1251 = vmatmul.mubr.bf16.gmra.mrb[0].mxu0 %v1142
      %v1252 = vpop.f32.mrb[0].mxu0
      %v1253 = vadd.f32 0.0, %v1252
      %v1254 = vpop.f32.mrb[0].mxu0
      %v1255 = vpop.f32.mrb[0].mxu0
      %v1256 = vadd.f32 0.0, %v1255
      %v1257 = vpop.f32.mrb[0].mxu0
      %1258 = vmatprep.mubr.bf16.mxu0 0
      %1259 = vmatmul.mubr.bf16.gmra.mrb[0].mxu0 %v1145
      %v1260 = vpop.f32.mrb[0].mxu0
      %v1261 = vadd.f32 0.0, %v1260
      %v1262 = vpop.f32.mrb[0].mxu0
      %v1263 = vpop.f32.mrb[0].mxu0
      %v1264 = vadd.f32 0.0, %v1263
      %v1265 = vpop.f32.mrb[0].mxu0
      %1266 = vmatprep.mubr.bf16.mxu0 0
      %1267 = vmatmul.mubr.bf16.gmra.mrb[0].mxu0 %v1148
      %v1268 = vpop.f32.mrb[0].mxu0
      %v1269 = vadd.f32 0.0, %v1268
      %v1270 = vpop.f32.mrb[0].mxu0
      %v1271 = vpop.f32.mrb[0].mxu0
      %v1272 = vadd.f32 0.0, %v1271
      %v1273 = vpop.f32.mrb[0].mxu0
      %1274 = vmatprep.mubr.bf16.mxu0 0
      %1275 = vmatmul.mubr.bf16.gmra.mrb[0].mxu0 %v1151
      %v1276 = vpop.f32.mrb[0].mxu0
      %v1277 = vadd.f32 0.0, %v1276
      %v1278 = vpop.f32.mrb[0].mxu0
      %v1279 = vpop.f32.mrb[0].mxu0
      %v1280 = vadd.f32 0.0, %v1279
      %v1281 = vpop.f32.mrb[0].mxu0
      %1282 = vmatprep.mubr.bf16.mxu0 0
      %1283 = vmatmul.mubr.bf16.gmra.mrb[0].mxu0 %v1154
      %v1284 = vpop.f32.mrb[0].mxu0
      %v1285 = vadd.f32 0.0, %v1284
      %v1286 = vpop.f32.mrb[0].mxu0
      %v1287 = vpop.f32.mrb[0].mxu0
      %v1288 = vadd.f32 0.0, %v1287
      %v1289 = vpop.f32.mrb[0].mxu0
      %1290 = vmatprep.mubr.bf16.mxu0 0
      %1291 = vmatmul.mubr.bf16.gmra.mrb[0].mxu0 %v1157
      %v1292 = vpop.f32.mrb[0].mxu0
      %v1293 = vadd.f32 0.0, %v1292
      %v1294 = vpop.f32.mrb[0].mxu0
      %v1295 = vpop.f32.mrb[0].mxu0
      %v1296 = vadd.f32 0.0, %v1295
      %v1297 = vpop.f32.mrb[0].mxu0
      %1298 = vmatprep.mubr.bf16.mxu0 0
      %1299 = vmatmul.mubr.bf16.gmra.mrb[0].mxu0 %v1160
      %v1300 = vpop.f32.mrb[0].mxu0
      %v1301 = vadd.f32 0.0, %v1300
      %v1302 = vpop.f32.mrb[0].mxu0
      %v1303 = vpop.f32.mrb[0].mxu0
      %v1304 = vadd.f32 0.0, %v1303
      %v1305 = vpop.f32.mrb[0].mxu0
      %1306 = vmatprep.mubr.bf16.mxu0 0
      %1307 = vmatmul.mubr.bf16.gmra.mrb[0].mxu0 %v1163
      %v1308 = vpop.f32.mrb[0].mxu0
      %v1309 = vadd.f32 0.0, %v1308
      %v1310 = vpop.f32.mrb[0].mxu0
      %v1311 = vpop.f32.mrb[0].mxu0
      %v1312 = vadd.f32 0.0, %v1311
      %v1313 = vpop.f32.mrb[0].mxu0
      %1314 = vmatprep.mubr.bf16.mxu0 0
      %1315 = vmatmul.mubr.bf16.gmra.mrb[0].mxu0 %v1166
      %v1316 = vpop.f32.mrb[0].mxu0
      %v1317 = vadd.f32 0.0, %v1316
      %v1318 = vpop.f32.mrb[0].mxu0
      %v1319 = vpop.f32.mrb[0].mxu0
      %v1320 = vadd.f32 0.0, %v1319
      %v1321 = vpop.f32.mrb[0].mxu0
      %1322 = vmatprep.mubr.bf16.mxu0 0
      %1323 = vmatmul.mubr.bf16.gmra.mrb[0].mxu0 %v1169
      %v1324 = vpop.f32.mrb[0].mxu0
      %v1325 = vadd.f32 0.0, %v1324
      %v1326 = vpop.f32.mrb[0].mxu0
      %v1327 = vpop.f32.mrb[0].mxu0
      %v1328 = vadd.f32 0.0, %v1327
      %v1329 = vpop.f32.mrb[0].mxu0
      %1330 = vmatprep.mubr.bf16.mxu0 0
      %1331 = vmatmul.mubr.bf16.gmra.mrb[0].mxu0 %v1172
      %v1332 = vpop.f32.mrb[0].mxu0
      %v1333 = vadd.f32 0.0, %v1332
      %v1334 = vpop.f32.mrb[0].mxu0
      %v1335 = vpop.f32.mrb[0].mxu0
      %v1336 = vadd.f32 0.0, %v1335
      %v1337 = vpop.f32.mrb[0].mxu0
      %1338 = vdwg.mxu0
      %v1341 = vunpack.c.l.b16 %v1068
      %v1342 = vunpack.c.l.b16 %v1069
      %v1343 = vpack.c.b16 %v1342, %v1341
      %v1345 = vsel %vm530, %v1052, 0
      %v1348 = vsel %vm530, %v1053, 0
      %v1351 = vsel %vm530, %v1054, 0
      %v1354 = vsel %vm530, %v1055, 0
      %v1357 = vsel %vm530, %v1056, 0
      %v1360 = vsel %vm530, %v1057, 0
      %v1363 = vsel %vm530, %v1058, 0
      %v1366 = vsel %vm530, %v1059, 0
      %v1369 = vsel %vm530, %v1060, 0
      %v1372 = vsel %vm530, %v1061, 0
      %v1375 = vsel %vm530, %v1062, 0
      %v1378 = vsel %vm530, %v1063, 0
      %v1381 = vsel %vm530, %v1064, 0
      %v1384 = vsel %vm530, %v1065, 0
      %v1387 = vsel %vm530, %v1066, 0
      %v1390 = vsel %vm530, %v1067, 0
      %v1393 = vsel %vm1174, %v1343, 0
      %1395 = vmatprep.subr.bf16.mxu0 0
      %1396 = vmatpush1.bf16.msra.mxu0 %v1393
      %1397 = vmatprep.subr.bf16.mxu0 0
      %1398 = vmatpush1.bf16.msra.mxu0 0
      %1399 = vmatprep.subr.bf16.mxu0 0
      %1400 = vmatpush1.bf16.msra.mxu0 0
      %1401 = vmatprep.subr.bf16.mxu0 0
      %1402 = vmatpush1.bf16.msra.mxu0 0
      %1403 = vmatprep.subr.bf16.mxu0 0
      %1404 = vmatpush1.bf16.msra.mxu0 0
      %1405 = vmatprep.subr.bf16.mxu0 0
      %1406 = vmatpush1.bf16.msra.mxu0 0
      %1407 = vmatprep.subr.bf16.mxu0 0
      %1408 = vmatpush1.bf16.msra.mxu0 0
      %1409 = vmatprep.subr.bf16.mxu0 0
      %1410 = vmatpush1.bf16.msra.mxu0 0
      %1411 = vmatprep.subr.bf16.mxu0 0
      %1412 = vmatpush1.bf16.msra.mxu0 0
      %1413 = vmatprep.subr.bf16.mxu0 0
      %1414 = vmatpush1.bf16.msra.mxu0 0
      %1415 = vmatprep.subr.bf16.mxu0 0
      %1416 = vmatpush1.bf16.msra.mxu0 0
      %1417 = vmatprep.subr.bf16.mxu0 0
      %1418 = vmatpush1.bf16.msra.mxu0 0
      %1419 = vmatprep.subr.bf16.mxu0 0
      %1420 = vmatpush1.bf16.msra.mxu0 0
      %1421 = vmatprep.subr.bf16.mxu0 0
      %1422 = vmatpush1.bf16.msra.mxu0 0
      %1423 = vmatprep.subr.bf16.mxu0 0
      %1424 = vmatpush1.bf16.msra.mxu0 0
      %1425 = vmatprep.subr.bf16.mxu0 0
      %1426 = vmatpush1.bf16.msra.mxu0 0
      %1427 = vmatprep.mubr.bf16.mxu0 0
      %1428 = vmatmul.mubr.bf16.gmra.mrb[0].mxu0 %v1345
      %v1429 = vpop.f32.mrb[0].mxu0
      %v1430 = vadd.f32 %v1213, %v1429
      %v1431 = vpop.f32.mrb[0].mxu0
      %v1432 = vpop.f32.mrb[0].mxu0
      %v1433 = vadd.f32 %v1216, %v1432
      %v1434 = vpop.f32.mrb[0].mxu0
      %1435 = vmatprep.mubr.bf16.mxu0 0
      %1436 = vmatmul.mubr.bf16.gmra.mrb[0].mxu0 %v1348
      %v1437 = vpop.f32.mrb[0].mxu0
      %v1438 = vadd.f32 %v1221, %v1437
      %v1439 = vpop.f32.mrb[0].mxu0
      %v1440 = vpop.f32.mrb[0].mxu0
      %v1441 = vadd.f32 %v1224, %v1440
      %v1442 = vpop.f32.mrb[0].mxu0
      %1443 = vmatprep.mubr.bf16.mxu0 0
      %1444 = vmatmul.mubr.bf16.gmra.mrb[0].mxu0 %v1351
      %v1445 = vpop.f32.mrb[0].mxu0
      %v1446 = vadd.f32 %v1229, %v1445
      %v1447 = vpop.f32.mrb[0].mxu0
      %v1448 = vpop.f32.mrb[0].mxu0
      %v1449 = vadd.f32 %v1232, %v1448
      %v1450 = vpop.f32.mrb[0].mxu0
      %1451 = vmatprep.mubr.bf16.mxu0 0
      %1452 = vmatmul.mubr.bf16.gmra.mrb[0].mxu0 %v1354
      %v1453 = vpop.f32.mrb[0].mxu0
      %v1454 = vadd.f32 %v1237, %v1453
      %v1455 = vpop.f32.mrb[0].mxu0
      %v1456 = vpop.f32.mrb[0].mxu0
      %v1457 = vadd.f32 %v1240, %v1456
      %v1458 = vpop.f32.mrb[0].mxu0
      %1459 = vmatprep.mubr.bf16.mxu0 0
      %1460 = vmatmul.mubr.bf16.gmra.mrb[0].mxu0 %v1357
      %v1461 = vpop.f32.mrb[0].mxu0
      %v1462 = vadd.f32 %v1245, %v1461
      %v1463 = vpop.f32.mrb[0].mxu0
      %v1464 = vpop.f32.mrb[0].mxu0
      %v1465 = vadd.f32 %v1248, %v1464
      %v1466 = vpop.f32.mrb[0].mxu0
      %1467 = vmatprep.mubr.bf16.mxu0 0
      %1468 = vmatmul.mubr.bf16.gmra.mrb[0].mxu0 %v1360
      %v1469 = vpop.f32.mrb[0].mxu0
      %v1470 = vadd.f32 %v1253, %v1469
      %v1471 = vpop.f32.mrb[0].mxu0
      %v1472 = vpop.f32.mrb[0].mxu0
      %v1473 = vadd.f32 %v1256, %v1472
      %v1474 = vpop.f32.mrb[0].mxu0
      %1475 = vmatprep.mubr.bf16.mxu0 0
      %1476 = vmatmul.mubr.bf16.gmra.mrb[0].mxu0 %v1363
      %v1477 = vpop.f32.mrb[0].mxu0
      %v1478 = vadd.f32 %v1261, %v1477
      %v1479 = vpop.f32.mrb[0].mxu0
      %v1480 = vpop.f32.mrb[0].mxu0
      %v1481 = vadd.f32 %v1264, %v1480
      %v1482 = vpop.f32.mrb[0].mxu0
      %1483 = vmatprep.mubr.bf16.mxu0 0
      %1484 = vmatmul.mubr.bf16.gmra.mrb[0].mxu0 %v1366
      %v1485 = vpop.f32.mrb[0].mxu0
      %v1486 = vadd.f32 %v1269, %v1485
      %v1487 = vpop.f32.mrb[0].mxu0
      %v1488 = vpop.f32.mrb[0].mxu0
      %v1489 = vadd.f32 %v1272, %v1488
      %v1490 = vpop.f32.mrb[0].mxu0
      %1491 = vmatprep.mubr.bf16.mxu0 0
      %1492 = vmatmul.mubr.bf16.gmra.mrb[0].mxu0 %v1369
      %v1493 = vpop.f32.mrb[0].mxu0
      %v1494 = vadd.f32 %v1277, %v1493
      %v1495 = vpop.f32.mrb[0].mxu0
      %v1496 = vpop.f32.mrb[0].mxu0
      %v1497 = vadd.f32 %v1280, %v1496
      %v1498 = vpop.f32.mrb[0].mxu0
      %1499 = vmatprep.mubr.bf16.mxu0 0
      %1500 = vmatmul.mubr.bf16.gmra.mrb[0].mxu0 %v1372
      %v1501 = vpop.f32.mrb[0].mxu0
      %v1502 = vadd.f32 %v1285, %v1501
      %v1503 = vpop.f32.mrb[0].mxu0
      %v1504 = vpop.f32.mrb[0].mxu0
      %v1505 = vadd.f32 %v1288, %v1504
      %v1506 = vpop.f32.mrb[0].mxu0
      %1507 = vmatprep.mubr.bf16.mxu0 0
      %1508 = vmatmul.mubr.bf16.gmra.mrb[0].mxu0 %v1375
      %v1509 = vpop.f32.mrb[0].mxu0
      %v1510 = vadd.f32 %v1293, %v1509
      %v1511 = vpop.f32.mrb[0].mxu0
      %v1512 = vpop.f32.mrb[0].mxu0
      %v1513 = vadd.f32 %v1296, %v1512
      %v1514 = vpop.f32.mrb[0].mxu0
      %1515 = vmatprep.mubr.bf16.mxu0 0
      %1516 = vmatmul.mubr.bf16.gmra.mrb[0].mxu0 %v1378
      %v1517 = vpop.f32.mrb[0].mxu0
      %v1518 = vadd.f32 %v1301, %v1517
      %v1519 = vpop.f32.mrb[0].mxu0
      %v1520 = vpop.f32.mrb[0].mxu0
      %v1521 = vadd.f32 %v1304, %v1520
      %v1522 = vpop.f32.mrb[0].mxu0
      %1523 = vmatprep.mubr.bf16.mxu0 0
      %1524 = vmatmul.mubr.bf16.gmra.mrb[0].mxu0 %v1381
      %v1525 = vpop.f32.mrb[0].mxu0
      %v1526 = vadd.f32 %v1309, %v1525
      %v1527 = vpop.f32.mrb[0].mxu0
      %v1528 = vpop.f32.mrb[0].mxu0
      %v1529 = vadd.f32 %v1312, %v1528
      %v1530 = vpop.f32.mrb[0].mxu0
      %1531 = vmatprep.mubr.bf16.mxu0 0
      %1532 = vmatmul.mubr.bf16.gmra.mrb[0].mxu0 %v1384
      %v1533 = vpop.f32.mrb[0].mxu0
      %v1534 = vadd.f32 %v1317, %v1533
      %v1535 = vpop.f32.mrb[0].mxu0
      %v1536 = vpop.f32.mrb[0].mxu0
      %v1537 = vadd.f32 %v1320, %v1536
      %v1538 = vpop.f32.mrb[0].mxu0
      %1539 = vmatprep.mubr.bf16.mxu0 0
      %1540 = vmatmul.mubr.bf16.gmra.mrb[0].mxu0 %v1387
      %v1541 = vpop.f32.mrb[0].mxu0
      %v1542 = vadd.f32 %v1325, %v1541
      %v1543 = vpop.f32.mrb[0].mxu0
      %v1544 = vpop.f32.mrb[0].mxu0
      %v1545 = vadd.f32 %v1328, %v1544
      %v1546 = vpop.f32.mrb[0].mxu0
      %1547 = vmatprep.mubr.bf16.mxu0 0
      %1548 = vmatmul.mubr.bf16.gmra.mrb[0].mxu0 %v1390
      %v1549 = vpop.f32.mrb[0].mxu0
      %v1550 = vadd.f32 %v1333, %v1549
      %v1551 = vpop.f32.mrb[0].mxu0
      %v1552 = vpop.f32.mrb[0].mxu0
      %v1553 = vadd.f32 %v1336, %v1552
      %v1554 = vpop.f32.mrb[0].mxu0
      %1555 = vdwg.mxu0
      %v1556 = vld [vmem:[#allocation2 + $0x2] sm:$0xff]
      %v1557 = vld [vmem:[#allocation2 + $0xa] sm:$0xff]
      %v1558 = vld [vmem:[#allocation2 + $0x1a] sm:$0xff]
      %v1559 = vld [vmem:[#allocation2 + $0x22] sm:$0xff]
      %v1560 = vld [vmem:[#allocation2 + $0x32] sm:$0xff]
      %v1561 = vld [vmem:[#allocation2 + $0x3a] sm:$0xff]
      %v1562 = vld [vmem:[#allocation2 + $0x4a] sm:$0xff]
      %v1563 = vld [vmem:[#allocation2 + $0x52] sm:$0xff]
      %v1564 = vld [vmem:[#allocation2 + $0x62] sm:$0xff]
      %v1565 = vld [vmem:[#allocation2 + $0x6a] sm:$0xff]
      %v1566 = vld [vmem:[#allocation2 + $0x7a] sm:$0xff]
      %v1567 = vld [vmem:[#allocation2 + $0x82] sm:$0xff]
      %v1568 = vld [vmem:[#allocation2 + $0x92] sm:$0xff]
      %v1569 = vld [vmem:[#allocation2 + $0x9a] sm:$0xff]
      %v1570 = vld [vmem:[#allocation2 + $0xaa] sm:$0xff]
      %v1571 = vld [vmem:[#allocation2 + $0xb2] sm:$0xff]
      %v1572 = vld [vmem:[#allocation2 + $0xc2] sm:$0xff]
      %v1573 = vld [vmem:[#allocation2 + $0xca] sm:$0xff]
      %v1574 = vld [vmem:[#allocation2 + $0xda] sm:$0xff]
      %v1575 = vld [vmem:[#allocation2 + $0xe2] sm:$0xff]
      %v1576 = vld [vmem:[#allocation2 + $0xf2] sm:$0xff]
      %v1577 = vld [vmem:[#allocation2 + $0xfa] sm:$0xff]
      %v1578 = vld [vmem:[#allocation2 + $0x10a] sm:$0xff]
      %v1579 = vld [vmem:[#allocation2 + $0x112] sm:$0xff]
      %v1580 = vld [vmem:[#allocation2 + $0x122] sm:$0xff]
      %v1581 = vld [vmem:[#allocation2 + $0x12a] sm:$0xff]
      %v1582 = vld [vmem:[#allocation2 + $0x13a] sm:$0xff]
      %v1583 = vld [vmem:[#allocation2 + $0x142] sm:$0xff]
      %v1584 = vld [vmem:[#allocation2 + $0x152] sm:$0xff]
      %v1585 = vld [vmem:[#allocation2 + $0x15a] sm:$0xff]
      %v1586 = vld [vmem:[#allocation2 + $0x16a] sm:$0xff]
      %v1587 = vld [vmem:[#allocation2 + $0x172] sm:$0xff]
      %v1588 = vpack.c.bf16 %v1557, %v1556
      %v1589 = vpack.c.bf16 %v1559, %v1558
      %v1590 = vpack.c.bf16 %v1561, %v1560
      %v1591 = vpack.c.bf16 %v1563, %v1562
      %v1592 = vpack.c.bf16 %v1565, %v1564
      %v1593 = vpack.c.bf16 %v1567, %v1566
      %v1594 = vpack.c.bf16 %v1569, %v1568
      %v1595 = vpack.c.bf16 %v1571, %v1570
      %v1596 = vpack.c.bf16 %v1573, %v1572
      %v1597 = vpack.c.bf16 %v1575, %v1574
      %v1598 = vpack.c.bf16 %v1577, %v1576
      %v1599 = vpack.c.bf16 %v1579, %v1578
      %v1600 = vpack.c.bf16 %v1581, %v1580
      %v1601 = vpack.c.bf16 %v1583, %v1582
      %v1602 = vpack.c.bf16 %v1585, %v1584
      %v1603 = vpack.c.bf16 %v1587, %v1586
      %s1604 = scalar_lea.vmem %s3, 16
      %v1605 = vld [vmem:[%s1604] sm:$0xf]
      %v1606 = vld [vmem:[%s1604 + $0x4] sm:$0x3]
      %v1609 = vunpack.c.l.b16 %v1605
      %v1610 = vunpack.c.l.b16 %v1606
      %v1611 = vpack.c.b16 %v1610, %v1609
      %v1613 = vsel %vm530, %v1588, 0
      %v1616 = vsel %vm530, %v1589, 0
      %v1619 = vsel %vm530, %v1590, 0
      %v1622 = vsel %vm530, %v1591, 0
      %v1625 = vsel %vm530, %v1592, 0
      %v1628 = vsel %vm530, %v1593, 0
      %v1631 = vsel %vm530, %v1594, 0
      %v1634 = vsel %vm530, %v1595, 0
      %v1637 = vsel %vm530, %v1596, 0
      %v1640 = vsel %vm530, %v1597, 0
      %v1643 = vsel %vm530, %v1598, 0
      %v1646 = vsel %vm530, %v1599, 0
      %v1649 = vsel %vm530, %v1600, 0
      %v1652 = vsel %vm530, %v1601, 0
      %v1655 = vsel %vm530, %v1602, 0
      %v1658 = vsel %vm530, %v1603, 0
      %v1661 = vsel %vm1174, %v1611, 0
      %1663 = vmatprep.subr.bf16.mxu0 0
      %1664 = vmatpush1.bf16.msra.mxu0 %v1661
      %1665 = vmatprep.subr.bf16.mxu0 0
      %1666 = vmatpush1.bf16.msra.mxu0 0
      %1667 = vmatprep.subr.bf16.mxu0 0
      %1668 = vmatpush1.bf16.msra.mxu0 0
      %1669 = vmatprep.subr.bf16.mxu0 0
      %1670 = vmatpush1.bf16.msra.mxu0 0
      %1671 = vmatprep.subr.bf16.mxu0 0
      %1672 = vmatpush1.bf16.msra.mxu0 0
      %1673 = vmatprep.subr.bf16.mxu0 0
      %1674 = vmatpush1.bf16.msra.mxu0 0
      %1675 = vmatprep.subr.bf16.mxu0 0
      %1676 = vmatpush1.bf16.msra.mxu0 0
      %1677 = vmatprep.subr.bf16.mxu0 0
      %1678 = vmatpush1.bf16.msra.mxu0 0
      %1679 = vmatprep.subr.bf16.mxu0 0
      %1680 = vmatpush1.bf16.msra.mxu0 0
      %1681 = vmatprep.subr.bf16.mxu0 0
      %1682 = vmatpush1.bf16.msra.mxu0 0
      %1683 = vmatprep.subr.bf16.mxu0 0
      %1684 = vmatpush1.bf16.msra.mxu0 0
      %1685 = vmatprep.subr.bf16.mxu0 0
      %1686 = vmatpush1.bf16.msra.mxu0 0
      %1687 = vmatprep.subr.bf16.mxu0 0
      %1688 = vmatpush1.bf16.msra.mxu0 0
      %1689 = vmatprep.subr.bf16.mxu0 0
      %1690 = vmatpush1.bf16.msra.mxu0 0
      %1691 = vmatprep.subr.bf16.mxu0 0
      %1692 = vmatpush1.bf16.msra.mxu0 0
      %1693 = vmatprep.subr.bf16.mxu0 0
      %1694 = vmatpush1.bf16.msra.mxu0 0
      %1695 = vmatprep.mubr.bf16.mxu0 0
      %1696 = vmatmul.mubr.bf16.gmra.mrb[0].mxu0 %v1613
      %v1697 = vpop.f32.mrb[0].mxu0
      %v1698 = vadd.f32 0.0, %v1697
      %v1699 = vpop.f32.mrb[0].mxu0
      %v1700 = vpop.f32.mrb[0].mxu0
      %v1701 = vadd.f32 0.0, %v1700
      %v1702 = vpop.f32.mrb[0].mxu0
      %1703 = vmatprep.mubr.bf16.mxu0 0
      %1704 = vmatmul.mubr.bf16.gmra.mrb[0].mxu0 %v1616
      %v1705 = vpop.f32.mrb[0].mxu0
      %v1706 = vadd.f32 0.0, %v1705
      %v1707 = vpop.f32.mrb[0].mxu0
      %v1708 = vpop.f32.mrb[0].mxu0
      %v1709 = vadd.f32 0.0, %v1708
      %v1710 = vpop.f32.mrb[0].mxu0
      %1711 = vmatprep.mubr.bf16.mxu0 0
      %1712 = vmatmul.mubr.bf16.gmra.mrb[0].mxu0 %v1619
      %v1713 = vpop.f32.mrb[0].mxu0
      %v1714 = vadd.f32 0.0, %v1713
      %v1715 = vpop.f32.mrb[0].mxu0
      %v1716 = vpop.f32.mrb[0].mxu0
      %v1717 = vadd.f32 0.0, %v1716
      %v1718 = vpop.f32.mrb[0].mxu0
      %1719 = vmatprep.mubr.bf16.mxu0 0
      %1720 = vmatmul.mubr.bf16.gmra.mrb[0].mxu0 %v1622
      %v1721 = vpop.f32.mrb[0].mxu0
      %v1722 = vadd.f32 0.0, %v1721
      %v1723 = vpop.f32.mrb[0].mxu0
      %v1724 = vpop.f32.mrb[0].mxu0
      %v1725 = vadd.f32 0.0, %v1724
      %v1726 = vpop.f32.mrb[0].mxu0
      %1727 = vmatprep.mubr.bf16.mxu0 0
      %1728 = vmatmul.mubr.bf16.gmra.mrb[0].mxu0 %v1625
      %v1729 = vpop.f32.mrb[0].mxu0
      %v1730 = vadd.f32 0.0, %v1729
      %v1731 = vpop.f32.mrb[0].mxu0
      %v1732 = vpop.f32.mrb[0].mxu0
      %v1733 = vadd.f32 0.0, %v1732
      %v1734 = vpop.f32.mrb[0].mxu0
      %1735 = vmatprep.mubr.bf16.mxu0 0
      %1736 = vmatmul.mubr.bf16.gmra.mrb[0].mxu0 %v1628
      %v1737 = vpop.f32.mrb[0].mxu0
      %v1738 = vadd.f32 0.0, %v1737
      %v1739 = vpop.f32.mrb[0].mxu0
      %v1740 = vpop.f32.mrb[0].mxu0
      %v1741 = vadd.f32 0.0, %v1740
      %v1742 = vpop.f32.mrb[0].mxu0
      %1743 = vmatprep.mubr.bf16.mxu0 0
      %1744 = vmatmul.mubr.bf16.gmra.mrb[0].mxu0 %v1631
      %v1745 = vpop.f32.mrb[0].mxu0
      %v1746 = vadd.f32 0.0, %v1745
      %v1747 = vpop.f32.mrb[0].mxu0
      %v1748 = vpop.f32.mrb[0].mxu0
      %v1749 = vadd.f32 0.0, %v1748
      %v1750 = vpop.f32.mrb[0].mxu0
      %1751 = vmatprep.mubr.bf16.mxu0 0
      %1752 = vmatmul.mubr.bf16.gmra.mrb[0].mxu0 %v1634
      %v1753 = vpop.f32.mrb[0].mxu0
      %v1754 = vadd.f32 0.0, %v1753
      %v1755 = vpop.f32.mrb[0].mxu0
      %v1756 = vpop.f32.mrb[0].mxu0
      %v1757 = vadd.f32 0.0, %v1756
      %v1758 = vpop.f32.mrb[0].mxu0
      %1759 = vmatprep.mubr.bf16.mxu0 0
      %1760 = vmatmul.mubr.bf16.gmra.mrb[0].mxu0 %v1637
      %v1761 = vpop.f32.mrb[0].mxu0
      %v1762 = vadd.f32 0.0, %v1761
      %v1763 = vpop.f32.mrb[0].mxu0
      %v1764 = vpop.f32.mrb[0].mxu0
      %v1765 = vadd.f32 0.0, %v1764
      %v1766 = vpop.f32.mrb[0].mxu0
      %1767 = vmatprep.mubr.bf16.mxu0 0
      %1768 = vmatmul.mubr.bf16.gmra.mrb[0].mxu0 %v1640
      %v1769 = vpop.f32.mrb[0].mxu0
      %v1770 = vadd.f32 0.0, %v1769
      %v1771 = vpop.f32.mrb[0].mxu0
      %v1772 = vpop.f32.mrb[0].mxu0
      %v1773 = vadd.f32 0.0, %v1772
      %v1774 = vpop.f32.mrb[0].mxu0
      %1775 = vmatprep.mubr.bf16.mxu0 0
      %1776 = vmatmul.mubr.bf16.gmra.mrb[0].mxu0 %v1643
      %v1777 = vpop.f32.mrb[0].mxu0
      %v1778 = vadd.f32 0.0, %v1777
      %v1779 = vpop.f32.mrb[0].mxu0
      %v1780 = vpop.f32.mrb[0].mxu0
      %v1781 = vadd.f32 0.0, %v1780
      %v1782 = vpop.f32.mrb[0].mxu0
      %1783 = vmatprep.mubr.bf16.mxu0 0
      %1784 = vmatmul.mubr.bf16.gmra.mrb[0].mxu0 %v1646
      %v1785 = vpop.f32.mrb[0].mxu0
      %v1786 = vadd.f32 0.0, %v1785
      %v1787 = vpop.f32.mrb[0].mxu0
      %v1788 = vpop.f32.mrb[0].mxu0
      %v1789 = vadd.f32 0.0, %v1788
      %v1790 = vpop.f32.mrb[0].mxu0
      %1791 = vmatprep.mubr.bf16.mxu0 0
      %1792 = vmatmul.mubr.bf16.gmra.mrb[0].mxu0 %v1649
      %v1793 = vpop.f32.mrb[0].mxu0
      %v1794 = vadd.f32 0.0, %v1793
      %v1795 = vpop.f32.mrb[0].mxu0
      %v1796 = vpop.f32.mrb[0].mxu0
      %v1797 = vadd.f32 0.0, %v1796
      %v1798 = vpop.f32.mrb[0].mxu0
      %1799 = vmatprep.mubr.bf16.mxu0 0
      %1800 = vmatmul.mubr.bf16.gmra.mrb[0].mxu0 %v1652
      %v1801 = vpop.f32.mrb[0].mxu0
      %v1802 = vadd.f32 0.0, %v1801
      %v1803 = vpop.f32.mrb[0].mxu0
      %v1804 = vpop.f32.mrb[0].mxu0
      %v1805 = vadd.f32 0.0, %v1804
      %v1806 = vpop.f32.mrb[0].mxu0
      %1807 = vmatprep.mubr.bf16.mxu0 0
      %1808 = vmatmul.mubr.bf16.gmra.mrb[0].mxu0 %v1655
      %v1809 = vpop.f32.mrb[0].mxu0
      %v1810 = vadd.f32 0.0, %v1809
      %v1811 = vpop.f32.mrb[0].mxu0
      %v1812 = vpop.f32.mrb[0].mxu0
      %v1813 = vadd.f32 0.0, %v1812
      %v1814 = vpop.f32.mrb[0].mxu0
      %1815 = vmatprep.mubr.bf16.mxu0 0
      %1816 = vmatmul.mubr.bf16.gmra.mrb[0].mxu0 %v1658
      %v1817 = vpop.f32.mrb[0].mxu0
      %v1818 = vadd.f32 0.0, %v1817
      %v1819 = vpop.f32.mrb[0].mxu0
      %v1820 = vpop.f32.mrb[0].mxu0
      %v1821 = vadd.f32 0.0, %v1820
      %v1822 = vpop.f32.mrb[0].mxu0
      %1823 = vdwg.mxu0
      %v1824 = vadd.f32 %v1430, %v1698
      %v1825 = vadd.f32 %v1433, %v1701
      %v1826 = vadd.f32 %v1438, %v1706
      %v1827 = vadd.f32 %v1441, %v1709
      %v1828 = vadd.f32 %v1446, %v1714
      %v1829 = vadd.f32 %v1449, %v1717
      %v1830 = vadd.f32 %v1454, %v1722
      %v1831 = vadd.f32 %v1457, %v1725
      %v1832 = vadd.f32 %v1462, %v1730
      %v1833 = vadd.f32 %v1465, %v1733
      %v1834 = vadd.f32 %v1470, %v1738
      %v1835 = vadd.f32 %v1473, %v1741
      %v1836 = vadd.f32 %v1478, %v1746
      %v1837 = vadd.f32 %v1481, %v1749
      %v1838 = vadd.f32 %v1486, %v1754
      %v1839 = vadd.f32 %v1489, %v1757
      %v1840 = vadd.f32 %v1494, %v1762
      %v1841 = vadd.f32 %v1497, %v1765
      %v1842 = vadd.f32 %v1502, %v1770
      %v1843 = vadd.f32 %v1505, %v1773
      %v1844 = vadd.f32 %v1510, %v1778
      %v1845 = vadd.f32 %v1513, %v1781
      %v1846 = vadd.f32 %v1518, %v1786
      %v1847 = vadd.f32 %v1521, %v1789
      %v1848 = vadd.f32 %v1526, %v1794
      %v1849 = vadd.f32 %v1529, %v1797
      %v1850 = vadd.f32 %v1534, %v1802
      %v1851 = vadd.f32 %v1537, %v1805
      %v1852 = vadd.f32 %v1542, %v1810
      %v1853 = vadd.f32 %v1545, %v1813
      %v1854 = vadd.f32 %v1550, %v1818
      %v1855 = vadd.f32 %v1553, %v1821
      %v1856 = vld [vmem:[%s987] sm:$0xff]
      %v1857 = vld [vmem:[%s987 + $0x8] sm:$0xff]
      %v1858 = vld [vmem:[%s987 + $0x18] sm:$0xff]
      %v1859 = vld [vmem:[%s987 + $0x20] sm:$0xff]
      %v1860 = vld [vmem:[%s987 + $0x30] sm:$0xff]
      %v1861 = vld [vmem:[%s987 + $0x38] sm:$0xff]
      %v1862 = vld [vmem:[%s987 + $0x48] sm:$0xff]
      %v1863 = vld [vmem:[%s987 + $0x50] sm:$0xff]
      %v1864 = vld [vmem:[%s987 + $0x60] sm:$0xff]
      %v1865 = vld [vmem:[%s987 + $0x68] sm:$0xff]
      %v1866 = vld [vmem:[%s987 + $0x78] sm:$0xff]
      %v1867 = vld [vmem:[%s987 + $0x80] sm:$0xff]
      %v1868 = vld [vmem:[%s987 + $0x90] sm:$0xff]
      %v1869 = vld [vmem:[%s987 + $0x98] sm:$0xff]
      %v1870 = vld [vmem:[%s987 + $0xa8] sm:$0xff]
      %v1871 = vld [vmem:[%s987 + $0xb0] sm:$0xff]
      %v1872 = vld [vmem:[%s987 + $0xc0] sm:$0xff]
      %v1873 = vld [vmem:[%s987 + $0xc8] sm:$0xff]
      %v1874 = vld [vmem:[%s987 + $0xd8] sm:$0xff]
      %v1875 = vld [vmem:[%s987 + $0xe0] sm:$0xff]
      %v1876 = vld [vmem:[%s987 + $0xf0] sm:$0xff]
      %v1877 = vld [vmem:[%s987 + $0xf8] sm:$0xff]
      %v1878 = vld [vmem:[%s987 + $0x108] sm:$0xff]
      %v1879 = vld [vmem:[%s987 + $0x110] sm:$0xff]
      %v1880 = vld [vmem:[%s987 + $0x120] sm:$0xff]
      %v1881 = vld [vmem:[%s987 + $0x128] sm:$0xff]
      %v1882 = vld [vmem:[%s987 + $0x138] sm:$0xff]
      %v1883 = vld [vmem:[%s987 + $0x140] sm:$0xff]
      %v1884 = vld [vmem:[%s987 + $0x150] sm:$0xff]
      %v1885 = vld [vmem:[%s987 + $0x158] sm:$0xff]
      %v1886 = vld [vmem:[%s987 + $0x168] sm:$0xff]
      %v1887 = vld [vmem:[%s987 + $0x170] sm:$0xff]
      %v1888 = vpack.c.bf16 %v1857, %v1856
      %v1889 = vpack.c.bf16 %v1859, %v1858
      %v1890 = vpack.c.bf16 %v1861, %v1860
      %v1891 = vpack.c.bf16 %v1863, %v1862
      %v1892 = vpack.c.bf16 %v1865, %v1864
      %v1893 = vpack.c.bf16 %v1867, %v1866
      %v1894 = vpack.c.bf16 %v1869, %v1868
      %v1895 = vpack.c.bf16 %v1871, %v1870
      %v1896 = vpack.c.bf16 %v1873, %v1872
      %v1897 = vpack.c.bf16 %v1875, %v1874
      %v1898 = vpack.c.bf16 %v1877, %v1876
      %v1899 = vpack.c.bf16 %v1879, %v1878
      %v1900 = vpack.c.bf16 %v1881, %v1880
      %v1901 = vpack.c.bf16 %v1883, %v1882
      %v1902 = vpack.c.bf16 %v1885, %v1884
      %v1903 = vpack.c.bf16 %v1887, %v1886
      %s1904 = scalar_lea.vmem %s3, 24
      %v1905 = vld [vmem:[%s1904] sm:$0xf]
      %v1906 = vld [vmem:[%s1904 + $0x4] sm:$0x3]
      %v1909 = vunpack.c.l.b16 %v1905
      %v1910 = vunpack.c.l.b16 %v1906
      %v1911 = vpack.c.b16 %v1910, %v1909
      %v1913 = vsel %vm530, %v1888, 0
      %v1916 = vsel %vm530, %v1889, 0
      %v1919 = vsel %vm530, %v1890, 0
      %v1922 = vsel %vm530, %v1891, 0
      %v1925 = vsel %vm530, %v1892, 0
      %v1928 = vsel %vm530, %v1893, 0
      %v1931 = vsel %vm530, %v1894, 0
      %v1934 = vsel %vm530, %v1895, 0
      %v1937 = vsel %vm530, %v1896, 0
      %v1940 = vsel %vm530, %v1897, 0
      %v1943 = vsel %vm530, %v1898, 0
      %v1946 = vsel %vm530, %v1899, 0
      %v1949 = vsel %vm530, %v1900, 0
      %v1952 = vsel %vm530, %v1901, 0
      %v1955 = vsel %vm530, %v1902, 0
      %v1958 = vsel %vm530, %v1903, 0
      %v1961 = vsel %vm1174, %v1911, 0
      %1963 = vmatprep.subr.bf16.mxu0 0
      %1964 = vmatpush1.bf16.msra.mxu0 %v1961
      %1965 = vmatprep.subr.bf16.mxu0 0
      %1966 = vmatpush1.bf16.msra.mxu0 0
      %1967 = vmatprep.subr.bf16.mxu0 0
      %1968 = vmatpush1.bf16.msra.mxu0 0
      %1969 = vmatprep.subr.bf16.mxu0 0
      %1970 = vmatpush1.bf16.msra.mxu0 0
      %1971 = vmatprep.subr.bf16.mxu0 0
      %1972 = vmatpush1.bf16.msra.mxu0 0
      %1973 = vmatprep.subr.bf16.mxu0 0
      %1974 = vmatpush1.bf16.msra.mxu0 0
      %1975 = vmatprep.subr.bf16.mxu0 0
      %1976 = vmatpush1.bf16.msra.mxu0 0
      %1977 = vmatprep.subr.bf16.mxu0 0
      %1978 = vmatpush1.bf16.msra.mxu0 0
      %1979 = vmatprep.subr.bf16.mxu0 0
      %1980 = vmatpush1.bf16.msra.mxu0 0
      %1981 = vmatprep.subr.bf16.mxu0 0
      %1982 = vmatpush1.bf16.msra.mxu0 0
      %1983 = vmatprep.subr.bf16.mxu0 0
      %1984 = vmatpush1.bf16.msra.mxu0 0
      %1985 = vmatprep.subr.bf16.mxu0 0
      %1986 = vmatpush1.bf16.msra.mxu0 0
      %1987 = vmatprep.subr.bf16.mxu0 0
      %1988 = vmatpush1.bf16.msra.mxu0 0
      %1989 = vmatprep.subr.bf16.mxu0 0
      %1990 = vmatpush1.bf16.msra.mxu0 0
      %1991 = vmatprep.subr.bf16.mxu0 0
      %1992 = vmatpush1.bf16.msra.mxu0 0
      %1993 = vmatprep.subr.bf16.mxu0 0
      %1994 = vmatpush1.bf16.msra.mxu0 0
      %1995 = vmatprep.mubr.bf16.mxu0 0
      %1996 = vmatmul.mubr.bf16.gmra.mrb[0].mxu0 %v1913
      %v1997 = vpop.f32.mrb[0].mxu0
      %v1998 = vadd.f32 0.0, %v1997
      %v1999 = vpop.f32.mrb[0].mxu0
      %v2000 = vpop.f32.mrb[0].mxu0
      %v2001 = vadd.f32 0.0, %v2000
      %v2002 = vpop.f32.mrb[0].mxu0
      %2003 = vmatprep.mubr.bf16.mxu0 0
      %2004 = vmatmul.mubr.bf16.gmra.mrb[0].mxu0 %v1916
      %v2005 = vpop.f32.mrb[0].mxu0
      %v2006 = vadd.f32 0.0, %v2005
      %v2007 = vpop.f32.mrb[0].mxu0
      %v2008 = vpop.f32.mrb[0].mxu0
      %v2009 = vadd.f32 0.0, %v2008
      %v2010 = vpop.f32.mrb[0].mxu0
      %2011 = vmatprep.mubr.bf16.mxu0 0
      %2012 = vmatmul.mubr.bf16.gmra.mrb[0].mxu0 %v1919
      %v2013 = vpop.f32.mrb[0].mxu0
      %v2014 = vadd.f32 0.0, %v2013
      %v2015 = vpop.f32.mrb[0].mxu0
      %v2016 = vpop.f32.mrb[0].mxu0
      %v2017 = vadd.f32 0.0, %v2016
      %v2018 = vpop.f32.mrb[0].mxu0
      %2019 = vmatprep.mubr.bf16.mxu0 0
      %2020 = vmatmul.mubr.bf16.gmra.mrb[0].mxu0 %v1922
      %v2021 = vpop.f32.mrb[0].mxu0
      %v2022 = vadd.f32 0.0, %v2021
      %v2023 = vpop.f32.mrb[0].mxu0
      %v2024 = vpop.f32.mrb[0].mxu0
      %v2025 = vadd.f32 0.0, %v2024
      %v2026 = vpop.f32.mrb[0].mxu0
      %2027 = vmatprep.mubr.bf16.mxu0 0
      %2028 = vmatmul.mubr.bf16.gmra.mrb[0].mxu0 %v1925
      %v2029 = vpop.f32.mrb[0].mxu0
      %v2030 = vadd.f32 0.0, %v2029
      %v2031 = vpop.f32.mrb[0].mxu0
      %v2032 = vpop.f32.mrb[0].mxu0
      %v2033 = vadd.f32 0.0, %v2032
      %v2034 = vpop.f32.mrb[0].mxu0
      %2035 = vmatprep.mubr.bf16.mxu0 0
      %2036 = vmatmul.mubr.bf16.gmra.mrb[0].mxu0 %v1928
      %v2037 = vpop.f32.mrb[0].mxu0
      %v2038 = vadd.f32 0.0, %v2037
      %v2039 = vpop.f32.mrb[0].mxu0
      %v2040 = vpop.f32.mrb[0].mxu0
      %v2041 = vadd.f32 0.0, %v2040
      %v2042 = vpop.f32.mrb[0].mxu0
      %2043 = vmatprep.mubr.bf16.mxu0 0
      %2044 = vmatmul.mubr.bf16.gmra.mrb[0].mxu0 %v1931
      %v2045 = vpop.f32.mrb[0].mxu0
      %v2046 = vadd.f32 0.0, %v2045
      %v2047 = vpop.f32.mrb[0].mxu0
      %v2048 = vpop.f32.mrb[0].mxu0
      %v2049 = vadd.f32 0.0, %v2048
      %v2050 = vpop.f32.mrb[0].mxu0
      %2051 = vmatprep.mubr.bf16.mxu0 0
      %2052 = vmatmul.mubr.bf16.gmra.mrb[0].mxu0 %v1934
      %v2053 = vpop.f32.mrb[0].mxu0
      %v2054 = vadd.f32 0.0, %v2053
      %v2055 = vpop.f32.mrb[0].mxu0
      %v2056 = vpop.f32.mrb[0].mxu0
      %v2057 = vadd.f32 0.0, %v2056
      %v2058 = vpop.f32.mrb[0].mxu0
      %2059 = vmatprep.mubr.bf16.mxu0 0
      %2060 = vmatmul.mubr.bf16.gmra.mrb[0].mxu0 %v1937
      %v2061 = vpop.f32.mrb[0].mxu0
      %v2062 = vadd.f32 0.0, %v2061
      %v2063 = vpop.f32.mrb[0].mxu0
      %v2064 = vpop.f32.mrb[0].mxu0
      %v2065 = vadd.f32 0.0, %v2064
      %v2066 = vpop.f32.mrb[0].mxu0
      %2067 = vmatprep.mubr.bf16.mxu0 0
      %2068 = vmatmul.mubr.bf16.gmra.mrb[0].mxu0 %v1940
      %v2069 = vpop.f32.mrb[0].mxu0
      %v2070 = vadd.f32 0.0, %v2069
      %v2071 = vpop.f32.mrb[0].mxu0
      %v2072 = vpop.f32.mrb[0].mxu0
      %v2073 = vadd.f32 0.0, %v2072
      %v2074 = vpop.f32.mrb[0].mxu0
      %2075 = vmatprep.mubr.bf16.mxu0 0
      %2076 = vmatmul.mubr.bf16.gmra.mrb[0].mxu0 %v1943
      %v2077 = vpop.f32.mrb[0].mxu0
      %v2078 = vadd.f32 0.0, %v2077
      %v2079 = vpop.f32.mrb[0].mxu0
      %v2080 = vpop.f32.mrb[0].mxu0
      %v2081 = vadd.f32 0.0, %v2080
      %v2082 = vpop.f32.mrb[0].mxu0
      %2083 = vmatprep.mubr.bf16.mxu0 0
      %2084 = vmatmul.mubr.bf16.gmra.mrb[0].mxu0 %v1946
      %v2085 = vpop.f32.mrb[0].mxu0
      %v2086 = vadd.f32 0.0, %v2085
      %v2087 = vpop.f32.mrb[0].mxu0
      %v2088 = vpop.f32.mrb[0].mxu0
      %v2089 = vadd.f32 0.0, %v2088
      %v2090 = vpop.f32.mrb[0].mxu0
      %2091 = vmatprep.mubr.bf16.mxu0 0
      %2092 = vmatmul.mubr.bf16.gmra.mrb[0].mxu0 %v1949
      %v2093 = vpop.f32.mrb[0].mxu0
      %v2094 = vadd.f32 0.0, %v2093
      %v2095 = vpop.f32.mrb[0].mxu0
      %v2096 = vpop.f32.mrb[0].mxu0
      %v2097 = vadd.f32 0.0, %v2096
      %v2098 = vpop.f32.mrb[0].mxu0
      %2099 = vmatprep.mubr.bf16.mxu0 0
      %2100 = vmatmul.mubr.bf16.gmra.mrb[0].mxu0 %v1952
      %v2101 = vpop.f32.mrb[0].mxu0
      %v2102 = vadd.f32 0.0, %v2101
      %v2103 = vpop.f32.mrb[0].mxu0
      %v2104 = vpop.f32.mrb[0].mxu0
      %v2105 = vadd.f32 0.0, %v2104
      %v2106 = vpop.f32.mrb[0].mxu0
      %2107 = vmatprep.mubr.bf16.mxu0 0
      %2108 = vmatmul.mubr.bf16.gmra.mrb[0].mxu0 %v1955
      %v2109 = vpop.f32.mrb[0].mxu0
      %v2110 = vadd.f32 0.0, %v2109
      %v2111 = vpop.f32.mrb[0].mxu0
      %v2112 = vpop.f32.mrb[0].mxu0
      %v2113 = vadd.f32 0.0, %v2112
      %v2114 = vpop.f32.mrb[0].mxu0
      %2115 = vmatprep.mubr.bf16.mxu0 0
      %2116 = vmatmul.mubr.bf16.gmra.mrb[0].mxu0 %v1958
      %v2117 = vpop.f32.mrb[0].mxu0
      %v2118 = vadd.f32 0.0, %v2117
      %v2119 = vpop.f32.mrb[0].mxu0
      %v2120 = vpop.f32.mrb[0].mxu0
      %v2121 = vadd.f32 0.0, %v2120
      %v2122 = vpop.f32.mrb[0].mxu0
      %2123 = vdwg.mxu0
      %v2124 = vadd.f32 %v1824, %v1998
      %v2125 = vadd.f32 %v1825, %v2001
      %v2126 = vadd.f32 %v1826, %v2006
      %v2127 = vadd.f32 %v1827, %v2009
      %v2128 = vadd.f32 %v1828, %v2014
      %v2129 = vadd.f32 %v1829, %v2017
      %v2130 = vadd.f32 %v1830, %v2022
      %v2131 = vadd.f32 %v1831, %v2025
      %v2132 = vadd.f32 %v1832, %v2030
      %v2133 = vadd.f32 %v1833, %v2033
      %v2134 = vadd.f32 %v1834, %v2038
      %v2135 = vadd.f32 %v1835, %v2041
      %v2136 = vadd.f32 %v1836, %v2046
      %v2137 = vadd.f32 %v1837, %v2049
      %v2138 = vadd.f32 %v1838, %v2054
      %v2139 = vadd.f32 %v1839, %v2057
      %v2140 = vadd.f32 %v1840, %v2062
      %v2141 = vadd.f32 %v1841, %v2065
      %v2142 = vadd.f32 %v1842, %v2070
      %v2143 = vadd.f32 %v1843, %v2073
      %v2144 = vadd.f32 %v1844, %v2078
      %v2145 = vadd.f32 %v1845, %v2081
      %v2146 = vadd.f32 %v1846, %v2086
      %v2147 = vadd.f32 %v1847, %v2089
      %v2148 = vadd.f32 %v1848, %v2094
      %v2149 = vadd.f32 %v1849, %v2097
      %v2150 = vadd.f32 %v1850, %v2102
      %v2151 = vadd.f32 %v1851, %v2105
      %v2152 = vadd.f32 %v1852, %v2110
      %v2153 = vadd.f32 %v1853, %v2113
      %v2154 = vadd.f32 %v1854, %v2118
      %v2155 = vadd.f32 %v1855, %v2121
      %v2156 = vld [vmem:[%s987 + $0x1] sm:$0xff]
      %v2157 = vld [vmem:[%s987 + $0x9] sm:$0xff]
      %v2158 = vld [vmem:[%s987 + $0x19] sm:$0xff]
      %v2159 = vld [vmem:[%s987 + $0x21] sm:$0xff]
      %v2160 = vld [vmem:[%s987 + $0x31] sm:$0xff]
      %v2161 = vld [vmem:[%s987 + $0x39] sm:$0xff]
      %v2162 = vld [vmem:[%s987 + $0x49] sm:$0xff]
      %v2163 = vld [vmem:[%s987 + $0x51] sm:$0xff]
      %v2164 = vld [vmem:[%s987 + $0x61] sm:$0xff]
      %v2165 = vld [vmem:[%s987 + $0x69] sm:$0xff]
      %v2166 = vld [vmem:[%s987 + $0x79] sm:$0xff]
      %v2167 = vld [vmem:[%s987 + $0x81] sm:$0xff]
      %v2168 = vld [vmem:[%s987 + $0x91] sm:$0xff]
      %v2169 = vld [vmem:[%s987 + $0x99] sm:$0xff]
      %v2170 = vld [vmem:[%s987 + $0xa9] sm:$0xff]
      %v2171 = vld [vmem:[%s987 + $0xb1] sm:$0xff]
      %v2172 = vld [vmem:[%s987 + $0xc1] sm:$0xff]
      %v2173 = vld [vmem:[%s987 + $0xc9] sm:$0xff]
      %v2174 = vld [vmem:[%s987 + $0xd9] sm:$0xff]
      %v2175 = vld [vmem:[%s987 + $0xe1] sm:$0xff]
      %v2176 = vld [vmem:[%s987 + $0xf1] sm:$0xff]
      %v2177 = vld [vmem:[%s987 + $0xf9] sm:$0xff]
      %v2178 = vld [vmem:[%s987 + $0x109] sm:$0xff]
      %v2179 = vld [vmem:[%s987 + $0x111] sm:$0xff]
      %v2180 = vld [vmem:[%s987 + $0x121] sm:$0xff]
      %v2181 = vld [vmem:[%s987 + $0x129] sm:$0xff]
      %v2182 = vld [vmem:[%s987 + $0x139] sm:$0xff]
      %v2183 = vld [vmem:[%s987 + $0x141] sm:$0xff]
      %v2184 = vld [vmem:[%s987 + $0x151] sm:$0xff]
      %v2185 = vld [vmem:[%s987 + $0x159] sm:$0xff]
      %v2186 = vld [vmem:[%s987 + $0x169] sm:$0xff]
      %v2187 = vld [vmem:[%s987 + $0x171] sm:$0xff]
      %v2188 = vpack.c.bf16 %v2157, %v2156
      %v2189 = vpack.c.bf16 %v2159, %v2158
      %v2190 = vpack.c.bf16 %v2161, %v2160
      %v2191 = vpack.c.bf16 %v2163, %v2162
      %v2192 = vpack.c.bf16 %v2165, %v2164
      %v2193 = vpack.c.bf16 %v2167, %v2166
      %v2194 = vpack.c.bf16 %v2169, %v2168
      %v2195 = vpack.c.bf16 %v2171, %v2170
      %v2196 = vpack.c.bf16 %v2173, %v2172
      %v2197 = vpack.c.bf16 %v2175, %v2174
      %v2198 = vpack.c.bf16 %v2177, %v2176
      %v2199 = vpack.c.bf16 %v2179, %v2178
      %v2200 = vpack.c.bf16 %v2181, %v2180
      %v2201 = vpack.c.bf16 %v2183, %v2182
      %v2202 = vpack.c.bf16 %v2185, %v2184
      %v2203 = vpack.c.bf16 %v2187, %v2186
      %s2204 = scalar_lea.vmem %s3, 32
      %v2205 = vld [vmem:[%s2204] sm:$0xf]
      %v2206 = vld [vmem:[%s2204 + $0x4] sm:$0x3]
      %v2209 = vunpack.c.l.b16 %v2205
      %v2210 = vunpack.c.l.b16 %v2206
      %v2211 = vpack.c.b16 %v2210, %v2209
      %v2213 = vsel %vm530, %v2188, 0
      %v2216 = vsel %vm530, %v2189, 0
      %v2219 = vsel %vm530, %v2190, 0
      %v2222 = vsel %vm530, %v2191, 0
      %v2225 = vsel %vm530, %v2192, 0
      %v2228 = vsel %vm530, %v2193, 0
      %v2231 = vsel %vm530, %v2194, 0
      %v2234 = vsel %vm530, %v2195, 0
      %v2237 = vsel %vm530, %v2196, 0
      %v2240 = vsel %vm530, %v2197, 0
      %v2243 = vsel %vm530, %v2198, 0
      %v2246 = vsel %vm530, %v2199, 0
      %v2249 = vsel %vm530, %v2200, 0
      %v2252 = vsel %vm530, %v2201, 0
      %v2255 = vsel %vm530, %v2202, 0
      %v2258 = vsel %vm530, %v2203, 0
      %v2261 = vsel %vm1174, %v2211, 0
      %2263 = vmatprep.subr.bf16.mxu0 0
      %2264 = vmatpush1.bf16.msra.mxu0 %v2261
      %2265 = vmatprep.subr.bf16.mxu0 0
      %2266 = vmatpush1.bf16.msra.mxu0 0
      %2267 = vmatprep.subr.bf16.mxu0 0
      %2268 = vmatpush1.bf16.msra.mxu0 0
      %2269 = vmatprep.subr.bf16.mxu0 0
      %2270 = vmatpush1.bf16.msra.mxu0 0
      %2271 = vmatprep.subr.bf16.mxu0 0
      %2272 = vmatpush1.bf16.msra.mxu0 0
      %2273 = vmatprep.subr.bf16.mxu0 0
      %2274 = vmatpush1.bf16.msra.mxu0 0
      %2275 = vmatprep.subr.bf16.mxu0 0
      %2276 = vmatpush1.bf16.msra.mxu0 0
      %2277 = vmatprep.subr.bf16.mxu0 0
      %2278 = vmatpush1.bf16.msra.mxu0 0
      %2279 = vmatprep.subr.bf16.mxu0 0
      %2280 = vmatpush1.bf16.msra.mxu0 0
      %2281 = vmatprep.subr.bf16.mxu0 0
      %2282 = vmatpush1.bf16.msra.mxu0 0
      %2283 = vmatprep.subr.bf16.mxu0 0
      %2284 = vmatpush1.bf16.msra.mxu0 0
      %2285 = vmatprep.subr.bf16.mxu0 0
      %2286 = vmatpush1.bf16.msra.mxu0 0
      %2287 = vmatprep.subr.bf16.mxu0 0
      %2288 = vmatpush1.bf16.msra.mxu0 0
      %2289 = vmatprep.subr.bf16.mxu0 0
      %2290 = vmatpush1.bf16.msra.mxu0 0
      %2291 = vmatprep.subr.bf16.mxu0 0
      %2292 = vmatpush1.bf16.msra.mxu0 0
      %2293 = vmatprep.subr.bf16.mxu0 0
      %2294 = vmatpush1.bf16.msra.mxu0 0
      %2295 = vmatprep.mubr.bf16.mxu0 0
      %2296 = vmatmul.mubr.bf16.gmra.mrb[0].mxu0 %v2213
      %v2297 = vpop.f32.mrb[0].mxu0
      %v2298 = vadd.f32 0.0, %v2297
      %v2299 = vpop.f32.mrb[0].mxu0
      %v2300 = vpop.f32.mrb[0].mxu0
      %v2301 = vadd.f32 0.0, %v2300
      %v2302 = vpop.f32.mrb[0].mxu0
      %2303 = vmatprep.mubr.bf16.mxu0 0
      %2304 = vmatmul.mubr.bf16.gmra.mrb[0].mxu0 %v2216
      %v2305 = vpop.f32.mrb[0].mxu0
      %v2306 = vadd.f32 0.0, %v2305
      %v2307 = vpop.f32.mrb[0].mxu0
      %v2308 = vpop.f32.mrb[0].mxu0
      %v2309 = vadd.f32 0.0, %v2308
      %v2310 = vpop.f32.mrb[0].mxu0
      %2311 = vmatprep.mubr.bf16.mxu0 0
      %2312 = vmatmul.mubr.bf16.gmra.mrb[0].mxu0 %v2219
      %v2313 = vpop.f32.mrb[0].mxu0
      %v2314 = vadd.f32 0.0, %v2313
      %v2315 = vpop.f32.mrb[0].mxu0
      %v2316 = vpop.f32.mrb[0].mxu0
      %v2317 = vadd.f32 0.0, %v2316
      %v2318 = vpop.f32.mrb[0].mxu0
      %2319 = vmatprep.mubr.bf16.mxu0 0
      %2320 = vmatmul.mubr.bf16.gmra.mrb[0].mxu0 %v2222
      %v2321 = vpop.f32.mrb[0].mxu0
      %v2322 = vadd.f32 0.0, %v2321
      %v2323 = vpop.f32.mrb[0].mxu0
      %v2324 = vpop.f32.mrb[0].mxu0
      %v2325 = vadd.f32 0.0, %v2324
      %v2326 = vpop.f32.mrb[0].mxu0
      %2327 = vmatprep.mubr.bf16.mxu0 0
      %2328 = vmatmul.mubr.bf16.gmra.mrb[0].mxu0 %v2225
      %v2329 = vpop.f32.mrb[0].mxu0
      %v2330 = vadd.f32 0.0, %v2329
      %v2331 = vpop.f32.mrb[0].mxu0
      %v2332 = vpop.f32.mrb[0].mxu0
      %v2333 = vadd.f32 0.0, %v2332
      %v2334 = vpop.f32.mrb[0].mxu0
      %2335 = vmatprep.mubr.bf16.mxu0 0
      %2336 = vmatmul.mubr.bf16.gmra.mrb[0].mxu0 %v2228
      %v2337 = vpop.f32.mrb[0].mxu0
      %v2338 = vadd.f32 0.0, %v2337
      %v2339 = vpop.f32.mrb[0].mxu0
      %v2340 = vpop.f32.mrb[0].mxu0
      %v2341 = vadd.f32 0.0, %v2340
      %v2342 = vpop.f32.mrb[0].mxu0
      %2343 = vmatprep.mubr.bf16.mxu0 0
      %2344 = vmatmul.mubr.bf16.gmra.mrb[0].mxu0 %v2231
      %v2345 = vpop.f32.mrb[0].mxu0
      %v2346 = vadd.f32 0.0, %v2345
      %v2347 = vpop.f32.mrb[0].mxu0
      %v2348 = vpop.f32.mrb[0].mxu0
      %v2349 = vadd.f32 0.0, %v2348
      %v2350 = vpop.f32.mrb[0].mxu0
      %2351 = vmatprep.mubr.bf16.mxu0 0
      %2352 = vmatmul.mubr.bf16.gmra.mrb[0].mxu0 %v2234
      %v2353 = vpop.f32.mrb[0].mxu0
      %v2354 = vadd.f32 0.0, %v2353
      %v2355 = vpop.f32.mrb[0].mxu0
      %v2356 = vpop.f32.mrb[0].mxu0
      %v2357 = vadd.f32 0.0, %v2356
      %v2358 = vpop.f32.mrb[0].mxu0
      %2359 = vmatprep.mubr.bf16.mxu0 0
      %2360 = vmatmul.mubr.bf16.gmra.mrb[0].mxu0 %v2237
      %v2361 = vpop.f32.mrb[0].mxu0
      %v2362 = vadd.f32 0.0, %v2361
      %v2363 = vpop.f32.mrb[0].mxu0
      %v2364 = vpop.f32.mrb[0].mxu0
      %v2365 = vadd.f32 0.0, %v2364
      %v2366 = vpop.f32.mrb[0].mxu0
      %2367 = vmatprep.mubr.bf16.mxu0 0
      %2368 = vmatmul.mubr.bf16.gmra.mrb[0].mxu0 %v2240
      %v2369 = vpop.f32.mrb[0].mxu0
      %v2370 = vadd.f32 0.0, %v2369
      %v2371 = vpop.f32.mrb[0].mxu0
      %v2372 = vpop.f32.mrb[0].mxu0
      %v2373 = vadd.f32 0.0, %v2372
      %v2374 = vpop.f32.mrb[0].mxu0
      %2375 = vmatprep.mubr.bf16.mxu0 0
      %2376 = vmatmul.mubr.bf16.gmra.mrb[0].mxu0 %v2243
      %v2377 = vpop.f32.mrb[0].mxu0
      %v2378 = vadd.f32 0.0, %v2377
      %v2379 = vpop.f32.mrb[0].mxu0
      %v2380 = vpop.f32.mrb[0].mxu0
      %v2381 = vadd.f32 0.0, %v2380
      %v2382 = vpop.f32.mrb[0].mxu0
      %2383 = vmatprep.mubr.bf16.mxu0 0
      %2384 = vmatmul.mubr.bf16.gmra.mrb[0].mxu0 %v2246
      %v2385 = vpop.f32.mrb[0].mxu0
      %v2386 = vadd.f32 0.0, %v2385
      %v2387 = vpop.f32.mrb[0].mxu0
      %v2388 = vpop.f32.mrb[0].mxu0
      %v2389 = vadd.f32 0.0, %v2388
      %v2390 = vpop.f32.mrb[0].mxu0
      %2391 = vmatprep.mubr.bf16.mxu0 0
      %2392 = vmatmul.mubr.bf16.gmra.mrb[0].mxu0 %v2249
      %v2393 = vpop.f32.mrb[0].mxu0
      %v2394 = vadd.f32 0.0, %v2393
      %v2395 = vpop.f32.mrb[0].mxu0
      %v2396 = vpop.f32.mrb[0].mxu0
      %v2397 = vadd.f32 0.0, %v2396
      %v2398 = vpop.f32.mrb[0].mxu0
      %2399 = vmatprep.mubr.bf16.mxu0 0
      %2400 = vmatmul.mubr.bf16.gmra.mrb[0].mxu0 %v2252
      %v2401 = vpop.f32.mrb[0].mxu0
      %v2402 = vadd.f32 0.0, %v2401
      %v2403 = vpop.f32.mrb[0].mxu0
      %v2404 = vpop.f32.mrb[0].mxu0
      %v2405 = vadd.f32 0.0, %v2404
      %v2406 = vpop.f32.mrb[0].mxu0
      %2407 = vmatprep.mubr.bf16.mxu0 0
      %2408 = vmatmul.mubr.bf16.gmra.mrb[0].mxu0 %v2255
      %v2409 = vpop.f32.mrb[0].mxu0
      %v2410 = vadd.f32 0.0, %v2409
      %v2411 = vpop.f32.mrb[0].mxu0
      %v2412 = vpop.f32.mrb[0].mxu0
      %v2413 = vadd.f32 0.0, %v2412
      %v2414 = vpop.f32.mrb[0].mxu0
      %2415 = vmatprep.mubr.bf16.mxu0 0
      %2416 = vmatmul.mubr.bf16.gmra.mrb[0].mxu0 %v2258
      %v2417 = vpop.f32.mrb[0].mxu0
      %v2418 = vadd.f32 0.0, %v2417
      %v2419 = vpop.f32.mrb[0].mxu0
      %v2420 = vpop.f32.mrb[0].mxu0
      %v2421 = vadd.f32 0.0, %v2420
      %v2422 = vpop.f32.mrb[0].mxu0
      %2423 = vdwg.mxu0
      %v2424 = vadd.f32 %v2124, %v2298
      %v2425 = vadd.f32 %v2125, %v2301
      %v2426 = vadd.f32 %v2126, %v2306
      %v2427 = vadd.f32 %v2127, %v2309
      %v2428 = vadd.f32 %v2128, %v2314
      %v2429 = vadd.f32 %v2129, %v2317
      %v2430 = vadd.f32 %v2130, %v2322
      %v2431 = vadd.f32 %v2131, %v2325
      %v2432 = vadd.f32 %v2132, %v2330
      %v2433 = vadd.f32 %v2133, %v2333
      %v2434 = vadd.f32 %v2134, %v2338
      %v2435 = vadd.f32 %v2135, %v2341
      %v2436 = vadd.f32 %v2136, %v2346
      %v2437 = vadd.f32 %v2137, %v2349
      %v2438 = vadd.f32 %v2138, %v2354
      %v2439 = vadd.f32 %v2139, %v2357
      %v2440 = vadd.f32 %v2140, %v2362
      %v2441 = vadd.f32 %v2141, %v2365
      %v2442 = vadd.f32 %v2142, %v2370
      %v2443 = vadd.f32 %v2143, %v2373
      %v2444 = vadd.f32 %v2144, %v2378
      %v2445 = vadd.f32 %v2145, %v2381
      %v2446 = vadd.f32 %v2146, %v2386
      %v2447 = vadd.f32 %v2147, %v2389
      %v2448 = vadd.f32 %v2148, %v2394
      %v2449 = vadd.f32 %v2149, %v2397
      %v2450 = vadd.f32 %v2150, %v2402
      %v2451 = vadd.f32 %v2151, %v2405
      %v2452 = vadd.f32 %v2152, %v2410
      %v2453 = vadd.f32 %v2153, %v2413
      %v2454 = vadd.f32 %v2154, %v2418
      %v2455 = vadd.f32 %v2155, %v2421
      %v2456 = vld [vmem:[%s987 + $0x2] sm:$0xff]
      %v2457 = vld [vmem:[%s987 + $0xa] sm:$0xff]
      %v2458 = vld [vmem:[%s987 + $0x1a] sm:$0xff]
      %v2459 = vld [vmem:[%s987 + $0x22] sm:$0xff]
      %v2460 = vld [vmem:[%s987 + $0x32] sm:$0xff]
      %v2461 = vld [vmem:[%s987 + $0x3a] sm:$0xff]
      %v2462 = vld [vmem:[%s987 + $0x4a] sm:$0xff]
      %v2463 = vld [vmem:[%s987 + $0x52] sm:$0xff]
      %v2464 = vld [vmem:[%s987 + $0x62] sm:$0xff]
      %v2465 = vld [vmem:[%s987 + $0x6a] sm:$0xff]
      %v2466 = vld [vmem:[%s987 + $0x7a] sm:$0xff]
      %v2467 = vld [vmem:[%s987 + $0x82] sm:$0xff]
      %v2468 = vld [vmem:[%s987 + $0x92] sm:$0xff]
      %v2469 = vld [vmem:[%s987 + $0x9a] sm:$0xff]
      %v2470 = vld [vmem:[%s987 + $0xaa] sm:$0xff]
      %v2471 = vld [vmem:[%s987 + $0xb2] sm:$0xff]
      %v2472 = vld [vmem:[%s987 + $0xc2] sm:$0xff]
      %v2473 = vld [vmem:[%s987 + $0xca] sm:$0xff]
      %v2474 = vld [vmem:[%s987 + $0xda] sm:$0xff]
      %v2475 = vld [vmem:[%s987 + $0xe2] sm:$0xff]
      %v2476 = vld [vmem:[%s987 + $0xf2] sm:$0xff]
      %v2477 = vld [vmem:[%s987 + $0xfa] sm:$0xff]
      %v2478 = vld [vmem:[%s987 + $0x10a] sm:$0xff]
      %v2479 = vld [vmem:[%s987 + $0x112] sm:$0xff]
      %v2480 = vld [vmem:[%s987 + $0x122] sm:$0xff]
      %v2481 = vld [vmem:[%s987 + $0x12a] sm:$0xff]
      %v2482 = vld [vmem:[%s987 + $0x13a] sm:$0xff]
      %v2483 = vld [vmem:[%s987 + $0x142] sm:$0xff]
      %v2484 = vld [vmem:[%s987 + $0x152] sm:$0xff]
      %v2485 = vld [vmem:[%s987 + $0x15a] sm:$0xff]
      %v2486 = vld [vmem:[%s987 + $0x16a] sm:$0xff]
      %v2487 = vld [vmem:[%s987 + $0x172] sm:$0xff]
      %v2488 = vpack.c.bf16 %v2457, %v2456
      %v2489 = vpack.c.bf16 %v2459, %v2458
      %v2490 = vpack.c.bf16 %v2461, %v2460
      %v2491 = vpack.c.bf16 %v2463, %v2462
      %v2492 = vpack.c.bf16 %v2465, %v2464
      %v2493 = vpack.c.bf16 %v2467, %v2466
      %v2494 = vpack.c.bf16 %v2469, %v2468
      %v2495 = vpack.c.bf16 %v2471, %v2470
      %v2496 = vpack.c.bf16 %v2473, %v2472
      %v2497 = vpack.c.bf16 %v2475, %v2474
      %v2498 = vpack.c.bf16 %v2477, %v2476
      %v2499 = vpack.c.bf16 %v2479, %v2478
      %v2500 = vpack.c.bf16 %v2481, %v2480
      %v2501 = vpack.c.bf16 %v2483, %v2482
      %v2502 = vpack.c.bf16 %v2485, %v2484
      %v2503 = vpack.c.bf16 %v2487, %v2486
      %s2504 = scalar_lea.vmem %s3, 40
      %v2505 = vld [vmem:[%s2504] sm:$0xf]
      %v2506 = vld [vmem:[%s2504 + $0x4] sm:$0x3]
      %v2509 = vunpack.c.l.b16 %v2505
      %v2510 = vunpack.c.l.b16 %v2506
      %v2511 = vpack.c.b16 %v2510, %v2509
      %v2513 = vsel %vm530, %v2488, 0
      %v2516 = vsel %vm530, %v2489, 0
      %v2519 = vsel %vm530, %v2490, 0
      %v2522 = vsel %vm530, %v2491, 0
      %v2525 = vsel %vm530, %v2492, 0
      %v2528 = vsel %vm530, %v2493, 0
      %v2531 = vsel %vm530, %v2494, 0
      %v2534 = vsel %vm530, %v2495, 0
      %v2537 = vsel %vm530, %v2496, 0
      %v2540 = vsel %vm530, %v2497, 0
      %v2543 = vsel %vm530, %v2498, 0
      %v2546 = vsel %vm530, %v2499, 0
      %v2549 = vsel %vm530, %v2500, 0
      %v2552 = vsel %vm530, %v2501, 0
      %v2555 = vsel %vm530, %v2502, 0
      %v2558 = vsel %vm530, %v2503, 0
      %v2561 = vsel %vm1174, %v2511, 0
      %2563 = vmatprep.subr.bf16.mxu0 0
      %2564 = vmatpush1.bf16.msra.mxu0 %v2561
      %2565 = vmatprep.subr.bf16.mxu0 0
      %2566 = vmatpush1.bf16.msra.mxu0 0
      %2567 = vmatprep.subr.bf16.mxu0 0
      %2568 = vmatpush1.bf16.msra.mxu0 0
      %2569 = vmatprep.subr.bf16.mxu0 0
      %2570 = vmatpush1.bf16.msra.mxu0 0
      %2571 = vmatprep.subr.bf16.mxu0 0
      %2572 = vmatpush1.bf16.msra.mxu0 0
      %2573 = vmatprep.subr.bf16.mxu0 0
      %2574 = vmatpush1.bf16.msra.mxu0 0
      %2575 = vmatprep.subr.bf16.mxu0 0
      %2576 = vmatpush1.bf16.msra.mxu0 0
      %2577 = vmatprep.subr.bf16.mxu0 0
      %2578 = vmatpush1.bf16.msra.mxu0 0
      %2579 = vmatprep.subr.bf16.mxu0 0
      %2580 = vmatpush1.bf16.msra.mxu0 0
      %2581 = vmatprep.subr.bf16.mxu0 0
      %2582 = vmatpush1.bf16.msra.mxu0 0
      %2583 = vmatprep.subr.bf16.mxu0 0
      %2584 = vmatpush1.bf16.msra.mxu0 0
      %2585 = vmatprep.subr.bf16.mxu0 0
      %2586 = vmatpush1.bf16.msra.mxu0 0
      %2587 = vmatprep.subr.bf16.mxu0 0
      %2588 = vmatpush1.bf16.msra.mxu0 0
      %2589 = vmatprep.subr.bf16.mxu0 0
      %2590 = vmatpush1.bf16.msra.mxu0 0
      %2591 = vmatprep.subr.bf16.mxu0 0
      %2592 = vmatpush1.bf16.msra.mxu0 0
      %2593 = vmatprep.subr.bf16.mxu0 0
      %2594 = vmatpush1.bf16.msra.mxu0 0
      %2595 = vmatprep.mubr.bf16.mxu0 0
      %2596 = vmatmul.mubr.bf16.gmra.mrb[0].mxu0 %v2513
      %v2597 = vpop.f32.mrb[0].mxu0
      %v2598 = vadd.f32 0.0, %v2597
      %v2599 = vpop.f32.mrb[0].mxu0
      %v2600 = vpop.f32.mrb[0].mxu0
      %v2601 = vadd.f32 0.0, %v2600
      %v2602 = vpop.f32.mrb[0].mxu0
      %2603 = vmatprep.mubr.bf16.mxu0 0
      %2604 = vmatmul.mubr.bf16.gmra.mrb[0].mxu0 %v2516
      %v2605 = vpop.f32.mrb[0].mxu0
      %v2606 = vadd.f32 0.0, %v2605
      %v2607 = vpop.f32.mrb[0].mxu0
      %v2608 = vpop.f32.mrb[0].mxu0
      %v2609 = vadd.f32 0.0, %v2608
      %v2610 = vpop.f32.mrb[0].mxu0
      %2611 = vmatprep.mubr.bf16.mxu0 0
      %2612 = vmatmul.mubr.bf16.gmra.mrb[0].mxu0 %v2519
      %v2613 = vpop.f32.mrb[0].mxu0
      %v2614 = vadd.f32 0.0, %v2613
      %v2615 = vpop.f32.mrb[0].mxu0
      %v2616 = vpop.f32.mrb[0].mxu0
      %v2617 = vadd.f32 0.0, %v2616
      %v2618 = vpop.f32.mrb[0].mxu0
      %2619 = vmatprep.mubr.bf16.mxu0 0
      %2620 = vmatmul.mubr.bf16.gmra.mrb[0].mxu0 %v2522
      %v2621 = vpop.f32.mrb[0].mxu0
      %v2622 = vadd.f32 0.0, %v2621
      %v2623 = vpop.f32.mrb[0].mxu0
      %v2624 = vpop.f32.mrb[0].mxu0
      %v2625 = vadd.f32 0.0, %v2624
      %v2626 = vpop.f32.mrb[0].mxu0
      %2627 = vmatprep.mubr.bf16.mxu0 0
      %2628 = vmatmul.mubr.bf16.gmra.mrb[0].mxu0 %v2525
      %v2629 = vpop.f32.mrb[0].mxu0
      %v2630 = vadd.f32 0.0, %v2629
      %v2631 = vpop.f32.mrb[0].mxu0
      %v2632 = vpop.f32.mrb[0].mxu0
      %v2633 = vadd.f32 0.0, %v2632
      %v2634 = vpop.f32.mrb[0].mxu0
      %2635 = vmatprep.mubr.bf16.mxu0 0
      %2636 = vmatmul.mubr.bf16.gmra.mrb[0].mxu0 %v2528
      %v2637 = vpop.f32.mrb[0].mxu0
      %v2638 = vadd.f32 0.0, %v2637
      %v2639 = vpop.f32.mrb[0].mxu0
      %v2640 = vpop.f32.mrb[0].mxu0
      %v2641 = vadd.f32 0.0, %v2640
      %v2642 = vpop.f32.mrb[0].mxu0
      %2643 = vmatprep.mubr.bf16.mxu0 0
      %2644 = vmatmul.mubr.bf16.gmra.mrb[0].mxu0 %v2531
      %v2645 = vpop.f32.mrb[0].mxu0
      %v2646 = vadd.f32 0.0, %v2645
      %v2647 = vpop.f32.mrb[0].mxu0
      %v2648 = vpop.f32.mrb[0].mxu0
      %v2649 = vadd.f32 0.0, %v2648
      %v2650 = vpop.f32.mrb[0].mxu0
      %2651 = vmatprep.mubr.bf16.mxu0 0
      %2652 = vmatmul.mubr.bf16.gmra.mrb[0].mxu0 %v2534
      %v2653 = vpop.f32.mrb[0].mxu0
      %v2654 = vadd.f32 0.0, %v2653
      %v2655 = vpop.f32.mrb[0].mxu0
      %v2656 = vpop.f32.mrb[0].mxu0
      %v2657 = vadd.f32 0.0, %v2656
      %v2658 = vpop.f32.mrb[0].mxu0
      %2659 = vmatprep.mubr.bf16.mxu0 0
      %2660 = vmatmul.mubr.bf16.gmra.mrb[0].mxu0 %v2537
      %v2661 = vpop.f32.mrb[0].mxu0
      %v2662 = vadd.f32 0.0, %v2661
      %v2663 = vpop.f32.mrb[0].mxu0
      %v2664 = vpop.f32.mrb[0].mxu0
      %v2665 = vadd.f32 0.0, %v2664
      %v2666 = vpop.f32.mrb[0].mxu0
      %2667 = vmatprep.mubr.bf16.mxu0 0
      %2668 = vmatmul.mubr.bf16.gmra.mrb[0].mxu0 %v2540
      %v2669 = vpop.f32.mrb[0].mxu0
      %v2670 = vadd.f32 0.0, %v2669
      %v2671 = vpop.f32.mrb[0].mxu0
      %v2672 = vpop.f32.mrb[0].mxu0
      %v2673 = vadd.f32 0.0, %v2672
      %v2674 = vpop.f32.mrb[0].mxu0
      %2675 = vmatprep.mubr.bf16.mxu0 0
      %2676 = vmatmul.mubr.bf16.gmra.mrb[0].mxu0 %v2543
      %v2677 = vpop.f32.mrb[0].mxu0
      %v2678 = vadd.f32 0.0, %v2677
      %v2679 = vpop.f32.mrb[0].mxu0
      %v2680 = vpop.f32.mrb[0].mxu0
      %v2681 = vadd.f32 0.0, %v2680
      %v2682 = vpop.f32.mrb[0].mxu0
      %2683 = vmatprep.mubr.bf16.mxu0 0
      %2684 = vmatmul.mubr.bf16.gmra.mrb[0].mxu0 %v2546
      %v2685 = vpop.f32.mrb[0].mxu0
      %v2686 = vadd.f32 0.0, %v2685
      %v2687 = vpop.f32.mrb[0].mxu0
      %v2688 = vpop.f32.mrb[0].mxu0
      %v2689 = vadd.f32 0.0, %v2688
      %v2690 = vpop.f32.mrb[0].mxu0
      %2691 = vmatprep.mubr.bf16.mxu0 0
      %2692 = vmatmul.mubr.bf16.gmra.mrb[0].mxu0 %v2549
      %v2693 = vpop.f32.mrb[0].mxu0
      %v2694 = vadd.f32 0.0, %v2693
      %v2695 = vpop.f32.mrb[0].mxu0
      %v2696 = vpop.f32.mrb[0].mxu0
      %v2697 = vadd.f32 0.0, %v2696
      %v2698 = vpop.f32.mrb[0].mxu0
      %2699 = vmatprep.mubr.bf16.mxu0 0
      %2700 = vmatmul.mubr.bf16.gmra.mrb[0].mxu0 %v2552
      %v2701 = vpop.f32.mrb[0].mxu0
      %v2702 = vadd.f32 0.0, %v2701
      %v2703 = vpop.f32.mrb[0].mxu0
      %v2704 = vpop.f32.mrb[0].mxu0
      %v2705 = vadd.f32 0.0, %v2704
      %v2706 = vpop.f32.mrb[0].mxu0
      %2707 = vmatprep.mubr.bf16.mxu0 0
      %2708 = vmatmul.mubr.bf16.gmra.mrb[0].mxu0 %v2555
      %v2709 = vpop.f32.mrb[0].mxu0
      %v2710 = vadd.f32 0.0, %v2709
      %v2711 = vpop.f32.mrb[0].mxu0
      %v2712 = vpop.f32.mrb[0].mxu0
      %v2713 = vadd.f32 0.0, %v2712
      %v2714 = vpop.f32.mrb[0].mxu0
      %2715 = vmatprep.mubr.bf16.mxu0 0
      %2716 = vmatmul.mubr.bf16.gmra.mrb[0].mxu0 %v2558
      %v2717 = vpop.f32.mrb[0].mxu0
      %v2718 = vadd.f32 0.0, %v2717
      %v2719 = vpop.f32.mrb[0].mxu0
      %v2720 = vpop.f32.mrb[0].mxu0
      %v2721 = vadd.f32 0.0, %v2720
      %v2722 = vpop.f32.mrb[0].mxu0
      %2723 = vdwg.mxu0
      %v2724 = vadd.f32 %v2424, %v2598
      %v2725 = vadd.f32 %v2425, %v2601
      %v2726 = vadd.f32 %v2426, %v2606
      %v2727 = vadd.f32 %v2427, %v2609
      %v2728 = vadd.f32 %v2428, %v2614
      %v2729 = vadd.f32 %v2429, %v2617
      %v2730 = vadd.f32 %v2430, %v2622
      %v2731 = vadd.f32 %v2431, %v2625
      %v2732 = vadd.f32 %v2432, %v2630
      %v2733 = vadd.f32 %v2433, %v2633
      %v2734 = vadd.f32 %v2434, %v2638
      %v2735 = vadd.f32 %v2435, %v2641
      %v2736 = vadd.f32 %v2436, %v2646
      %v2737 = vadd.f32 %v2437, %v2649
      %v2738 = vadd.f32 %v2438, %v2654
      %v2739 = vadd.f32 %v2439, %v2657
      %v2740 = vadd.f32 %v2440, %v2662
      %v2741 = vadd.f32 %v2441, %v2665
      %v2742 = vadd.f32 %v2442, %v2670
      %v2743 = vadd.f32 %v2443, %v2673
      %v2744 = vadd.f32 %v2444, %v2678
      %v2745 = vadd.f32 %v2445, %v2681
      %v2746 = vadd.f32 %v2446, %v2686
      %v2747 = vadd.f32 %v2447, %v2689
      %v2748 = vadd.f32 %v2448, %v2694
      %v2749 = vadd.f32 %v2449, %v2697
      %v2750 = vadd.f32 %v2450, %v2702
      %v2751 = vadd.f32 %v2451, %v2705
      %v2752 = vadd.f32 %v2452, %v2710
      %v2753 = vadd.f32 %v2453, %v2713
      %v2754 = vadd.f32 %v2454, %v2718
      %v2755 = vadd.f32 %v2455, %v2721
      %s2756 = scalar_lea.vmem [#allocation2], 48
      %v2757 = vld [vmem:[%s2756] sm:$0xff]
      %v2758 = vld [vmem:[%s2756 + $0x8] sm:$0xff]
      %v2759 = vld [vmem:[%s2756 + $0x18] sm:$0xff]
      %v2760 = vld [vmem:[%s2756 + $0x20] sm:$0xff]
      %v2761 = vld [vmem:[%s2756 + $0x30] sm:$0xff]
      %v2762 = vld [vmem:[%s2756 + $0x38] sm:$0xff]
      %v2763 = vld [vmem:[%s2756 + $0x48] sm:$0xff]
      %v2764 = vld [vmem:[%s2756 + $0x50] sm:$0xff]
      %v2765 = vld [vmem:[%s2756 + $0x60] sm:$0xff]
      %v2766 = vld [vmem:[%s2756 + $0x68] sm:$0xff]
      %v2767 = vld [vmem:[%s2756 + $0x78] sm:$0xff]
      %v2768 = vld [vmem:[%s2756 + $0x80] sm:$0xff]
      %v2769 = vld [vmem:[%s2756 + $0x90] sm:$0xff]
      %v2770 = vld [vmem:[%s2756 + $0x98] sm:$0xff]
      %v2771 = vld [vmem:[%s2756 + $0xa8] sm:$0xff]
      %v2772 = vld [vmem:[%s2756 + $0xb0] sm:$0xff]
      %v2773 = vld [vmem:[%s2756 + $0xc0] sm:$0xff]
      %v2774 = vld [vmem:[%s2756 + $0xc8] sm:$0xff]
      %v2775 = vld [vmem:[%s2756 + $0xd8] sm:$0xff]
      %v2776 = vld [vmem:[%s2756 + $0xe0] sm:$0xff]
      %v2777 = vld [vmem:[%s2756 + $0xf0] sm:$0xff]
      %v2778 = vld [vmem:[%s2756 + $0xf8] sm:$0xff]
      %v2779 = vld [vmem:[%s2756 + $0x108] sm:$0xff]
      %v2780 = vld [vmem:[%s2756 + $0x110] sm:$0xff]
      %v2781 = vld [vmem:[%s2756 + $0x120] sm:$0xff]
      %v2782 = vld [vmem:[%s2756 + $0x128] sm:$0xff]
      %v2783 = vld [vmem:[%s2756 + $0x138] sm:$0xff]
      %v2784 = vld [vmem:[%s2756 + $0x140] sm:$0xff]
      %v2785 = vld [vmem:[%s2756 + $0x150] sm:$0xff]
      %v2786 = vld [vmem:[%s2756 + $0x158] sm:$0xff]
      %v2787 = vld [vmem:[%s2756 + $0x168] sm:$0xff]
      %v2788 = vld [vmem:[%s2756 + $0x170] sm:$0xff]
      %v2789 = vpack.c.bf16 %v2758, %v2757
      %v2790 = vpack.c.bf16 %v2760, %v2759
      %v2791 = vpack.c.bf16 %v2762, %v2761
      %v2792 = vpack.c.bf16 %v2764, %v2763
      %v2793 = vpack.c.bf16 %v2766, %v2765
      %v2794 = vpack.c.bf16 %v2768, %v2767
      %v2795 = vpack.c.bf16 %v2770, %v2769
      %v2796 = vpack.c.bf16 %v2772, %v2771
      %v2797 = vpack.c.bf16 %v2774, %v2773
      %v2798 = vpack.c.bf16 %v2776, %v2775
      %v2799 = vpack.c.bf16 %v2778, %v2777
      %v2800 = vpack.c.bf16 %v2780, %v2779
      %v2801 = vpack.c.bf16 %v2782, %v2781
      %v2802 = vpack.c.bf16 %v2784, %v2783
      %v2803 = vpack.c.bf16 %v2786, %v2785
      %v2804 = vpack.c.bf16 %v2788, %v2787
      %s2805 = scalar_lea.vmem %s3, 48
      %v2806 = vld [vmem:[%s2805] sm:$0xf]
      %v2807 = vld [vmem:[%s2805 + $0x4] sm:$0x3]
      %v2810 = vunpack.c.l.b16 %v2806
      %v2811 = vunpack.c.l.b16 %v2807
      %v2812 = vpack.c.b16 %v2811, %v2810
      %v2814 = vsel %vm530, %v2789, 0
      %v2817 = vsel %vm530, %v2790, 0
      %v2820 = vsel %vm530, %v2791, 0
      %v2823 = vsel %vm530, %v2792, 0
      %v2826 = vsel %vm530, %v2793, 0
      %v2829 = vsel %vm530, %v2794, 0
      %v2832 = vsel %vm530, %v2795, 0
      %v2835 = vsel %vm530, %v2796, 0
      %v2838 = vsel %vm530, %v2797, 0
      %v2841 = vsel %vm530, %v2798, 0
      %v2844 = vsel %vm530, %v2799, 0
      %v2847 = vsel %vm530, %v2800, 0
      %v2850 = vsel %vm530, %v2801, 0
      %v2853 = vsel %vm530, %v2802, 0
      %v2856 = vsel %vm530, %v2803, 0
      %v2859 = vsel %vm530, %v2804, 0
      %v2862 = vsel %vm1174, %v2812, 0
      %2864 = vmatprep.subr.bf16.mxu0 0
      %2865 = vmatpush1.bf16.msra.mxu0 %v2862
      %2866 = vmatprep.subr.bf16.mxu0 0
      %2867 = vmatpush1.bf16.msra.mxu0 0
      %2868 = vmatprep.subr.bf16.mxu0 0
      %2869 = vmatpush1.bf16.msra.mxu0 0
      %2870 = vmatprep.subr.bf16.mxu0 0
      %2871 = vmatpush1.bf16.msra.mxu0 0
      %2872 = vmatprep.subr.bf16.mxu0 0
      %2873 = vmatpush1.bf16.msra.mxu0 0
      %2874 = vmatprep.subr.bf16.mxu0 0
      %2875 = vmatpush1.bf16.msra.mxu0 0
      %2876 = vmatprep.subr.bf16.mxu0 0
      %2877 = vmatpush1.bf16.msra.mxu0 0
      %2878 = vmatprep.subr.bf16.mxu0 0
      %2879 = vmatpush1.bf16.msra.mxu0 0
      %2880 = vmatprep.subr.bf16.mxu0 0
      %2881 = vmatpush1.bf16.msra.mxu0 0
      %2882 = vmatprep.subr.bf16.mxu0 0
      %2883 = vmatpush1.bf16.msra.mxu0 0
      %2884 = vmatprep.subr.bf16.mxu0 0
      %2885 = vmatpush1.bf16.msra.mxu0 0
      %2886 = vmatprep.subr.bf16.mxu0 0
      %2887 = vmatpush1.bf16.msra.mxu0 0
      %2888 = vmatprep.subr.bf16.mxu0 0
      %2889 = vmatpush1.bf16.msra.mxu0 0
      %2890 = vmatprep.subr.bf16.mxu0 0
      %2891 = vmatpush1.bf16.msra.mxu0 0
      %2892 = vmatprep.subr.bf16.mxu0 0
      %2893 = vmatpush1.bf16.msra.mxu0 0
      %2894 = vmatprep.subr.bf16.mxu0 0
      %2895 = vmatpush1.bf16.msra.mxu0 0
      %2896 = vmatprep.mubr.bf16.mxu0 0
      %2897 = vmatmul.mubr.bf16.gmra.mrb[0].mxu0 %v2814
      %v2898 = vpop.f32.mrb[0].mxu0
      %v2899 = vadd.f32 0.0, %v2898
      %v2900 = vpop.f32.mrb[0].mxu0
      %v2901 = vpop.f32.mrb[0].mxu0
      %v2902 = vadd.f32 0.0, %v2901
      %v2903 = vpop.f32.mrb[0].mxu0
      %2904 = vmatprep.mubr.bf16.mxu0 0
      %2905 = vmatmul.mubr.bf16.gmra.mrb[0].mxu0 %v2817
      %v2906 = vpop.f32.mrb[0].mxu0
      %v2907 = vadd.f32 0.0, %v2906
      %v2908 = vpop.f32.mrb[0].mxu0
      %v2909 = vpop.f32.mrb[0].mxu0
      %v2910 = vadd.f32 0.0, %v2909
      %v2911 = vpop.f32.mrb[0].mxu0
      %2912 = vmatprep.mubr.bf16.mxu0 0
      %2913 = vmatmul.mubr.bf16.gmra.mrb[0].mxu0 %v2820
      %v2914 = vpop.f32.mrb[0].mxu0
      %v2915 = vadd.f32 0.0, %v2914
      %v2916 = vpop.f32.mrb[0].mxu0
      %v2917 = vpop.f32.mrb[0].mxu0
      %v2918 = vadd.f32 0.0, %v2917
      %v2919 = vpop.f32.mrb[0].mxu0
      %2920 = vmatprep.mubr.bf16.mxu0 0
      %2921 = vmatmul.mubr.bf16.gmra.mrb[0].mxu0 %v2823
      %v2922 = vpop.f32.mrb[0].mxu0
      %v2923 = vadd.f32 0.0, %v2922
      %v2924 = vpop.f32.mrb[0].mxu0
      %v2925 = vpop.f32.mrb[0].mxu0
      %v2926 = vadd.f32 0.0, %v2925
      %v2927 = vpop.f32.mrb[0].mxu0
      %2928 = vmatprep.mubr.bf16.mxu0 0
      %2929 = vmatmul.mubr.bf16.gmra.mrb[0].mxu0 %v2826
      %v2930 = vpop.f32.mrb[0].mxu0
      %v2931 = vadd.f32 0.0, %v2930
      %v2932 = vpop.f32.mrb[0].mxu0
      %v2933 = vpop.f32.mrb[0].mxu0
      %v2934 = vadd.f32 0.0, %v2933
      %v2935 = vpop.f32.mrb[0].mxu0
      %2936 = vmatprep.mubr.bf16.mxu0 0
      %2937 = vmatmul.mubr.bf16.gmra.mrb[0].mxu0 %v2829
      %v2938 = vpop.f32.mrb[0].mxu0
      %v2939 = vadd.f32 0.0, %v2938
      %v2940 = vpop.f32.mrb[0].mxu0
      %v2941 = vpop.f32.mrb[0].mxu0
      %v2942 = vadd.f32 0.0, %v2941
      %v2943 = vpop.f32.mrb[0].mxu0
      %2944 = vmatprep.mubr.bf16.mxu0 0
      %2945 = vmatmul.mubr.bf16.gmra.mrb[0].mxu0 %v2832
      %v2946 = vpop.f32.mrb[0].mxu0
      %v2947 = vadd.f32 0.0, %v2946
      %v2948 = vpop.f32.mrb[0].mxu0
      %v2949 = vpop.f32.mrb[0].mxu0
      %v2950 = vadd.f32 0.0, %v2949
      %v2951 = vpop.f32.mrb[0].mxu0
      %2952 = vmatprep.mubr.bf16.mxu0 0
      %2953 = vmatmul.mubr.bf16.gmra.mrb[0].mxu0 %v2835
      %v2954 = vpop.f32.mrb[0].mxu0
      %v2955 = vadd.f32 0.0, %v2954
      %v2956 = vpop.f32.mrb[0].mxu0
      %v2957 = vpop.f32.mrb[0].mxu0
      %v2958 = vadd.f32 0.0, %v2957
      %v2959 = vpop.f32.mrb[0].mxu0
      %2960 = vmatprep.mubr.bf16.mxu0 0
      %2961 = vmatmul.mubr.bf16.gmra.mrb[0].mxu0 %v2838
      %v2962 = vpop.f32.mrb[0].mxu0
      %v2963 = vadd.f32 0.0, %v2962
      %v2964 = vpop.f32.mrb[0].mxu0
      %v2965 = vpop.f32.mrb[0].mxu0
      %v2966 = vadd.f32 0.0, %v2965
      %v2967 = vpop.f32.mrb[0].mxu0
      %2968 = vmatprep.mubr.bf16.mxu0 0
      %2969 = vmatmul.mubr.bf16.gmra.mrb[0].mxu0 %v2841
      %v2970 = vpop.f32.mrb[0].mxu0
      %v2971 = vadd.f32 0.0, %v2970
      %v2972 = vpop.f32.mrb[0].mxu0
      %v2973 = vpop.f32.mrb[0].mxu0
      %v2974 = vadd.f32 0.0, %v2973
      %v2975 = vpop.f32.mrb[0].mxu0
      %2976 = vmatprep.mubr.bf16.mxu0 0
      %2977 = vmatmul.mubr.bf16.gmra.mrb[0].mxu0 %v2844
      %v2978 = vpop.f32.mrb[0].mxu0
      %v2979 = vadd.f32 0.0, %v2978
      %v2980 = vpop.f32.mrb[0].mxu0
      %v2981 = vpop.f32.mrb[0].mxu0
      %v2982 = vadd.f32 0.0, %v2981
      %v2983 = vpop.f32.mrb[0].mxu0
      %2984 = vmatprep.mubr.bf16.mxu0 0
      %2985 = vmatmul.mubr.bf16.gmra.mrb[0].mxu0 %v2847
      %v2986 = vpop.f32.mrb[0].mxu0
      %v2987 = vadd.f32 0.0, %v2986
      %v2988 = vpop.f32.mrb[0].mxu0
      %v2989 = vpop.f32.mrb[0].mxu0
      %v2990 = vadd.f32 0.0, %v2989
      %v2991 = vpop.f32.mrb[0].mxu0
      %2992 = vmatprep.mubr.bf16.mxu0 0
      %2993 = vmatmul.mubr.bf16.gmra.mrb[0].mxu0 %v2850
      %v2994 = vpop.f32.mrb[0].mxu0
      %v2995 = vadd.f32 0.0, %v2994
      %v2996 = vpop.f32.mrb[0].mxu0
      %v2997 = vpop.f32.mrb[0].mxu0
      %v2998 = vadd.f32 0.0, %v2997
      %v2999 = vpop.f32.mrb[0].mxu0
      %3000 = vmatprep.mubr.bf16.mxu0 0
      %3001 = vmatmul.mubr.bf16.gmra.mrb[0].mxu0 %v2853
      %v3002 = vpop.f32.mrb[0].mxu0
      %v3003 = vadd.f32 0.0, %v3002
      %v3004 = vpop.f32.mrb[0].mxu0
      %v3005 = vpop.f32.mrb[0].mxu0
      %v3006 = vadd.f32 0.0, %v3005
      %v3007 = vpop.f32.mrb[0].mxu0
      %3008 = vmatprep.mubr.bf16.mxu0 0
      %3009 = vmatmul.mubr.bf16.gmra.mrb[0].mxu0 %v2856
      %v3010 = vpop.f32.mrb[0].mxu0
      %v3011 = vadd.f32 0.0, %v3010
      %v3012 = vpop.f32.mrb[0].mxu0
      %v3013 = vpop.f32.mrb[0].mxu0
      %v3014 = vadd.f32 0.0, %v3013
      %v3015 = vpop.f32.mrb[0].mxu0
      %3016 = vmatprep.mubr.bf16.mxu0 0
      %3017 = vmatmul.mubr.bf16.gmra.mrb[0].mxu0 %v2859
      %v3018 = vpop.f32.mrb[0].mxu0
      %v3019 = vadd.f32 0.0, %v3018
      %v3020 = vpop.f32.mrb[0].mxu0
      %v3021 = vpop.f32.mrb[0].mxu0
      %v3022 = vadd.f32 0.0, %v3021
      %v3023 = vpop.f32.mrb[0].mxu0
      %3024 = vdwg.mxu0
      %v3025 = vadd.f32 %v2724, %v2899
      %v3026 = vadd.f32 %v2725, %v2902
      %v3027 = vadd.f32 %v2726, %v2907
      %v3028 = vadd.f32 %v2727, %v2910
      %v3029 = vadd.f32 %v2728, %v2915
      %v3030 = vadd.f32 %v2729, %v2918
      %v3031 = vadd.f32 %v2730, %v2923
      %v3032 = vadd.f32 %v2731, %v2926
      %v3033 = vadd.f32 %v2732, %v2931
      %v3034 = vadd.f32 %v2733, %v2934
      %v3035 = vadd.f32 %v2734, %v2939
      %v3036 = vadd.f32 %v2735, %v2942
      %v3037 = vadd.f32 %v2736, %v2947
      %v3038 = vadd.f32 %v2737, %v2950
      %v3039 = vadd.f32 %v2738, %v2955
      %v3040 = vadd.f32 %v2739, %v2958
      %v3041 = vadd.f32 %v2740, %v2963
      %v3042 = vadd.f32 %v2741, %v2966
      %v3043 = vadd.f32 %v2742, %v2971
      %v3044 = vadd.f32 %v2743, %v2974
      %v3045 = vadd.f32 %v2744, %v2979
      %v3046 = vadd.f32 %v2745, %v2982
      %v3047 = vadd.f32 %v2746, %v2987
      %v3048 = vadd.f32 %v2747, %v2990
      %v3049 = vadd.f32 %v2748, %v2995
      %v3050 = vadd.f32 %v2749, %v2998
      %v3051 = vadd.f32 %v2750, %v3003
      %v3052 = vadd.f32 %v2751, %v3006
      %v3053 = vadd.f32 %v2752, %v3011
      %v3054 = vadd.f32 %v2753, %v3014
      %v3055 = vadd.f32 %v2754, %v3019
      %v3056 = vadd.f32 %v2755, %v3022
      %v3057 = vld [vmem:[%s2756 + $0x1] sm:$0xff]
      %v3058 = vld [vmem:[%s2756 + $0x9] sm:$0xff]
      %v3059 = vld [vmem:[%s2756 + $0x19] sm:$0xff]
      %v3060 = vld [vmem:[%s2756 + $0x21] sm:$0xff]
      %v3061 = vld [vmem:[%s2756 + $0x31] sm:$0xff]
      %v3062 = vld [vmem:[%s2756 + $0x39] sm:$0xff]
      %v3063 = vld [vmem:[%s2756 + $0x49] sm:$0xff]
      %v3064 = vld [vmem:[%s2756 + $0x51] sm:$0xff]
      %v3065 = vld [vmem:[%s2756 + $0x61] sm:$0xff]
      %v3066 = vld [vmem:[%s2756 + $0x69] sm:$0xff]
      %v3067 = vld [vmem:[%s2756 + $0x79] sm:$0xff]
      %v3068 = vld [vmem:[%s2756 + $0x81] sm:$0xff]
      %v3069 = vld [vmem:[%s2756 + $0x91] sm:$0xff]
      %v3070 = vld [vmem:[%s2756 + $0x99] sm:$0xff]
      %v3071 = vld [vmem:[%s2756 + $0xa9] sm:$0xff]
      %v3072 = vld [vmem:[%s2756 + $0xb1] sm:$0xff]
      %v3073 = vld [vmem:[%s2756 + $0xc1] sm:$0xff]
      %v3074 = vld [vmem:[%s2756 + $0xc9] sm:$0xff]
      %v3075 = vld [vmem:[%s2756 + $0xd9] sm:$0xff]
      %v3076 = vld [vmem:[%s2756 + $0xe1] sm:$0xff]
      %v3077 = vld [vmem:[%s2756 + $0xf1] sm:$0xff]
      %v3078 = vld [vmem:[%s2756 + $0xf9] sm:$0xff]
      %v3079 = vld [vmem:[%s2756 + $0x109] sm:$0xff]
      %v3080 = vld [vmem:[%s2756 + $0x111] sm:$0xff]
      %v3081 = vld [vmem:[%s2756 + $0x121] sm:$0xff]
      %v3082 = vld [vmem:[%s2756 + $0x129] sm:$0xff]
      %v3083 = vld [vmem:[%s2756 + $0x139] sm:$0xff]
      %v3084 = vld [vmem:[%s2756 + $0x141] sm:$0xff]
      %v3085 = vld [vmem:[%s2756 + $0x151] sm:$0xff]
      %v3086 = vld [vmem:[%s2756 + $0x159] sm:$0xff]
      %v3087 = vld [vmem:[%s2756 + $0x169] sm:$0xff]
      %v3088 = vld [vmem:[%s2756 + $0x171] sm:$0xff]
      %v3089 = vpack.c.bf16 %v3058, %v3057
      %v3090 = vpack.c.bf16 %v3060, %v3059
      %v3091 = vpack.c.bf16 %v3062, %v3061
      %v3092 = vpack.c.bf16 %v3064, %v3063
      %v3093 = vpack.c.bf16 %v3066, %v3065
      %v3094 = vpack.c.bf16 %v3068, %v3067
      %v3095 = vpack.c.bf16 %v3070, %v3069
      %v3096 = vpack.c.bf16 %v3072, %v3071
      %v3097 = vpack.c.bf16 %v3074, %v3073
      %v3098 = vpack.c.bf16 %v3076, %v3075
      %v3099 = vpack.c.bf16 %v3078, %v3077
      %v3100 = vpack.c.bf16 %v3080, %v3079
      %v3101 = vpack.c.bf16 %v3082, %v3081
      %v3102 = vpack.c.bf16 %v3084, %v3083
      %v3103 = vpack.c.bf16 %v3086, %v3085
      %v3104 = vpack.c.bf16 %v3088, %v3087
      %s3105 = scalar_lea.vmem %s3, 56
      %v3106 = vld [vmem:[%s3105] sm:$0xf]
      %v3107 = vld [vmem:[%s3105 + $0x4] sm:$0x3]
      %v3110 = vunpack.c.l.b16 %v3106
      %v3111 = vunpack.c.l.b16 %v3107
      %v3112 = vpack.c.b16 %v3111, %v3110
      %v3114 = vsel %vm530, %v3089, 0
      %v3117 = vsel %vm530, %v3090, 0
      %v3120 = vsel %vm530, %v3091, 0
      %v3123 = vsel %vm530, %v3092, 0
      %v3126 = vsel %vm530, %v3093, 0
      %v3129 = vsel %vm530, %v3094, 0
      %v3132 = vsel %vm530, %v3095, 0
      %v3135 = vsel %vm530, %v3096, 0
      %v3138 = vsel %vm530, %v3097, 0
      %v3141 = vsel %vm530, %v3098, 0
      %v3144 = vsel %vm530, %v3099, 0
      %v3147 = vsel %vm530, %v3100, 0
      %v3150 = vsel %vm530, %v3101, 0
      %v3153 = vsel %vm530, %v3102, 0
      %v3156 = vsel %vm530, %v3103, 0
      %v3159 = vsel %vm530, %v3104, 0
      %v3162 = vsel %vm1174, %v3112, 0
      %3164 = vmatprep.subr.bf16.mxu0 0
      %3165 = vmatpush1.bf16.msra.mxu0 %v3162
      %3166 = vmatprep.subr.bf16.mxu0 0
      %3167 = vmatpush1.bf16.msra.mxu0 0
      %3168 = vmatprep.subr.bf16.mxu0 0
      %3169 = vmatpush1.bf16.msra.mxu0 0
      %3170 = vmatprep.subr.bf16.mxu0 0
      %3171 = vmatpush1.bf16.msra.mxu0 0
      %3172 = vmatprep.subr.bf16.mxu0 0
      %3173 = vmatpush1.bf16.msra.mxu0 0
      %3174 = vmatprep.subr.bf16.mxu0 0
      %3175 = vmatpush1.bf16.msra.mxu0 0
      %3176 = vmatprep.subr.bf16.mxu0 0
      %3177 = vmatpush1.bf16.msra.mxu0 0
      %3178 = vmatprep.subr.bf16.mxu0 0
      %3179 = vmatpush1.bf16.msra.mxu0 0
      %3180 = vmatprep.subr.bf16.mxu0 0
      %3181 = vmatpush1.bf16.msra.mxu0 0
      %3182 = vmatprep.subr.bf16.mxu0 0
      %3183 = vmatpush1.bf16.msra.mxu0 0
      %3184 = vmatprep.subr.bf16.mxu0 0
      %3185 = vmatpush1.bf16.msra.mxu0 0
      %3186 = vmatprep.subr.bf16.mxu0 0
      %3187 = vmatpush1.bf16.msra.mxu0 0
      %3188 = vmatprep.subr.bf16.mxu0 0
      %3189 = vmatpush1.bf16.msra.mxu0 0
      %3190 = vmatprep.subr.bf16.mxu0 0
      %3191 = vmatpush1.bf16.msra.mxu0 0
      %3192 = vmatprep.subr.bf16.mxu0 0
      %3193 = vmatpush1.bf16.msra.mxu0 0
      %3194 = vmatprep.subr.bf16.mxu0 0
      %3195 = vmatpush1.bf16.msra.mxu0 0
      %3196 = vmatprep.mubr.bf16.mxu0 0
      %3197 = vmatmul.mubr.bf16.gmra.mrb[0].mxu0 %v3114
      %v3198 = vpop.f32.mrb[0].mxu0
      %v3199 = vadd.f32 0.0, %v3198
      %v3200 = vpop.f32.mrb[0].mxu0
      %v3201 = vpop.f32.mrb[0].mxu0
      %v3202 = vadd.f32 0.0, %v3201
      %v3203 = vpop.f32.mrb[0].mxu0
      %3204 = vmatprep.mubr.bf16.mxu0 0
      %3205 = vmatmul.mubr.bf16.gmra.mrb[0].mxu0 %v3117
      %v3206 = vpop.f32.mrb[0].mxu0
      %v3207 = vadd.f32 0.0, %v3206
      %v3208 = vpop.f32.mrb[0].mxu0
      %v3209 = vpop.f32.mrb[0].mxu0
      %v3210 = vadd.f32 0.0, %v3209
      %v3211 = vpop.f32.mrb[0].mxu0
      %3212 = vmatprep.mubr.bf16.mxu0 0
      %3213 = vmatmul.mubr.bf16.gmra.mrb[0].mxu0 %v3120
      %v3214 = vpop.f32.mrb[0].mxu0
      %v3215 = vadd.f32 0.0, %v3214
      %v3216 = vpop.f32.mrb[0].mxu0
      %v3217 = vpop.f32.mrb[0].mxu0
      %v3218 = vadd.f32 0.0, %v3217
      %v3219 = vpop.f32.mrb[0].mxu0
      %3220 = vmatprep.mubr.bf16.mxu0 0
      %3221 = vmatmul.mubr.bf16.gmra.mrb[0].mxu0 %v3123
      %v3222 = vpop.f32.mrb[0].mxu0
      %v3223 = vadd.f32 0.0, %v3222
      %v3224 = vpop.f32.mrb[0].mxu0
      %v3225 = vpop.f32.mrb[0].mxu0
      %v3226 = vadd.f32 0.0, %v3225
      %v3227 = vpop.f32.mrb[0].mxu0
      %3228 = vmatprep.mubr.bf16.mxu0 0
      %3229 = vmatmul.mubr.bf16.gmra.mrb[0].mxu0 %v3126
      %v3230 = vpop.f32.mrb[0].mxu0
      %v3231 = vadd.f32 0.0, %v3230
      %v3232 = vpop.f32.mrb[0].mxu0
      %v3233 = vpop.f32.mrb[0].mxu0
      %v3234 = vadd.f32 0.0, %v3233
      %v3235 = vpop.f32.mrb[0].mxu0
      %3236 = vmatprep.mubr.bf16.mxu0 0
      %3237 = vmatmul.mubr.bf16.gmra.mrb[0].mxu0 %v3129
      %v3238 = vpop.f32.mrb[0].mxu0
      %v3239 = vadd.f32 0.0, %v3238
      %v3240 = vpop.f32.mrb[0].mxu0
      %v3241 = vpop.f32.mrb[0].mxu0
      %v3242 = vadd.f32 0.0, %v3241
      %v3243 = vpop.f32.mrb[0].mxu0
      %3244 = vmatprep.mubr.bf16.mxu0 0
      %3245 = vmatmul.mubr.bf16.gmra.mrb[0].mxu0 %v3132
      %v3246 = vpop.f32.mrb[0].mxu0
      %v3247 = vadd.f32 0.0, %v3246
      %v3248 = vpop.f32.mrb[0].mxu0
      %v3249 = vpop.f32.mrb[0].mxu0
      %v3250 = vadd.f32 0.0, %v3249
      %v3251 = vpop.f32.mrb[0].mxu0
      %3252 = vmatprep.mubr.bf16.mxu0 0
      %3253 = vmatmul.mubr.bf16.gmra.mrb[0].mxu0 %v3135
      %v3254 = vpop.f32.mrb[0].mxu0
      %v3255 = vadd.f32 0.0, %v3254
      %v3256 = vpop.f32.mrb[0].mxu0
      %v3257 = vpop.f32.mrb[0].mxu0
      %v3258 = vadd.f32 0.0, %v3257
      %v3259 = vpop.f32.mrb[0].mxu0
      %3260 = vmatprep.mubr.bf16.mxu0 0
      %3261 = vmatmul.mubr.bf16.gmra.mrb[0].mxu0 %v3138
      %v3262 = vpop.f32.mrb[0].mxu0
      %v3263 = vadd.f32 0.0, %v3262
      %v3264 = vpop.f32.mrb[0].mxu0
      %v3265 = vpop.f32.mrb[0].mxu0
      %v3266 = vadd.f32 0.0, %v3265
      %v3267 = vpop.f32.mrb[0].mxu0
      %3268 = vmatprep.mubr.bf16.mxu0 0
      %3269 = vmatmul.mubr.bf16.gmra.mrb[0].mxu0 %v3141
      %v3270 = vpop.f32.mrb[0].mxu0
      %v3271 = vadd.f32 0.0, %v3270
      %v3272 = vpop.f32.mrb[0].mxu0
      %v3273 = vpop.f32.mrb[0].mxu0
      %v3274 = vadd.f32 0.0, %v3273
      %v3275 = vpop.f32.mrb[0].mxu0
      %3276 = vmatprep.mubr.bf16.mxu0 0
      %3277 = vmatmul.mubr.bf16.gmra.mrb[0].mxu0 %v3144
      %v3278 = vpop.f32.mrb[0].mxu0
      %v3279 = vadd.f32 0.0, %v3278
      %v3280 = vpop.f32.mrb[0].mxu0
      %v3281 = vpop.f32.mrb[0].mxu0
      %v3282 = vadd.f32 0.0, %v3281
      %v3283 = vpop.f32.mrb[0].mxu0
      %3284 = vmatprep.mubr.bf16.mxu0 0
      %3285 = vmatmul.mubr.bf16.gmra.mrb[0].mxu0 %v3147
      %v3286 = vpop.f32.mrb[0].mxu0
      %v3287 = vadd.f32 0.0, %v3286
      %v3288 = vpop.f32.mrb[0].mxu0
      %v3289 = vpop.f32.mrb[0].mxu0
      %v3290 = vadd.f32 0.0, %v3289
      %v3291 = vpop.f32.mrb[0].mxu0
      %3292 = vmatprep.mubr.bf16.mxu0 0
      %3293 = vmatmul.mubr.bf16.gmra.mrb[0].mxu0 %v3150
      %v3294 = vpop.f32.mrb[0].mxu0
      %v3295 = vadd.f32 0.0, %v3294
      %v3296 = vpop.f32.mrb[0].mxu0
      %v3297 = vpop.f32.mrb[0].mxu0
      %v3298 = vadd.f32 0.0, %v3297
      %v3299 = vpop.f32.mrb[0].mxu0
      %3300 = vmatprep.mubr.bf16.mxu0 0
      %3301 = vmatmul.mubr.bf16.gmra.mrb[0].mxu0 %v3153
      %v3302 = vpop.f32.mrb[0].mxu0
      %v3303 = vadd.f32 0.0, %v3302
      %v3304 = vpop.f32.mrb[0].mxu0
      %v3305 = vpop.f32.mrb[0].mxu0
      %v3306 = vadd.f32 0.0, %v3305
      %v3307 = vpop.f32.mrb[0].mxu0
      %3308 = vmatprep.mubr.bf16.mxu0 0
      %3309 = vmatmul.mubr.bf16.gmra.mrb[0].mxu0 %v3156
      %v3310 = vpop.f32.mrb[0].mxu0
      %v3311 = vadd.f32 0.0, %v3310
      %v3312 = vpop.f32.mrb[0].mxu0
      %v3313 = vpop.f32.mrb[0].mxu0
      %v3314 = vadd.f32 0.0, %v3313
      %v3315 = vpop.f32.mrb[0].mxu0
      %3316 = vmatprep.mubr.bf16.mxu0 0
      %3317 = vmatmul.mubr.bf16.gmra.mrb[0].mxu0 %v3159
      %v3318 = vpop.f32.mrb[0].mxu0
      %v3319 = vadd.f32 0.0, %v3318
      %v3320 = vpop.f32.mrb[0].mxu0
      %v3321 = vpop.f32.mrb[0].mxu0
      %v3322 = vadd.f32 0.0, %v3321
      %v3323 = vpop.f32.mrb[0].mxu0
      %3324 = vdwg.mxu0
      %v3325 = vadd.f32 %v3025, %v3199
      %v3326 = vadd.f32 %v3026, %v3202
      %v3327 = vadd.f32 %v3027, %v3207
      %v3328 = vadd.f32 %v3028, %v3210
      %v3329 = vadd.f32 %v3029, %v3215
      %v3330 = vadd.f32 %v3030, %v3218
      %v3331 = vadd.f32 %v3031, %v3223
      %v3332 = vadd.f32 %v3032, %v3226
      %v3333 = vadd.f32 %v3033, %v3231
      %v3334 = vadd.f32 %v3034, %v3234
      %v3335 = vadd.f32 %v3035, %v3239
      %v3336 = vadd.f32 %v3036, %v3242
      %v3337 = vadd.f32 %v3037, %v3247
      %v3338 = vadd.f32 %v3038, %v3250
      %v3339 = vadd.f32 %v3039, %v3255
      %v3340 = vadd.f32 %v3040, %v3258
      %v3341 = vadd.f32 %v3041, %v3263
      %v3342 = vadd.f32 %v3042, %v3266
      %v3343 = vadd.f32 %v3043, %v3271
      %v3344 = vadd.f32 %v3044, %v3274
      %v3345 = vadd.f32 %v3045, %v3279
      %v3346 = vadd.f32 %v3046, %v3282
      %v3347 = vadd.f32 %v3047, %v3287
      %v3348 = vadd.f32 %v3048, %v3290
      %v3349 = vadd.f32 %v3049, %v3295
      %v3350 = vadd.f32 %v3050, %v3298
      %v3351 = vadd.f32 %v3051, %v3303
      %v3352 = vadd.f32 %v3052, %v3306
      %v3353 = vadd.f32 %v3053, %v3311
      %v3354 = vadd.f32 %v3054, %v3314
      %v3355 = vadd.f32 %v3055, %v3319
      %v3356 = vadd.f32 %v3056, %v3322
      %v3357 = vld [vmem:[%s2756 + $0x2] sm:$0xff]
      %v3358 = vld [vmem:[%s2756 + $0xa] sm:$0xff]
      %v3359 = vld [vmem:[%s2756 + $0x1a] sm:$0xff]
      %v3360 = vld [vmem:[%s2756 + $0x22] sm:$0xff]
      %v3361 = vld [vmem:[%s2756 + $0x32] sm:$0xff]
      %v3362 = vld [vmem:[%s2756 + $0x3a] sm:$0xff]
      %v3363 = vld [vmem:[%s2756 + $0x4a] sm:$0xff]
      %v3364 = vld [vmem:[%s2756 + $0x52] sm:$0xff]
      %v3365 = vld [vmem:[%s2756 + $0x62] sm:$0xff]
      %v3366 = vld [vmem:[%s2756 + $0x6a] sm:$0xff]
      %v3367 = vld [vmem:[%s2756 + $0x7a] sm:$0xff]
      %v3368 = vld [vmem:[%s2756 + $0x82] sm:$0xff]
      %v3369 = vld [vmem:[%s2756 + $0x92] sm:$0xff]
      %v3370 = vld [vmem:[%s2756 + $0x9a] sm:$0xff]
      %v3371 = vld [vmem:[%s2756 + $0xaa] sm:$0xff]
      %v3372 = vld [vmem:[%s2756 + $0xb2] sm:$0xff]
      %v3373 = vld [vmem:[%s2756 + $0xc2] sm:$0xff]
      %v3374 = vld [vmem:[%s2756 + $0xca] sm:$0xff]
      %v3375 = vld [vmem:[%s2756 + $0xda] sm:$0xff]
      %v3376 = vld [vmem:[%s2756 + $0xe2] sm:$0xff]
      %v3377 = vld [vmem:[%s2756 + $0xf2] sm:$0xff]
      %v3378 = vld [vmem:[%s2756 + $0xfa] sm:$0xff]
      %v3379 = vld [vmem:[%s2756 + $0x10a] sm:$0xff]
      %v3380 = vld [vmem:[%s2756 + $0x112] sm:$0xff]
      %v3381 = vld [vmem:[%s2756 + $0x122] sm:$0xff]
      %v3382 = vld [vmem:[%s2756 + $0x12a] sm:$0xff]
      %v3383 = vld [vmem:[%s2756 + $0x13a] sm:$0xff]
      %v3384 = vld [vmem:[%s2756 + $0x142] sm:$0xff]
      %v3385 = vld [vmem:[%s2756 + $0x152] sm:$0xff]
      %v3386 = vld [vmem:[%s2756 + $0x15a] sm:$0xff]
      %v3387 = vld [vmem:[%s2756 + $0x16a] sm:$0xff]
      %v3388 = vld [vmem:[%s2756 + $0x172] sm:$0xff]
      %v3389 = vpack.c.bf16 %v3358, %v3357
      %v3390 = vpack.c.bf16 %v3360, %v3359
      %v3391 = vpack.c.bf16 %v3362, %v3361
      %v3392 = vpack.c.bf16 %v3364, %v3363
      %v3393 = vpack.c.bf16 %v3366, %v3365
      %v3394 = vpack.c.bf16 %v3368, %v3367
      %v3395 = vpack.c.bf16 %v3370, %v3369
      %v3396 = vpack.c.bf16 %v3372, %v3371
      %v3397 = vpack.c.bf16 %v3374, %v3373
      %v3398 = vpack.c.bf16 %v3376, %v3375
      %v3399 = vpack.c.bf16 %v3378, %v3377
      %v3400 = vpack.c.bf16 %v3380, %v3379
      %v3401 = vpack.c.bf16 %v3382, %v3381
      %v3402 = vpack.c.bf16 %v3384, %v3383
      %v3403 = vpack.c.bf16 %v3386, %v3385
      %v3404 = vpack.c.bf16 %v3388, %v3387
      %s3405 = scalar_lea.vmem %s3, 64
      %v3406 = vld [vmem:[%s3405] sm:$0xf]
      %v3407 = vld [vmem:[%s3405 + $0x4] sm:$0x3]
      %v3410 = vunpack.c.l.b16 %v3406
      %v3411 = vunpack.c.l.b16 %v3407
      %v3412 = vpack.c.b16 %v3411, %v3410
      %v3414 = vsel %vm530, %v3389, 0
      %v3417 = vsel %vm530, %v3390, 0
      %v3420 = vsel %vm530, %v3391, 0
      %v3423 = vsel %vm530, %v3392, 0
      %v3426 = vsel %vm530, %v3393, 0
      %v3429 = vsel %vm530, %v3394, 0
      %v3432 = vsel %vm530, %v3395, 0
      %v3435 = vsel %vm530, %v3396, 0
      %v3438 = vsel %vm530, %v3397, 0
      %v3441 = vsel %vm530, %v3398, 0
      %v3444 = vsel %vm530, %v3399, 0
      %v3447 = vsel %vm530, %v3400, 0
      %v3450 = vsel %vm530, %v3401, 0
      %v3453 = vsel %vm530, %v3402, 0
      %v3456 = vsel %vm530, %v3403, 0
      %v3459 = vsel %vm530, %v3404, 0
      %v3462 = vsel %vm1174, %v3412, 0
      %3464 = vmatprep.subr.bf16.mxu0 0
      %3465 = vmatpush1.bf16.msra.mxu0 %v3462
      %3466 = vmatprep.subr.bf16.mxu0 0
      %3467 = vmatpush1.bf16.msra.mxu0 0
      %3468 = vmatprep.subr.bf16.mxu0 0
      %3469 = vmatpush1.bf16.msra.mxu0 0
      %3470 = vmatprep.subr.bf16.mxu0 0
      %3471 = vmatpush1.bf16.msra.mxu0 0
      %3472 = vmatprep.subr.bf16.mxu0 0
      %3473 = vmatpush1.bf16.msra.mxu0 0
      %3474 = vmatprep.subr.bf16.mxu0 0
      %3475 = vmatpush1.bf16.msra.mxu0 0
      %3476 = vmatprep.subr.bf16.mxu0 0
      %3477 = vmatpush1.bf16.msra.mxu0 0
      %3478 = vmatprep.subr.bf16.mxu0 0
      %3479 = vmatpush1.bf16.msra.mxu0 0
      %3480 = vmatprep.subr.bf16.mxu0 0
      %3481 = vmatpush1.bf16.msra.mxu0 0
      %3482 = vmatprep.subr.bf16.mxu0 0
      %3483 = vmatpush1.bf16.msra.mxu0 0
      %3484 = vmatprep.subr.bf16.mxu0 0
      %3485 = vmatpush1.bf16.msra.mxu0 0
      %3486 = vmatprep.subr.bf16.mxu0 0
      %3487 = vmatpush1.bf16.msra.mxu0 0
      %3488 = vmatprep.subr.bf16.mxu0 0
      %3489 = vmatpush1.bf16.msra.mxu0 0
      %3490 = vmatprep.subr.bf16.mxu0 0
      %3491 = vmatpush1.bf16.msra.mxu0 0
      %3492 = vmatprep.subr.bf16.mxu0 0
      %3493 = vmatpush1.bf16.msra.mxu0 0
      %3494 = vmatprep.subr.bf16.mxu0 0
      %3495 = vmatpush1.bf16.msra.mxu0 0
      %3496 = vmatprep.mubr.bf16.mxu0 0
      %3497 = vmatmul.mubr.bf16.gmra.mrb[0].mxu0 %v3414
      %v3498 = vpop.f32.mrb[0].mxu0
      %v3499 = vadd.f32 0.0, %v3498
      %v3500 = vpop.f32.mrb[0].mxu0
      %v3501 = vpop.f32.mrb[0].mxu0
      %v3502 = vadd.f32 0.0, %v3501
      %v3503 = vpop.f32.mrb[0].mxu0
      %3504 = vmatprep.mubr.bf16.mxu0 0
      %3505 = vmatmul.mubr.bf16.gmra.mrb[0].mxu0 %v3417
      %v3506 = vpop.f32.mrb[0].mxu0
      %v3507 = vadd.f32 0.0, %v3506
      %v3508 = vpop.f32.mrb[0].mxu0
      %v3509 = vpop.f32.mrb[0].mxu0
      %v3510 = vadd.f32 0.0, %v3509
      %v3511 = vpop.f32.mrb[0].mxu0
      %3512 = vmatprep.mubr.bf16.mxu0 0
      %3513 = vmatmul.mubr.bf16.gmra.mrb[0].mxu0 %v3420
      %v3514 = vpop.f32.mrb[0].mxu0
      %v3515 = vadd.f32 0.0, %v3514
      %v3516 = vpop.f32.mrb[0].mxu0
      %v3517 = vpop.f32.mrb[0].mxu0
      %v3518 = vadd.f32 0.0, %v3517
      %v3519 = vpop.f32.mrb[0].mxu0
      %3520 = vmatprep.mubr.bf16.mxu0 0
      %3521 = vmatmul.mubr.bf16.gmra.mrb[0].mxu0 %v3423
      %v3522 = vpop.f32.mrb[0].mxu0
      %v3523 = vadd.f32 0.0, %v3522
      %v3524 = vpop.f32.mrb[0].mxu0
      %v3525 = vpop.f32.mrb[0].mxu0
      %v3526 = vadd.f32 0.0, %v3525
      %v3527 = vpop.f32.mrb[0].mxu0
      %3528 = vmatprep.mubr.bf16.mxu0 0
      %3529 = vmatmul.mubr.bf16.gmra.mrb[0].mxu0 %v3426
      %v3530 = vpop.f32.mrb[0].mxu0
      %v3531 = vadd.f32 0.0, %v3530
      %v3532 = vpop.f32.mrb[0].mxu0
      %v3533 = vpop.f32.mrb[0].mxu0
      %v3534 = vadd.f32 0.0, %v3533
      %v3535 = vpop.f32.mrb[0].mxu0
      %3536 = vmatprep.mubr.bf16.mxu0 0
      %3537 = vmatmul.mubr.bf16.gmra.mrb[0].mxu0 %v3429
      %v3538 = vpop.f32.mrb[0].mxu0
      %v3539 = vadd.f32 0.0, %v3538
      %v3540 = vpop.f32.mrb[0].mxu0
      %v3541 = vpop.f32.mrb[0].mxu0
      %v3542 = vadd.f32 0.0, %v3541
      %v3543 = vpop.f32.mrb[0].mxu0
      %3544 = vmatprep.mubr.bf16.mxu0 0
      %3545 = vmatmul.mubr.bf16.gmra.mrb[0].mxu0 %v3432
      %v3546 = vpop.f32.mrb[0].mxu0
      %v3547 = vadd.f32 0.0, %v3546
      %v3548 = vpop.f32.mrb[0].mxu0
      %v3549 = vpop.f32.mrb[0].mxu0
      %v3550 = vadd.f32 0.0, %v3549
      %v3551 = vpop.f32.mrb[0].mxu0
      %3552 = vmatprep.mubr.bf16.mxu0 0
      %3553 = vmatmul.mubr.bf16.gmra.mrb[0].mxu0 %v3435
      %v3554 = vpop.f32.mrb[0].mxu0
      %v3555 = vadd.f32 0.0, %v3554
      %v3556 = vpop.f32.mrb[0].mxu0
      %v3557 = vpop.f32.mrb[0].mxu0
      %v3558 = vadd.f32 0.0, %v3557
      %v3559 = vpop.f32.mrb[0].mxu0
      %3560 = vmatprep.mubr.bf16.mxu0 0
      %3561 = vmatmul.mubr.bf16.gmra.mrb[0].mxu0 %v3438
      %v3562 = vpop.f32.mrb[0].mxu0
      %v3563 = vadd.f32 0.0, %v3562
      %v3564 = vpop.f32.mrb[0].mxu0
      %v3565 = vpop.f32.mrb[0].mxu0
      %v3566 = vadd.f32 0.0, %v3565
      %v3567 = vpop.f32.mrb[0].mxu0
      %3568 = vmatprep.mubr.bf16.mxu0 0
      %3569 = vmatmul.mubr.bf16.gmra.mrb[0].mxu0 %v3441
      %v3570 = vpop.f32.mrb[0].mxu0
      %v3571 = vadd.f32 0.0, %v3570
      %v3572 = vpop.f32.mrb[0].mxu0
      %v3573 = vpop.f32.mrb[0].mxu0
      %v3574 = vadd.f32 0.0, %v3573
      %v3575 = vpop.f32.mrb[0].mxu0
      %3576 = vmatprep.mubr.bf16.mxu0 0
      %3577 = vmatmul.mubr.bf16.gmra.mrb[0].mxu0 %v3444
      %v3578 = vpop.f32.mrb[0].mxu0
      %v3579 = vadd.f32 0.0, %v3578
      %v3580 = vpop.f32.mrb[0].mxu0
      %v3581 = vpop.f32.mrb[0].mxu0
      %v3582 = vadd.f32 0.0, %v3581
      %v3583 = vpop.f32.mrb[0].mxu0
      %3584 = vmatprep.mubr.bf16.mxu0 0
      %3585 = vmatmul.mubr.bf16.gmra.mrb[0].mxu0 %v3447
      %v3586 = vpop.f32.mrb[0].mxu0
      %v3587 = vadd.f32 0.0, %v3586
      %v3588 = vpop.f32.mrb[0].mxu0
      %v3589 = vpop.f32.mrb[0].mxu0
      %v3590 = vadd.f32 0.0, %v3589
      %v3591 = vpop.f32.mrb[0].mxu0
      %3592 = vmatprep.mubr.bf16.mxu0 0
      %3593 = vmatmul.mubr.bf16.gmra.mrb[0].mxu0 %v3450
      %v3594 = vpop.f32.mrb[0].mxu0
      %v3595 = vadd.f32 0.0, %v3594
      %v3596 = vpop.f32.mrb[0].mxu0
      %v3597 = vpop.f32.mrb[0].mxu0
      %v3598 = vadd.f32 0.0, %v3597
      %v3599 = vpop.f32.mrb[0].mxu0
      %3600 = vmatprep.mubr.bf16.mxu0 0
      %3601 = vmatmul.mubr.bf16.gmra.mrb[0].mxu0 %v3453
      %v3602 = vpop.f32.mrb[0].mxu0
      %v3603 = vadd.f32 0.0, %v3602
      %v3604 = vpop.f32.mrb[0].mxu0
      %v3605 = vpop.f32.mrb[0].mxu0
      %v3606 = vadd.f32 0.0, %v3605
      %v3607 = vpop.f32.mrb[0].mxu0
      %3608 = vmatprep.mubr.bf16.mxu0 0
      %3609 = vmatmul.mubr.bf16.gmra.mrb[0].mxu0 %v3456
      %v3610 = vpop.f32.mrb[0].mxu0
      %v3611 = vadd.f32 0.0, %v3610
      %v3612 = vpop.f32.mrb[0].mxu0
      %v3613 = vpop.f32.mrb[0].mxu0
      %v3614 = vadd.f32 0.0, %v3613
      %v3615 = vpop.f32.mrb[0].mxu0
      %3616 = vmatprep.mubr.bf16.mxu0 0
      %3617 = vmatmul.mubr.bf16.gmra.mrb[0].mxu0 %v3459
      %v3618 = vpop.f32.mrb[0].mxu0
      %v3619 = vadd.f32 0.0, %v3618
      %v3620 = vpop.f32.mrb[0].mxu0
      %v3621 = vpop.f32.mrb[0].mxu0
      %v3622 = vadd.f32 0.0, %v3621
      %v3623 = vpop.f32.mrb[0].mxu0
      %3624 = vdwg.mxu0
      %v3625 = vadd.f32 %v3325, %v3499
      %v3626 = vadd.f32 %v3326, %v3502
      %v3627 = vadd.f32 %v3327, %v3507
      %v3628 = vadd.f32 %v3328, %v3510
      %v3629 = vadd.f32 %v3329, %v3515
      %v3630 = vadd.f32 %v3330, %v3518
      %v3631 = vadd.f32 %v3331, %v3523
      %v3632 = vadd.f32 %v3332, %v3526
      %v3633 = vadd.f32 %v3333, %v3531
      %v3634 = vadd.f32 %v3334, %v3534
      %v3635 = vadd.f32 %v3335, %v3539
      %v3636 = vadd.f32 %v3336, %v3542
      %v3637 = vadd.f32 %v3337, %v3547
      %v3638 = vadd.f32 %v3338, %v3550
      %v3639 = vadd.f32 %v3339, %v3555
      %v3640 = vadd.f32 %v3340, %v3558
      %v3641 = vadd.f32 %v3341, %v3563
      %v3642 = vadd.f32 %v3342, %v3566
      %v3643 = vadd.f32 %v3343, %v3571
      %v3644 = vadd.f32 %v3344, %v3574
      %v3645 = vadd.f32 %v3345, %v3579
      %v3646 = vadd.f32 %v3346, %v3582
      %v3647 = vadd.f32 %v3347, %v3587
      %v3648 = vadd.f32 %v3348, %v3590
      %v3649 = vadd.f32 %v3349, %v3595
      %v3650 = vadd.f32 %v3350, %v3598
      %v3651 = vadd.f32 %v3351, %v3603
      %v3652 = vadd.f32 %v3352, %v3606
      %v3653 = vadd.f32 %v3353, %v3611
      %v3654 = vadd.f32 %v3354, %v3614
      %v3655 = vadd.f32 %v3355, %v3619
      %v3656 = vadd.f32 %v3356, %v3622
      %v3657 = vld [vmem:[%s4] sm:$0x1]
      %v3659 = vlaneseq
      %v3660 = vshrl.u32 %v3659, 7
      %v3661 = vsub.s32 0, %v3660
      %v3662 = vrot.slane %v3657, %v3661
      %v3664 = vadd.f32 %v3625, %v3662
      %v3665 = vadd.f32 %v3626, %v3662
      %v3666 = vadd.f32 %v3627, %v3662
      %v3667 = vadd.f32 %v3628, %v3662
      %v3668 = vadd.f32 %v3629, %v3662
      %v3669 = vadd.f32 %v3630, %v3662
      %v3670 = vadd.f32 %v3631, %v3662
      %v3671 = vadd.f32 %v3632, %v3662
      %v3672 = vadd.f32 %v3633, %v3662
      %v3673 = vadd.f32 %v3634, %v3662
      %v3674 = vadd.f32 %v3635, %v3662
      %v3675 = vadd.f32 %v3636, %v3662
      %v3676 = vadd.f32 %v3637, %v3662
      %v3677 = vadd.f32 %v3638, %v3662
      %v3678 = vadd.f32 %v3639, %v3662
      %v3679 = vadd.f32 %v3640, %v3662
      %v3680 = vadd.f32 %v3641, %v3662
      %v3681 = vadd.f32 %v3642, %v3662
      %v3682 = vadd.f32 %v3643, %v3662
      %v3683 = vadd.f32 %v3644, %v3662
      %v3684 = vadd.f32 %v3645, %v3662
      %v3685 = vadd.f32 %v3646, %v3662
      %v3686 = vadd.f32 %v3647, %v3662
      %v3687 = vadd.f32 %v3648, %v3662
      %v3688 = vadd.f32 %v3649, %v3662
      %v3689 = vadd.f32 %v3650, %v3662
      %v3690 = vadd.f32 %v3651, %v3662
      %v3691 = vadd.f32 %v3652, %v3662
      %v3692 = vadd.f32 %v3653, %v3662
      %v3693 = vadd.f32 %v3654, %v3662
      %v3694 = vadd.f32 %v3655, %v3662
      %v3695 = vadd.f32 %v3656, %v3662
      %v3696 = vmax.f32 %v3664, 0.0
      %v3697 = vmax.f32 %v3665, 0.0
      %v3698 = vmax.f32 %v3666, 0.0
      %v3699 = vmax.f32 %v3667, 0.0
      %v3700 = vmax.f32 %v3668, 0.0
      %v3701 = vmax.f32 %v3669, 0.0
      %v3702 = vmax.f32 %v3670, 0.0
      %v3703 = vmax.f32 %v3671, 0.0
      %v3704 = vmax.f32 %v3672, 0.0
      %v3705 = vmax.f32 %v3673, 0.0
      %v3706 = vmax.f32 %v3674, 0.0
      %v3707 = vmax.f32 %v3675, 0.0
      %v3708 = vmax.f32 %v3676, 0.0
      %v3709 = vmax.f32 %v3677, 0.0
      %v3710 = vmax.f32 %v3678, 0.0
      %v3711 = vmax.f32 %v3679, 0.0
      %v3712 = vmax.f32 %v3680, 0.0
      %v3713 = vmax.f32 %v3681, 0.0
      %v3714 = vmax.f32 %v3682, 0.0
      %v3715 = vmax.f32 %v3683, 0.0
      %v3716 = vmax.f32 %v3684, 0.0
      %v3717 = vmax.f32 %v3685, 0.0
      %v3718 = vmax.f32 %v3686, 0.0
      %v3719 = vmax.f32 %v3687, 0.0
      %v3720 = vmax.f32 %v3688, 0.0
      %v3721 = vmax.f32 %v3689, 0.0
      %v3722 = vmax.f32 %v3690, 0.0
      %v3723 = vmax.f32 %v3691, 0.0
      %v3724 = vmax.f32 %v3692, 0.0
      %v3725 = vmax.f32 %v3693, 0.0
      %v3726 = vmax.f32 %v3694, 0.0
      %v3727 = vmax.f32 %v3695, 0.0
      %3760 = vrot.lane.b32.xlu0 %v3696, 124
      %v3761 = vpop.permute.xlu0 %3760
      %3762 = vrot.lane.b32.xlu0 %v3697, 124
      %v3763 = vpop.permute.xlu0 %3762
      %3764 = vrot.lane.b32.xlu0 %v3698, 124
      %v3765 = vpop.permute.xlu0 %3764
      %3766 = vrot.lane.b32.xlu0 %v3699, 124
      %v3767 = vpop.permute.xlu0 %3766
      %3768 = vrot.lane.b32.xlu0 %v3700, 124
      %v3769 = vpop.permute.xlu0 %3768
      %3770 = vrot.lane.b32.xlu0 %v3701, 124
      %v3771 = vpop.permute.xlu0 %3770
      %3772 = vrot.lane.b32.xlu0 %v3702, 124
      %v3773 = vpop.permute.xlu0 %3772
      %3774 = vrot.lane.b32.xlu0 %v3703, 124
      %v3775 = vpop.permute.xlu0 %3774
      %3776 = vrot.lane.b32.xlu0 %v3704, 124
      %v3777 = vpop.permute.xlu0 %3776
      %3778 = vrot.lane.b32.xlu0 %v3705, 124
      %v3779 = vpop.permute.xlu0 %3778
      %3780 = vrot.lane.b32.xlu0 %v3706, 124
      %v3781 = vpop.permute.xlu0 %3780
      %3782 = vrot.lane.b32.xlu0 %v3707, 124
      %v3783 = vpop.permute.xlu0 %3782
      %3784 = vrot.lane.b32.xlu0 %v3708, 124
      %v3785 = vpop.permute.xlu0 %3784
      %3786 = vrot.lane.b32.xlu0 %v3709, 124
      %v3787 = vpop.permute.xlu0 %3786
      %3788 = vrot.lane.b32.xlu0 %v3710, 124
      %v3789 = vpop.permute.xlu0 %3788
      %3790 = vrot.lane.b32.xlu0 %v3711, 124
      %v3791 = vpop.permute.xlu0 %3790
      %3792 = vrot.lane.b32.xlu0 %v3712, 124
      %v3793 = vpop.permute.xlu0 %3792
      %3794 = vrot.lane.b32.xlu0 %v3713, 124
      %v3795 = vpop.permute.xlu0 %3794
      %3796 = vrot.lane.b32.xlu0 %v3714, 124
      %v3797 = vpop.permute.xlu0 %3796
      %3798 = vrot.lane.b32.xlu0 %v3715, 124
      %v3799 = vpop.permute.xlu0 %3798
      %3800 = vrot.lane.b32.xlu0 %v3716, 124
      %v3801 = vpop.permute.xlu0 %3800
      %3802 = vrot.lane.b32.xlu0 %v3717, 124
      %v3803 = vpop.permute.xlu0 %3802
      %3804 = vrot.lane.b32.xlu0 %v3718, 124
      %v3805 = vpop.permute.xlu0 %3804
      %3806 = vrot.lane.b32.xlu0 %v3719, 124
      %v3807 = vpop.permute.xlu0 %3806
      %3808 = vrot.lane.b32.xlu0 %v3720, 124
      %v3809 = vpop.permute.xlu0 %3808
      %3810 = vrot.lane.b32.xlu0 %v3721, 124
      %v3811 = vpop.permute.xlu0 %3810
      %3812 = vrot.lane.b32.xlu0 %v3722, 124
      %v3813 = vpop.permute.xlu0 %3812
      %3814 = vrot.lane.b32.xlu0 %v3723, 124
      %v3815 = vpop.permute.xlu0 %3814
      %3816 = vrot.lane.b32.xlu0 %v3724, 124
      %v3817 = vpop.permute.xlu0 %3816
      %3818 = vrot.lane.b32.xlu0 %v3725, 124
      %v3819 = vpop.permute.xlu0 %3818
      %3820 = vrot.lane.b32.xlu0 %v3726, 124
      %v3821 = vpop.permute.xlu0 %3820
      %3822 = vrot.lane.b32.xlu0 %v3727, 124
      %v3823 = vpop.permute.xlu0 %3822
      %3856 = vst.msk [vmem:[%s987 + $0x1] sm:$0xff] %vm530, %v3761
      %3857 = vst.msk [vmem:[%s987 + $0x9] sm:$0xff] %vm530, %v3763
      %3858 = vst.msk [vmem:[%s987 + $0x19] sm:$0xff] %vm530, %v3765
      %3859 = vst.msk [vmem:[%s987 + $0x21] sm:$0xff] %vm530, %v3767
      %3860 = vst.msk [vmem:[%s987 + $0x31] sm:$0xff] %vm530, %v3769
      %3861 = vst.msk [vmem:[%s987 + $0x39] sm:$0xff] %vm530, %v3771
      %3862 = vst.msk [vmem:[%s987 + $0x49] sm:$0xff] %vm530, %v3773
      %3863 = vst.msk [vmem:[%s987 + $0x51] sm:$0xff] %vm530, %v3775
      %3864 = vst.msk [vmem:[%s987 + $0x61] sm:$0xff] %vm530, %v3777
      %3865 = vst.msk [vmem:[%s987 + $0x69] sm:$0xff] %vm530, %v3779
      %3866 = vst.msk [vmem:[%s987 + $0x79] sm:$0xff] %vm530, %v3781
      %3867 = vst.msk [vmem:[%s987 + $0x81] sm:$0xff] %vm530, %v3783
      %3868 = vst.msk [vmem:[%s987 + $0x91] sm:$0xff] %vm530, %v3785
      %3869 = vst.msk [vmem:[%s987 + $0x99] sm:$0xff] %vm530, %v3787
      %3870 = vst.msk [vmem:[%s987 + $0xa9] sm:$0xff] %vm530, %v3789
      %3871 = vst.msk [vmem:[%s987 + $0xb1] sm:$0xff] %vm530, %v3791
      %3872 = vst.msk [vmem:[%s987 + $0xc1] sm:$0xff] %vm530, %v3793
      %3873 = vst.msk [vmem:[%s987 + $0xc9] sm:$0xff] %vm530, %v3795
      %3874 = vst.msk [vmem:[%s987 + $0xd9] sm:$0xff] %vm530, %v3797
      %3875 = vst.msk [vmem:[%s987 + $0xe1] sm:$0xff] %vm530, %v3799
      %3876 = vst.msk [vmem:[%s987 + $0xf1] sm:$0xff] %vm530, %v3801
      %3877 = vst.msk [vmem:[%s987 + $0xf9] sm:$0xff] %vm530, %v3803
      %3878 = vst.msk [vmem:[%s987 + $0x109] sm:$0xff] %vm530, %v3805
      %3879 = vst.msk [vmem:[%s987 + $0x111] sm:$0xff] %vm530, %v3807
      %3880 = vst.msk [vmem:[%s987 + $0x121] sm:$0xff] %vm530, %v3809
      %3881 = vst.msk [vmem:[%s987 + $0x129] sm:$0xff] %vm530, %v3811
      %3882 = vst.msk [vmem:[%s987 + $0x139] sm:$0xff] %vm530, %v3813
      %3883 = vst.msk [vmem:[%s987 + $0x141] sm:$0xff] %vm530, %v3815
      %3884 = vst.msk [vmem:[%s987 + $0x151] sm:$0xff] %vm530, %v3817
      %3885 = vst.msk [vmem:[%s987 + $0x159] sm:$0xff] %vm530, %v3819
      %3886 = vst.msk [vmem:[%s987 + $0x169] sm:$0xff] %vm530, %v3821
      %3887 = vst.msk [vmem:[%s987 + $0x171] sm:$0xff] %vm530, %v3823
      %v3888 = vld [vmem:[#allocation2] sm:$0xff]
      %v3889 = vld [vmem:[#allocation2 + $0x8] sm:$0xff]
      %v3890 = vld [vmem:[#allocation2 + $0x18] sm:$0xff]
      %v3891 = vld [vmem:[#allocation2 + $0x20] sm:$0xff]
      %v3892 = vld [vmem:[#allocation2 + $0x30] sm:$0xff]
      %v3893 = vld [vmem:[#allocation2 + $0x38] sm:$0xff]
      %v3894 = vld [vmem:[#allocation2 + $0x48] sm:$0xff]
      %v3895 = vld [vmem:[#allocation2 + $0x50] sm:$0xff]
      %v3896 = vld [vmem:[#allocation2 + $0x60] sm:$0xff]
      %v3897 = vld [vmem:[#allocation2 + $0x68] sm:$0xff]
      %v3898 = vld [vmem:[#allocation2 + $0x78] sm:$0xff]
      %v3899 = vld [vmem:[#allocation2 + $0x80] sm:$0xff]
      %v3900 = vld [vmem:[#allocation2 + $0x90] sm:$0xff]
      %v3901 = vld [vmem:[#allocation2 + $0x98] sm:$0xff]
      %v3902 = vld [vmem:[#allocation2 + $0xa8] sm:$0xff]
      %v3903 = vld [vmem:[#allocation2 + $0xb0] sm:$0xff]
      %v3904 = vld [vmem:[#allocation2 + $0xc0] sm:$0xff]
      %v3905 = vld [vmem:[#allocation2 + $0xc8] sm:$0xff]
      %v3906 = vld [vmem:[#allocation2 + $0xd8] sm:$0xff]
      %v3907 = vld [vmem:[#allocation2 + $0xe0] sm:$0xff]
      %v3908 = vld [vmem:[#allocation2 + $0xf0] sm:$0xff]
      %v3909 = vld [vmem:[#allocation2 + $0xf8] sm:$0xff]
      %v3910 = vld [vmem:[#allocation2 + $0x108] sm:$0xff]
      %v3911 = vld [vmem:[#allocation2 + $0x110] sm:$0xff]
      %v3912 = vld [vmem:[#allocation2 + $0x120] sm:$0xff]
      %v3913 = vld [vmem:[#allocation2 + $0x128] sm:$0xff]
      %v3914 = vld [vmem:[#allocation2 + $0x138] sm:$0xff]
      %v3915 = vld [vmem:[#allocation2 + $0x140] sm:$0xff]
      %v3916 = vld [vmem:[#allocation2 + $0x150] sm:$0xff]
      %v3917 = vld [vmem:[#allocation2 + $0x158] sm:$0xff]
      %v3918 = vld [vmem:[#allocation2 + $0x168] sm:$0xff]
      %v3919 = vld [vmem:[#allocation2 + $0x170] sm:$0xff]
      %v3920 = vpack.c.bf16 %v3889, %v3888
      %v3921 = vpack.c.bf16 %v3891, %v3890
      %v3922 = vpack.c.bf16 %v3893, %v3892
      %v3923 = vpack.c.bf16 %v3895, %v3894
      %v3924 = vpack.c.bf16 %v3897, %v3896
      %v3925 = vpack.c.bf16 %v3899, %v3898
      %v3926 = vpack.c.bf16 %v3901, %v3900
      %v3927 = vpack.c.bf16 %v3903, %v3902
      %v3928 = vpack.c.bf16 %v3905, %v3904
      %v3929 = vpack.c.bf16 %v3907, %v3906
      %v3930 = vpack.c.bf16 %v3909, %v3908
      %v3931 = vpack.c.bf16 %v3911, %v3910
      %v3932 = vpack.c.bf16 %v3913, %v3912
      %v3933 = vpack.c.bf16 %v3915, %v3914
      %v3934 = vpack.c.bf16 %v3917, %v3916
      %v3935 = vpack.c.bf16 %v3919, %v3918
      %v3936 = vld [vmem:[%s5] sm:$0xf]
      %v3937 = vld [vmem:[%s5 + $0x4] sm:$0x3]
      %v3938 = vld [vmem:[#allocation2 + $0x1] sm:$0xff]
      %v3939 = vld [vmem:[#allocation2 + $0x9] sm:$0xff]
      %v3940 = vld [vmem:[#allocation2 + $0x19] sm:$0xff]
      %v3941 = vld [vmem:[#allocation2 + $0x21] sm:$0xff]
      %v3942 = vld [vmem:[#allocation2 + $0x31] sm:$0xff]
      %v3943 = vld [vmem:[#allocation2 + $0x39] sm:$0xff]
      %v3944 = vld [vmem:[#allocation2 + $0x49] sm:$0xff]
      %v3945 = vld [vmem:[#allocation2 + $0x51] sm:$0xff]
      %v3946 = vld [vmem:[#allocation2 + $0x61] sm:$0xff]
      %v3947 = vld [vmem:[#allocation2 + $0x69] sm:$0xff]
      %v3948 = vld [vmem:[#allocation2 + $0x79] sm:$0xff]
      %v3949 = vld [vmem:[#allocation2 + $0x81] sm:$0xff]
      %v3950 = vld [vmem:[#allocation2 + $0x91] sm:$0xff]
      %v3951 = vld [vmem:[#allocation2 + $0x99] sm:$0xff]
      %v3952 = vld [vmem:[#allocation2 + $0xa9] sm:$0xff]
      %v3953 = vld [vmem:[#allocation2 + $0xb1] sm:$0xff]
      %v3954 = vld [vmem:[#allocation2 + $0xc1] sm:$0xff]
      %v3955 = vld [vmem:[#allocation2 + $0xc9] sm:$0xff]
      %v3956 = vld [vmem:[#allocation2 + $0xd9] sm:$0xff]
      %v3957 = vld [vmem:[#allocation2 + $0xe1] sm:$0xff]
      %v3958 = vld [vmem:[#allocation2 + $0xf1] sm:$0xff]
      %v3959 = vld [vmem:[#allocation2 + $0xf9] sm:$0xff]
      %v3960 = vld [vmem:[#allocation2 + $0x109] sm:$0xff]
      %v3961 = vld [vmem:[#allocation2 + $0x111] sm:$0xff]
      %v3962 = vld [vmem:[#allocation2 + $0x121] sm:$0xff]
      %v3963 = vld [vmem:[#allocation2 + $0x129] sm:$0xff]
      %v3964 = vld [vmem:[#allocation2 + $0x139] sm:$0xff]
      %v3965 = vld [vmem:[#allocation2 + $0x141] sm:$0xff]
      %v3966 = vld [vmem:[#allocation2 + $0x151] sm:$0xff]
      %v3967 = vld [vmem:[#allocation2 + $0x159] sm:$0xff]
      %v3968 = vld [vmem:[#allocation2 + $0x169] sm:$0xff]
      %v3969 = vld [vmem:[#allocation2 + $0x171] sm:$0xff]
      %v3970 = vpack.c.bf16 %v3939, %v3938
      %v3971 = vpack.c.bf16 %v3941, %v3940
      %v3972 = vpack.c.bf16 %v3943, %v3942
      %v3973 = vpack.c.bf16 %v3945, %v3944
      %v3974 = vpack.c.bf16 %v3947, %v3946
      %v3975 = vpack.c.bf16 %v3949, %v3948
      %v3976 = vpack.c.bf16 %v3951, %v3950
      %v3977 = vpack.c.bf16 %v3953, %v3952
      %v3978 = vpack.c.bf16 %v3955, %v3954
      %v3979 = vpack.c.bf16 %v3957, %v3956
      %v3980 = vpack.c.bf16 %v3959, %v3958
      %v3981 = vpack.c.bf16 %v3961, %v3960
      %v3982 = vpack.c.bf16 %v3963, %v3962
      %v3983 = vpack.c.bf16 %v3965, %v3964
      %v3984 = vpack.c.bf16 %v3967, %v3966
      %v3985 = vpack.c.bf16 %v3969, %v3968
      %s3986 = scalar_lea.vmem %s5, 8
      %v3987 = vld [vmem:[%s3986] sm:$0xf]
      %v3988 = vld [vmem:[%s3986 + $0x4] sm:$0x3]
      %v3991 = vunpack.c.l.b16 %v3987
      %v3992 = vunpack.c.l.b16 %v3988
      %v3993 = vpack.c.b16 %v3992, %v3991
      %v3995 = vsel %vm530, %v3970, 0
      %v3998 = vsel %vm530, %v3971, 0
      %v4001 = vsel %vm530, %v3972, 0
      %v4004 = vsel %vm530, %v3973, 0
      %v4007 = vsel %vm530, %v3974, 0
      %v4010 = vsel %vm530, %v3975, 0
      %v4013 = vsel %vm530, %v3976, 0
      %v4016 = vsel %vm530, %v3977, 0
      %v4019 = vsel %vm530, %v3978, 0
      %v4022 = vsel %vm530, %v3979, 0
      %v4025 = vsel %vm530, %v3980, 0
      %v4028 = vsel %vm530, %v3981, 0
      %v4031 = vsel %vm530, %v3982, 0
      %v4034 = vsel %vm530, %v3983, 0
      %v4037 = vsel %vm530, %v3984, 0
      %v4040 = vsel %vm530, %v3985, 0
      %v4043 = vsel %vm1174, %v3993, 0
      %4045 = vmatprep.subr.bf16.mxu0 0
      %4046 = vmatpush1.bf16.msra.mxu0 %v4043
      %4047 = vmatprep.subr.bf16.mxu0 0
      %4048 = vmatpush1.bf16.msra.mxu0 0
      %4049 = vmatprep.subr.bf16.mxu0 0
      %4050 = vmatpush1.bf16.msra.mxu0 0
      %4051 = vmatprep.subr.bf16.mxu0 0
      %4052 = vmatpush1.bf16.msra.mxu0 0
      %4053 = vmatprep.subr.bf16.mxu0 0
      %4054 = vmatpush1.bf16.msra.mxu0 0
      %4055 = vmatprep.subr.bf16.mxu0 0
      %4056 = vmatpush1.bf16.msra.mxu0 0
      %4057 = vmatprep.subr.bf16.mxu0 0
      %4058 = vmatpush1.bf16.msra.mxu0 0
      %4059 = vmatprep.subr.bf16.mxu0 0
      %4060 = vmatpush1.bf16.msra.mxu0 0
      %4061 = vmatprep.subr.bf16.mxu0 0
      %4062 = vmatpush1.bf16.msra.mxu0 0
      %4063 = vmatprep.subr.bf16.mxu0 0
      %4064 = vmatpush1.bf16.msra.mxu0 0
      %4065 = vmatprep.subr.bf16.mxu0 0
      %4066 = vmatpush1.bf16.msra.mxu0 0
      %4067 = vmatprep.subr.bf16.mxu0 0
      %4068 = vmatpush1.bf16.msra.mxu0 0
      %4069 = vmatprep.subr.bf16.mxu0 0
      %4070 = vmatpush1.bf16.msra.mxu0 0
      %4071 = vmatprep.subr.bf16.mxu0 0
      %4072 = vmatpush1.bf16.msra.mxu0 0
      %4073 = vmatprep.subr.bf16.mxu0 0
      %4074 = vmatpush1.bf16.msra.mxu0 0
      %4075 = vmatprep.subr.bf16.mxu0 0
      %4076 = vmatpush1.bf16.msra.mxu0 0
      %4077 = vmatprep.mubr.bf16.mxu0 0
      %4078 = vmatmul.mubr.bf16.gmra.mrb[0].mxu0 %v3995
      %v4079 = vpop.f32.mrb[0].mxu0
      %v4080 = vadd.f32 0.0, %v4079
      %v4081 = vpop.f32.mrb[0].mxu0
      %v4082 = vpop.f32.mrb[0].mxu0
      %v4083 = vadd.f32 0.0, %v4082
      %v4084 = vpop.f32.mrb[0].mxu0
      %4085 = vmatprep.mubr.bf16.mxu0 0
      %4086 = vmatmul.mubr.bf16.gmra.mrb[0].mxu0 %v3998
      %v4087 = vpop.f32.mrb[0].mxu0
      %v4088 = vadd.f32 0.0, %v4087
      %v4089 = vpop.f32.mrb[0].mxu0
      %v4090 = vpop.f32.mrb[0].mxu0
      %v4091 = vadd.f32 0.0, %v4090
      %v4092 = vpop.f32.mrb[0].mxu0
      %4093 = vmatprep.mubr.bf16.mxu0 0
      %4094 = vmatmul.mubr.bf16.gmra.mrb[0].mxu0 %v4001
      %v4095 = vpop.f32.mrb[0].mxu0
      %v4096 = vadd.f32 0.0, %v4095
      %v4097 = vpop.f32.mrb[0].mxu0
      %v4098 = vpop.f32.mrb[0].mxu0
      %v4099 = vadd.f32 0.0, %v4098
      %v4100 = vpop.f32.mrb[0].mxu0
      %4101 = vmatprep.mubr.bf16.mxu0 0
      %4102 = vmatmul.mubr.bf16.gmra.mrb[0].mxu0 %v4004
      %v4103 = vpop.f32.mrb[0].mxu0
      %v4104 = vadd.f32 0.0, %v4103
      %v4105 = vpop.f32.mrb[0].mxu0
      %v4106 = vpop.f32.mrb[0].mxu0
      %v4107 = vadd.f32 0.0, %v4106
      %v4108 = vpop.f32.mrb[0].mxu0
      %4109 = vmatprep.mubr.bf16.mxu0 0
      %4110 = vmatmul.mubr.bf16.gmra.mrb[0].mxu0 %v4007
      %v4111 = vpop.f32.mrb[0].mxu0
      %v4112 = vadd.f32 0.0, %v4111
      %v4113 = vpop.f32.mrb[0].mxu0
      %v4114 = vpop.f32.mrb[0].mxu0
      %v4115 = vadd.f32 0.0, %v4114
      %v4116 = vpop.f32.mrb[0].mxu0
      %4117 = vmatprep.mubr.bf16.mxu0 0
      %4118 = vmatmul.mubr.bf16.gmra.mrb[0].mxu0 %v4010
      %v4119 = vpop.f32.mrb[0].mxu0
      %v4120 = vadd.f32 0.0, %v4119
      %v4121 = vpop.f32.mrb[0].mxu0
      %v4122 = vpop.f32.mrb[0].mxu0
      %v4123 = vadd.f32 0.0, %v4122
      %v4124 = vpop.f32.mrb[0].mxu0
      %4125 = vmatprep.mubr.bf16.mxu0 0
      %4126 = vmatmul.mubr.bf16.gmra.mrb[0].mxu0 %v4013
      %v4127 = vpop.f32.mrb[0].mxu0
      %v4128 = vadd.f32 0.0, %v4127
      %v4129 = vpop.f32.mrb[0].mxu0
      %v4130 = vpop.f32.mrb[0].mxu0
      %v4131 = vadd.f32 0.0, %v4130
      %v4132 = vpop.f32.mrb[0].mxu0
      %4133 = vmatprep.mubr.bf16.mxu0 0
      %4134 = vmatmul.mubr.bf16.gmra.mrb[0].mxu0 %v4016
      %v4135 = vpop.f32.mrb[0].mxu0
      %v4136 = vadd.f32 0.0, %v4135
      %v4137 = vpop.f32.mrb[0].mxu0
      %v4138 = vpop.f32.mrb[0].mxu0
      %v4139 = vadd.f32 0.0, %v4138
      %v4140 = vpop.f32.mrb[0].mxu0
      %4141 = vmatprep.mubr.bf16.mxu0 0
      %4142 = vmatmul.mubr.bf16.gmra.mrb[0].mxu0 %v4019
      %v4143 = vpop.f32.mrb[0].mxu0
      %v4144 = vadd.f32 0.0, %v4143
      %v4145 = vpop.f32.mrb[0].mxu0
      %v4146 = vpop.f32.mrb[0].mxu0
      %v4147 = vadd.f32 0.0, %v4146
      %v4148 = vpop.f32.mrb[0].mxu0
      %4149 = vmatprep.mubr.bf16.mxu0 0
      %4150 = vmatmul.mubr.bf16.gmra.mrb[0].mxu0 %v4022
      %v4151 = vpop.f32.mrb[0].mxu0
      %v4152 = vadd.f32 0.0, %v4151
      %v4153 = vpop.f32.mrb[0].mxu0
      %v4154 = vpop.f32.mrb[0].mxu0
      %v4155 = vadd.f32 0.0, %v4154
      %v4156 = vpop.f32.mrb[0].mxu0
      %4157 = vmatprep.mubr.bf16.mxu0 0
      %4158 = vmatmul.mubr.bf16.gmra.mrb[0].mxu0 %v4025
      %v4159 = vpop.f32.mrb[0].mxu0
      %v4160 = vadd.f32 0.0, %v4159
      %v4161 = vpop.f32.mrb[0].mxu0
      %v4162 = vpop.f32.mrb[0].mxu0
      %v4163 = vadd.f32 0.0, %v4162
      %v4164 = vpop.f32.mrb[0].mxu0
      %4165 = vmatprep.mubr.bf16.mxu0 0
      %4166 = vmatmul.mubr.bf16.gmra.mrb[0].mxu0 %v4028
      %v4167 = vpop.f32.mrb[0].mxu0
      %v4168 = vadd.f32 0.0, %v4167
      %v4169 = vpop.f32.mrb[0].mxu0
      %v4170 = vpop.f32.mrb[0].mxu0
      %v4171 = vadd.f32 0.0, %v4170
      %v4172 = vpop.f32.mrb[0].mxu0
      %4173 = vmatprep.mubr.bf16.mxu0 0
      %4174 = vmatmul.mubr.bf16.gmra.mrb[0].mxu0 %v4031
      %v4175 = vpop.f32.mrb[0].mxu0
      %v4176 = vadd.f32 0.0, %v4175
      %v4177 = vpop.f32.mrb[0].mxu0
      %v4178 = vpop.f32.mrb[0].mxu0
      %v4179 = vadd.f32 0.0, %v4178
      %v4180 = vpop.f32.mrb[0].mxu0
      %4181 = vmatprep.mubr.bf16.mxu0 0
      %4182 = vmatmul.mubr.bf16.gmra.mrb[0].mxu0 %v4034
      %v4183 = vpop.f32.mrb[0].mxu0
      %v4184 = vadd.f32 0.0, %v4183
      %v4185 = vpop.f32.mrb[0].mxu0
      %v4186 = vpop.f32.mrb[0].mxu0
      %v4187 = vadd.f32 0.0, %v4186
      %v4188 = vpop.f32.mrb[0].mxu0
      %4189 = vmatprep.mubr.bf16.mxu0 0
      %4190 = vmatmul.mubr.bf16.gmra.mrb[0].mxu0 %v4037
      %v4191 = vpop.f32.mrb[0].mxu0
      %v4192 = vadd.f32 0.0, %v4191
      %v4193 = vpop.f32.mrb[0].mxu0
      %v4194 = vpop.f32.mrb[0].mxu0
      %v4195 = vadd.f32 0.0, %v4194
      %v4196 = vpop.f32.mrb[0].mxu0
      %4197 = vmatprep.mubr.bf16.mxu0 0
      %4198 = vmatmul.mubr.bf16.gmra.mrb[0].mxu0 %v4040
      %v4199 = vpop.f32.mrb[0].mxu0
      %v4200 = vadd.f32 0.0, %v4199
      %v4201 = vpop.f32.mrb[0].mxu0
      %v4202 = vpop.f32.mrb[0].mxu0
      %v4203 = vadd.f32 0.0, %v4202
      %v4204 = vpop.f32.mrb[0].mxu0
      %4205 = vdwg.mxu0
      %v4208 = vunpack.c.l.b16 %v3936
      %v4209 = vunpack.c.l.b16 %v3937
      %v4210 = vpack.c.b16 %v4209, %v4208
      %v4212 = vsel %vm530, %v3920, 0
      %v4215 = vsel %vm530, %v3921, 0
      %v4218 = vsel %vm530, %v3922, 0
      %v4221 = vsel %vm530, %v3923, 0
      %v4224 = vsel %vm530, %v3924, 0
      %v4227 = vsel %vm530, %v3925, 0
      %v4230 = vsel %vm530, %v3926, 0
      %v4233 = vsel %vm530, %v3927, 0
      %v4236 = vsel %vm530, %v3928, 0
      %v4239 = vsel %vm530, %v3929, 0
      %v4242 = vsel %vm530, %v3930, 0
      %v4245 = vsel %vm530, %v3931, 0
      %v4248 = vsel %vm530, %v3932, 0
      %v4251 = vsel %vm530, %v3933, 0
      %v4254 = vsel %vm530, %v3934, 0
      %v4257 = vsel %vm530, %v3935, 0
      %v4260 = vsel %vm1174, %v4210, 0
      %4262 = vmatprep.subr.bf16.mxu0 0
      %4263 = vmatpush1.bf16.msra.mxu0 %v4260
      %4264 = vmatprep.subr.bf16.mxu0 0
      %4265 = vmatpush1.bf16.msra.mxu0 0
      %4266 = vmatprep.subr.bf16.mxu0 0
      %4267 = vmatpush1.bf16.msra.mxu0 0
      %4268 = vmatprep.subr.bf16.mxu0 0
      %4269 = vmatpush1.bf16.msra.mxu0 0
      %4270 = vmatprep.subr.bf16.mxu0 0
      %4271 = vmatpush1.bf16.msra.mxu0 0
      %4272 = vmatprep.subr.bf16.mxu0 0
      %4273 = vmatpush1.bf16.msra.mxu0 0
      %4274 = vmatprep.subr.bf16.mxu0 0
      %4275 = vmatpush1.bf16.msra.mxu0 0
      %4276 = vmatprep.subr.bf16.mxu0 0
      %4277 = vmatpush1.bf16.msra.mxu0 0
      %4278 = vmatprep.subr.bf16.mxu0 0
      %4279 = vmatpush1.bf16.msra.mxu0 0
      %4280 = vmatprep.subr.bf16.mxu0 0
      %4281 = vmatpush1.bf16.msra.mxu0 0
      %4282 = vmatprep.subr.bf16.mxu0 0
      %4283 = vmatpush1.bf16.msra.mxu0 0
      %4284 = vmatprep.subr.bf16.mxu0 0
      %4285 = vmatpush1.bf16.msra.mxu0 0
      %4286 = vmatprep.subr.bf16.mxu0 0
      %4287 = vmatpush1.bf16.msra.mxu0 0
      %4288 = vmatprep.subr.bf16.mxu0 0
      %4289 = vmatpush1.bf16.msra.mxu0 0
      %4290 = vmatprep.subr.bf16.mxu0 0
      %4291 = vmatpush1.bf16.msra.mxu0 0
      %4292 = vmatprep.subr.bf16.mxu0 0
      %4293 = vmatpush1.bf16.msra.mxu0 0
      %4294 = vmatprep.mubr.bf16.mxu0 0
      %4295 = vmatmul.mubr.bf16.gmra.mrb[0].mxu0 %v4212
      %v4296 = vpop.f32.mrb[0].mxu0
      %v4297 = vadd.f32 %v4080, %v4296
      %v4298 = vpop.f32.mrb[0].mxu0
      %v4299 = vpop.f32.mrb[0].mxu0
      %v4300 = vadd.f32 %v4083, %v4299
      %v4301 = vpop.f32.mrb[0].mxu0
      %4302 = vmatprep.mubr.bf16.mxu0 0
      %4303 = vmatmul.mubr.bf16.gmra.mrb[0].mxu0 %v4215
      %v4304 = vpop.f32.mrb[0].mxu0
      %v4305 = vadd.f32 %v4088, %v4304
      %v4306 = vpop.f32.mrb[0].mxu0
      %v4307 = vpop.f32.mrb[0].mxu0
      %v4308 = vadd.f32 %v4091, %v4307
      %v4309 = vpop.f32.mrb[0].mxu0
      %4310 = vmatprep.mubr.bf16.mxu0 0
      %4311 = vmatmul.mubr.bf16.gmra.mrb[0].mxu0 %v4218
      %v4312 = vpop.f32.mrb[0].mxu0
      %v4313 = vadd.f32 %v4096, %v4312
      %v4314 = vpop.f32.mrb[0].mxu0
      %v4315 = vpop.f32.mrb[0].mxu0
      %v4316 = vadd.f32 %v4099, %v4315
      %v4317 = vpop.f32.mrb[0].mxu0
      %4318 = vmatprep.mubr.bf16.mxu0 0
      %4319 = vmatmul.mubr.bf16.gmra.mrb[0].mxu0 %v4221
      %v4320 = vpop.f32.mrb[0].mxu0
      %v4321 = vadd.f32 %v4104, %v4320
      %v4322 = vpop.f32.mrb[0].mxu0
      %v4323 = vpop.f32.mrb[0].mxu0
      %v4324 = vadd.f32 %v4107, %v4323
      %v4325 = vpop.f32.mrb[0].mxu0
      %4326 = vmatprep.mubr.bf16.mxu0 0
      %4327 = vmatmul.mubr.bf16.gmra.mrb[0].mxu0 %v4224
      %v4328 = vpop.f32.mrb[0].mxu0
      %v4329 = vadd.f32 %v4112, %v4328
      %v4330 = vpop.f32.mrb[0].mxu0
      %v4331 = vpop.f32.mrb[0].mxu0
      %v4332 = vadd.f32 %v4115, %v4331
      %v4333 = vpop.f32.mrb[0].mxu0
      %4334 = vmatprep.mubr.bf16.mxu0 0
      %4335 = vmatmul.mubr.bf16.gmra.mrb[0].mxu0 %v4227
      %v4336 = vpop.f32.mrb[0].mxu0
      %v4337 = vadd.f32 %v4120, %v4336
      %v4338 = vpop.f32.mrb[0].mxu0
      %v4339 = vpop.f32.mrb[0].mxu0
      %v4340 = vadd.f32 %v4123, %v4339
      %v4341 = vpop.f32.mrb[0].mxu0
      %4342 = vmatprep.mubr.bf16.mxu0 0
      %4343 = vmatmul.mubr.bf16.gmra.mrb[0].mxu0 %v4230
      %v4344 = vpop.f32.mrb[0].mxu0
      %v4345 = vadd.f32 %v4128, %v4344
      %v4346 = vpop.f32.mrb[0].mxu0
      %v4347 = vpop.f32.mrb[0].mxu0
      %v4348 = vadd.f32 %v4131, %v4347
      %v4349 = vpop.f32.mrb[0].mxu0
      %4350 = vmatprep.mubr.bf16.mxu0 0
      %4351 = vmatmul.mubr.bf16.gmra.mrb[0].mxu0 %v4233
      %v4352 = vpop.f32.mrb[0].mxu0
      %v4353 = vadd.f32 %v4136, %v4352
      %v4354 = vpop.f32.mrb[0].mxu0
      %v4355 = vpop.f32.mrb[0].mxu0
      %v4356 = vadd.f32 %v4139, %v4355
      %v4357 = vpop.f32.mrb[0].mxu0
      %4358 = vmatprep.mubr.bf16.mxu0 0
      %4359 = vmatmul.mubr.bf16.gmra.mrb[0].mxu0 %v4236
      %v4360 = vpop.f32.mrb[0].mxu0
      %v4361 = vadd.f32 %v4144, %v4360
      %v4362 = vpop.f32.mrb[0].mxu0
      %v4363 = vpop.f32.mrb[0].mxu0
      %v4364 = vadd.f32 %v4147, %v4363
      %v4365 = vpop.f32.mrb[0].mxu0
      %4366 = vmatprep.mubr.bf16.mxu0 0
      %4367 = vmatmul.mubr.bf16.gmra.mrb[0].mxu0 %v4239
      %v4368 = vpop.f32.mrb[0].mxu0
      %v4369 = vadd.f32 %v4152, %v4368
      %v4370 = vpop.f32.mrb[0].mxu0
      %v4371 = vpop.f32.mrb[0].mxu0
      %v4372 = vadd.f32 %v4155, %v4371
      %v4373 = vpop.f32.mrb[0].mxu0
      %4374 = vmatprep.mubr.bf16.mxu0 0
      %4375 = vmatmul.mubr.bf16.gmra.mrb[0].mxu0 %v4242
      %v4376 = vpop.f32.mrb[0].mxu0
      %v4377 = vadd.f32 %v4160, %v4376
      %v4378 = vpop.f32.mrb[0].mxu0
      %v4379 = vpop.f32.mrb[0].mxu0
      %v4380 = vadd.f32 %v4163, %v4379
      %v4381 = vpop.f32.mrb[0].mxu0
      %4382 = vmatprep.mubr.bf16.mxu0 0
      %4383 = vmatmul.mubr.bf16.gmra.mrb[0].mxu0 %v4245
      %v4384 = vpop.f32.mrb[0].mxu0
      %v4385 = vadd.f32 %v4168, %v4384
      %v4386 = vpop.f32.mrb[0].mxu0
      %v4387 = vpop.f32.mrb[0].mxu0
      %v4388 = vadd.f32 %v4171, %v4387
      %v4389 = vpop.f32.mrb[0].mxu0
      %4390 = vmatprep.mubr.bf16.mxu0 0
      %4391 = vmatmul.mubr.bf16.gmra.mrb[0].mxu0 %v4248
      %v4392 = vpop.f32.mrb[0].mxu0
      %v4393 = vadd.f32 %v4176, %v4392
      %v4394 = vpop.f32.mrb[0].mxu0
      %v4395 = vpop.f32.mrb[0].mxu0
      %v4396 = vadd.f32 %v4179, %v4395
      %v4397 = vpop.f32.mrb[0].mxu0
      %4398 = vmatprep.mubr.bf16.mxu0 0
      %4399 = vmatmul.mubr.bf16.gmra.mrb[0].mxu0 %v4251
      %v4400 = vpop.f32.mrb[0].mxu0
      %v4401 = vadd.f32 %v4184, %v4400
      %v4402 = vpop.f32.mrb[0].mxu0
      %v4403 = vpop.f32.mrb[0].mxu0
      %v4404 = vadd.f32 %v4187, %v4403
      %v4405 = vpop.f32.mrb[0].mxu0
      %4406 = vmatprep.mubr.bf16.mxu0 0
      %4407 = vmatmul.mubr.bf16.gmra.mrb[0].mxu0 %v4254
      %v4408 = vpop.f32.mrb[0].mxu0
      %v4409 = vadd.f32 %v4192, %v4408
      %v4410 = vpop.f32.mrb[0].mxu0
      %v4411 = vpop.f32.mrb[0].mxu0
      %v4412 = vadd.f32 %v4195, %v4411
      %v4413 = vpop.f32.mrb[0].mxu0
      %4414 = vmatprep.mubr.bf16.mxu0 0
      %4415 = vmatmul.mubr.bf16.gmra.mrb[0].mxu0 %v4257
      %v4416 = vpop.f32.mrb[0].mxu0
      %v4417 = vadd.f32 %v4200, %v4416
      %v4418 = vpop.f32.mrb[0].mxu0
      %v4419 = vpop.f32.mrb[0].mxu0
      %v4420 = vadd.f32 %v4203, %v4419
      %v4421 = vpop.f32.mrb[0].mxu0
      %4422 = vdwg.mxu0
      %v4423 = vld [vmem:[#allocation2 + $0x2] sm:$0xff]
      %v4424 = vld [vmem:[#allocation2 + $0xa] sm:$0xff]
      %v4425 = vld [vmem:[#allocation2 + $0x1a] sm:$0xff]
      %v4426 = vld [vmem:[#allocation2 + $0x22] sm:$0xff]
      %v4427 = vld [vmem:[#allocation2 + $0x32] sm:$0xff]
      %v4428 = vld [vmem:[#allocation2 + $0x3a] sm:$0xff]
      %v4429 = vld [vmem:[#allocation2 + $0x4a] sm:$0xff]
      %v4430 = vld [vmem:[#allocation2 + $0x52] sm:$0xff]
      %v4431 = vld [vmem:[#allocation2 + $0x62] sm:$0xff]
      %v4432 = vld [vmem:[#allocation2 + $0x6a] sm:$0xff]
      %v4433 = vld [vmem:[#allocation2 + $0x7a] sm:$0xff]
      %v4434 = vld [vmem:[#allocation2 + $0x82] sm:$0xff]
      %v4435 = vld [vmem:[#allocation2 + $0x92] sm:$0xff]
      %v4436 = vld [vmem:[#allocation2 + $0x9a] sm:$0xff]
      %v4437 = vld [vmem:[#allocation2 + $0xaa] sm:$0xff]
      %v4438 = vld [vmem:[#allocation2 + $0xb2] sm:$0xff]
      %v4439 = vld [vmem:[#allocation2 + $0xc2] sm:$0xff]
      %v4440 = vld [vmem:[#allocation2 + $0xca] sm:$0xff]
      %v4441 = vld [vmem:[#allocation2 + $0xda] sm:$0xff]
      %v4442 = vld [vmem:[#allocation2 + $0xe2] sm:$0xff]
      %v4443 = vld [vmem:[#allocation2 + $0xf2] sm:$0xff]
      %v4444 = vld [vmem:[#allocation2 + $0xfa] sm:$0xff]
      %v4445 = vld [vmem:[#allocation2 + $0x10a] sm:$0xff]
      %v4446 = vld [vmem:[#allocation2 + $0x112] sm:$0xff]
      %v4447 = vld [vmem:[#allocation2 + $0x122] sm:$0xff]
      %v4448 = vld [vmem:[#allocation2 + $0x12a] sm:$0xff]
      %v4449 = vld [vmem:[#allocation2 + $0x13a] sm:$0xff]
      %v4450 = vld [vmem:[#allocation2 + $0x142] sm:$0xff]
      %v4451 = vld [vmem:[#allocation2 + $0x152] sm:$0xff]
      %v4452 = vld [vmem:[#allocation2 + $0x15a] sm:$0xff]
      %v4453 = vld [vmem:[#allocation2 + $0x16a] sm:$0xff]
      %v4454 = vld [vmem:[#allocation2 + $0x172] sm:$0xff]
      %v4455 = vpack.c.bf16 %v4424, %v4423
      %v4456 = vpack.c.bf16 %v4426, %v4425
      %v4457 = vpack.c.bf16 %v4428, %v4427
      %v4458 = vpack.c.bf16 %v4430, %v4429
      %v4459 = vpack.c.bf16 %v4432, %v4431
      %v4460 = vpack.c.bf16 %v4434, %v4433
      %v4461 = vpack.c.bf16 %v4436, %v4435
      %v4462 = vpack.c.bf16 %v4438, %v4437
      %v4463 = vpack.c.bf16 %v4440, %v4439
      %v4464 = vpack.c.bf16 %v4442, %v4441
      %v4465 = vpack.c.bf16 %v4444, %v4443
      %v4466 = vpack.c.bf16 %v4446, %v4445
      %v4467 = vpack.c.bf16 %v4448, %v4447
      %v4468 = vpack.c.bf16 %v4450, %v4449
      %v4469 = vpack.c.bf16 %v4452, %v4451
      %v4470 = vpack.c.bf16 %v4454, %v4453
      %s4471 = scalar_lea.vmem %s5, 16
      %v4472 = vld [vmem:[%s4471] sm:$0xf]
      %v4473 = vld [vmem:[%s4471 + $0x4] sm:$0x3]
      %v4476 = vunpack.c.l.b16 %v4472
      %v4477 = vunpack.c.l.b16 %v4473
      %v4478 = vpack.c.b16 %v4477, %v4476
      %v4480 = vsel %vm530, %v4455, 0
      %v4483 = vsel %vm530, %v4456, 0
      %v4486 = vsel %vm530, %v4457, 0
      %v4489 = vsel %vm530, %v4458, 0
      %v4492 = vsel %vm530, %v4459, 0
      %v4495 = vsel %vm530, %v4460, 0
      %v4498 = vsel %vm530, %v4461, 0
      %v4501 = vsel %vm530, %v4462, 0
      %v4504 = vsel %vm530, %v4463, 0
      %v4507 = vsel %vm530, %v4464, 0
      %v4510 = vsel %vm530, %v4465, 0
      %v4513 = vsel %vm530, %v4466, 0
      %v4516 = vsel %vm530, %v4467, 0
      %v4519 = vsel %vm530, %v4468, 0
      %v4522 = vsel %vm530, %v4469, 0
      %v4525 = vsel %vm530, %v4470, 0
      %v4528 = vsel %vm1174, %v4478, 0
      %4530 = vmatprep.subr.bf16.mxu0 0
      %4531 = vmatpush1.bf16.msra.mxu0 %v4528
      %4532 = vmatprep.subr.bf16.mxu0 0
      %4533 = vmatpush1.bf16.msra.mxu0 0
      %4534 = vmatprep.subr.bf16.mxu0 0
      %4535 = vmatpush1.bf16.msra.mxu0 0
      %4536 = vmatprep.subr.bf16.mxu0 0
      %4537 = vmatpush1.bf16.msra.mxu0 0
      %4538 = vmatprep.subr.bf16.mxu0 0
      %4539 = vmatpush1.bf16.msra.mxu0 0
      %4540 = vmatprep.subr.bf16.mxu0 0
      %4541 = vmatpush1.bf16.msra.mxu0 0
      %4542 = vmatprep.subr.bf16.mxu0 0
      %4543 = vmatpush1.bf16.msra.mxu0 0
      %4544 = vmatprep.subr.bf16.mxu0 0
      %4545 = vmatpush1.bf16.msra.mxu0 0
      %4546 = vmatprep.subr.bf16.mxu0 0
      %4547 = vmatpush1.bf16.msra.mxu0 0
      %4548 = vmatprep.subr.bf16.mxu0 0
      %4549 = vmatpush1.bf16.msra.mxu0 0
      %4550 = vmatprep.subr.bf16.mxu0 0
      %4551 = vmatpush1.bf16.msra.mxu0 0
      %4552 = vmatprep.subr.bf16.mxu0 0
      %4553 = vmatpush1.bf16.msra.mxu0 0
      %4554 = vmatprep.subr.bf16.mxu0 0
      %4555 = vmatpush1.bf16.msra.mxu0 0
      %4556 = vmatprep.subr.bf16.mxu0 0
      %4557 = vmatpush1.bf16.msra.mxu0 0
      %4558 = vmatprep.subr.bf16.mxu0 0
      %4559 = vmatpush1.bf16.msra.mxu0 0
      %4560 = vmatprep.subr.bf16.mxu0 0
      %4561 = vmatpush1.bf16.msra.mxu0 0
      %4562 = vmatprep.mubr.bf16.mxu0 0
      %4563 = vmatmul.mubr.bf16.gmra.mrb[0].mxu0 %v4480
      %v4564 = vpop.f32.mrb[0].mxu0
      %v4565 = vadd.f32 0.0, %v4564
      %v4566 = vpop.f32.mrb[0].mxu0
      %v4567 = vpop.f32.mrb[0].mxu0
      %v4568 = vadd.f32 0.0, %v4567
      %v4569 = vpop.f32.mrb[0].mxu0
      %4570 = vmatprep.mubr.bf16.mxu0 0
      %4571 = vmatmul.mubr.bf16.gmra.mrb[0].mxu0 %v4483
      %v4572 = vpop.f32.mrb[0].mxu0
      %v4573 = vadd.f32 0.0, %v4572
      %v4574 = vpop.f32.mrb[0].mxu0
      %v4575 = vpop.f32.mrb[0].mxu0
      %v4576 = vadd.f32 0.0, %v4575
      %v4577 = vpop.f32.mrb[0].mxu0
      %4578 = vmatprep.mubr.bf16.mxu0 0
      %4579 = vmatmul.mubr.bf16.gmra.mrb[0].mxu0 %v4486
      %v4580 = vpop.f32.mrb[0].mxu0
      %v4581 = vadd.f32 0.0, %v4580
      %v4582 = vpop.f32.mrb[0].mxu0
      %v4583 = vpop.f32.mrb[0].mxu0
      %v4584 = vadd.f32 0.0, %v4583
      %v4585 = vpop.f32.mrb[0].mxu0
      %4586 = vmatprep.mubr.bf16.mxu0 0
      %4587 = vmatmul.mubr.bf16.gmra.mrb[0].mxu0 %v4489
      %v4588 = vpop.f32.mrb[0].mxu0
      %v4589 = vadd.f32 0.0, %v4588
      %v4590 = vpop.f32.mrb[0].mxu0
      %v4591 = vpop.f32.mrb[0].mxu0
      %v4592 = vadd.f32 0.0, %v4591
      %v4593 = vpop.f32.mrb[0].mxu0
      %4594 = vmatprep.mubr.bf16.mxu0 0
      %4595 = vmatmul.mubr.bf16.gmra.mrb[0].mxu0 %v4492
      %v4596 = vpop.f32.mrb[0].mxu0
      %v4597 = vadd.f32 0.0, %v4596
      %v4598 = vpop.f32.mrb[0].mxu0
      %v4599 = vpop.f32.mrb[0].mxu0
      %v4600 = vadd.f32 0.0, %v4599
      %v4601 = vpop.f32.mrb[0].mxu0
      %4602 = vmatprep.mubr.bf16.mxu0 0
      %4603 = vmatmul.mubr.bf16.gmra.mrb[0].mxu0 %v4495
      %v4604 = vpop.f32.mrb[0].mxu0
      %v4605 = vadd.f32 0.0, %v4604
      %v4606 = vpop.f32.mrb[0].mxu0
      %v4607 = vpop.f32.mrb[0].mxu0
      %v4608 = vadd.f32 0.0, %v4607
      %v4609 = vpop.f32.mrb[0].mxu0
      %4610 = vmatprep.mubr.bf16.mxu0 0
      %4611 = vmatmul.mubr.bf16.gmra.mrb[0].mxu0 %v4498
      %v4612 = vpop.f32.mrb[0].mxu0
      %v4613 = vadd.f32 0.0, %v4612
      %v4614 = vpop.f32.mrb[0].mxu0
      %v4615 = vpop.f32.mrb[0].mxu0
      %v4616 = vadd.f32 0.0, %v4615
      %v4617 = vpop.f32.mrb[0].mxu0
      %4618 = vmatprep.mubr.bf16.mxu0 0
      %4619 = vmatmul.mubr.bf16.gmra.mrb[0].mxu0 %v4501
      %v4620 = vpop.f32.mrb[0].mxu0
      %v4621 = vadd.f32 0.0, %v4620
      %v4622 = vpop.f32.mrb[0].mxu0
      %v4623 = vpop.f32.mrb[0].mxu0
      %v4624 = vadd.f32 0.0, %v4623
      %v4625 = vpop.f32.mrb[0].mxu0
      %4626 = vmatprep.mubr.bf16.mxu0 0
      %4627 = vmatmul.mubr.bf16.gmra.mrb[0].mxu0 %v4504
      %v4628 = vpop.f32.mrb[0].mxu0
      %v4629 = vadd.f32 0.0, %v4628
      %v4630 = vpop.f32.mrb[0].mxu0
      %v4631 = vpop.f32.mrb[0].mxu0
      %v4632 = vadd.f32 0.0, %v4631
      %v4633 = vpop.f32.mrb[0].mxu0
      %4634 = vmatprep.mubr.bf16.mxu0 0
      %4635 = vmatmul.mubr.bf16.gmra.mrb[0].mxu0 %v4507
      %v4636 = vpop.f32.mrb[0].mxu0
      %v4637 = vadd.f32 0.0, %v4636
      %v4638 = vpop.f32.mrb[0].mxu0
      %v4639 = vpop.f32.mrb[0].mxu0
      %v4640 = vadd.f32 0.0, %v4639
      %v4641 = vpop.f32.mrb[0].mxu0
      %4642 = vmatprep.mubr.bf16.mxu0 0
      %4643 = vmatmul.mubr.bf16.gmra.mrb[0].mxu0 %v4510
      %v4644 = vpop.f32.mrb[0].mxu0
      %v4645 = vadd.f32 0.0, %v4644
      %v4646 = vpop.f32.mrb[0].mxu0
      %v4647 = vpop.f32.mrb[0].mxu0
      %v4648 = vadd.f32 0.0, %v4647
      %v4649 = vpop.f32.mrb[0].mxu0
      %4650 = vmatprep.mubr.bf16.mxu0 0
      %4651 = vmatmul.mubr.bf16.gmra.mrb[0].mxu0 %v4513
      %v4652 = vpop.f32.mrb[0].mxu0
      %v4653 = vadd.f32 0.0, %v4652
      %v4654 = vpop.f32.mrb[0].mxu0
      %v4655 = vpop.f32.mrb[0].mxu0
      %v4656 = vadd.f32 0.0, %v4655
      %v4657 = vpop.f32.mrb[0].mxu0
      %4658 = vmatprep.mubr.bf16.mxu0 0
      %4659 = vmatmul.mubr.bf16.gmra.mrb[0].mxu0 %v4516
      %v4660 = vpop.f32.mrb[0].mxu0
      %v4661 = vadd.f32 0.0, %v4660
      %v4662 = vpop.f32.mrb[0].mxu0
      %v4663 = vpop.f32.mrb[0].mxu0
      %v4664 = vadd.f32 0.0, %v4663
      %v4665 = vpop.f32.mrb[0].mxu0
      %4666 = vmatprep.mubr.bf16.mxu0 0
      %4667 = vmatmul.mubr.bf16.gmra.mrb[0].mxu0 %v4519
      %v4668 = vpop.f32.mrb[0].mxu0
      %v4669 = vadd.f32 0.0, %v4668
      %v4670 = vpop.f32.mrb[0].mxu0
      %v4671 = vpop.f32.mrb[0].mxu0
      %v4672 = vadd.f32 0.0, %v4671
      %v4673 = vpop.f32.mrb[0].mxu0
      %4674 = vmatprep.mubr.bf16.mxu0 0
      %4675 = vmatmul.mubr.bf16.gmra.mrb[0].mxu0 %v4522
      %v4676 = vpop.f32.mrb[0].mxu0
      %v4677 = vadd.f32 0.0, %v4676
      %v4678 = vpop.f32.mrb[0].mxu0
      %v4679 = vpop.f32.mrb[0].mxu0
      %v4680 = vadd.f32 0.0, %v4679
      %v4681 = vpop.f32.mrb[0].mxu0
      %4682 = vmatprep.mubr.bf16.mxu0 0
      %4683 = vmatmul.mubr.bf16.gmra.mrb[0].mxu0 %v4525
      %v4684 = vpop.f32.mrb[0].mxu0
      %v4685 = vadd.f32 0.0, %v4684
      %v4686 = vpop.f32.mrb[0].mxu0
      %v4687 = vpop.f32.mrb[0].mxu0
      %v4688 = vadd.f32 0.0, %v4687
      %v4689 = vpop.f32.mrb[0].mxu0
      %4690 = vdwg.mxu0
      %v4691 = vadd.f32 %v4297, %v4565
      %v4692 = vadd.f32 %v4300, %v4568
      %v4693 = vadd.f32 %v4305, %v4573
      %v4694 = vadd.f32 %v4308, %v4576
      %v4695 = vadd.f32 %v4313, %v4581
      %v4696 = vadd.f32 %v4316, %v4584
      %v4697 = vadd.f32 %v4321, %v4589
      %v4698 = vadd.f32 %v4324, %v4592
      %v4699 = vadd.f32 %v4329, %v4597
      %v4700 = vadd.f32 %v4332, %v4600
      %v4701 = vadd.f32 %v4337, %v4605
      %v4702 = vadd.f32 %v4340, %v4608
      %v4703 = vadd.f32 %v4345, %v4613
      %v4704 = vadd.f32 %v4348, %v4616
      %v4705 = vadd.f32 %v4353, %v4621
      %v4706 = vadd.f32 %v4356, %v4624
      %v4707 = vadd.f32 %v4361, %v4629
      %v4708 = vadd.f32 %v4364, %v4632
      %v4709 = vadd.f32 %v4369, %v4637
      %v4710 = vadd.f32 %v4372, %v4640
      %v4711 = vadd.f32 %v4377, %v4645
      %v4712 = vadd.f32 %v4380, %v4648
      %v4713 = vadd.f32 %v4385, %v4653
      %v4714 = vadd.f32 %v4388, %v4656
      %v4715 = vadd.f32 %v4393, %v4661
      %v4716 = vadd.f32 %v4396, %v4664
      %v4717 = vadd.f32 %v4401, %v4669
      %v4718 = vadd.f32 %v4404, %v4672
      %v4719 = vadd.f32 %v4409, %v4677
      %v4720 = vadd.f32 %v4412, %v4680
      %v4721 = vadd.f32 %v4417, %v4685
      %v4722 = vadd.f32 %v4420, %v4688
      %v4723 = vld [vmem:[%s987] sm:$0xff]
      %v4724 = vld [vmem:[%s987 + $0x8] sm:$0xff]
      %v4725 = vld [vmem:[%s987 + $0x18] sm:$0xff]
      %v4726 = vld [vmem:[%s987 + $0x20] sm:$0xff]
      %v4727 = vld [vmem:[%s987 + $0x30] sm:$0xff]
      %v4728 = vld [vmem:[%s987 + $0x38] sm:$0xff]
      %v4729 = vld [vmem:[%s987 + $0x48] sm:$0xff]
      %v4730 = vld [vmem:[%s987 + $0x50] sm:$0xff]
      %v4731 = vld [vmem:[%s987 + $0x60] sm:$0xff]
      %v4732 = vld [vmem:[%s987 + $0x68] sm:$0xff]
      %v4733 = vld [vmem:[%s987 + $0x78] sm:$0xff]
      %v4734 = vld [vmem:[%s987 + $0x80] sm:$0xff]
      %v4735 = vld [vmem:[%s987 + $0x90] sm:$0xff]
      %v4736 = vld [vmem:[%s987 + $0x98] sm:$0xff]
      %v4737 = vld [vmem:[%s987 + $0xa8] sm:$0xff]
      %v4738 = vld [vmem:[%s987 + $0xb0] sm:$0xff]
      %v4739 = vld [vmem:[%s987 + $0xc0] sm:$0xff]
      %v4740 = vld [vmem:[%s987 + $0xc8] sm:$0xff]
      %v4741 = vld [vmem:[%s987 + $0xd8] sm:$0xff]
      %v4742 = vld [vmem:[%s987 + $0xe0] sm:$0xff]
      %v4743 = vld [vmem:[%s987 + $0xf0] sm:$0xff]
      %v4744 = vld [vmem:[%s987 + $0xf8] sm:$0xff]
      %v4745 = vld [vmem:[%s987 + $0x108] sm:$0xff]
      %v4746 = vld [vmem:[%s987 + $0x110] sm:$0xff]
      %v4747 = vld [vmem:[%s987 + $0x120] sm:$0xff]
      %v4748 = vld [vmem:[%s987 + $0x128] sm:$0xff]
      %v4749 = vld [vmem:[%s987 + $0x138] sm:$0xff]
      %v4750 = vld [vmem:[%s987 + $0x140] sm:$0xff]
      %v4751 = vld [vmem:[%s987 + $0x150] sm:$0xff]
      %v4752 = vld [vmem:[%s987 + $0x158] sm:$0xff]
      %v4753 = vld [vmem:[%s987 + $0x168] sm:$0xff]
      %v4754 = vld [vmem:[%s987 + $0x170] sm:$0xff]
      %v4755 = vpack.c.bf16 %v4724, %v4723
      %v4756 = vpack.c.bf16 %v4726, %v4725
      %v4757 = vpack.c.bf16 %v4728, %v4727
      %v4758 = vpack.c.bf16 %v4730, %v4729
      %v4759 = vpack.c.bf16 %v4732, %v4731
      %v4760 = vpack.c.bf16 %v4734, %v4733
      %v4761 = vpack.c.bf16 %v4736, %v4735
      %v4762 = vpack.c.bf16 %v4738, %v4737
      %v4763 = vpack.c.bf16 %v4740, %v4739
      %v4764 = vpack.c.bf16 %v4742, %v4741
      %v4765 = vpack.c.bf16 %v4744, %v4743
      %v4766 = vpack.c.bf16 %v4746, %v4745
      %v4767 = vpack.c.bf16 %v4748, %v4747
      %v4768 = vpack.c.bf16 %v4750, %v4749
      %v4769 = vpack.c.bf16 %v4752, %v4751
      %v4770 = vpack.c.bf16 %v4754, %v4753
      %s4771 = scalar_lea.vmem %s5, 24
      %v4772 = vld [vmem:[%s4771] sm:$0xf]
      %v4773 = vld [vmem:[%s4771 + $0x4] sm:$0x3]
      %v4776 = vunpack.c.l.b16 %v4772
      %v4777 = vunpack.c.l.b16 %v4773
      %v4778 = vpack.c.b16 %v4777, %v4776
      %v4780 = vsel %vm530, %v4755, 0
      %v4783 = vsel %vm530, %v4756, 0
      %v4786 = vsel %vm530, %v4757, 0
      %v4789 = vsel %vm530, %v4758, 0
      %v4792 = vsel %vm530, %v4759, 0
      %v4795 = vsel %vm530, %v4760, 0
      %v4798 = vsel %vm530, %v4761, 0
      %v4801 = vsel %vm530, %v4762, 0
      %v4804 = vsel %vm530, %v4763, 0
      %v4807 = vsel %vm530, %v4764, 0
      %v4810 = vsel %vm530, %v4765, 0
      %v4813 = vsel %vm530, %v4766, 0
      %v4816 = vsel %vm530, %v4767, 0
      %v4819 = vsel %vm530, %v4768, 0
      %v4822 = vsel %vm530, %v4769, 0
      %v4825 = vsel %vm530, %v4770, 0
      %v4828 = vsel %vm1174, %v4778, 0
      %4830 = vmatprep.subr.bf16.mxu0 0
      %4831 = vmatpush1.bf16.msra.mxu0 %v4828
      %4832 = vmatprep.subr.bf16.mxu0 0
      %4833 = vmatpush1.bf16.msra.mxu0 0
      %4834 = vmatprep.subr.bf16.mxu0 0
      %4835 = vmatpush1.bf16.msra.mxu0 0
      %4836 = vmatprep.subr.bf16.mxu0 0
      %4837 = vmatpush1.bf16.msra.mxu0 0
      %4838 = vmatprep.subr.bf16.mxu0 0
      %4839 = vmatpush1.bf16.msra.mxu0 0
      %4840 = vmatprep.subr.bf16.mxu0 0
      %4841 = vmatpush1.bf16.msra.mxu0 0
      %4842 = vmatprep.subr.bf16.mxu0 0
      %4843 = vmatpush1.bf16.msra.mxu0 0
      %4844 = vmatprep.subr.bf16.mxu0 0
      %4845 = vmatpush1.bf16.msra.mxu0 0
      %4846 = vmatprep.subr.bf16.mxu0 0
      %4847 = vmatpush1.bf16.msra.mxu0 0
      %4848 = vmatprep.subr.bf16.mxu0 0
      %4849 = vmatpush1.bf16.msra.mxu0 0
      %4850 = vmatprep.subr.bf16.mxu0 0
      %4851 = vmatpush1.bf16.msra.mxu0 0
      %4852 = vmatprep.subr.bf16.mxu0 0
      %4853 = vmatpush1.bf16.msra.mxu0 0
      %4854 = vmatprep.subr.bf16.mxu0 0
      %4855 = vmatpush1.bf16.msra.mxu0 0
      %4856 = vmatprep.subr.bf16.mxu0 0
      %4857 = vmatpush1.bf16.msra.mxu0 0
      %4858 = vmatprep.subr.bf16.mxu0 0
      %4859 = vmatpush1.bf16.msra.mxu0 0
      %4860 = vmatprep.subr.bf16.mxu0 0
      %4861 = vmatpush1.bf16.msra.mxu0 0
      %4862 = vmatprep.mubr.bf16.mxu0 0
      %4863 = vmatmul.mubr.bf16.gmra.mrb[0].mxu0 %v4780
      %v4864 = vpop.f32.mrb[0].mxu0
      %v4865 = vadd.f32 0.0, %v4864
      %v4866 = vpop.f32.mrb[0].mxu0
      %v4867 = vpop.f32.mrb[0].mxu0
      %v4868 = vadd.f32 0.0, %v4867
      %v4869 = vpop.f32.mrb[0].mxu0
      %4870 = vmatprep.mubr.bf16.mxu0 0
      %4871 = vmatmul.mubr.bf16.gmra.mrb[0].mxu0 %v4783
      %v4872 = vpop.f32.mrb[0].mxu0
      %v4873 = vadd.f32 0.0, %v4872
      %v4874 = vpop.f32.mrb[0].mxu0
      %v4875 = vpop.f32.mrb[0].mxu0
      %v4876 = vadd.f32 0.0, %v4875
      %v4877 = vpop.f32.mrb[0].mxu0
      %4878 = vmatprep.mubr.bf16.mxu0 0
      %4879 = vmatmul.mubr.bf16.gmra.mrb[0].mxu0 %v4786
      %v4880 = vpop.f32.mrb[0].mxu0
      %v4881 = vadd.f32 0.0, %v4880
      %v4882 = vpop.f32.mrb[0].mxu0
      %v4883 = vpop.f32.mrb[0].mxu0
      %v4884 = vadd.f32 0.0, %v4883
      %v4885 = vpop.f32.mrb[0].mxu0
      %4886 = vmatprep.mubr.bf16.mxu0 0
      %4887 = vmatmul.mubr.bf16.gmra.mrb[0].mxu0 %v4789
      %v4888 = vpop.f32.mrb[0].mxu0
      %v4889 = vadd.f32 0.0, %v4888
      %v4890 = vpop.f32.mrb[0].mxu0
      %v4891 = vpop.f32.mrb[0].mxu0
      %v4892 = vadd.f32 0.0, %v4891
      %v4893 = vpop.f32.mrb[0].mxu0
      %4894 = vmatprep.mubr.bf16.mxu0 0
      %4895 = vmatmul.mubr.bf16.gmra.mrb[0].mxu0 %v4792
      %v4896 = vpop.f32.mrb[0].mxu0
      %v4897 = vadd.f32 0.0, %v4896
      %v4898 = vpop.f32.mrb[0].mxu0
      %v4899 = vpop.f32.mrb[0].mxu0
      %v4900 = vadd.f32 0.0, %v4899
      %v4901 = vpop.f32.mrb[0].mxu0
      %4902 = vmatprep.mubr.bf16.mxu0 0
      %4903 = vmatmul.mubr.bf16.gmra.mrb[0].mxu0 %v4795
      %v4904 = vpop.f32.mrb[0].mxu0
      %v4905 = vadd.f32 0.0, %v4904
      %v4906 = vpop.f32.mrb[0].mxu0
      %v4907 = vpop.f32.mrb[0].mxu0
      %v4908 = vadd.f32 0.0, %v4907
      %v4909 = vpop.f32.mrb[0].mxu0
      %4910 = vmatprep.mubr.bf16.mxu0 0
      %4911 = vmatmul.mubr.bf16.gmra.mrb[0].mxu0 %v4798
      %v4912 = vpop.f32.mrb[0].mxu0
      %v4913 = vadd.f32 0.0, %v4912
      %v4914 = vpop.f32.mrb[0].mxu0
      %v4915 = vpop.f32.mrb[0].mxu0
      %v4916 = vadd.f32 0.0, %v4915
      %v4917 = vpop.f32.mrb[0].mxu0
      %4918 = vmatprep.mubr.bf16.mxu0 0
      %4919 = vmatmul.mubr.bf16.gmra.mrb[0].mxu0 %v4801
      %v4920 = vpop.f32.mrb[0].mxu0
      %v4921 = vadd.f32 0.0, %v4920
      %v4922 = vpop.f32.mrb[0].mxu0
      %v4923 = vpop.f32.mrb[0].mxu0
      %v4924 = vadd.f32 0.0, %v4923
      %v4925 = vpop.f32.mrb[0].mxu0
      %4926 = vmatprep.mubr.bf16.mxu0 0
      %4927 = vmatmul.mubr.bf16.gmra.mrb[0].mxu0 %v4804
      %v4928 = vpop.f32.mrb[0].mxu0
      %v4929 = vadd.f32 0.0, %v4928
      %v4930 = vpop.f32.mrb[0].mxu0
      %v4931 = vpop.f32.mrb[0].mxu0
      %v4932 = vadd.f32 0.0, %v4931
      %v4933 = vpop.f32.mrb[0].mxu0
      %4934 = vmatprep.mubr.bf16.mxu0 0
      %4935 = vmatmul.mubr.bf16.gmra.mrb[0].mxu0 %v4807
      %v4936 = vpop.f32.mrb[0].mxu0
      %v4937 = vadd.f32 0.0, %v4936
      %v4938 = vpop.f32.mrb[0].mxu0
      %v4939 = vpop.f32.mrb[0].mxu0
      %v4940 = vadd.f32 0.0, %v4939
      %v4941 = vpop.f32.mrb[0].mxu0
      %4942 = vmatprep.mubr.bf16.mxu0 0
      %4943 = vmatmul.mubr.bf16.gmra.mrb[0].mxu0 %v4810
      %v4944 = vpop.f32.mrb[0].mxu0
      %v4945 = vadd.f32 0.0, %v4944
      %v4946 = vpop.f32.mrb[0].mxu0
      %v4947 = vpop.f32.mrb[0].mxu0
      %v4948 = vadd.f32 0.0, %v4947
      %v4949 = vpop.f32.mrb[0].mxu0
      %4950 = vmatprep.mubr.bf16.mxu0 0
      %4951 = vmatmul.mubr.bf16.gmra.mrb[0].mxu0 %v4813
      %v4952 = vpop.f32.mrb[0].mxu0
      %v4953 = vadd.f32 0.0, %v4952
      %v4954 = vpop.f32.mrb[0].mxu0
      %v4955 = vpop.f32.mrb[0].mxu0
      %v4956 = vadd.f32 0.0, %v4955
      %v4957 = vpop.f32.mrb[0].mxu0
      %4958 = vmatprep.mubr.bf16.mxu0 0
      %4959 = vmatmul.mubr.bf16.gmra.mrb[0].mxu0 %v4816
      %v4960 = vpop.f32.mrb[0].mxu0
      %v4961 = vadd.f32 0.0, %v4960
      %v4962 = vpop.f32.mrb[0].mxu0
      %v4963 = vpop.f32.mrb[0].mxu0
      %v4964 = vadd.f32 0.0, %v4963
      %v4965 = vpop.f32.mrb[0].mxu0
      %4966 = vmatprep.mubr.bf16.mxu0 0
      %4967 = vmatmul.mubr.bf16.gmra.mrb[0].mxu0 %v4819
      %v4968 = vpop.f32.mrb[0].mxu0
      %v4969 = vadd.f32 0.0, %v4968
      %v4970 = vpop.f32.mrb[0].mxu0
      %v4971 = vpop.f32.mrb[0].mxu0
      %v4972 = vadd.f32 0.0, %v4971
      %v4973 = vpop.f32.mrb[0].mxu0
      %4974 = vmatprep.mubr.bf16.mxu0 0
      %4975 = vmatmul.mubr.bf16.gmra.mrb[0].mxu0 %v4822
      %v4976 = vpop.f32.mrb[0].mxu0
      %v4977 = vadd.f32 0.0, %v4976
      %v4978 = vpop.f32.mrb[0].mxu0
      %v4979 = vpop.f32.mrb[0].mxu0
      %v4980 = vadd.f32 0.0, %v4979
      %v4981 = vpop.f32.mrb[0].mxu0
      %4982 = vmatprep.mubr.bf16.mxu0 0
      %4983 = vmatmul.mubr.bf16.gmra.mrb[0].mxu0 %v4825
      %v4984 = vpop.f32.mrb[0].mxu0
      %v4985 = vadd.f32 0.0, %v4984
      %v4986 = vpop.f32.mrb[0].mxu0
      %v4987 = vpop.f32.mrb[0].mxu0
      %v4988 = vadd.f32 0.0, %v4987
      %v4989 = vpop.f32.mrb[0].mxu0
      %4990 = vdwg.mxu0
      %v4991 = vadd.f32 %v4691, %v4865
      %v4992 = vadd.f32 %v4692, %v4868
      %v4993 = vadd.f32 %v4693, %v4873
      %v4994 = vadd.f32 %v4694, %v4876
      %v4995 = vadd.f32 %v4695, %v4881
      %v4996 = vadd.f32 %v4696, %v4884
      %v4997 = vadd.f32 %v4697, %v4889
      %v4998 = vadd.f32 %v4698, %v4892
      %v4999 = vadd.f32 %v4699, %v4897
      %v5000 = vadd.f32 %v4700, %v4900
      %v5001 = vadd.f32 %v4701, %v4905
      %v5002 = vadd.f32 %v4702, %v4908
      %v5003 = vadd.f32 %v4703, %v4913
      %v5004 = vadd.f32 %v4704, %v4916
      %v5005 = vadd.f32 %v4705, %v4921
      %v5006 = vadd.f32 %v4706, %v4924
      %v5007 = vadd.f32 %v4707, %v4929
      %v5008 = vadd.f32 %v4708, %v4932
      %v5009 = vadd.f32 %v4709, %v4937
      %v5010 = vadd.f32 %v4710, %v4940
      %v5011 = vadd.f32 %v4711, %v4945
      %v5012 = vadd.f32 %v4712, %v4948
      %v5013 = vadd.f32 %v4713, %v4953
      %v5014 = vadd.f32 %v4714, %v4956
      %v5015 = vadd.f32 %v4715, %v4961
      %v5016 = vadd.f32 %v4716, %v4964
      %v5017 = vadd.f32 %v4717, %v4969
      %v5018 = vadd.f32 %v4718, %v4972
      %v5019 = vadd.f32 %v4719, %v4977
      %v5020 = vadd.f32 %v4720, %v4980
      %v5021 = vadd.f32 %v4721, %v4985
      %v5022 = vadd.f32 %v4722, %v4988
      %v5023 = vld [vmem:[%s987 + $0x1] sm:$0xff]
      %v5024 = vld [vmem:[%s987 + $0x9] sm:$0xff]
      %v5025 = vld [vmem:[%s987 + $0x19] sm:$0xff]
      %v5026 = vld [vmem:[%s987 + $0x21] sm:$0xff]
      %v5027 = vld [vmem:[%s987 + $0x31] sm:$0xff]
      %v5028 = vld [vmem:[%s987 + $0x39] sm:$0xff]
      %v5029 = vld [vmem:[%s987 + $0x49] sm:$0xff]
      %v5030 = vld [vmem:[%s987 + $0x51] sm:$0xff]
      %v5031 = vld [vmem:[%s987 + $0x61] sm:$0xff]
      %v5032 = vld [vmem:[%s987 + $0x69] sm:$0xff]
      %v5033 = vld [vmem:[%s987 + $0x79] sm:$0xff]
      %v5034 = vld [vmem:[%s987 + $0x81] sm:$0xff]
      %v5035 = vld [vmem:[%s987 + $0x91] sm:$0xff]
      %v5036 = vld [vmem:[%s987 + $0x99] sm:$0xff]
      %v5037 = vld [vmem:[%s987 + $0xa9] sm:$0xff]
      %v5038 = vld [vmem:[%s987 + $0xb1] sm:$0xff]
      %v5039 = vld [vmem:[%s987 + $0xc1] sm:$0xff]
      %v5040 = vld [vmem:[%s987 + $0xc9] sm:$0xff]
      %v5041 = vld [vmem:[%s987 + $0xd9] sm:$0xff]
      %v5042 = vld [vmem:[%s987 + $0xe1] sm:$0xff]
      %v5043 = vld [vmem:[%s987 + $0xf1] sm:$0xff]
      %v5044 = vld [vmem:[%s987 + $0xf9] sm:$0xff]
      %v5045 = vld [vmem:[%s987 + $0x109] sm:$0xff]
      %v5046 = vld [vmem:[%s987 + $0x111] sm:$0xff]
      %v5047 = vld [vmem:[%s987 + $0x121] sm:$0xff]
      %v5048 = vld [vmem:[%s987 + $0x129] sm:$0xff]
      %v5049 = vld [vmem:[%s987 + $0x139] sm:$0xff]
      %v5050 = vld [vmem:[%s987 + $0x141] sm:$0xff]
      %v5051 = vld [vmem:[%s987 + $0x151] sm:$0xff]
      %v5052 = vld [vmem:[%s987 + $0x159] sm:$0xff]
      %v5053 = vld [vmem:[%s987 + $0x169] sm:$0xff]
      %v5054 = vld [vmem:[%s987 + $0x171] sm:$0xff]
      %v5055 = vpack.c.bf16 %v5024, %v5023
      %v5056 = vpack.c.bf16 %v5026, %v5025
      %v5057 = vpack.c.bf16 %v5028, %v5027
      %v5058 = vpack.c.bf16 %v5030, %v5029
      %v5059 = vpack.c.bf16 %v5032, %v5031
      %v5060 = vpack.c.bf16 %v5034, %v5033
      %v5061 = vpack.c.bf16 %v5036, %v5035
      %v5062 = vpack.c.bf16 %v5038, %v5037
      %v5063 = vpack.c.bf16 %v5040, %v5039
      %v5064 = vpack.c.bf16 %v5042, %v5041
      %v5065 = vpack.c.bf16 %v5044, %v5043
      %v5066 = vpack.c.bf16 %v5046, %v5045
      %v5067 = vpack.c.bf16 %v5048, %v5047
      %v5068 = vpack.c.bf16 %v5050, %v5049
      %v5069 = vpack.c.bf16 %v5052, %v5051
      %v5070 = vpack.c.bf16 %v5054, %v5053
      %s5071 = scalar_lea.vmem %s5, 32
      %v5072 = vld [vmem:[%s5071] sm:$0xf]
      %v5073 = vld [vmem:[%s5071 + $0x4] sm:$0x3]
      %v5076 = vunpack.c.l.b16 %v5072
      %v5077 = vunpack.c.l.b16 %v5073
      %v5078 = vpack.c.b16 %v5077, %v5076
      %v5080 = vsel %vm530, %v5055, 0
      %v5083 = vsel %vm530, %v5056, 0
      %v5086 = vsel %vm530, %v5057, 0
      %v5089 = vsel %vm530, %v5058, 0
      %v5092 = vsel %vm530, %v5059, 0
      %v5095 = vsel %vm530, %v5060, 0
      %v5098 = vsel %vm530, %v5061, 0
      %v5101 = vsel %vm530, %v5062, 0
      %v5104 = vsel %vm530, %v5063, 0
      %v5107 = vsel %vm530, %v5064, 0
      %v5110 = vsel %vm530, %v5065, 0
      %v5113 = vsel %vm530, %v5066, 0
      %v5116 = vsel %vm530, %v5067, 0
      %v5119 = vsel %vm530, %v5068, 0
      %v5122 = vsel %vm530, %v5069, 0
      %v5125 = vsel %vm530, %v5070, 0
      %v5128 = vsel %vm1174, %v5078, 0
      %5130 = vmatprep.subr.bf16.mxu0 0
      %5131 = vmatpush1.bf16.msra.mxu0 %v5128
      %5132 = vmatprep.subr.bf16.mxu0 0
      %5133 = vmatpush1.bf16.msra.mxu0 0
      %5134 = vmatprep.subr.bf16.mxu0 0
      %5135 = vmatpush1.bf16.msra.mxu0 0
      %5136 = vmatprep.subr.bf16.mxu0 0
      %5137 = vmatpush1.bf16.msra.mxu0 0
      %5138 = vmatprep.subr.bf16.mxu0 0
      %5139 = vmatpush1.bf16.msra.mxu0 0
      %5140 = vmatprep.subr.bf16.mxu0 0
      %5141 = vmatpush1.bf16.msra.mxu0 0
      %5142 = vmatprep.subr.bf16.mxu0 0
      %5143 = vmatpush1.bf16.msra.mxu0 0
      %5144 = vmatprep.subr.bf16.mxu0 0
      %5145 = vmatpush1.bf16.msra.mxu0 0
      %5146 = vmatprep.subr.bf16.mxu0 0
      %5147 = vmatpush1.bf16.msra.mxu0 0
      %5148 = vmatprep.subr.bf16.mxu0 0
      %5149 = vmatpush1.bf16.msra.mxu0 0
      %5150 = vmatprep.subr.bf16.mxu0 0
      %5151 = vmatpush1.bf16.msra.mxu0 0
      %5152 = vmatprep.subr.bf16.mxu0 0
      %5153 = vmatpush1.bf16.msra.mxu0 0
      %5154 = vmatprep.subr.bf16.mxu0 0
      %5155 = vmatpush1.bf16.msra.mxu0 0
      %5156 = vmatprep.subr.bf16.mxu0 0
      %5157 = vmatpush1.bf16.msra.mxu0 0
      %5158 = vmatprep.subr.bf16.mxu0 0
      %5159 = vmatpush1.bf16.msra.mxu0 0
      %5160 = vmatprep.subr.bf16.mxu0 0
      %5161 = vmatpush1.bf16.msra.mxu0 0
      %5162 = vmatprep.mubr.bf16.mxu0 0
      %5163 = vmatmul.mubr.bf16.gmra.mrb[0].mxu0 %v5080
      %v5164 = vpop.f32.mrb[0].mxu0
      %v5165 = vadd.f32 0.0, %v5164
      %v5166 = vpop.f32.mrb[0].mxu0
      %v5167 = vpop.f32.mrb[0].mxu0
      %v5168 = vadd.f32 0.0, %v5167
      %v5169 = vpop.f32.mrb[0].mxu0
      %5170 = vmatprep.mubr.bf16.mxu0 0
      %5171 = vmatmul.mubr.bf16.gmra.mrb[0].mxu0 %v5083
      %v5172 = vpop.f32.mrb[0].mxu0
      %v5173 = vadd.f32 0.0, %v5172
      %v5174 = vpop.f32.mrb[0].mxu0
      %v5175 = vpop.f32.mrb[0].mxu0
      %v5176 = vadd.f32 0.0, %v5175
      %v5177 = vpop.f32.mrb[0].mxu0
      %5178 = vmatprep.mubr.bf16.mxu0 0
      %5179 = vmatmul.mubr.bf16.gmra.mrb[0].mxu0 %v5086
      %v5180 = vpop.f32.mrb[0].mxu0
      %v5181 = vadd.f32 0.0, %v5180
      %v5182 = vpop.f32.mrb[0].mxu0
      %v5183 = vpop.f32.mrb[0].mxu0
      %v5184 = vadd.f32 0.0, %v5183
      %v5185 = vpop.f32.mrb[0].mxu0
      %5186 = vmatprep.mubr.bf16.mxu0 0
      %5187 = vmatmul.mubr.bf16.gmra.mrb[0].mxu0 %v5089
      %v5188 = vpop.f32.mrb[0].mxu0
      %v5189 = vadd.f32 0.0, %v5188
      %v5190 = vpop.f32.mrb[0].mxu0
      %v5191 = vpop.f32.mrb[0].mxu0
      %v5192 = vadd.f32 0.0, %v5191
      %v5193 = vpop.f32.mrb[0].mxu0
      %5194 = vmatprep.mubr.bf16.mxu0 0
      %5195 = vmatmul.mubr.bf16.gmra.mrb[0].mxu0 %v5092
      %v5196 = vpop.f32.mrb[0].mxu0
      %v5197 = vadd.f32 0.0, %v5196
      %v5198 = vpop.f32.mrb[0].mxu0
      %v5199 = vpop.f32.mrb[0].mxu0
      %v5200 = vadd.f32 0.0, %v5199
      %v5201 = vpop.f32.mrb[0].mxu0
      %5202 = vmatprep.mubr.bf16.mxu0 0
      %5203 = vmatmul.mubr.bf16.gmra.mrb[0].mxu0 %v5095
      %v5204 = vpop.f32.mrb[0].mxu0
      %v5205 = vadd.f32 0.0, %v5204
      %v5206 = vpop.f32.mrb[0].mxu0
      %v5207 = vpop.f32.mrb[0].mxu0
      %v5208 = vadd.f32 0.0, %v5207
      %v5209 = vpop.f32.mrb[0].mxu0
      %5210 = vmatprep.mubr.bf16.mxu0 0
      %5211 = vmatmul.mubr.bf16.gmra.mrb[0].mxu0 %v5098
      %v5212 = vpop.f32.mrb[0].mxu0
      %v5213 = vadd.f32 0.0, %v5212
      %v5214 = vpop.f32.mrb[0].mxu0
      %v5215 = vpop.f32.mrb[0].mxu0
      %v5216 = vadd.f32 0.0, %v5215
      %v5217 = vpop.f32.mrb[0].mxu0
      %5218 = vmatprep.mubr.bf16.mxu0 0
      %5219 = vmatmul.mubr.bf16.gmra.mrb[0].mxu0 %v5101
      %v5220 = vpop.f32.mrb[0].mxu0
      %v5221 = vadd.f32 0.0, %v5220
      %v5222 = vpop.f32.mrb[0].mxu0
      %v5223 = vpop.f32.mrb[0].mxu0
      %v5224 = vadd.f32 0.0, %v5223
      %v5225 = vpop.f32.mrb[0].mxu0
      %5226 = vmatprep.mubr.bf16.mxu0 0
      %5227 = vmatmul.mubr.bf16.gmra.mrb[0].mxu0 %v5104
      %v5228 = vpop.f32.mrb[0].mxu0
      %v5229 = vadd.f32 0.0, %v5228
      %v5230 = vpop.f32.mrb[0].mxu0
      %v5231 = vpop.f32.mrb[0].mxu0
      %v5232 = vadd.f32 0.0, %v5231
      %v5233 = vpop.f32.mrb[0].mxu0
      %5234 = vmatprep.mubr.bf16.mxu0 0
      %5235 = vmatmul.mubr.bf16.gmra.mrb[0].mxu0 %v5107
      %v5236 = vpop.f32.mrb[0].mxu0
      %v5237 = vadd.f32 0.0, %v5236
      %v5238 = vpop.f32.mrb[0].mxu0
      %v5239 = vpop.f32.mrb[0].mxu0
      %v5240 = vadd.f32 0.0, %v5239
      %v5241 = vpop.f32.mrb[0].mxu0
      %5242 = vmatprep.mubr.bf16.mxu0 0
      %5243 = vmatmul.mubr.bf16.gmra.mrb[0].mxu0 %v5110
      %v5244 = vpop.f32.mrb[0].mxu0
      %v5245 = vadd.f32 0.0, %v5244
      %v5246 = vpop.f32.mrb[0].mxu0
      %v5247 = vpop.f32.mrb[0].mxu0
      %v5248 = vadd.f32 0.0, %v5247
      %v5249 = vpop.f32.mrb[0].mxu0
      %5250 = vmatprep.mubr.bf16.mxu0 0
      %5251 = vmatmul.mubr.bf16.gmra.mrb[0].mxu0 %v5113
      %v5252 = vpop.f32.mrb[0].mxu0
      %v5253 = vadd.f32 0.0, %v5252
      %v5254 = vpop.f32.mrb[0].mxu0
      %v5255 = vpop.f32.mrb[0].mxu0
      %v5256 = vadd.f32 0.0, %v5255
      %v5257 = vpop.f32.mrb[0].mxu0
      %5258 = vmatprep.mubr.bf16.mxu0 0
      %5259 = vmatmul.mubr.bf16.gmra.mrb[0].mxu0 %v5116
      %v5260 = vpop.f32.mrb[0].mxu0
      %v5261 = vadd.f32 0.0, %v5260
      %v5262 = vpop.f32.mrb[0].mxu0
      %v5263 = vpop.f32.mrb[0].mxu0
      %v5264 = vadd.f32 0.0, %v5263
      %v5265 = vpop.f32.mrb[0].mxu0
      %5266 = vmatprep.mubr.bf16.mxu0 0
      %5267 = vmatmul.mubr.bf16.gmra.mrb[0].mxu0 %v5119
      %v5268 = vpop.f32.mrb[0].mxu0
      %v5269 = vadd.f32 0.0, %v5268
      %v5270 = vpop.f32.mrb[0].mxu0
      %v5271 = vpop.f32.mrb[0].mxu0
      %v5272 = vadd.f32 0.0, %v5271
      %v5273 = vpop.f32.mrb[0].mxu0
      %5274 = vmatprep.mubr.bf16.mxu0 0
      %5275 = vmatmul.mubr.bf16.gmra.mrb[0].mxu0 %v5122
      %v5276 = vpop.f32.mrb[0].mxu0
      %v5277 = vadd.f32 0.0, %v5276
      %v5278 = vpop.f32.mrb[0].mxu0
      %v5279 = vpop.f32.mrb[0].mxu0
      %v5280 = vadd.f32 0.0, %v5279
      %v5281 = vpop.f32.mrb[0].mxu0
      %5282 = vmatprep.mubr.bf16.mxu0 0
      %5283 = vmatmul.mubr.bf16.gmra.mrb[0].mxu0 %v5125
      %v5284 = vpop.f32.mrb[0].mxu0
      %v5285 = vadd.f32 0.0, %v5284
      %v5286 = vpop.f32.mrb[0].mxu0
      %v5287 = vpop.f32.mrb[0].mxu0
      %v5288 = vadd.f32 0.0, %v5287
      %v5289 = vpop.f32.mrb[0].mxu0
      %5290 = vdwg.mxu0
      %v5291 = vadd.f32 %v4991, %v5165
      %v5292 = vadd.f32 %v4992, %v5168
      %v5293 = vadd.f32 %v4993, %v5173
      %v5294 = vadd.f32 %v4994, %v5176
      %v5295 = vadd.f32 %v4995, %v5181
      %v5296 = vadd.f32 %v4996, %v5184
      %v5297 = vadd.f32 %v4997, %v5189
      %v5298 = vadd.f32 %v4998, %v5192
      %v5299 = vadd.f32 %v4999, %v5197
      %v5300 = vadd.f32 %v5000, %v5200
      %v5301 = vadd.f32 %v5001, %v5205
      %v5302 = vadd.f32 %v5002, %v5208
      %v5303 = vadd.f32 %v5003, %v5213
      %v5304 = vadd.f32 %v5004, %v5216
      %v5305 = vadd.f32 %v5005, %v5221
      %v5306 = vadd.f32 %v5006, %v5224
      %v5307 = vadd.f32 %v5007, %v5229
      %v5308 = vadd.f32 %v5008, %v5232
      %v5309 = vadd.f32 %v5009, %v5237
      %v5310 = vadd.f32 %v5010, %v5240
      %v5311 = vadd.f32 %v5011, %v5245
      %v5312 = vadd.f32 %v5012, %v5248
      %v5313 = vadd.f32 %v5013, %v5253
      %v5314 = vadd.f32 %v5014, %v5256
      %v5315 = vadd.f32 %v5015, %v5261
      %v5316 = vadd.f32 %v5016, %v5264
      %v5317 = vadd.f32 %v5017, %v5269
      %v5318 = vadd.f32 %v5018, %v5272
      %v5319 = vadd.f32 %v5019, %v5277
      %v5320 = vadd.f32 %v5020, %v5280
      %v5321 = vadd.f32 %v5021, %v5285
      %v5322 = vadd.f32 %v5022, %v5288
      %v5323 = vld [vmem:[%s987 + $0x2] sm:$0xff]
      %v5324 = vld [vmem:[%s987 + $0xa] sm:$0xff]
      %v5325 = vld [vmem:[%s987 + $0x1a] sm:$0xff]
      %v5326 = vld [vmem:[%s987 + $0x22] sm:$0xff]
      %v5327 = vld [vmem:[%s987 + $0x32] sm:$0xff]
      %v5328 = vld [vmem:[%s987 + $0x3a] sm:$0xff]
      %v5329 = vld [vmem:[%s987 + $0x4a] sm:$0xff]
      %v5330 = vld [vmem:[%s987 + $0x52] sm:$0xff]
      %v5331 = vld [vmem:[%s987 + $0x62] sm:$0xff]
      %v5332 = vld [vmem:[%s987 + $0x6a] sm:$0xff]
      %v5333 = vld [vmem:[%s987 + $0x7a] sm:$0xff]
      %v5334 = vld [vmem:[%s987 + $0x82] sm:$0xff]
      %v5335 = vld [vmem:[%s987 + $0x92] sm:$0xff]
      %v5336 = vld [vmem:[%s987 + $0x9a] sm:$0xff]
      %v5337 = vld [vmem:[%s987 + $0xaa] sm:$0xff]
      %v5338 = vld [vmem:[%s987 + $0xb2] sm:$0xff]
      %v5339 = vld [vmem:[%s987 + $0xc2] sm:$0xff]
      %v5340 = vld [vmem:[%s987 + $0xca] sm:$0xff]
      %v5341 = vld [vmem:[%s987 + $0xda] sm:$0xff]
      %v5342 = vld [vmem:[%s987 + $0xe2] sm:$0xff]
      %v5343 = vld [vmem:[%s987 + $0xf2] sm:$0xff]
      %v5344 = vld [vmem:[%s987 + $0xfa] sm:$0xff]
      %v5345 = vld [vmem:[%s987 + $0x10a] sm:$0xff]
      %v5346 = vld [vmem:[%s987 + $0x112] sm:$0xff]
      %v5347 = vld [vmem:[%s987 + $0x122] sm:$0xff]
      %v5348 = vld [vmem:[%s987 + $0x12a] sm:$0xff]
      %v5349 = vld [vmem:[%s987 + $0x13a] sm:$0xff]
      %v5350 = vld [vmem:[%s987 + $0x142] sm:$0xff]
      %v5351 = vld [vmem:[%s987 + $0x152] sm:$0xff]
      %v5352 = vld [vmem:[%s987 + $0x15a] sm:$0xff]
      %v5353 = vld [vmem:[%s987 + $0x16a] sm:$0xff]
      %v5354 = vld [vmem:[%s987 + $0x172] sm:$0xff]
      %v5355 = vpack.c.bf16 %v5324, %v5323
      %v5356 = vpack.c.bf16 %v5326, %v5325
      %v5357 = vpack.c.bf16 %v5328, %v5327
      %v5358 = vpack.c.bf16 %v5330, %v5329
      %v5359 = vpack.c.bf16 %v5332, %v5331
      %v5360 = vpack.c.bf16 %v5334, %v5333
      %v5361 = vpack.c.bf16 %v5336, %v5335
      %v5362 = vpack.c.bf16 %v5338, %v5337
      %v5363 = vpack.c.bf16 %v5340, %v5339
      %v5364 = vpack.c.bf16 %v5342, %v5341
      %v5365 = vpack.c.bf16 %v5344, %v5343
      %v5366 = vpack.c.bf16 %v5346, %v5345
      %v5367 = vpack.c.bf16 %v5348, %v5347
      %v5368 = vpack.c.bf16 %v5350, %v5349
      %v5369 = vpack.c.bf16 %v5352, %v5351
      %v5370 = vpack.c.bf16 %v5354, %v5353
      %s5371 = scalar_lea.vmem %s5, 40
      %v5372 = vld [vmem:[%s5371] sm:$0xf]
      %v5373 = vld [vmem:[%s5371 + $0x4] sm:$0x3]
      %v5376 = vunpack.c.l.b16 %v5372
      %v5377 = vunpack.c.l.b16 %v5373
      %v5378 = vpack.c.b16 %v5377, %v5376
      %v5380 = vsel %vm530, %v5355, 0
      %v5383 = vsel %vm530, %v5356, 0
      %v5386 = vsel %vm530, %v5357, 0
      %v5389 = vsel %vm530, %v5358, 0
      %v5392 = vsel %vm530, %v5359, 0
      %v5395 = vsel %vm530, %v5360, 0
      %v5398 = vsel %vm530, %v5361, 0
      %v5401 = vsel %vm530, %v5362, 0
      %v5404 = vsel %vm530, %v5363, 0
      %v5407 = vsel %vm530, %v5364, 0
      %v5410 = vsel %vm530, %v5365, 0
      %v5413 = vsel %vm530, %v5366, 0
      %v5416 = vsel %vm530, %v5367, 0
      %v5419 = vsel %vm530, %v5368, 0
      %v5422 = vsel %vm530, %v5369, 0
      %v5425 = vsel %vm530, %v5370, 0
      %v5428 = vsel %vm1174, %v5378, 0
      %5430 = vmatprep.subr.bf16.mxu0 0
      %5431 = vmatpush1.bf16.msra.mxu0 %v5428
      %5432 = vmatprep.subr.bf16.mxu0 0
      %5433 = vmatpush1.bf16.msra.mxu0 0
      %5434 = vmatprep.subr.bf16.mxu0 0
      %5435 = vmatpush1.bf16.msra.mxu0 0
      %5436 = vmatprep.subr.bf16.mxu0 0
      %5437 = vmatpush1.bf16.msra.mxu0 0
      %5438 = vmatprep.subr.bf16.mxu0 0
      %5439 = vmatpush1.bf16.msra.mxu0 0
      %5440 = vmatprep.subr.bf16.mxu0 0
      %5441 = vmatpush1.bf16.msra.mxu0 0
      %5442 = vmatprep.subr.bf16.mxu0 0
      %5443 = vmatpush1.bf16.msra.mxu0 0
      %5444 = vmatprep.subr.bf16.mxu0 0
      %5445 = vmatpush1.bf16.msra.mxu0 0
      %5446 = vmatprep.subr.bf16.mxu0 0
      %5447 = vmatpush1.bf16.msra.mxu0 0
      %5448 = vmatprep.subr.bf16.mxu0 0
      %5449 = vmatpush1.bf16.msra.mxu0 0
      %5450 = vmatprep.subr.bf16.mxu0 0
      %5451 = vmatpush1.bf16.msra.mxu0 0
      %5452 = vmatprep.subr.bf16.mxu0 0
      %5453 = vmatpush1.bf16.msra.mxu0 0
      %5454 = vmatprep.subr.bf16.mxu0 0
      %5455 = vmatpush1.bf16.msra.mxu0 0
      %5456 = vmatprep.subr.bf16.mxu0 0
      %5457 = vmatpush1.bf16.msra.mxu0 0
      %5458 = vmatprep.subr.bf16.mxu0 0
      %5459 = vmatpush1.bf16.msra.mxu0 0
      %5460 = vmatprep.subr.bf16.mxu0 0
      %5461 = vmatpush1.bf16.msra.mxu0 0
      %5462 = vmatprep.mubr.bf16.mxu0 0
      %5463 = vmatmul.mubr.bf16.gmra.mrb[0].mxu0 %v5380
      %v5464 = vpop.f32.mrb[0].mxu0
      %v5465 = vadd.f32 0.0, %v5464
      %v5466 = vpop.f32.mrb[0].mxu0
      %v5467 = vpop.f32.mrb[0].mxu0
      %v5468 = vadd.f32 0.0, %v5467
      %v5469 = vpop.f32.mrb[0].mxu0
      %5470 = vmatprep.mubr.bf16.mxu0 0
      %5471 = vmatmul.mubr.bf16.gmra.mrb[0].mxu0 %v5383
      %v5472 = vpop.f32.mrb[0].mxu0
      %v5473 = vadd.f32 0.0, %v5472
      %v5474 = vpop.f32.mrb[0].mxu0
      %v5475 = vpop.f32.mrb[0].mxu0
      %v5476 = vadd.f32 0.0, %v5475
      %v5477 = vpop.f32.mrb[0].mxu0
      %5478 = vmatprep.mubr.bf16.mxu0 0
      %5479 = vmatmul.mubr.bf16.gmra.mrb[0].mxu0 %v5386
      %v5480 = vpop.f32.mrb[0].mxu0
      %v5481 = vadd.f32 0.0, %v5480
      %v5482 = vpop.f32.mrb[0].mxu0
      %v5483 = vpop.f32.mrb[0].mxu0
      %v5484 = vadd.f32 0.0, %v5483
      %v5485 = vpop.f32.mrb[0].mxu0
      %5486 = vmatprep.mubr.bf16.mxu0 0
      %5487 = vmatmul.mubr.bf16.gmra.mrb[0].mxu0 %v5389
      %v5488 = vpop.f32.mrb[0].mxu0
      %v5489 = vadd.f32 0.0, %v5488
      %v5490 = vpop.f32.mrb[0].mxu0
      %v5491 = vpop.f32.mrb[0].mxu0
      %v5492 = vadd.f32 0.0, %v5491
      %v5493 = vpop.f32.mrb[0].mxu0
      %5494 = vmatprep.mubr.bf16.mxu0 0
      %5495 = vmatmul.mubr.bf16.gmra.mrb[0].mxu0 %v5392
      %v5496 = vpop.f32.mrb[0].mxu0
      %v5497 = vadd.f32 0.0, %v5496
      %v5498 = vpop.f32.mrb[0].mxu0
      %v5499 = vpop.f32.mrb[0].mxu0
      %v5500 = vadd.f32 0.0, %v5499
      %v5501 = vpop.f32.mrb[0].mxu0
      %5502 = vmatprep.mubr.bf16.mxu0 0
      %5503 = vmatmul.mubr.bf16.gmra.mrb[0].mxu0 %v5395
      %v5504 = vpop.f32.mrb[0].mxu0
      %v5505 = vadd.f32 0.0, %v5504
      %v5506 = vpop.f32.mrb[0].mxu0
      %v5507 = vpop.f32.mrb[0].mxu0
      %v5508 = vadd.f32 0.0, %v5507
      %v5509 = vpop.f32.mrb[0].mxu0
      %5510 = vmatprep.mubr.bf16.mxu0 0
      %5511 = vmatmul.mubr.bf16.gmra.mrb[0].mxu0 %v5398
      %v5512 = vpop.f32.mrb[0].mxu0
      %v5513 = vadd.f32 0.0, %v5512
      %v5514 = vpop.f32.mrb[0].mxu0
      %v5515 = vpop.f32.mrb[0].mxu0
      %v5516 = vadd.f32 0.0, %v5515
      %v5517 = vpop.f32.mrb[0].mxu0
      %5518 = vmatprep.mubr.bf16.mxu0 0
      %5519 = vmatmul.mubr.bf16.gmra.mrb[0].mxu0 %v5401
      %v5520 = vpop.f32.mrb[0].mxu0
      %v5521 = vadd.f32 0.0, %v5520
      %v5522 = vpop.f32.mrb[0].mxu0
      %v5523 = vpop.f32.mrb[0].mxu0
      %v5524 = vadd.f32 0.0, %v5523
      %v5525 = vpop.f32.mrb[0].mxu0
      %5526 = vmatprep.mubr.bf16.mxu0 0
      %5527 = vmatmul.mubr.bf16.gmra.mrb[0].mxu0 %v5404
      %v5528 = vpop.f32.mrb[0].mxu0
      %v5529 = vadd.f32 0.0, %v5528
      %v5530 = vpop.f32.mrb[0].mxu0
      %v5531 = vpop.f32.mrb[0].mxu0
      %v5532 = vadd.f32 0.0, %v5531
      %v5533 = vpop.f32.mrb[0].mxu0
      %5534 = vmatprep.mubr.bf16.mxu0 0
      %5535 = vmatmul.mubr.bf16.gmra.mrb[0].mxu0 %v5407
      %v5536 = vpop.f32.mrb[0].mxu0
      %v5537 = vadd.f32 0.0, %v5536
      %v5538 = vpop.f32.mrb[0].mxu0
      %v5539 = vpop.f32.mrb[0].mxu0
      %v5540 = vadd.f32 0.0, %v5539
      %v5541 = vpop.f32.mrb[0].mxu0
      %5542 = vmatprep.mubr.bf16.mxu0 0
      %5543 = vmatmul.mubr.bf16.gmra.mrb[0].mxu0 %v5410
      %v5544 = vpop.f32.mrb[0].mxu0
      %v5545 = vadd.f32 0.0, %v5544
      %v5546 = vpop.f32.mrb[0].mxu0
      %v5547 = vpop.f32.mrb[0].mxu0
      %v5548 = vadd.f32 0.0, %v5547
      %v5549 = vpop.f32.mrb[0].mxu0
      %5550 = vmatprep.mubr.bf16.mxu0 0
      %5551 = vmatmul.mubr.bf16.gmra.mrb[0].mxu0 %v5413
      %v5552 = vpop.f32.mrb[0].mxu0
      %v5553 = vadd.f32 0.0, %v5552
      %v5554 = vpop.f32.mrb[0].mxu0
      %v5555 = vpop.f32.mrb[0].mxu0
      %v5556 = vadd.f32 0.0, %v5555
      %v5557 = vpop.f32.mrb[0].mxu0
      %5558 = vmatprep.mubr.bf16.mxu0 0
      %5559 = vmatmul.mubr.bf16.gmra.mrb[0].mxu0 %v5416
      %v5560 = vpop.f32.mrb[0].mxu0
      %v5561 = vadd.f32 0.0, %v5560
      %v5562 = vpop.f32.mrb[0].mxu0
      %v5563 = vpop.f32.mrb[0].mxu0
      %v5564 = vadd.f32 0.0, %v5563
      %v5565 = vpop.f32.mrb[0].mxu0
      %5566 = vmatprep.mubr.bf16.mxu0 0
      %5567 = vmatmul.mubr.bf16.gmra.mrb[0].mxu0 %v5419
      %v5568 = vpop.f32.mrb[0].mxu0
      %v5569 = vadd.f32 0.0, %v5568
      %v5570 = vpop.f32.mrb[0].mxu0
      %v5571 = vpop.f32.mrb[0].mxu0
      %v5572 = vadd.f32 0.0, %v5571
      %v5573 = vpop.f32.mrb[0].mxu0
      %5574 = vmatprep.mubr.bf16.mxu0 0
      %5575 = vmatmul.mubr.bf16.gmra.mrb[0].mxu0 %v5422
      %v5576 = vpop.f32.mrb[0].mxu0
      %v5577 = vadd.f32 0.0, %v5576
      %v5578 = vpop.f32.mrb[0].mxu0
      %v5579 = vpop.f32.mrb[0].mxu0
      %v5580 = vadd.f32 0.0, %v5579
      %v5581 = vpop.f32.mrb[0].mxu0
      %5582 = vmatprep.mubr.bf16.mxu0 0
      %5583 = vmatmul.mubr.bf16.gmra.mrb[0].mxu0 %v5425
      %v5584 = vpop.f32.mrb[0].mxu0
      %v5585 = vadd.f32 0.0, %v5584
      %v5586 = vpop.f32.mrb[0].mxu0
      %v5587 = vpop.f32.mrb[0].mxu0
      %v5588 = vadd.f32 0.0, %v5587
      %v5589 = vpop.f32.mrb[0].mxu0
      %5590 = vdwg.mxu0
      %v5591 = vadd.f32 %v5291, %v5465
      %v5592 = vadd.f32 %v5292, %v5468
      %v5593 = vadd.f32 %v5293, %v5473
      %v5594 = vadd.f32 %v5294, %v5476
      %v5595 = vadd.f32 %v5295, %v5481
      %v5596 = vadd.f32 %v5296, %v5484
      %v5597 = vadd.f32 %v5297, %v5489
      %v5598 = vadd.f32 %v5298, %v5492
      %v5599 = vadd.f32 %v5299, %v5497
      %v5600 = vadd.f32 %v5300, %v5500
      %v5601 = vadd.f32 %v5301, %v5505
      %v5602 = vadd.f32 %v5302, %v5508
      %v5603 = vadd.f32 %v5303, %v5513
      %v5604 = vadd.f32 %v5304, %v5516
      %v5605 = vadd.f32 %v5305, %v5521
      %v5606 = vadd.f32 %v5306, %v5524
      %v5607 = vadd.f32 %v5307, %v5529
      %v5608 = vadd.f32 %v5308, %v5532
      %v5609 = vadd.f32 %v5309, %v5537
      %v5610 = vadd.f32 %v5310, %v5540
      %v5611 = vadd.f32 %v5311, %v5545
      %v5612 = vadd.f32 %v5312, %v5548
      %v5613 = vadd.f32 %v5313, %v5553
      %v5614 = vadd.f32 %v5314, %v5556
      %v5615 = vadd.f32 %v5315, %v5561
      %v5616 = vadd.f32 %v5316, %v5564
      %v5617 = vadd.f32 %v5317, %v5569
      %v5618 = vadd.f32 %v5318, %v5572
      %v5619 = vadd.f32 %v5319, %v5577
      %v5620 = vadd.f32 %v5320, %v5580
      %v5621 = vadd.f32 %v5321, %v5585
      %v5622 = vadd.f32 %v5322, %v5588
      %v5623 = vld [vmem:[%s2756] sm:$0xff]
      %v5624 = vld [vmem:[%s2756 + $0x8] sm:$0xff]
      %v5625 = vld [vmem:[%s2756 + $0x18] sm:$0xff]
      %v5626 = vld [vmem:[%s2756 + $0x20] sm:$0xff]
      %v5627 = vld [vmem:[%s2756 + $0x30] sm:$0xff]
      %v5628 = vld [vmem:[%s2756 + $0x38] sm:$0xff]
      %v5629 = vld [vmem:[%s2756 + $0x48] sm:$0xff]
      %v5630 = vld [vmem:[%s2756 + $0x50] sm:$0xff]
      %v5631 = vld [vmem:[%s2756 + $0x60] sm:$0xff]
      %v5632 = vld [vmem:[%s2756 + $0x68] sm:$0xff]
      %v5633 = vld [vmem:[%s2756 + $0x78] sm:$0xff]
      %v5634 = vld [vmem:[%s2756 + $0x80] sm:$0xff]
      %v5635 = vld [vmem:[%s2756 + $0x90] sm:$0xff]
      %v5636 = vld [vmem:[%s2756 + $0x98] sm:$0xff]
      %v5637 = vld [vmem:[%s2756 + $0xa8] sm:$0xff]
      %v5638 = vld [vmem:[%s2756 + $0xb0] sm:$0xff]
      %v5639 = vld [vmem:[%s2756 + $0xc0] sm:$0xff]
      %v5640 = vld [vmem:[%s2756 + $0xc8] sm:$0xff]
      %v5641 = vld [vmem:[%s2756 + $0xd8] sm:$0xff]
      %v5642 = vld [vmem:[%s2756 + $0xe0] sm:$0xff]
      %v5643 = vld [vmem:[%s2756 + $0xf0] sm:$0xff]
      %v5644 = vld [vmem:[%s2756 + $0xf8] sm:$0xff]
      %v5645 = vld [vmem:[%s2756 + $0x108] sm:$0xff]
      %v5646 = vld [vmem:[%s2756 + $0x110] sm:$0xff]
      %v5647 = vld [vmem:[%s2756 + $0x120] sm:$0xff]
      %v5648 = vld [vmem:[%s2756 + $0x128] sm:$0xff]
      %v5649 = vld [vmem:[%s2756 + $0x138] sm:$0xff]
      %v5650 = vld [vmem:[%s2756 + $0x140] sm:$0xff]
      %v5651 = vld [vmem:[%s2756 + $0x150] sm:$0xff]
      %v5652 = vld [vmem:[%s2756 + $0x158] sm:$0xff]
      %v5653 = vld [vmem:[%s2756 + $0x168] sm:$0xff]
      %v5654 = vld [vmem:[%s2756 + $0x170] sm:$0xff]
      %v5655 = vpack.c.bf16 %v5624, %v5623
      %v5656 = vpack.c.bf16 %v5626, %v5625
      %v5657 = vpack.c.bf16 %v5628, %v5627
      %v5658 = vpack.c.bf16 %v5630, %v5629
      %v5659 = vpack.c.bf16 %v5632, %v5631
      %v5660 = vpack.c.bf16 %v5634, %v5633
      %v5661 = vpack.c.bf16 %v5636, %v5635
      %v5662 = vpack.c.bf16 %v5638, %v5637
      %v5663 = vpack.c.bf16 %v5640, %v5639
      %v5664 = vpack.c.bf16 %v5642, %v5641
      %v5665 = vpack.c.bf16 %v5644, %v5643
      %v5666 = vpack.c.bf16 %v5646, %v5645
      %v5667 = vpack.c.bf16 %v5648, %v5647
      %v5668 = vpack.c.bf16 %v5650, %v5649
      %v5669 = vpack.c.bf16 %v5652, %v5651
      %v5670 = vpack.c.bf16 %v5654, %v5653
      %s5671 = scalar_lea.vmem %s5, 48
      %v5672 = vld [vmem:[%s5671] sm:$0xf]
      %v5673 = vld [vmem:[%s5671 + $0x4] sm:$0x3]
      %v5676 = vunpack.c.l.b16 %v5672
      %v5677 = vunpack.c.l.b16 %v5673
      %v5678 = vpack.c.b16 %v5677, %v5676
      %v5680 = vsel %vm530, %v5655, 0
      %v5683 = vsel %vm530, %v5656, 0
      %v5686 = vsel %vm530, %v5657, 0
      %v5689 = vsel %vm530, %v5658, 0
      %v5692 = vsel %vm530, %v5659, 0
      %v5695 = vsel %vm530, %v5660, 0
      %v5698 = vsel %vm530, %v5661, 0
      %v5701 = vsel %vm530, %v5662, 0
      %v5704 = vsel %vm530, %v5663, 0
      %v5707 = vsel %vm530, %v5664, 0
      %v5710 = vsel %vm530, %v5665, 0
      %v5713 = vsel %vm530, %v5666, 0
      %v5716 = vsel %vm530, %v5667, 0
      %v5719 = vsel %vm530, %v5668, 0
      %v5722 = vsel %vm530, %v5669, 0
      %v5725 = vsel %vm530, %v5670, 0
      %v5728 = vsel %vm1174, %v5678, 0
      %5730 = vmatprep.subr.bf16.mxu0 0
      %5731 = vmatpush1.bf16.msra.mxu0 %v5728
      %5732 = vmatprep.subr.bf16.mxu0 0
      %5733 = vmatpush1.bf16.msra.mxu0 0
      %5734 = vmatprep.subr.bf16.mxu0 0
      %5735 = vmatpush1.bf16.msra.mxu0 0
      %5736 = vmatprep.subr.bf16.mxu0 0
      %5737 = vmatpush1.bf16.msra.mxu0 0
      %5738 = vmatprep.subr.bf16.mxu0 0
      %5739 = vmatpush1.bf16.msra.mxu0 0
      %5740 = vmatprep.subr.bf16.mxu0 0
      %5741 = vmatpush1.bf16.msra.mxu0 0
      %5742 = vmatprep.subr.bf16.mxu0 0
      %5743 = vmatpush1.bf16.msra.mxu0 0
      %5744 = vmatprep.subr.bf16.mxu0 0
      %5745 = vmatpush1.bf16.msra.mxu0 0
      %5746 = vmatprep.subr.bf16.mxu0 0
      %5747 = vmatpush1.bf16.msra.mxu0 0
      %5748 = vmatprep.subr.bf16.mxu0 0
      %5749 = vmatpush1.bf16.msra.mxu0 0
      %5750 = vmatprep.subr.bf16.mxu0 0
      %5751 = vmatpush1.bf16.msra.mxu0 0
      %5752 = vmatprep.subr.bf16.mxu0 0
      %5753 = vmatpush1.bf16.msra.mxu0 0
      %5754 = vmatprep.subr.bf16.mxu0 0
      %5755 = vmatpush1.bf16.msra.mxu0 0
      %5756 = vmatprep.subr.bf16.mxu0 0
      %5757 = vmatpush1.bf16.msra.mxu0 0
      %5758 = vmatprep.subr.bf16.mxu0 0
      %5759 = vmatpush1.bf16.msra.mxu0 0
      %5760 = vmatprep.subr.bf16.mxu0 0
      %5761 = vmatpush1.bf16.msra.mxu0 0
      %5762 = vmatprep.mubr.bf16.mxu0 0
      %5763 = vmatmul.mubr.bf16.gmra.mrb[0].mxu0 %v5680
      %v5764 = vpop.f32.mrb[0].mxu0
      %v5765 = vadd.f32 0.0, %v5764
      %v5766 = vpop.f32.mrb[0].mxu0
      %v5767 = vpop.f32.mrb[0].mxu0
      %v5768 = vadd.f32 0.0, %v5767
      %v5769 = vpop.f32.mrb[0].mxu0
      %5770 = vmatprep.mubr.bf16.mxu0 0
      %5771 = vmatmul.mubr.bf16.gmra.mrb[0].mxu0 %v5683
      %v5772 = vpop.f32.mrb[0].mxu0
      %v5773 = vadd.f32 0.0, %v5772
      %v5774 = vpop.f32.mrb[0].mxu0
      %v5775 = vpop.f32.mrb[0].mxu0
      %v5776 = vadd.f32 0.0, %v5775
      %v5777 = vpop.f32.mrb[0].mxu0
      %5778 = vmatprep.mubr.bf16.mxu0 0
      %5779 = vmatmul.mubr.bf16.gmra.mrb[0].mxu0 %v5686
      %v5780 = vpop.f32.mrb[0].mxu0
      %v5781 = vadd.f32 0.0, %v5780
      %v5782 = vpop.f32.mrb[0].mxu0
      %v5783 = vpop.f32.mrb[0].mxu0
      %v5784 = vadd.f32 0.0, %v5783
      %v5785 = vpop.f32.mrb[0].mxu0
      %5786 = vmatprep.mubr.bf16.mxu0 0
      %5787 = vmatmul.mubr.bf16.gmra.mrb[0].mxu0 %v5689
      %v5788 = vpop.f32.mrb[0].mxu0
      %v5789 = vadd.f32 0.0, %v5788
      %v5790 = vpop.f32.mrb[0].mxu0
      %v5791 = vpop.f32.mrb[0].mxu0
      %v5792 = vadd.f32 0.0, %v5791
      %v5793 = vpop.f32.mrb[0].mxu0
      %5794 = vmatprep.mubr.bf16.mxu0 0
      %5795 = vmatmul.mubr.bf16.gmra.mrb[0].mxu0 %v5692
      %v5796 = vpop.f32.mrb[0].mxu0
      %v5797 = vadd.f32 0.0, %v5796
      %v5798 = vpop.f32.mrb[0].mxu0
      %v5799 = vpop.f32.mrb[0].mxu0
      %v5800 = vadd.f32 0.0, %v5799
      %v5801 = vpop.f32.mrb[0].mxu0
      %5802 = vmatprep.mubr.bf16.mxu0 0
      %5803 = vmatmul.mubr.bf16.gmra.mrb[0].mxu0 %v5695
      %v5804 = vpop.f32.mrb[0].mxu0
      %v5805 = vadd.f32 0.0, %v5804
      %v5806 = vpop.f32.mrb[0].mxu0
      %v5807 = vpop.f32.mrb[0].mxu0
      %v5808 = vadd.f32 0.0, %v5807
      %v5809 = vpop.f32.mrb[0].mxu0
      %5810 = vmatprep.mubr.bf16.mxu0 0
      %5811 = vmatmul.mubr.bf16.gmra.mrb[0].mxu0 %v5698
      %v5812 = vpop.f32.mrb[0].mxu0
      %v5813 = vadd.f32 0.0, %v5812
      %v5814 = vpop.f32.mrb[0].mxu0
      %v5815 = vpop.f32.mrb[0].mxu0
      %v5816 = vadd.f32 0.0, %v5815
      %v5817 = vpop.f32.mrb[0].mxu0
      %5818 = vmatprep.mubr.bf16.mxu0 0
      %5819 = vmatmul.mubr.bf16.gmra.mrb[0].mxu0 %v5701
      %v5820 = vpop.f32.mrb[0].mxu0
      %v5821 = vadd.f32 0.0, %v5820
      %v5822 = vpop.f32.mrb[0].mxu0
      %v5823 = vpop.f32.mrb[0].mxu0
      %v5824 = vadd.f32 0.0, %v5823
      %v5825 = vpop.f32.mrb[0].mxu0
      %5826 = vmatprep.mubr.bf16.mxu0 0
      %5827 = vmatmul.mubr.bf16.gmra.mrb[0].mxu0 %v5704
      %v5828 = vpop.f32.mrb[0].mxu0
      %v5829 = vadd.f32 0.0, %v5828
      %v5830 = vpop.f32.mrb[0].mxu0
      %v5831 = vpop.f32.mrb[0].mxu0
      %v5832 = vadd.f32 0.0, %v5831
      %v5833 = vpop.f32.mrb[0].mxu0
      %5834 = vmatprep.mubr.bf16.mxu0 0
      %5835 = vmatmul.mubr.bf16.gmra.mrb[0].mxu0 %v5707
      %v5836 = vpop.f32.mrb[0].mxu0
      %v5837 = vadd.f32 0.0, %v5836
      %v5838 = vpop.f32.mrb[0].mxu0
      %v5839 = vpop.f32.mrb[0].mxu0
      %v5840 = vadd.f32 0.0, %v5839
      %v5841 = vpop.f32.mrb[0].mxu0
      %5842 = vmatprep.mubr.bf16.mxu0 0
      %5843 = vmatmul.mubr.bf16.gmra.mrb[0].mxu0 %v5710
      %v5844 = vpop.f32.mrb[0].mxu0
      %v5845 = vadd.f32 0.0, %v5844
      %v5846 = vpop.f32.mrb[0].mxu0
      %v5847 = vpop.f32.mrb[0].mxu0
      %v5848 = vadd.f32 0.0, %v5847
      %v5849 = vpop.f32.mrb[0].mxu0
      %5850 = vmatprep.mubr.bf16.mxu0 0
      %5851 = vmatmul.mubr.bf16.gmra.mrb[0].mxu0 %v5713
      %v5852 = vpop.f32.mrb[0].mxu0
      %v5853 = vadd.f32 0.0, %v5852
      %v5854 = vpop.f32.mrb[0].mxu0
      %v5855 = vpop.f32.mrb[0].mxu0
      %v5856 = vadd.f32 0.0, %v5855
      %v5857 = vpop.f32.mrb[0].mxu0
      %5858 = vmatprep.mubr.bf16.mxu0 0
      %5859 = vmatmul.mubr.bf16.gmra.mrb[0].mxu0 %v5716
      %v5860 = vpop.f32.mrb[0].mxu0
      %v5861 = vadd.f32 0.0, %v5860
      %v5862 = vpop.f32.mrb[0].mxu0
      %v5863 = vpop.f32.mrb[0].mxu0
      %v5864 = vadd.f32 0.0, %v5863
      %v5865 = vpop.f32.mrb[0].mxu0
      %5866 = vmatprep.mubr.bf16.mxu0 0
      %5867 = vmatmul.mubr.bf16.gmra.mrb[0].mxu0 %v5719
      %v5868 = vpop.f32.mrb[0].mxu0
      %v5869 = vadd.f32 0.0, %v5868
      %v5870 = vpop.f32.mrb[0].mxu0
      %v5871 = vpop.f32.mrb[0].mxu0
      %v5872 = vadd.f32 0.0, %v5871
      %v5873 = vpop.f32.mrb[0].mxu0
      %5874 = vmatprep.mubr.bf16.mxu0 0
      %5875 = vmatmul.mubr.bf16.gmra.mrb[0].mxu0 %v5722
      %v5876 = vpop.f32.mrb[0].mxu0
      %v5877 = vadd.f32 0.0, %v5876
      %v5878 = vpop.f32.mrb[0].mxu0
      %v5879 = vpop.f32.mrb[0].mxu0
      %v5880 = vadd.f32 0.0, %v5879
      %v5881 = vpop.f32.mrb[0].mxu0
      %5882 = vmatprep.mubr.bf16.mxu0 0
      %5883 = vmatmul.mubr.bf16.gmra.mrb[0].mxu0 %v5725
      %v5884 = vpop.f32.mrb[0].mxu0
      %v5885 = vadd.f32 0.0, %v5884
      %v5886 = vpop.f32.mrb[0].mxu0
      %v5887 = vpop.f32.mrb[0].mxu0
      %v5888 = vadd.f32 0.0, %v5887
      %v5889 = vpop.f32.mrb[0].mxu0
      %5890 = vdwg.mxu0
      %v5891 = vadd.f32 %v5591, %v5765
      %v5892 = vadd.f32 %v5592, %v5768
      %v5893 = vadd.f32 %v5593, %v5773
      %v5894 = vadd.f32 %v5594, %v5776
      %v5895 = vadd.f32 %v5595, %v5781
      %v5896 = vadd.f32 %v5596, %v5784
      %v5897 = vadd.f32 %v5597, %v5789
      %v5898 = vadd.f32 %v5598, %v5792
      %v5899 = vadd.f32 %v5599, %v5797
      %v5900 = vadd.f32 %v5600, %v5800
      %v5901 = vadd.f32 %v5601, %v5805
      %v5902 = vadd.f32 %v5602, %v5808
      %v5903 = vadd.f32 %v5603, %v5813
      %v5904 = vadd.f32 %v5604, %v5816
      %v5905 = vadd.f32 %v5605, %v5821
      %v5906 = vadd.f32 %v5606, %v5824
      %v5907 = vadd.f32 %v5607, %v5829
      %v5908 = vadd.f32 %v5608, %v5832
      %v5909 = vadd.f32 %v5609, %v5837
      %v5910 = vadd.f32 %v5610, %v5840
      %v5911 = vadd.f32 %v5611, %v5845
      %v5912 = vadd.f32 %v5612, %v5848
      %v5913 = vadd.f32 %v5613, %v5853
      %v5914 = vadd.f32 %v5614, %v5856
      %v5915 = vadd.f32 %v5615, %v5861
      %v5916 = vadd.f32 %v5616, %v5864
      %v5917 = vadd.f32 %v5617, %v5869
      %v5918 = vadd.f32 %v5618, %v5872
      %v5919 = vadd.f32 %v5619, %v5877
      %v5920 = vadd.f32 %v5620, %v5880
      %v5921 = vadd.f32 %v5621, %v5885
      %v5922 = vadd.f32 %v5622, %v5888
      %v5923 = vld [vmem:[%s2756 + $0x1] sm:$0xff]
      %v5924 = vld [vmem:[%s2756 + $0x9] sm:$0xff]
      %v5925 = vld [vmem:[%s2756 + $0x19] sm:$0xff]
      %v5926 = vld [vmem:[%s2756 + $0x21] sm:$0xff]
      %v5927 = vld [vmem:[%s2756 + $0x31] sm:$0xff]
      %v5928 = vld [vmem:[%s2756 + $0x39] sm:$0xff]
      %v5929 = vld [vmem:[%s2756 + $0x49] sm:$0xff]
      %v5930 = vld [vmem:[%s2756 + $0x51] sm:$0xff]
      %v5931 = vld [vmem:[%s2756 + $0x61] sm:$0xff]
      %v5932 = vld [vmem:[%s2756 + $0x69] sm:$0xff]
      %v5933 = vld [vmem:[%s2756 + $0x79] sm:$0xff]
      %v5934 = vld [vmem:[%s2756 + $0x81] sm:$0xff]
      %v5935 = vld [vmem:[%s2756 + $0x91] sm:$0xff]
      %v5936 = vld [vmem:[%s2756 + $0x99] sm:$0xff]
      %v5937 = vld [vmem:[%s2756 + $0xa9] sm:$0xff]
      %v5938 = vld [vmem:[%s2756 + $0xb1] sm:$0xff]
      %v5939 = vld [vmem:[%s2756 + $0xc1] sm:$0xff]
      %v5940 = vld [vmem:[%s2756 + $0xc9] sm:$0xff]
      %v5941 = vld [vmem:[%s2756 + $0xd9] sm:$0xff]
      %v5942 = vld [vmem:[%s2756 + $0xe1] sm:$0xff]
      %v5943 = vld [vmem:[%s2756 + $0xf1] sm:$0xff]
      %v5944 = vld [vmem:[%s2756 + $0xf9] sm:$0xff]
      %v5945 = vld [vmem:[%s2756 + $0x109] sm:$0xff]
      %v5946 = vld [vmem:[%s2756 + $0x111] sm:$0xff]
      %v5947 = vld [vmem:[%s2756 + $0x121] sm:$0xff]
      %v5948 = vld [vmem:[%s2756 + $0x129] sm:$0xff]
      %v5949 = vld [vmem:[%s2756 + $0x139] sm:$0xff]
      %v5950 = vld [vmem:[%s2756 + $0x141] sm:$0xff]
      %v5951 = vld [vmem:[%s2756 + $0x151] sm:$0xff]
      %v5952 = vld [vmem:[%s2756 + $0x159] sm:$0xff]
      %v5953 = vld [vmem:[%s2756 + $0x169] sm:$0xff]
      %v5954 = vld [vmem:[%s2756 + $0x171] sm:$0xff]
      %v5955 = vpack.c.bf16 %v5924, %v5923
      %v5956 = vpack.c.bf16 %v5926, %v5925
      %v5957 = vpack.c.bf16 %v5928, %v5927
      %v5958 = vpack.c.bf16 %v5930, %v5929
      %v5959 = vpack.c.bf16 %v5932, %v5931
      %v5960 = vpack.c.bf16 %v5934, %v5933
      %v5961 = vpack.c.bf16 %v5936, %v5935
      %v5962 = vpack.c.bf16 %v5938, %v5937
      %v5963 = vpack.c.bf16 %v5940, %v5939
      %v5964 = vpack.c.bf16 %v5942, %v5941
      %v5965 = vpack.c.bf16 %v5944, %v5943
      %v5966 = vpack.c.bf16 %v5946, %v5945
      %v5967 = vpack.c.bf16 %v5948, %v5947
      %v5968 = vpack.c.bf16 %v5950, %v5949
      %v5969 = vpack.c.bf16 %v5952, %v5951
      %v5970 = vpack.c.bf16 %v5954, %v5953
      %s5971 = scalar_lea.vmem %s5, 56
      %v5972 = vld [vmem:[%s5971] sm:$0xf]
      %v5973 = vld [vmem:[%s5971 + $0x4] sm:$0x3]
      %v5976 = vunpack.c.l.b16 %v5972
      %v5977 = vunpack.c.l.b16 %v5973
      %v5978 = vpack.c.b16 %v5977, %v5976
      %v5980 = vsel %vm530, %v5955, 0
      %v5983 = vsel %vm530, %v5956, 0
      %v5986 = vsel %vm530, %v5957, 0
      %v5989 = vsel %vm530, %v5958, 0
      %v5992 = vsel %vm530, %v5959, 0
      %v5995 = vsel %vm530, %v5960, 0
      %v5998 = vsel %vm530, %v5961, 0
      %v6001 = vsel %vm530, %v5962, 0
      %v6004 = vsel %vm530, %v5963, 0
      %v6007 = vsel %vm530, %v5964, 0
      %v6010 = vsel %vm530, %v5965, 0
      %v6013 = vsel %vm530, %v5966, 0
      %v6016 = vsel %vm530, %v5967, 0
      %v6019 = vsel %vm530, %v5968, 0
      %v6022 = vsel %vm530, %v5969, 0
      %v6025 = vsel %vm530, %v5970, 0
      %v6028 = vsel %vm1174, %v5978, 0
      %6030 = vmatprep.subr.bf16.mxu0 0
      %6031 = vmatpush1.bf16.msra.mxu0 %v6028
      %6032 = vmatprep.subr.bf16.mxu0 0
      %6033 = vmatpush1.bf16.msra.mxu0 0
      %6034 = vmatprep.subr.bf16.mxu0 0
      %6035 = vmatpush1.bf16.msra.mxu0 0
      %6036 = vmatprep.subr.bf16.mxu0 0
      %6037 = vmatpush1.bf16.msra.mxu0 0
      %6038 = vmatprep.subr.bf16.mxu0 0
      %6039 = vmatpush1.bf16.msra.mxu0 0
      %6040 = vmatprep.subr.bf16.mxu0 0
      %6041 = vmatpush1.bf16.msra.mxu0 0
      %6042 = vmatprep.subr.bf16.mxu0 0
      %6043 = vmatpush1.bf16.msra.mxu0 0
      %6044 = vmatprep.subr.bf16.mxu0 0
      %6045 = vmatpush1.bf16.msra.mxu0 0
      %6046 = vmatprep.subr.bf16.mxu0 0
      %6047 = vmatpush1.bf16.msra.mxu0 0
      %6048 = vmatprep.subr.bf16.mxu0 0
      %6049 = vmatpush1.bf16.msra.mxu0 0
      %6050 = vmatprep.subr.bf16.mxu0 0
      %6051 = vmatpush1.bf16.msra.mxu0 0
      %6052 = vmatprep.subr.bf16.mxu0 0
      %6053 = vmatpush1.bf16.msra.mxu0 0
      %6054 = vmatprep.subr.bf16.mxu0 0
      %6055 = vmatpush1.bf16.msra.mxu0 0
      %6056 = vmatprep.subr.bf16.mxu0 0
      %6057 = vmatpush1.bf16.msra.mxu0 0
      %6058 = vmatprep.subr.bf16.mxu0 0
      %6059 = vmatpush1.bf16.msra.mxu0 0
      %6060 = vmatprep.subr.bf16.mxu0 0
      %6061 = vmatpush1.bf16.msra.mxu0 0
      %6062 = vmatprep.mubr.bf16.mxu0 0
      %6063 = vmatmul.mubr.bf16.gmra.mrb[0].mxu0 %v5980
      %v6064 = vpop.f32.mrb[0].mxu0
      %v6065 = vadd.f32 0.0, %v6064
      %v6066 = vpop.f32.mrb[0].mxu0
      %v6067 = vpop.f32.mrb[0].mxu0
      %v6068 = vadd.f32 0.0, %v6067
      %v6069 = vpop.f32.mrb[0].mxu0
      %6070 = vmatprep.mubr.bf16.mxu0 0
      %6071 = vmatmul.mubr.bf16.gmra.mrb[0].mxu0 %v5983
      %v6072 = vpop.f32.mrb[0].mxu0
      %v6073 = vadd.f32 0.0, %v6072
      %v6074 = vpop.f32.mrb[0].mxu0
      %v6075 = vpop.f32.mrb[0].mxu0
      %v6076 = vadd.f32 0.0, %v6075
      %v6077 = vpop.f32.mrb[0].mxu0
      %6078 = vmatprep.mubr.bf16.mxu0 0
      %6079 = vmatmul.mubr.bf16.gmra.mrb[0].mxu0 %v5986
      %v6080 = vpop.f32.mrb[0].mxu0
      %v6081 = vadd.f32 0.0, %v6080
      %v6082 = vpop.f32.mrb[0].mxu0
      %v6083 = vpop.f32.mrb[0].mxu0
      %v6084 = vadd.f32 0.0, %v6083
      %v6085 = vpop.f32.mrb[0].mxu0
      %6086 = vmatprep.mubr.bf16.mxu0 0
      %6087 = vmatmul.mubr.bf16.gmra.mrb[0].mxu0 %v5989
      %v6088 = vpop.f32.mrb[0].mxu0
      %v6089 = vadd.f32 0.0, %v6088
      %v6090 = vpop.f32.mrb[0].mxu0
      %v6091 = vpop.f32.mrb[0].mxu0
      %v6092 = vadd.f32 0.0, %v6091
      %v6093 = vpop.f32.mrb[0].mxu0
      %6094 = vmatprep.mubr.bf16.mxu0 0
      %6095 = vmatmul.mubr.bf16.gmra.mrb[0].mxu0 %v5992
      %v6096 = vpop.f32.mrb[0].mxu0
      %v6097 = vadd.f32 0.0, %v6096
      %v6098 = vpop.f32.mrb[0].mxu0
      %v6099 = vpop.f32.mrb[0].mxu0
      %v6100 = vadd.f32 0.0, %v6099
      %v6101 = vpop.f32.mrb[0].mxu0
      %6102 = vmatprep.mubr.bf16.mxu0 0
      %6103 = vmatmul.mubr.bf16.gmra.mrb[0].mxu0 %v5995
      %v6104 = vpop.f32.mrb[0].mxu0
      %v6105 = vadd.f32 0.0, %v6104
      %v6106 = vpop.f32.mrb[0].mxu0
      %v6107 = vpop.f32.mrb[0].mxu0
      %v6108 = vadd.f32 0.0, %v6107
      %v6109 = vpop.f32.mrb[0].mxu0
      %6110 = vmatprep.mubr.bf16.mxu0 0
      %6111 = vmatmul.mubr.bf16.gmra.mrb[0].mxu0 %v5998
      %v6112 = vpop.f32.mrb[0].mxu0
      %v6113 = vadd.f32 0.0, %v6112
      %v6114 = vpop.f32.mrb[0].mxu0
      %v6115 = vpop.f32.mrb[0].mxu0
      %v6116 = vadd.f32 0.0, %v6115
      %v6117 = vpop.f32.mrb[0].mxu0
      %6118 = vmatprep.mubr.bf16.mxu0 0
      %6119 = vmatmul.mubr.bf16.gmra.mrb[0].mxu0 %v6001
      %v6120 = vpop.f32.mrb[0].mxu0
      %v6121 = vadd.f32 0.0, %v6120
      %v6122 = vpop.f32.mrb[0].mxu0
      %v6123 = vpop.f32.mrb[0].mxu0
      %v6124 = vadd.f32 0.0, %v6123
      %v6125 = vpop.f32.mrb[0].mxu0
      %6126 = vmatprep.mubr.bf16.mxu0 0
      %6127 = vmatmul.mubr.bf16.gmra.mrb[0].mxu0 %v6004
      %v6128 = vpop.f32.mrb[0].mxu0
      %v6129 = vadd.f32 0.0, %v6128
      %v6130 = vpop.f32.mrb[0].mxu0
      %v6131 = vpop.f32.mrb[0].mxu0
      %v6132 = vadd.f32 0.0, %v6131
      %v6133 = vpop.f32.mrb[0].mxu0
      %6134 = vmatprep.mubr.bf16.mxu0 0
      %6135 = vmatmul.mubr.bf16.gmra.mrb[0].mxu0 %v6007
      %v6136 = vpop.f32.mrb[0].mxu0
      %v6137 = vadd.f32 0.0, %v6136
      %v6138 = vpop.f32.mrb[0].mxu0
      %v6139 = vpop.f32.mrb[0].mxu0
      %v6140 = vadd.f32 0.0, %v6139
      %v6141 = vpop.f32.mrb[0].mxu0
      %6142 = vmatprep.mubr.bf16.mxu0 0
      %6143 = vmatmul.mubr.bf16.gmra.mrb[0].mxu0 %v6010
      %v6144 = vpop.f32.mrb[0].mxu0
      %v6145 = vadd.f32 0.0, %v6144
      %v6146 = vpop.f32.mrb[0].mxu0
      %v6147 = vpop.f32.mrb[0].mxu0
      %v6148 = vadd.f32 0.0, %v6147
      %v6149 = vpop.f32.mrb[0].mxu0
      %6150 = vmatprep.mubr.bf16.mxu0 0
      %6151 = vmatmul.mubr.bf16.gmra.mrb[0].mxu0 %v6013
      %v6152 = vpop.f32.mrb[0].mxu0
      %v6153 = vadd.f32 0.0, %v6152
      %v6154 = vpop.f32.mrb[0].mxu0
      %v6155 = vpop.f32.mrb[0].mxu0
      %v6156 = vadd.f32 0.0, %v6155
      %v6157 = vpop.f32.mrb[0].mxu0
      %6158 = vmatprep.mubr.bf16.mxu0 0
      %6159 = vmatmul.mubr.bf16.gmra.mrb[0].mxu0 %v6016
      %v6160 = vpop.f32.mrb[0].mxu0
      %v6161 = vadd.f32 0.0, %v6160
      %v6162 = vpop.f32.mrb[0].mxu0
      %v6163 = vpop.f32.mrb[0].mxu0
      %v6164 = vadd.f32 0.0, %v6163
      %v6165 = vpop.f32.mrb[0].mxu0
      %6166 = vmatprep.mubr.bf16.mxu0 0
      %6167 = vmatmul.mubr.bf16.gmra.mrb[0].mxu0 %v6019
      %v6168 = vpop.f32.mrb[0].mxu0
      %v6169 = vadd.f32 0.0, %v6168
      %v6170 = vpop.f32.mrb[0].mxu0
      %v6171 = vpop.f32.mrb[0].mxu0
      %v6172 = vadd.f32 0.0, %v6171
      %v6173 = vpop.f32.mrb[0].mxu0
      %6174 = vmatprep.mubr.bf16.mxu0 0
      %6175 = vmatmul.mubr.bf16.gmra.mrb[0].mxu0 %v6022
      %v6176 = vpop.f32.mrb[0].mxu0
      %v6177 = vadd.f32 0.0, %v6176
      %v6178 = vpop.f32.mrb[0].mxu0
      %v6179 = vpop.f32.mrb[0].mxu0
      %v6180 = vadd.f32 0.0, %v6179
      %v6181 = vpop.f32.mrb[0].mxu0
      %6182 = vmatprep.mubr.bf16.mxu0 0
      %6183 = vmatmul.mubr.bf16.gmra.mrb[0].mxu0 %v6025
      %v6184 = vpop.f32.mrb[0].mxu0
      %v6185 = vadd.f32 0.0, %v6184
      %v6186 = vpop.f32.mrb[0].mxu0
      %v6187 = vpop.f32.mrb[0].mxu0
      %v6188 = vadd.f32 0.0, %v6187
      %v6189 = vpop.f32.mrb[0].mxu0
      %6190 = vdwg.mxu0
      %v6191 = vadd.f32 %v5891, %v6065
      %v6192 = vadd.f32 %v5892, %v6068
      %v6193 = vadd.f32 %v5893, %v6073
      %v6194 = vadd.f32 %v5894, %v6076
      %v6195 = vadd.f32 %v5895, %v6081
      %v6196 = vadd.f32 %v5896, %v6084
      %v6197 = vadd.f32 %v5897, %v6089
      %v6198 = vadd.f32 %v5898, %v6092
      %v6199 = vadd.f32 %v5899, %v6097
      %v6200 = vadd.f32 %v5900, %v6100
      %v6201 = vadd.f32 %v5901, %v6105
      %v6202 = vadd.f32 %v5902, %v6108
      %v6203 = vadd.f32 %v5903, %v6113
      %v6204 = vadd.f32 %v5904, %v6116
      %v6205 = vadd.f32 %v5905, %v6121
      %v6206 = vadd.f32 %v5906, %v6124
      %v6207 = vadd.f32 %v5907, %v6129
      %v6208 = vadd.f32 %v5908, %v6132
      %v6209 = vadd.f32 %v5909, %v6137
      %v6210 = vadd.f32 %v5910, %v6140
      %v6211 = vadd.f32 %v5911, %v6145
      %v6212 = vadd.f32 %v5912, %v6148
      %v6213 = vadd.f32 %v5913, %v6153
      %v6214 = vadd.f32 %v5914, %v6156
      %v6215 = vadd.f32 %v5915, %v6161
      %v6216 = vadd.f32 %v5916, %v6164
      %v6217 = vadd.f32 %v5917, %v6169
      %v6218 = vadd.f32 %v5918, %v6172
      %v6219 = vadd.f32 %v5919, %v6177
      %v6220 = vadd.f32 %v5920, %v6180
      %v6221 = vadd.f32 %v5921, %v6185
      %v6222 = vadd.f32 %v5922, %v6188
      %v6223 = vld [vmem:[%s2756 + $0x2] sm:$0xff]
      %v6224 = vld [vmem:[%s2756 + $0xa] sm:$0xff]
      %v6225 = vld [vmem:[%s2756 + $0x1a] sm:$0xff]
      %v6226 = vld [vmem:[%s2756 + $0x22] sm:$0xff]
      %v6227 = vld [vmem:[%s2756 + $0x32] sm:$0xff]
      %v6228 = vld [vmem:[%s2756 + $0x3a] sm:$0xff]
      %v6229 = vld [vmem:[%s2756 + $0x4a] sm:$0xff]
      %v6230 = vld [vmem:[%s2756 + $0x52] sm:$0xff]
      %v6231 = vld [vmem:[%s2756 + $0x62] sm:$0xff]
      %v6232 = vld [vmem:[%s2756 + $0x6a] sm:$0xff]
      %v6233 = vld [vmem:[%s2756 + $0x7a] sm:$0xff]
      %v6234 = vld [vmem:[%s2756 + $0x82] sm:$0xff]
      %v6235 = vld [vmem:[%s2756 + $0x92] sm:$0xff]
      %v6236 = vld [vmem:[%s2756 + $0x9a] sm:$0xff]
      %v6237 = vld [vmem:[%s2756 + $0xaa] sm:$0xff]
      %v6238 = vld [vmem:[%s2756 + $0xb2] sm:$0xff]
      %v6239 = vld [vmem:[%s2756 + $0xc2] sm:$0xff]
      %v6240 = vld [vmem:[%s2756 + $0xca] sm:$0xff]
      %v6241 = vld [vmem:[%s2756 + $0xda] sm:$0xff]
      %v6242 = vld [vmem:[%s2756 + $0xe2] sm:$0xff]
      %v6243 = vld [vmem:[%s2756 + $0xf2] sm:$0xff]
      %v6244 = vld [vmem:[%s2756 + $0xfa] sm:$0xff]
      %v6245 = vld [vmem:[%s2756 + $0x10a] sm:$0xff]
      %v6246 = vld [vmem:[%s2756 + $0x112] sm:$0xff]
      %v6247 = vld [vmem:[%s2756 + $0x122] sm:$0xff]
      %v6248 = vld [vmem:[%s2756 + $0x12a] sm:$0xff]
      %v6249 = vld [vmem:[%s2756 + $0x13a] sm:$0xff]
      %v6250 = vld [vmem:[%s2756 + $0x142] sm:$0xff]
      %v6251 = vld [vmem:[%s2756 + $0x152] sm:$0xff]
      %v6252 = vld [vmem:[%s2756 + $0x15a] sm:$0xff]
      %v6253 = vld [vmem:[%s2756 + $0x16a] sm:$0xff]
      %v6254 = vld [vmem:[%s2756 + $0x172] sm:$0xff]
      %v6255 = vpack.c.bf16 %v6224, %v6223
      %v6256 = vpack.c.bf16 %v6226, %v6225
      %v6257 = vpack.c.bf16 %v6228, %v6227
      %v6258 = vpack.c.bf16 %v6230, %v6229
      %v6259 = vpack.c.bf16 %v6232, %v6231
      %v6260 = vpack.c.bf16 %v6234, %v6233
      %v6261 = vpack.c.bf16 %v6236, %v6235
      %v6262 = vpack.c.bf16 %v6238, %v6237
      %v6263 = vpack.c.bf16 %v6240, %v6239
      %v6264 = vpack.c.bf16 %v6242, %v6241
      %v6265 = vpack.c.bf16 %v6244, %v6243
      %v6266 = vpack.c.bf16 %v6246, %v6245
      %v6267 = vpack.c.bf16 %v6248, %v6247
      %v6268 = vpack.c.bf16 %v6250, %v6249
      %v6269 = vpack.c.bf16 %v6252, %v6251
      %v6270 = vpack.c.bf16 %v6254, %v6253
      %s6271 = scalar_lea.vmem %s5, 64
      %v6272 = vld [vmem:[%s6271] sm:$0xf]
      %v6273 = vld [vmem:[%s6271 + $0x4] sm:$0x3]
      %v6276 = vunpack.c.l.b16 %v6272
      %v6277 = vunpack.c.l.b16 %v6273
      %v6278 = vpack.c.b16 %v6277, %v6276
      %v6280 = vsel %vm530, %v6255, 0
      %v6283 = vsel %vm530, %v6256, 0
      %v6286 = vsel %vm530, %v6257, 0
      %v6289 = vsel %vm530, %v6258, 0
      %v6292 = vsel %vm530, %v6259, 0
      %v6295 = vsel %vm530, %v6260, 0
      %v6298 = vsel %vm530, %v6261, 0
      %v6301 = vsel %vm530, %v6262, 0
      %v6304 = vsel %vm530, %v6263, 0
      %v6307 = vsel %vm530, %v6264, 0
      %v6310 = vsel %vm530, %v6265, 0
      %v6313 = vsel %vm530, %v6266, 0
      %v6316 = vsel %vm530, %v6267, 0
      %v6319 = vsel %vm530, %v6268, 0
      %v6322 = vsel %vm530, %v6269, 0
      %v6325 = vsel %vm530, %v6270, 0
      %v6328 = vsel %vm1174, %v6278, 0
      %6330 = vmatprep.subr.bf16.mxu0 0
      %6331 = vmatpush1.bf16.msra.mxu0 %v6328
      %6332 = vmatprep.subr.bf16.mxu0 0
      %6333 = vmatpush1.bf16.msra.mxu0 0
      %6334 = vmatprep.subr.bf16.mxu0 0
      %6335 = vmatpush1.bf16.msra.mxu0 0
      %6336 = vmatprep.subr.bf16.mxu0 0
      %6337 = vmatpush1.bf16.msra.mxu0 0
      %6338 = vmatprep.subr.bf16.mxu0 0
      %6339 = vmatpush1.bf16.msra.mxu0 0
      %6340 = vmatprep.subr.bf16.mxu0 0
      %6341 = vmatpush1.bf16.msra.mxu0 0
      %6342 = vmatprep.subr.bf16.mxu0 0
      %6343 = vmatpush1.bf16.msra.mxu0 0
      %6344 = vmatprep.subr.bf16.mxu0 0
      %6345 = vmatpush1.bf16.msra.mxu0 0
      %6346 = vmatprep.subr.bf16.mxu0 0
      %6347 = vmatpush1.bf16.msra.mxu0 0
      %6348 = vmatprep.subr.bf16.mxu0 0
      %6349 = vmatpush1.bf16.msra.mxu0 0
      %6350 = vmatprep.subr.bf16.mxu0 0
      %6351 = vmatpush1.bf16.msra.mxu0 0
      %6352 = vmatprep.subr.bf16.mxu0 0
      %6353 = vmatpush1.bf16.msra.mxu0 0
      %6354 = vmatprep.subr.bf16.mxu0 0
      %6355 = vmatpush1.bf16.msra.mxu0 0
      %6356 = vmatprep.subr.bf16.mxu0 0
      %6357 = vmatpush1.bf16.msra.mxu0 0
      %6358 = vmatprep.subr.bf16.mxu0 0
      %6359 = vmatpush1.bf16.msra.mxu0 0
      %6360 = vmatprep.subr.bf16.mxu0 0
      %6361 = vmatpush1.bf16.msra.mxu0 0
      %6362 = vmatprep.mubr.bf16.mxu0 0
      %6363 = vmatmul.mubr.bf16.gmra.mrb[0].mxu0 %v6280
      %v6364 = vpop.f32.mrb[0].mxu0
      %v6365 = vadd.f32 0.0, %v6364
      %v6366 = vpop.f32.mrb[0].mxu0
      %v6367 = vpop.f32.mrb[0].mxu0
      %v6368 = vadd.f32 0.0, %v6367
      %v6369 = vpop.f32.mrb[0].mxu0
      %6370 = vmatprep.mubr.bf16.mxu0 0
      %6371 = vmatmul.mubr.bf16.gmra.mrb[0].mxu0 %v6283
      %v6372 = vpop.f32.mrb[0].mxu0
      %v6373 = vadd.f32 0.0, %v6372
      %v6374 = vpop.f32.mrb[0].mxu0
      %v6375 = vpop.f32.mrb[0].mxu0
      %v6376 = vadd.f32 0.0, %v6375
      %v6377 = vpop.f32.mrb[0].mxu0
      %6378 = vmatprep.mubr.bf16.mxu0 0
      %6379 = vmatmul.mubr.bf16.gmra.mrb[0].mxu0 %v6286
      %v6380 = vpop.f32.mrb[0].mxu0
      %v6381 = vadd.f32 0.0, %v6380
      %v6382 = vpop.f32.mrb[0].mxu0
      %v6383 = vpop.f32.mrb[0].mxu0
      %v6384 = vadd.f32 0.0, %v6383
      %v6385 = vpop.f32.mrb[0].mxu0
      %6386 = vmatprep.mubr.bf16.mxu0 0
      %6387 = vmatmul.mubr.bf16.gmra.mrb[0].mxu0 %v6289
      %v6388 = vpop.f32.mrb[0].mxu0
      %v6389 = vadd.f32 0.0, %v6388
      %v6390 = vpop.f32.mrb[0].mxu0
      %v6391 = vpop.f32.mrb[0].mxu0
      %v6392 = vadd.f32 0.0, %v6391
      %v6393 = vpop.f32.mrb[0].mxu0
      %6394 = vmatprep.mubr.bf16.mxu0 0
      %6395 = vmatmul.mubr.bf16.gmra.mrb[0].mxu0 %v6292
      %v6396 = vpop.f32.mrb[0].mxu0
      %v6397 = vadd.f32 0.0, %v6396
      %v6398 = vpop.f32.mrb[0].mxu0
      %v6399 = vpop.f32.mrb[0].mxu0
      %v6400 = vadd.f32 0.0, %v6399
      %v6401 = vpop.f32.mrb[0].mxu0
      %6402 = vmatprep.mubr.bf16.mxu0 0
      %6403 = vmatmul.mubr.bf16.gmra.mrb[0].mxu0 %v6295
      %v6404 = vpop.f32.mrb[0].mxu0
      %v6405 = vadd.f32 0.0, %v6404
      %v6406 = vpop.f32.mrb[0].mxu0
      %v6407 = vpop.f32.mrb[0].mxu0
      %v6408 = vadd.f32 0.0, %v6407
      %v6409 = vpop.f32.mrb[0].mxu0
      %6410 = vmatprep.mubr.bf16.mxu0 0
      %6411 = vmatmul.mubr.bf16.gmra.mrb[0].mxu0 %v6298
      %v6412 = vpop.f32.mrb[0].mxu0
      %v6413 = vadd.f32 0.0, %v6412
      %v6414 = vpop.f32.mrb[0].mxu0
      %v6415 = vpop.f32.mrb[0].mxu0
      %v6416 = vadd.f32 0.0, %v6415
      %v6417 = vpop.f32.mrb[0].mxu0
      %6418 = vmatprep.mubr.bf16.mxu0 0
      %6419 = vmatmul.mubr.bf16.gmra.mrb[0].mxu0 %v6301
      %v6420 = vpop.f32.mrb[0].mxu0
      %v6421 = vadd.f32 0.0, %v6420
      %v6422 = vpop.f32.mrb[0].mxu0
      %v6423 = vpop.f32.mrb[0].mxu0
      %v6424 = vadd.f32 0.0, %v6423
      %v6425 = vpop.f32.mrb[0].mxu0
      %6426 = vmatprep.mubr.bf16.mxu0 0
      %6427 = vmatmul.mubr.bf16.gmra.mrb[0].mxu0 %v6304
      %v6428 = vpop.f32.mrb[0].mxu0
      %v6429 = vadd.f32 0.0, %v6428
      %v6430 = vpop.f32.mrb[0].mxu0
      %v6431 = vpop.f32.mrb[0].mxu0
      %v6432 = vadd.f32 0.0, %v6431
      %v6433 = vpop.f32.mrb[0].mxu0
      %6434 = vmatprep.mubr.bf16.mxu0 0
      %6435 = vmatmul.mubr.bf16.gmra.mrb[0].mxu0 %v6307
      %v6436 = vpop.f32.mrb[0].mxu0
      %v6437 = vadd.f32 0.0, %v6436
      %v6438 = vpop.f32.mrb[0].mxu0
      %v6439 = vpop.f32.mrb[0].mxu0
      %v6440 = vadd.f32 0.0, %v6439
      %v6441 = vpop.f32.mrb[0].mxu0
      %6442 = vmatprep.mubr.bf16.mxu0 0
      %6443 = vmatmul.mubr.bf16.gmra.mrb[0].mxu0 %v6310
      %v6444 = vpop.f32.mrb[0].mxu0
      %v6445 = vadd.f32 0.0, %v6444
      %v6446 = vpop.f32.mrb[0].mxu0
      %v6447 = vpop.f32.mrb[0].mxu0
      %v6448 = vadd.f32 0.0, %v6447
      %v6449 = vpop.f32.mrb[0].mxu0
      %6450 = vmatprep.mubr.bf16.mxu0 0
      %6451 = vmatmul.mubr.bf16.gmra.mrb[0].mxu0 %v6313
      %v6452 = vpop.f32.mrb[0].mxu0
      %v6453 = vadd.f32 0.0, %v6452
      %v6454 = vpop.f32.mrb[0].mxu0
      %v6455 = vpop.f32.mrb[0].mxu0
      %v6456 = vadd.f32 0.0, %v6455
      %v6457 = vpop.f32.mrb[0].mxu0
      %6458 = vmatprep.mubr.bf16.mxu0 0
      %6459 = vmatmul.mubr.bf16.gmra.mrb[0].mxu0 %v6316
      %v6460 = vpop.f32.mrb[0].mxu0
      %v6461 = vadd.f32 0.0, %v6460
      %v6462 = vpop.f32.mrb[0].mxu0
      %v6463 = vpop.f32.mrb[0].mxu0
      %v6464 = vadd.f32 0.0, %v6463
      %v6465 = vpop.f32.mrb[0].mxu0
      %6466 = vmatprep.mubr.bf16.mxu0 0
      %6467 = vmatmul.mubr.bf16.gmra.mrb[0].mxu0 %v6319
      %v6468 = vpop.f32.mrb[0].mxu0
      %v6469 = vadd.f32 0.0, %v6468
      %v6470 = vpop.f32.mrb[0].mxu0
      %v6471 = vpop.f32.mrb[0].mxu0
      %v6472 = vadd.f32 0.0, %v6471
      %v6473 = vpop.f32.mrb[0].mxu0
      %6474 = vmatprep.mubr.bf16.mxu0 0
      %6475 = vmatmul.mubr.bf16.gmra.mrb[0].mxu0 %v6322
      %v6476 = vpop.f32.mrb[0].mxu0
      %v6477 = vadd.f32 0.0, %v6476
      %v6478 = vpop.f32.mrb[0].mxu0
      %v6479 = vpop.f32.mrb[0].mxu0
      %v6480 = vadd.f32 0.0, %v6479
      %v6481 = vpop.f32.mrb[0].mxu0
      %6482 = vmatprep.mubr.bf16.mxu0 0
      %6483 = vmatmul.mubr.bf16.gmra.mrb[0].mxu0 %v6325
      %v6484 = vpop.f32.mrb[0].mxu0
      %v6485 = vadd.f32 0.0, %v6484
      %v6486 = vpop.f32.mrb[0].mxu0
      %v6487 = vpop.f32.mrb[0].mxu0
      %v6488 = vadd.f32 0.0, %v6487
      %v6489 = vpop.f32.mrb[0].mxu0
      %6490 = vdwg.mxu0
      %v6491 = vadd.f32 %v6191, %v6365
      %v6492 = vadd.f32 %v6192, %v6368
      %v6493 = vadd.f32 %v6193, %v6373
      %v6494 = vadd.f32 %v6194, %v6376
      %v6495 = vadd.f32 %v6195, %v6381
      %v6496 = vadd.f32 %v6196, %v6384
      %v6497 = vadd.f32 %v6197, %v6389
      %v6498 = vadd.f32 %v6198, %v6392
      %v6499 = vadd.f32 %v6199, %v6397
      %v6500 = vadd.f32 %v6200, %v6400
      %v6501 = vadd.f32 %v6201, %v6405
      %v6502 = vadd.f32 %v6202, %v6408
      %v6503 = vadd.f32 %v6203, %v6413
      %v6504 = vadd.f32 %v6204, %v6416
      %v6505 = vadd.f32 %v6205, %v6421
      %v6506 = vadd.f32 %v6206, %v6424
      %v6507 = vadd.f32 %v6207, %v6429
      %v6508 = vadd.f32 %v6208, %v6432
      %v6509 = vadd.f32 %v6209, %v6437
      %v6510 = vadd.f32 %v6210, %v6440
      %v6511 = vadd.f32 %v6211, %v6445
      %v6512 = vadd.f32 %v6212, %v6448
      %v6513 = vadd.f32 %v6213, %v6453
      %v6514 = vadd.f32 %v6214, %v6456
      %v6515 = vadd.f32 %v6215, %v6461
      %v6516 = vadd.f32 %v6216, %v6464
      %v6517 = vadd.f32 %v6217, %v6469
      %v6518 = vadd.f32 %v6218, %v6472
      %v6519 = vadd.f32 %v6219, %v6477
      %v6520 = vadd.f32 %v6220, %v6480
      %v6521 = vadd.f32 %v6221, %v6485
      %v6522 = vadd.f32 %v6222, %v6488
      %v6523 = vld [vmem:[%s6] sm:$0x1]
      %v6525 = vlaneseq
      %v6526 = vshrl.u32 %v6525, 7
      %v6527 = vsub.s32 0, %v6526
      %v6528 = vrot.slane %v6523, %v6527
      %v6530 = vadd.f32 %v6491, %v6528
      %v6531 = vadd.f32 %v6492, %v6528
      %v6532 = vadd.f32 %v6493, %v6528
      %v6533 = vadd.f32 %v6494, %v6528
      %v6534 = vadd.f32 %v6495, %v6528
      %v6535 = vadd.f32 %v6496, %v6528
      %v6536 = vadd.f32 %v6497, %v6528
      %v6537 = vadd.f32 %v6498, %v6528
      %v6538 = vadd.f32 %v6499, %v6528
      %v6539 = vadd.f32 %v6500, %v6528
      %v6540 = vadd.f32 %v6501, %v6528
      %v6541 = vadd.f32 %v6502, %v6528
      %v6542 = vadd.f32 %v6503, %v6528
      %v6543 = vadd.f32 %v6504, %v6528
      %v6544 = vadd.f32 %v6505, %v6528
      %v6545 = vadd.f32 %v6506, %v6528
      %v6546 = vadd.f32 %v6507, %v6528
      %v6547 = vadd.f32 %v6508, %v6528
      %v6548 = vadd.f32 %v6509, %v6528
      %v6549 = vadd.f32 %v6510, %v6528
      %v6550 = vadd.f32 %v6511, %v6528
      %v6551 = vadd.f32 %v6512, %v6528
      %v6552 = vadd.f32 %v6513, %v6528
      %v6553 = vadd.f32 %v6514, %v6528
      %v6554 = vadd.f32 %v6515, %v6528
      %v6555 = vadd.f32 %v6516, %v6528
      %v6556 = vadd.f32 %v6517, %v6528
      %v6557 = vadd.f32 %v6518, %v6528
      %v6558 = vadd.f32 %v6519, %v6528
      %v6559 = vadd.f32 %v6520, %v6528
      %v6560 = vadd.f32 %v6521, %v6528
      %v6561 = vadd.f32 %v6522, %v6528
      %v6562 = vmax.f32 %v6530, 0.0
      %v6563 = vmax.f32 %v6531, 0.0
      %v6564 = vmax.f32 %v6532, 0.0
      %v6565 = vmax.f32 %v6533, 0.0
      %v6566 = vmax.f32 %v6534, 0.0
      %v6567 = vmax.f32 %v6535, 0.0
      %v6568 = vmax.f32 %v6536, 0.0
      %v6569 = vmax.f32 %v6537, 0.0
      %v6570 = vmax.f32 %v6538, 0.0
      %v6571 = vmax.f32 %v6539, 0.0
      %v6572 = vmax.f32 %v6540, 0.0
      %v6573 = vmax.f32 %v6541, 0.0
      %v6574 = vmax.f32 %v6542, 0.0
      %v6575 = vmax.f32 %v6543, 0.0
      %v6576 = vmax.f32 %v6544, 0.0
      %v6577 = vmax.f32 %v6545, 0.0
      %v6578 = vmax.f32 %v6546, 0.0
      %v6579 = vmax.f32 %v6547, 0.0
      %v6580 = vmax.f32 %v6548, 0.0
      %v6581 = vmax.f32 %v6549, 0.0
      %v6582 = vmax.f32 %v6550, 0.0
      %v6583 = vmax.f32 %v6551, 0.0
      %v6584 = vmax.f32 %v6552, 0.0
      %v6585 = vmax.f32 %v6553, 0.0
      %v6586 = vmax.f32 %v6554, 0.0
      %v6587 = vmax.f32 %v6555, 0.0
      %v6588 = vmax.f32 %v6556, 0.0
      %v6589 = vmax.f32 %v6557, 0.0
      %v6590 = vmax.f32 %v6558, 0.0
      %v6591 = vmax.f32 %v6559, 0.0
      %v6592 = vmax.f32 %v6560, 0.0
      %v6593 = vmax.f32 %v6561, 0.0
      %6626 = vrot.lane.b32.xlu0 %v6562, 124
      %v6627 = vpop.permute.xlu0 %6626
      %6628 = vrot.lane.b32.xlu0 %v6563, 124
      %v6629 = vpop.permute.xlu0 %6628
      %6630 = vrot.lane.b32.xlu0 %v6564, 124
      %v6631 = vpop.permute.xlu0 %6630
      %6632 = vrot.lane.b32.xlu0 %v6565, 124
      %v6633 = vpop.permute.xlu0 %6632
      %6634 = vrot.lane.b32.xlu0 %v6566, 124
      %v6635 = vpop.permute.xlu0 %6634
      %6636 = vrot.lane.b32.xlu0 %v6567, 124
      %v6637 = vpop.permute.xlu0 %6636
      %6638 = vrot.lane.b32.xlu0 %v6568, 124
      %v6639 = vpop.permute.xlu0 %6638
      %6640 = vrot.lane.b32.xlu0 %v6569, 124
      %v6641 = vpop.permute.xlu0 %6640
      %6642 = vrot.lane.b32.xlu0 %v6570, 124
      %v6643 = vpop.permute.xlu0 %6642
      %6644 = vrot.lane.b32.xlu0 %v6571, 124
      %v6645 = vpop.permute.xlu0 %6644
      %6646 = vrot.lane.b32.xlu0 %v6572, 124
      %v6647 = vpop.permute.xlu0 %6646
      %6648 = vrot.lane.b32.xlu0 %v6573, 124
      %v6649 = vpop.permute.xlu0 %6648
      %6650 = vrot.lane.b32.xlu0 %v6574, 124
      %v6651 = vpop.permute.xlu0 %6650
      %6652 = vrot.lane.b32.xlu0 %v6575, 124
      %v6653 = vpop.permute.xlu0 %6652
      %6654 = vrot.lane.b32.xlu0 %v6576, 124
      %v6655 = vpop.permute.xlu0 %6654
      %6656 = vrot.lane.b32.xlu0 %v6577, 124
      %v6657 = vpop.permute.xlu0 %6656
      %6658 = vrot.lane.b32.xlu0 %v6578, 124
      %v6659 = vpop.permute.xlu0 %6658
      %6660 = vrot.lane.b32.xlu0 %v6579, 124
      %v6661 = vpop.permute.xlu0 %6660
      %6662 = vrot.lane.b32.xlu0 %v6580, 124
      %v6663 = vpop.permute.xlu0 %6662
      %6664 = vrot.lane.b32.xlu0 %v6581, 124
      %v6665 = vpop.permute.xlu0 %6664
      %6666 = vrot.lane.b32.xlu0 %v6582, 124
      %v6667 = vpop.permute.xlu0 %6666
      %6668 = vrot.lane.b32.xlu0 %v6583, 124
      %v6669 = vpop.permute.xlu0 %6668
      %6670 = vrot.lane.b32.xlu0 %v6584, 124
      %v6671 = vpop.permute.xlu0 %6670
      %6672 = vrot.lane.b32.xlu0 %v6585, 124
      %v6673 = vpop.permute.xlu0 %6672
      %6674 = vrot.lane.b32.xlu0 %v6586, 124
      %v6675 = vpop.permute.xlu0 %6674
      %6676 = vrot.lane.b32.xlu0 %v6587, 124
      %v6677 = vpop.permute.xlu0 %6676
      %6678 = vrot.lane.b32.xlu0 %v6588, 124
      %v6679 = vpop.permute.xlu0 %6678
      %6680 = vrot.lane.b32.xlu0 %v6589, 124
      %v6681 = vpop.permute.xlu0 %6680
      %6682 = vrot.lane.b32.xlu0 %v6590, 124
      %v6683 = vpop.permute.xlu0 %6682
      %6684 = vrot.lane.b32.xlu0 %v6591, 124
      %v6685 = vpop.permute.xlu0 %6684
      %6686 = vrot.lane.b32.xlu0 %v6592, 124
      %v6687 = vpop.permute.xlu0 %6686
      %6688 = vrot.lane.b32.xlu0 %v6593, 124
      %v6689 = vpop.permute.xlu0 %6688
      %6722 = vst.msk [vmem:[%s987 + $0x1] sm:$0xff] %vm530, %v6627
      %6723 = vst.msk [vmem:[%s987 + $0x9] sm:$0xff] %vm530, %v6629
      %6724 = vst.msk [vmem:[%s987 + $0x19] sm:$0xff] %vm530, %v6631
      %6725 = vst.msk [vmem:[%s987 + $0x21] sm:$0xff] %vm530, %v6633
      %6726 = vst.msk [vmem:[%s987 + $0x31] sm:$0xff] %vm530, %v6635
      %6727 = vst.msk [vmem:[%s987 + $0x39] sm:$0xff] %vm530, %v6637
      %6728 = vst.msk [vmem:[%s987 + $0x49] sm:$0xff] %vm530, %v6639
      %6729 = vst.msk [vmem:[%s987 + $0x51] sm:$0xff] %vm530, %v6641
      %6730 = vst.msk [vmem:[%s987 + $0x61] sm:$0xff] %vm530, %v6643
      %6731 = vst.msk [vmem:[%s987 + $0x69] sm:$0xff] %vm530, %v6645
      %6732 = vst.msk [vmem:[%s987 + $0x79] sm:$0xff] %vm530, %v6647
      %6733 = vst.msk [vmem:[%s987 + $0x81] sm:$0xff] %vm530, %v6649
      %6734 = vst.msk [vmem:[%s987 + $0x91] sm:$0xff] %vm530, %v6651
      %6735 = vst.msk [vmem:[%s987 + $0x99] sm:$0xff] %vm530, %v6653
      %6736 = vst.msk [vmem:[%s987 + $0xa9] sm:$0xff] %vm530, %v6655
      %6737 = vst.msk [vmem:[%s987 + $0xb1] sm:$0xff] %vm530, %v6657
      %6738 = vst.msk [vmem:[%s987 + $0xc1] sm:$0xff] %vm530, %v6659
      %6739 = vst.msk [vmem:[%s987 + $0xc9] sm:$0xff] %vm530, %v6661
      %6740 = vst.msk [vmem:[%s987 + $0xd9] sm:$0xff] %vm530, %v6663
      %6741 = vst.msk [vmem:[%s987 + $0xe1] sm:$0xff] %vm530, %v6665
      %6742 = vst.msk [vmem:[%s987 + $0xf1] sm:$0xff] %vm530, %v6667
      %6743 = vst.msk [vmem:[%s987 + $0xf9] sm:$0xff] %vm530, %v6669
      %6744 = vst.msk [vmem:[%s987 + $0x109] sm:$0xff] %vm530, %v6671
      %6745 = vst.msk [vmem:[%s987 + $0x111] sm:$0xff] %vm530, %v6673
      %6746 = vst.msk [vmem:[%s987 + $0x121] sm:$0xff] %vm530, %v6675
      %6747 = vst.msk [vmem:[%s987 + $0x129] sm:$0xff] %vm530, %v6677
      %6748 = vst.msk [vmem:[%s987 + $0x139] sm:$0xff] %vm530, %v6679
      %6749 = vst.msk [vmem:[%s987 + $0x141] sm:$0xff] %vm530, %v6681
      %6750 = vst.msk [vmem:[%s987 + $0x151] sm:$0xff] %vm530, %v6683
      %6751 = vst.msk [vmem:[%s987 + $0x159] sm:$0xff] %vm530, %v6685
      %6752 = vst.msk [vmem:[%s987 + $0x169] sm:$0xff] %vm530, %v6687
      %6753 = vst.msk [vmem:[%s987 + $0x171] sm:$0xff] %vm530, %v6689
      %v6754 = vld [vmem:[#allocation2] sm:$0xff]
      %v6755 = vld [vmem:[#allocation2 + $0x8] sm:$0xff]
      %v6756 = vld [vmem:[#allocation2 + $0x18] sm:$0xff]
      %v6757 = vld [vmem:[#allocation2 + $0x20] sm:$0xff]
      %v6758 = vld [vmem:[#allocation2 + $0x30] sm:$0xff]
      %v6759 = vld [vmem:[#allocation2 + $0x38] sm:$0xff]
      %v6760 = vld [vmem:[#allocation2 + $0x48] sm:$0xff]
      %v6761 = vld [vmem:[#allocation2 + $0x50] sm:$0xff]
      %v6762 = vld [vmem:[#allocation2 + $0x60] sm:$0xff]
      %v6763 = vld [vmem:[#allocation2 + $0x68] sm:$0xff]
      %v6764 = vld [vmem:[#allocation2 + $0x78] sm:$0xff]
      %v6765 = vld [vmem:[#allocation2 + $0x80] sm:$0xff]
      %v6766 = vld [vmem:[#allocation2 + $0x90] sm:$0xff]
      %v6767 = vld [vmem:[#allocation2 + $0x98] sm:$0xff]
      %v6768 = vld [vmem:[#allocation2 + $0xa8] sm:$0xff]
      %v6769 = vld [vmem:[#allocation2 + $0xb0] sm:$0xff]
      %v6770 = vld [vmem:[#allocation2 + $0xc0] sm:$0xff]
      %v6771 = vld [vmem:[#allocation2 + $0xc8] sm:$0xff]
      %v6772 = vld [vmem:[#allocation2 + $0xd8] sm:$0xff]
      %v6773 = vld [vmem:[#allocation2 + $0xe0] sm:$0xff]
      %v6774 = vld [vmem:[#allocation2 + $0xf0] sm:$0xff]
      %v6775 = vld [vmem:[#allocation2 + $0xf8] sm:$0xff]
      %v6776 = vld [vmem:[#allocation2 + $0x108] sm:$0xff]
      %v6777 = vld [vmem:[#allocation2 + $0x110] sm:$0xff]
      %v6778 = vld [vmem:[#allocation2 + $0x120] sm:$0xff]
      %v6779 = vld [vmem:[#allocation2 + $0x128] sm:$0xff]
      %v6780 = vld [vmem:[#allocation2 + $0x138] sm:$0xff]
      %v6781 = vld [vmem:[#allocation2 + $0x140] sm:$0xff]
      %v6782 = vld [vmem:[#allocation2 + $0x150] sm:$0xff]
      %v6783 = vld [vmem:[#allocation2 + $0x158] sm:$0xff]
      %v6784 = vld [vmem:[#allocation2 + $0x168] sm:$0xff]
      %v6785 = vld [vmem:[#allocation2 + $0x170] sm:$0xff]
      %v6786 = vpack.c.bf16 %v6755, %v6754
      %v6787 = vpack.c.bf16 %v6757, %v6756
      %v6788 = vpack.c.bf16 %v6759, %v6758
      %v6789 = vpack.c.bf16 %v6761, %v6760
      %v6790 = vpack.c.bf16 %v6763, %v6762
      %v6791 = vpack.c.bf16 %v6765, %v6764
      %v6792 = vpack.c.bf16 %v6767, %v6766
      %v6793 = vpack.c.bf16 %v6769, %v6768
      %v6794 = vpack.c.bf16 %v6771, %v6770
      %v6795 = vpack.c.bf16 %v6773, %v6772
      %v6796 = vpack.c.bf16 %v6775, %v6774
      %v6797 = vpack.c.bf16 %v6777, %v6776
      %v6798 = vpack.c.bf16 %v6779, %v6778
      %v6799 = vpack.c.bf16 %v6781, %v6780
      %v6800 = vpack.c.bf16 %v6783, %v6782
      %v6801 = vpack.c.bf16 %v6785, %v6784
      %v6802 = vld [vmem:[%s7] sm:$0xf]
      %v6803 = vld [vmem:[%s7 + $0x4] sm:$0x3]
      %v6804 = vld [vmem:[#allocation2 + $0x1] sm:$0xff]
      %v6805 = vld [vmem:[#allocation2 + $0x9] sm:$0xff]
      %v6806 = vld [vmem:[#allocation2 + $0x19] sm:$0xff]
      %v6807 = vld [vmem:[#allocation2 + $0x21] sm:$0xff]
      %v6808 = vld [vmem:[#allocation2 + $0x31] sm:$0xff]
      %v6809 = vld [vmem:[#allocation2 + $0x39] sm:$0xff]
      %v6810 = vld [vmem:[#allocation2 + $0x49] sm:$0xff]
      %v6811 = vld [vmem:[#allocation2 + $0x51] sm:$0xff]
      %v6812 = vld [vmem:[#allocation2 + $0x61] sm:$0xff]
      %v6813 = vld [vmem:[#allocation2 + $0x69] sm:$0xff]
      %v6814 = vld [vmem:[#allocation2 + $0x79] sm:$0xff]
      %v6815 = vld [vmem:[#allocation2 + $0x81] sm:$0xff]
      %v6816 = vld [vmem:[#allocation2 + $0x91] sm:$0xff]
      %v6817 = vld [vmem:[#allocation2 + $0x99] sm:$0xff]
      %v6818 = vld [vmem:[#allocation2 + $0xa9] sm:$0xff]
      %v6819 = vld [vmem:[#allocation2 + $0xb1] sm:$0xff]
      %v6820 = vld [vmem:[#allocation2 + $0xc1] sm:$0xff]
      %v6821 = vld [vmem:[#allocation2 + $0xc9] sm:$0xff]
      %v6822 = vld [vmem:[#allocation2 + $0xd9] sm:$0xff]
      %v6823 = vld [vmem:[#allocation2 + $0xe1] sm:$0xff]
      %v6824 = vld [vmem:[#allocation2 + $0xf1] sm:$0xff]
      %v6825 = vld [vmem:[#allocation2 + $0xf9] sm:$0xff]
      %v6826 = vld [vmem:[#allocation2 + $0x109] sm:$0xff]
      %v6827 = vld [vmem:[#allocation2 + $0x111] sm:$0xff]
      %v6828 = vld [vmem:[#allocation2 + $0x121] sm:$0xff]
      %v6829 = vld [vmem:[#allocation2 + $0x129] sm:$0xff]
      %v6830 = vld [vmem:[#allocation2 + $0x139] sm:$0xff]
      %v6831 = vld [vmem:[#allocation2 + $0x141] sm:$0xff]
      %v6832 = vld [vmem:[#allocation2 + $0x151] sm:$0xff]
      %v6833 = vld [vmem:[#allocation2 + $0x159] sm:$0xff]
      %v6834 = vld [vmem:[#allocation2 + $0x169] sm:$0xff]
      %v6835 = vld [vmem:[#allocation2 + $0x171] sm:$0xff]
      %v6836 = vpack.c.bf16 %v6805, %v6804
      %v6837 = vpack.c.bf16 %v6807, %v6806
      %v6838 = vpack.c.bf16 %v6809, %v6808
      %v6839 = vpack.c.bf16 %v6811, %v6810
      %v6840 = vpack.c.bf16 %v6813, %v6812
      %v6841 = vpack.c.bf16 %v6815, %v6814
      %v6842 = vpack.c.bf16 %v6817, %v6816
      %v6843 = vpack.c.bf16 %v6819, %v6818
      %v6844 = vpack.c.bf16 %v6821, %v6820
      %v6845 = vpack.c.bf16 %v6823, %v6822
      %v6846 = vpack.c.bf16 %v6825, %v6824
      %v6847 = vpack.c.bf16 %v6827, %v6826
      %v6848 = vpack.c.bf16 %v6829, %v6828
      %v6849 = vpack.c.bf16 %v6831, %v6830
      %v6850 = vpack.c.bf16 %v6833, %v6832
      %v6851 = vpack.c.bf16 %v6835, %v6834
      %s6852 = scalar_lea.vmem %s7, 8
      %v6853 = vld [vmem:[%s6852] sm:$0xf]
      %v6854 = vld [vmem:[%s6852 + $0x4] sm:$0x3]
      %v6857 = vunpack.c.l.b16 %v6853
      %v6858 = vunpack.c.l.b16 %v6854
      %v6859 = vpack.c.b16 %v6858, %v6857
      %v6861 = vsel %vm530, %v6836, 0
      %v6864 = vsel %vm530, %v6837, 0
      %v6867 = vsel %vm530, %v6838, 0
      %v6870 = vsel %vm530, %v6839, 0
      %v6873 = vsel %vm530, %v6840, 0
      %v6876 = vsel %vm530, %v6841, 0
      %v6879 = vsel %vm530, %v6842, 0
      %v6882 = vsel %vm530, %v6843, 0
      %v6885 = vsel %vm530, %v6844, 0
      %v6888 = vsel %vm530, %v6845, 0
      %v6891 = vsel %vm530, %v6846, 0
      %v6894 = vsel %vm530, %v6847, 0
      %v6897 = vsel %vm530, %v6848, 0
      %v6900 = vsel %vm530, %v6849, 0
      %v6903 = vsel %vm530, %v6850, 0
      %v6906 = vsel %vm530, %v6851, 0
      %v6909 = vsel %vm1174, %v6859, 0
      %6911 = vmatprep.subr.bf16.mxu0 0
      %6912 = vmatpush1.bf16.msra.mxu0 %v6909
      %6913 = vmatprep.subr.bf16.mxu0 0
      %6914 = vmatpush1.bf16.msra.mxu0 0
      %6915 = vmatprep.subr.bf16.mxu0 0
      %6916 = vmatpush1.bf16.msra.mxu0 0
      %6917 = vmatprep.subr.bf16.mxu0 0
      %6918 = vmatpush1.bf16.msra.mxu0 0
      %6919 = vmatprep.subr.bf16.mxu0 0
      %6920 = vmatpush1.bf16.msra.mxu0 0
      %6921 = vmatprep.subr.bf16.mxu0 0
      %6922 = vmatpush1.bf16.msra.mxu0 0
      %6923 = vmatprep.subr.bf16.mxu0 0
      %6924 = vmatpush1.bf16.msra.mxu0 0
      %6925 = vmatprep.subr.bf16.mxu0 0
      %6926 = vmatpush1.bf16.msra.mxu0 0
      %6927 = vmatprep.subr.bf16.mxu0 0
      %6928 = vmatpush1.bf16.msra.mxu0 0
      %6929 = vmatprep.subr.bf16.mxu0 0
      %6930 = vmatpush1.bf16.msra.mxu0 0
      %6931 = vmatprep.subr.bf16.mxu0 0
      %6932 = vmatpush1.bf16.msra.mxu0 0
      %6933 = vmatprep.subr.bf16.mxu0 0
      %6934 = vmatpush1.bf16.msra.mxu0 0
      %6935 = vmatprep.subr.bf16.mxu0 0
      %6936 = vmatpush1.bf16.msra.mxu0 0
      %6937 = vmatprep.subr.bf16.mxu0 0
      %6938 = vmatpush1.bf16.msra.mxu0 0
      %6939 = vmatprep.subr.bf16.mxu0 0
      %6940 = vmatpush1.bf16.msra.mxu0 0
      %6941 = vmatprep.subr.bf16.mxu0 0
      %6942 = vmatpush1.bf16.msra.mxu0 0
      %6943 = vmatprep.mubr.bf16.mxu0 0
      %6944 = vmatmul.mubr.bf16.gmra.mrb[0].mxu0 %v6861
      %v6945 = vpop.f32.mrb[0].mxu0
      %v6946 = vadd.f32 0.0, %v6945
      %v6947 = vpop.f32.mrb[0].mxu0
      %v6948 = vpop.f32.mrb[0].mxu0
      %v6949 = vadd.f32 0.0, %v6948
      %v6950 = vpop.f32.mrb[0].mxu0
      %6951 = vmatprep.mubr.bf16.mxu0 0
      %6952 = vmatmul.mubr.bf16.gmra.mrb[0].mxu0 %v6864
      %v6953 = vpop.f32.mrb[0].mxu0
      %v6954 = vadd.f32 0.0, %v6953
      %v6955 = vpop.f32.mrb[0].mxu0
      %v6956 = vpop.f32.mrb[0].mxu0
      %v6957 = vadd.f32 0.0, %v6956
      %v6958 = vpop.f32.mrb[0].mxu0
      %6959 = vmatprep.mubr.bf16.mxu0 0
      %6960 = vmatmul.mubr.bf16.gmra.mrb[0].mxu0 %v6867
      %v6961 = vpop.f32.mrb[0].mxu0
      %v6962 = vadd.f32 0.0, %v6961
      %v6963 = vpop.f32.mrb[0].mxu0
      %v6964 = vpop.f32.mrb[0].mxu0
      %v6965 = vadd.f32 0.0, %v6964
      %v6966 = vpop.f32.mrb[0].mxu0
      %6967 = vmatprep.mubr.bf16.mxu0 0
      %6968 = vmatmul.mubr.bf16.gmra.mrb[0].mxu0 %v6870
      %v6969 = vpop.f32.mrb[0].mxu0
      %v6970 = vadd.f32 0.0, %v6969
      %v6971 = vpop.f32.mrb[0].mxu0
      %v6972 = vpop.f32.mrb[0].mxu0
      %v6973 = vadd.f32 0.0, %v6972
      %v6974 = vpop.f32.mrb[0].mxu0
      %6975 = vmatprep.mubr.bf16.mxu0 0
      %6976 = vmatmul.mubr.bf16.gmra.mrb[0].mxu0 %v6873
      %v6977 = vpop.f32.mrb[0].mxu0
      %v6978 = vadd.f32 0.0, %v6977
      %v6979 = vpop.f32.mrb[0].mxu0
      %v6980 = vpop.f32.mrb[0].mxu0
      %v6981 = vadd.f32 0.0, %v6980
      %v6982 = vpop.f32.mrb[0].mxu0
      %6983 = vmatprep.mubr.bf16.mxu0 0
      %6984 = vmatmul.mubr.bf16.gmra.mrb[0].mxu0 %v6876
      %v6985 = vpop.f32.mrb[0].mxu0
      %v6986 = vadd.f32 0.0, %v6985
      %v6987 = vpop.f32.mrb[0].mxu0
      %v6988 = vpop.f32.mrb[0].mxu0
      %v6989 = vadd.f32 0.0, %v6988
      %v6990 = vpop.f32.mrb[0].mxu0
      %6991 = vmatprep.mubr.bf16.mxu0 0
      %6992 = vmatmul.mubr.bf16.gmra.mrb[0].mxu0 %v6879
      %v6993 = vpop.f32.mrb[0].mxu0
      %v6994 = vadd.f32 0.0, %v6993
      %v6995 = vpop.f32.mrb[0].mxu0
      %v6996 = vpop.f32.mrb[0].mxu0
      %v6997 = vadd.f32 0.0, %v6996
      %v6998 = vpop.f32.mrb[0].mxu0
      %6999 = vmatprep.mubr.bf16.mxu0 0
      %7000 = vmatmul.mubr.bf16.gmra.mrb[0].mxu0 %v6882
      %v7001 = vpop.f32.mrb[0].mxu0
      %v7002 = vadd.f32 0.0, %v7001
      %v7003 = vpop.f32.mrb[0].mxu0
      %v7004 = vpop.f32.mrb[0].mxu0
      %v7005 = vadd.f32 0.0, %v7004
      %v7006 = vpop.f32.mrb[0].mxu0
      %7007 = vmatprep.mubr.bf16.mxu0 0
      %7008 = vmatmul.mubr.bf16.gmra.mrb[0].mxu0 %v6885
      %v7009 = vpop.f32.mrb[0].mxu0
      %v7010 = vadd.f32 0.0, %v7009
      %v7011 = vpop.f32.mrb[0].mxu0
      %v7012 = vpop.f32.mrb[0].mxu0
      %v7013 = vadd.f32 0.0, %v7012
      %v7014 = vpop.f32.mrb[0].mxu0
      %7015 = vmatprep.mubr.bf16.mxu0 0
      %7016 = vmatmul.mubr.bf16.gmra.mrb[0].mxu0 %v6888
      %v7017 = vpop.f32.mrb[0].mxu0
      %v7018 = vadd.f32 0.0, %v7017
      %v7019 = vpop.f32.mrb[0].mxu0
      %v7020 = vpop.f32.mrb[0].mxu0
      %v7021 = vadd.f32 0.0, %v7020
      %v7022 = vpop.f32.mrb[0].mxu0
      %7023 = vmatprep.mubr.bf16.mxu0 0
      %7024 = vmatmul.mubr.bf16.gmra.mrb[0].mxu0 %v6891
      %v7025 = vpop.f32.mrb[0].mxu0
      %v7026 = vadd.f32 0.0, %v7025
      %v7027 = vpop.f32.mrb[0].mxu0
      %v7028 = vpop.f32.mrb[0].mxu0
      %v7029 = vadd.f32 0.0, %v7028
      %v7030 = vpop.f32.mrb[0].mxu0
      %7031 = vmatprep.mubr.bf16.mxu0 0
      %7032 = vmatmul.mubr.bf16.gmra.mrb[0].mxu0 %v6894
      %v7033 = vpop.f32.mrb[0].mxu0
      %v7034 = vadd.f32 0.0, %v7033
      %v7035 = vpop.f32.mrb[0].mxu0
      %v7036 = vpop.f32.mrb[0].mxu0
      %v7037 = vadd.f32 0.0, %v7036
      %v7038 = vpop.f32.mrb[0].mxu0
      %7039 = vmatprep.mubr.bf16.mxu0 0
      %7040 = vmatmul.mubr.bf16.gmra.mrb[0].mxu0 %v6897
      %v7041 = vpop.f32.mrb[0].mxu0
      %v7042 = vadd.f32 0.0, %v7041
      %v7043 = vpop.f32.mrb[0].mxu0
      %v7044 = vpop.f32.mrb[0].mxu0
      %v7045 = vadd.f32 0.0, %v7044
      %v7046 = vpop.f32.mrb[0].mxu0
      %7047 = vmatprep.mubr.bf16.mxu0 0
      %7048 = vmatmul.mubr.bf16.gmra.mrb[0].mxu0 %v6900
      %v7049 = vpop.f32.mrb[0].mxu0
      %v7050 = vadd.f32 0.0, %v7049
      %v7051 = vpop.f32.mrb[0].mxu0
      %v7052 = vpop.f32.mrb[0].mxu0
      %v7053 = vadd.f32 0.0, %v7052
      %v7054 = vpop.f32.mrb[0].mxu0
      %7055 = vmatprep.mubr.bf16.mxu0 0
      %7056 = vmatmul.mubr.bf16.gmra.mrb[0].mxu0 %v6903
      %v7057 = vpop.f32.mrb[0].mxu0
      %v7058 = vadd.f32 0.0, %v7057
      %v7059 = vpop.f32.mrb[0].mxu0
      %v7060 = vpop.f32.mrb[0].mxu0
      %v7061 = vadd.f32 0.0, %v7060
      %v7062 = vpop.f32.mrb[0].mxu0
      %7063 = vmatprep.mubr.bf16.mxu0 0
      %7064 = vmatmul.mubr.bf16.gmra.mrb[0].mxu0 %v6906
      %v7065 = vpop.f32.mrb[0].mxu0
      %v7066 = vadd.f32 0.0, %v7065
      %v7067 = vpop.f32.mrb[0].mxu0
      %v7068 = vpop.f32.mrb[0].mxu0
      %v7069 = vadd.f32 0.0, %v7068
      %v7070 = vpop.f32.mrb[0].mxu0
      %7071 = vdwg.mxu0
      %v7074 = vunpack.c.l.b16 %v6802
      %v7075 = vunpack.c.l.b16 %v6803
      %v7076 = vpack.c.b16 %v7075, %v7074
      %v7078 = vsel %vm530, %v6786, 0
      %v7081 = vsel %vm530, %v6787, 0
      %v7084 = vsel %vm530, %v6788, 0
      %v7087 = vsel %vm530, %v6789, 0
      %v7090 = vsel %vm530, %v6790, 0
      %v7093 = vsel %vm530, %v6791, 0
      %v7096 = vsel %vm530, %v6792, 0
      %v7099 = vsel %vm530, %v6793, 0
      %v7102 = vsel %vm530, %v6794, 0
      %v7105 = vsel %vm530, %v6795, 0
      %v7108 = vsel %vm530, %v6796, 0
      %v7111 = vsel %vm530, %v6797, 0
      %v7114 = vsel %vm530, %v6798, 0
      %v7117 = vsel %vm530, %v6799, 0
      %v7120 = vsel %vm530, %v6800, 0
      %v7123 = vsel %vm530, %v6801, 0
      %v7126 = vsel %vm1174, %v7076, 0
      %7128 = vmatprep.subr.bf16.mxu0 0
      %7129 = vmatpush1.bf16.msra.mxu0 %v7126
      %7130 = vmatprep.subr.bf16.mxu0 0
      %7131 = vmatpush1.bf16.msra.mxu0 0
      %7132 = vmatprep.subr.bf16.mxu0 0
      %7133 = vmatpush1.bf16.msra.mxu0 0
      %7134 = vmatprep.subr.bf16.mxu0 0
      %7135 = vmatpush1.bf16.msra.mxu0 0
      %7136 = vmatprep.subr.bf16.mxu0 0
      %7137 = vmatpush1.bf16.msra.mxu0 0
      %7138 = vmatprep.subr.bf16.mxu0 0
      %7139 = vmatpush1.bf16.msra.mxu0 0
      %7140 = vmatprep.subr.bf16.mxu0 0
      %7141 = vmatpush1.bf16.msra.mxu0 0
      %7142 = vmatprep.subr.bf16.mxu0 0
      %7143 = vmatpush1.bf16.msra.mxu0 0
      %7144 = vmatprep.subr.bf16.mxu0 0
      %7145 = vmatpush1.bf16.msra.mxu0 0
      %7146 = vmatprep.subr.bf16.mxu0 0
      %7147 = vmatpush1.bf16.msra.mxu0 0
      %7148 = vmatprep.subr.bf16.mxu0 0
      %7149 = vmatpush1.bf16.msra.mxu0 0
      %7150 = vmatprep.subr.bf16.mxu0 0
      %7151 = vmatpush1.bf16.msra.mxu0 0
      %7152 = vmatprep.subr.bf16.mxu0 0
      %7153 = vmatpush1.bf16.msra.mxu0 0
      %7154 = vmatprep.subr.bf16.mxu0 0
      %7155 = vmatpush1.bf16.msra.mxu0 0
      %7156 = vmatprep.subr.bf16.mxu0 0
      %7157 = vmatpush1.bf16.msra.mxu0 0
      %7158 = vmatprep.subr.bf16.mxu0 0
      %7159 = vmatpush1.bf16.msra.mxu0 0
      %7160 = vmatprep.mubr.bf16.mxu0 0
      %7161 = vmatmul.mubr.bf16.gmra.mrb[0].mxu0 %v7078
      %v7162 = vpop.f32.mrb[0].mxu0
      %v7163 = vadd.f32 %v6946, %v7162
      %v7164 = vpop.f32.mrb[0].mxu0
      %v7165 = vpop.f32.mrb[0].mxu0
      %v7166 = vadd.f32 %v6949, %v7165
      %v7167 = vpop.f32.mrb[0].mxu0
      %7168 = vmatprep.mubr.bf16.mxu0 0
      %7169 = vmatmul.mubr.bf16.gmra.mrb[0].mxu0 %v7081
      %v7170 = vpop.f32.mrb[0].mxu0
      %v7171 = vadd.f32 %v6954, %v7170
      %v7172 = vpop.f32.mrb[0].mxu0
      %v7173 = vpop.f32.mrb[0].mxu0
      %v7174 = vadd.f32 %v6957, %v7173
      %v7175 = vpop.f32.mrb[0].mxu0
      %7176 = vmatprep.mubr.bf16.mxu0 0
      %7177 = vmatmul.mubr.bf16.gmra.mrb[0].mxu0 %v7084
      %v7178 = vpop.f32.mrb[0].mxu0
      %v7179 = vadd.f32 %v6962, %v7178
      %v7180 = vpop.f32.mrb[0].mxu0
      %v7181 = vpop.f32.mrb[0].mxu0
      %v7182 = vadd.f32 %v6965, %v7181
      %v7183 = vpop.f32.mrb[0].mxu0
      %7184 = vmatprep.mubr.bf16.mxu0 0
      %7185 = vmatmul.mubr.bf16.gmra.mrb[0].mxu0 %v7087
      %v7186 = vpop.f32.mrb[0].mxu0
      %v7187 = vadd.f32 %v6970, %v7186
      %v7188 = vpop.f32.mrb[0].mxu0
      %v7189 = vpop.f32.mrb[0].mxu0
      %v7190 = vadd.f32 %v6973, %v7189
      %v7191 = vpop.f32.mrb[0].mxu0
      %7192 = vmatprep.mubr.bf16.mxu0 0
      %7193 = vmatmul.mubr.bf16.gmra.mrb[0].mxu0 %v7090
      %v7194 = vpop.f32.mrb[0].mxu0
      %v7195 = vadd.f32 %v6978, %v7194
      %v7196 = vpop.f32.mrb[0].mxu0
      %v7197 = vpop.f32.mrb[0].mxu0
      %v7198 = vadd.f32 %v6981, %v7197
      %v7199 = vpop.f32.mrb[0].mxu0
      %7200 = vmatprep.mubr.bf16.mxu0 0
      %7201 = vmatmul.mubr.bf16.gmra.mrb[0].mxu0 %v7093
      %v7202 = vpop.f32.mrb[0].mxu0
      %v7203 = vadd.f32 %v6986, %v7202
      %v7204 = vpop.f32.mrb[0].mxu0
      %v7205 = vpop.f32.mrb[0].mxu0
      %v7206 = vadd.f32 %v6989, %v7205
      %v7207 = vpop.f32.mrb[0].mxu0
      %7208 = vmatprep.mubr.bf16.mxu0 0
      %7209 = vmatmul.mubr.bf16.gmra.mrb[0].mxu0 %v7096
      %v7210 = vpop.f32.mrb[0].mxu0
      %v7211 = vadd.f32 %v6994, %v7210
      %v7212 = vpop.f32.mrb[0].mxu0
      %v7213 = vpop.f32.mrb[0].mxu0
      %v7214 = vadd.f32 %v6997, %v7213
      %v7215 = vpop.f32.mrb[0].mxu0
      %7216 = vmatprep.mubr.bf16.mxu0 0
      %7217 = vmatmul.mubr.bf16.gmra.mrb[0].mxu0 %v7099
      %v7218 = vpop.f32.mrb[0].mxu0
      %v7219 = vadd.f32 %v7002, %v7218
      %v7220 = vpop.f32.mrb[0].mxu0
      %v7221 = vpop.f32.mrb[0].mxu0
      %v7222 = vadd.f32 %v7005, %v7221
      %v7223 = vpop.f32.mrb[0].mxu0
      %7224 = vmatprep.mubr.bf16.mxu0 0
      %7225 = vmatmul.mubr.bf16.gmra.mrb[0].mxu0 %v7102
      %v7226 = vpop.f32.mrb[0].mxu0
      %v7227 = vadd.f32 %v7010, %v7226
      %v7228 = vpop.f32.mrb[0].mxu0
      %v7229 = vpop.f32.mrb[0].mxu0
      %v7230 = vadd.f32 %v7013, %v7229
      %v7231 = vpop.f32.mrb[0].mxu0
      %7232 = vmatprep.mubr.bf16.mxu0 0
      %7233 = vmatmul.mubr.bf16.gmra.mrb[0].mxu0 %v7105
      %v7234 = vpop.f32.mrb[0].mxu0
      %v7235 = vadd.f32 %v7018, %v7234
      %v7236 = vpop.f32.mrb[0].mxu0
      %v7237 = vpop.f32.mrb[0].mxu0
      %v7238 = vadd.f32 %v7021, %v7237
      %v7239 = vpop.f32.mrb[0].mxu0
      %7240 = vmatprep.mubr.bf16.mxu0 0
      %7241 = vmatmul.mubr.bf16.gmra.mrb[0].mxu0 %v7108
      %v7242 = vpop.f32.mrb[0].mxu0
      %v7243 = vadd.f32 %v7026, %v7242
      %v7244 = vpop.f32.mrb[0].mxu0
      %v7245 = vpop.f32.mrb[0].mxu0
      %v7246 = vadd.f32 %v7029, %v7245
      %v7247 = vpop.f32.mrb[0].mxu0
      %7248 = vmatprep.mubr.bf16.mxu0 0
      %7249 = vmatmul.mubr.bf16.gmra.mrb[0].mxu0 %v7111
      %v7250 = vpop.f32.mrb[0].mxu0
      %v7251 = vadd.f32 %v7034, %v7250
      %v7252 = vpop.f32.mrb[0].mxu0
      %v7253 = vpop.f32.mrb[0].mxu0
      %v7254 = vadd.f32 %v7037, %v7253
      %v7255 = vpop.f32.mrb[0].mxu0
      %7256 = vmatprep.mubr.bf16.mxu0 0
      %7257 = vmatmul.mubr.bf16.gmra.mrb[0].mxu0 %v7114
      %v7258 = vpop.f32.mrb[0].mxu0
      %v7259 = vadd.f32 %v7042, %v7258
      %v7260 = vpop.f32.mrb[0].mxu0
      %v7261 = vpop.f32.mrb[0].mxu0
      %v7262 = vadd.f32 %v7045, %v7261
      %v7263 = vpop.f32.mrb[0].mxu0
      %7264 = vmatprep.mubr.bf16.mxu0 0
      %7265 = vmatmul.mubr.bf16.gmra.mrb[0].mxu0 %v7117
      %v7266 = vpop.f32.mrb[0].mxu0
      %v7267 = vadd.f32 %v7050, %v7266
      %v7268 = vpop.f32.mrb[0].mxu0
      %v7269 = vpop.f32.mrb[0].mxu0
      %v7270 = vadd.f32 %v7053, %v7269
      %v7271 = vpop.f32.mrb[0].mxu0
      %7272 = vmatprep.mubr.bf16.mxu0 0
      %7273 = vmatmul.mubr.bf16.gmra.mrb[0].mxu0 %v7120
      %v7274 = vpop.f32.mrb[0].mxu0
      %v7275 = vadd.f32 %v7058, %v7274
      %v7276 = vpop.f32.mrb[0].mxu0
      %v7277 = vpop.f32.mrb[0].mxu0
      %v7278 = vadd.f32 %v7061, %v7277
      %v7279 = vpop.f32.mrb[0].mxu0
      %7280 = vmatprep.mubr.bf16.mxu0 0
      %7281 = vmatmul.mubr.bf16.gmra.mrb[0].mxu0 %v7123
      %v7282 = vpop.f32.mrb[0].mxu0
      %v7283 = vadd.f32 %v7066, %v7282
      %v7284 = vpop.f32.mrb[0].mxu0
      %v7285 = vpop.f32.mrb[0].mxu0
      %v7286 = vadd.f32 %v7069, %v7285
      %v7287 = vpop.f32.mrb[0].mxu0
      %7288 = vdwg.mxu0
      %v7289 = vld [vmem:[#allocation2 + $0x2] sm:$0xff]
      %v7290 = vld [vmem:[#allocation2 + $0xa] sm:$0xff]
      %v7291 = vld [vmem:[#allocation2 + $0x1a] sm:$0xff]
      %v7292 = vld [vmem:[#allocation2 + $0x22] sm:$0xff]
      %v7293 = vld [vmem:[#allocation2 + $0x32] sm:$0xff]
      %v7294 = vld [vmem:[#allocation2 + $0x3a] sm:$0xff]
      %v7295 = vld [vmem:[#allocation2 + $0x4a] sm:$0xff]
      %v7296 = vld [vmem:[#allocation2 + $0x52] sm:$0xff]
      %v7297 = vld [vmem:[#allocation2 + $0x62] sm:$0xff]
      %v7298 = vld [vmem:[#allocation2 + $0x6a] sm:$0xff]
      %v7299 = vld [vmem:[#allocation2 + $0x7a] sm:$0xff]
      %v7300 = vld [vmem:[#allocation2 + $0x82] sm:$0xff]
      %v7301 = vld [vmem:[#allocation2 + $0x92] sm:$0xff]
      %v7302 = vld [vmem:[#allocation2 + $0x9a] sm:$0xff]
      %v7303 = vld [vmem:[#allocation2 + $0xaa] sm:$0xff]
      %v7304 = vld [vmem:[#allocation2 + $0xb2] sm:$0xff]
      %v7305 = vld [vmem:[#allocation2 + $0xc2] sm:$0xff]
      %v7306 = vld [vmem:[#allocation2 + $0xca] sm:$0xff]
      %v7307 = vld [vmem:[#allocation2 + $0xda] sm:$0xff]
      %v7308 = vld [vmem:[#allocation2 + $0xe2] sm:$0xff]
      %v7309 = vld [vmem:[#allocation2 + $0xf2] sm:$0xff]
      %v7310 = vld [vmem:[#allocation2 + $0xfa] sm:$0xff]
      %v7311 = vld [vmem:[#allocation2 + $0x10a] sm:$0xff]
      %v7312 = vld [vmem:[#allocation2 + $0x112] sm:$0xff]
      %v7313 = vld [vmem:[#allocation2 + $0x122] sm:$0xff]
      %v7314 = vld [vmem:[#allocation2 + $0x12a] sm:$0xff]
      %v7315 = vld [vmem:[#allocation2 + $0x13a] sm:$0xff]
      %v7316 = vld [vmem:[#allocation2 + $0x142] sm:$0xff]
      %v7317 = vld [vmem:[#allocation2 + $0x152] sm:$0xff]
      %v7318 = vld [vmem:[#allocation2 + $0x15a] sm:$0xff]
      %v7319 = vld [vmem:[#allocation2 + $0x16a] sm:$0xff]
      %v7320 = vld [vmem:[#allocation2 + $0x172] sm:$0xff]
      %v7321 = vpack.c.bf16 %v7290, %v7289
      %v7322 = vpack.c.bf16 %v7292, %v7291
      %v7323 = vpack.c.bf16 %v7294, %v7293
      %v7324 = vpack.c.bf16 %v7296, %v7295
      %v7325 = vpack.c.bf16 %v7298, %v7297
      %v7326 = vpack.c.bf16 %v7300, %v7299
      %v7327 = vpack.c.bf16 %v7302, %v7301
      %v7328 = vpack.c.bf16 %v7304, %v7303
      %v7329 = vpack.c.bf16 %v7306, %v7305
      %v7330 = vpack.c.bf16 %v7308, %v7307
      %v7331 = vpack.c.bf16 %v7310, %v7309
      %v7332 = vpack.c.bf16 %v7312, %v7311
      %v7333 = vpack.c.bf16 %v7314, %v7313
      %v7334 = vpack.c.bf16 %v7316, %v7315
      %v7335 = vpack.c.bf16 %v7318, %v7317
      %v7336 = vpack.c.bf16 %v7320, %v7319
      %s7337 = scalar_lea.vmem %s7, 16
      %v7338 = vld [vmem:[%s7337] sm:$0xf]
      %v7339 = vld [vmem:[%s7337 + $0x4] sm:$0x3]
      %v7342 = vunpack.c.l.b16 %v7338
      %v7343 = vunpack.c.l.b16 %v7339
      %v7344 = vpack.c.b16 %v7343, %v7342
      %v7346 = vsel %vm530, %v7321, 0
      %v7349 = vsel %vm530, %v7322, 0
      %v7352 = vsel %vm530, %v7323, 0
      %v7355 = vsel %vm530, %v7324, 0
      %v7358 = vsel %vm530, %v7325, 0
      %v7361 = vsel %vm530, %v7326, 0
      %v7364 = vsel %vm530, %v7327, 0
      %v7367 = vsel %vm530, %v7328, 0
      %v7370 = vsel %vm530, %v7329, 0
      %v7373 = vsel %vm530, %v7330, 0
      %v7376 = vsel %vm530, %v7331, 0
      %v7379 = vsel %vm530, %v7332, 0
      %v7382 = vsel %vm530, %v7333, 0
      %v7385 = vsel %vm530, %v7334, 0
      %v7388 = vsel %vm530, %v7335, 0
      %v7391 = vsel %vm530, %v7336, 0
      %v7394 = vsel %vm1174, %v7344, 0
      %7396 = vmatprep.subr.bf16.mxu0 0
      %7397 = vmatpush1.bf16.msra.mxu0 %v7394
      %7398 = vmatprep.subr.bf16.mxu0 0
      %7399 = vmatpush1.bf16.msra.mxu0 0
      %7400 = vmatprep.subr.bf16.mxu0 0
      %7401 = vmatpush1.bf16.msra.mxu0 0
      %7402 = vmatprep.subr.bf16.mxu0 0
      %7403 = vmatpush1.bf16.msra.mxu0 0
      %7404 = vmatprep.subr.bf16.mxu0 0
      %7405 = vmatpush1.bf16.msra.mxu0 0
      %7406 = vmatprep.subr.bf16.mxu0 0
      %7407 = vmatpush1.bf16.msra.mxu0 0
      %7408 = vmatprep.subr.bf16.mxu0 0
      %7409 = vmatpush1.bf16.msra.mxu0 0
      %7410 = vmatprep.subr.bf16.mxu0 0
      %7411 = vmatpush1.bf16.msra.mxu0 0
      %7412 = vmatprep.subr.bf16.mxu0 0
      %7413 = vmatpush1.bf16.msra.mxu0 0
      %7414 = vmatprep.subr.bf16.mxu0 0
      %7415 = vmatpush1.bf16.msra.mxu0 0
      %7416 = vmatprep.subr.bf16.mxu0 0
      %7417 = vmatpush1.bf16.msra.mxu0 0
      %7418 = vmatprep.subr.bf16.mxu0 0
      %7419 = vmatpush1.bf16.msra.mxu0 0
      %7420 = vmatprep.subr.bf16.mxu0 0
      %7421 = vmatpush1.bf16.msra.mxu0 0
      %7422 = vmatprep.subr.bf16.mxu0 0
      %7423 = vmatpush1.bf16.msra.mxu0 0
      %7424 = vmatprep.subr.bf16.mxu0 0
      %7425 = vmatpush1.bf16.msra.mxu0 0
      %7426 = vmatprep.subr.bf16.mxu0 0
      %7427 = vmatpush1.bf16.msra.mxu0 0
      %7428 = vmatprep.mubr.bf16.mxu0 0
      %7429 = vmatmul.mubr.bf16.gmra.mrb[0].mxu0 %v7346
      %v7430 = vpop.f32.mrb[0].mxu0
      %v7431 = vadd.f32 0.0, %v7430
      %v7432 = vpop.f32.mrb[0].mxu0
      %v7433 = vpop.f32.mrb[0].mxu0
      %v7434 = vadd.f32 0.0, %v7433
      %v7435 = vpop.f32.mrb[0].mxu0
      %7436 = vmatprep.mubr.bf16.mxu0 0
      %7437 = vmatmul.mubr.bf16.gmra.mrb[0].mxu0 %v7349
      %v7438 = vpop.f32.mrb[0].mxu0
      %v7439 = vadd.f32 0.0, %v7438
      %v7440 = vpop.f32.mrb[0].mxu0
      %v7441 = vpop.f32.mrb[0].mxu0
      %v7442 = vadd.f32 0.0, %v7441
      %v7443 = vpop.f32.mrb[0].mxu0
      %7444 = vmatprep.mubr.bf16.mxu0 0
      %7445 = vmatmul.mubr.bf16.gmra.mrb[0].mxu0 %v7352
      %v7446 = vpop.f32.mrb[0].mxu0
      %v7447 = vadd.f32 0.0, %v7446
      %v7448 = vpop.f32.mrb[0].mxu0
      %v7449 = vpop.f32.mrb[0].mxu0
      %v7450 = vadd.f32 0.0, %v7449
      %v7451 = vpop.f32.mrb[0].mxu0
      %7452 = vmatprep.mubr.bf16.mxu0 0
      %7453 = vmatmul.mubr.bf16.gmra.mrb[0].mxu0 %v7355
      %v7454 = vpop.f32.mrb[0].mxu0
      %v7455 = vadd.f32 0.0, %v7454
      %v7456 = vpop.f32.mrb[0].mxu0
      %v7457 = vpop.f32.mrb[0].mxu0
      %v7458 = vadd.f32 0.0, %v7457
      %v7459 = vpop.f32.mrb[0].mxu0
      %7460 = vmatprep.mubr.bf16.mxu0 0
      %7461 = vmatmul.mubr.bf16.gmra.mrb[0].mxu0 %v7358
      %v7462 = vpop.f32.mrb[0].mxu0
      %v7463 = vadd.f32 0.0, %v7462
      %v7464 = vpop.f32.mrb[0].mxu0
      %v7465 = vpop.f32.mrb[0].mxu0
      %v7466 = vadd.f32 0.0, %v7465
      %v7467 = vpop.f32.mrb[0].mxu0
      %7468 = vmatprep.mubr.bf16.mxu0 0
      %7469 = vmatmul.mubr.bf16.gmra.mrb[0].mxu0 %v7361
      %v7470 = vpop.f32.mrb[0].mxu0
      %v7471 = vadd.f32 0.0, %v7470
      %v7472 = vpop.f32.mrb[0].mxu0
      %v7473 = vpop.f32.mrb[0].mxu0
      %v7474 = vadd.f32 0.0, %v7473
      %v7475 = vpop.f32.mrb[0].mxu0
      %7476 = vmatprep.mubr.bf16.mxu0 0
      %7477 = vmatmul.mubr.bf16.gmra.mrb[0].mxu0 %v7364
      %v7478 = vpop.f32.mrb[0].mxu0
      %v7479 = vadd.f32 0.0, %v7478
      %v7480 = vpop.f32.mrb[0].mxu0
      %v7481 = vpop.f32.mrb[0].mxu0
      %v7482 = vadd.f32 0.0, %v7481
      %v7483 = vpop.f32.mrb[0].mxu0
      %7484 = vmatprep.mubr.bf16.mxu0 0
      %7485 = vmatmul.mubr.bf16.gmra.mrb[0].mxu0 %v7367
      %v7486 = vpop.f32.mrb[0].mxu0
      %v7487 = vadd.f32 0.0, %v7486
      %v7488 = vpop.f32.mrb[0].mxu0
      %v7489 = vpop.f32.mrb[0].mxu0
      %v7490 = vadd.f32 0.0, %v7489
      %v7491 = vpop.f32.mrb[0].mxu0
      %7492 = vmatprep.mubr.bf16.mxu0 0
      %7493 = vmatmul.mubr.bf16.gmra.mrb[0].mxu0 %v7370
      %v7494 = vpop.f32.mrb[0].mxu0
      %v7495 = vadd.f32 0.0, %v7494
      %v7496 = vpop.f32.mrb[0].mxu0
      %v7497 = vpop.f32.mrb[0].mxu0
      %v7498 = vadd.f32 0.0, %v7497
      %v7499 = vpop.f32.mrb[0].mxu0
      %7500 = vmatprep.mubr.bf16.mxu0 0
      %7501 = vmatmul.mubr.bf16.gmra.mrb[0].mxu0 %v7373
      %v7502 = vpop.f32.mrb[0].mxu0
      %v7503 = vadd.f32 0.0, %v7502
      %v7504 = vpop.f32.mrb[0].mxu0
      %v7505 = vpop.f32.mrb[0].mxu0
      %v7506 = vadd.f32 0.0, %v7505
      %v7507 = vpop.f32.mrb[0].mxu0
      %7508 = vmatprep.mubr.bf16.mxu0 0
      %7509 = vmatmul.mubr.bf16.gmra.mrb[0].mxu0 %v7376
      %v7510 = vpop.f32.mrb[0].mxu0
      %v7511 = vadd.f32 0.0, %v7510
      %v7512 = vpop.f32.mrb[0].mxu0
      %v7513 = vpop.f32.mrb[0].mxu0
      %v7514 = vadd.f32 0.0, %v7513
      %v7515 = vpop.f32.mrb[0].mxu0
      %7516 = vmatprep.mubr.bf16.mxu0 0
      %7517 = vmatmul.mubr.bf16.gmra.mrb[0].mxu0 %v7379
      %v7518 = vpop.f32.mrb[0].mxu0
      %v7519 = vadd.f32 0.0, %v7518
      %v7520 = vpop.f32.mrb[0].mxu0
      %v7521 = vpop.f32.mrb[0].mxu0
      %v7522 = vadd.f32 0.0, %v7521
      %v7523 = vpop.f32.mrb[0].mxu0
      %7524 = vmatprep.mubr.bf16.mxu0 0
      %7525 = vmatmul.mubr.bf16.gmra.mrb[0].mxu0 %v7382
      %v7526 = vpop.f32.mrb[0].mxu0
      %v7527 = vadd.f32 0.0, %v7526
      %v7528 = vpop.f32.mrb[0].mxu0
      %v7529 = vpop.f32.mrb[0].mxu0
      %v7530 = vadd.f32 0.0, %v7529
      %v7531 = vpop.f32.mrb[0].mxu0
      %7532 = vmatprep.mubr.bf16.mxu0 0
      %7533 = vmatmul.mubr.bf16.gmra.mrb[0].mxu0 %v7385
      %v7534 = vpop.f32.mrb[0].mxu0
      %v7535 = vadd.f32 0.0, %v7534
      %v7536 = vpop.f32.mrb[0].mxu0
      %v7537 = vpop.f32.mrb[0].mxu0
      %v7538 = vadd.f32 0.0, %v7537
      %v7539 = vpop.f32.mrb[0].mxu0
      %7540 = vmatprep.mubr.bf16.mxu0 0
      %7541 = vmatmul.mubr.bf16.gmra.mrb[0].mxu0 %v7388
      %v7542 = vpop.f32.mrb[0].mxu0
      %v7543 = vadd.f32 0.0, %v7542
      %v7544 = vpop.f32.mrb[0].mxu0
      %v7545 = vpop.f32.mrb[0].mxu0
      %v7546 = vadd.f32 0.0, %v7545
      %v7547 = vpop.f32.mrb[0].mxu0
      %7548 = vmatprep.mubr.bf16.mxu0 0
      %7549 = vmatmul.mubr.bf16.gmra.mrb[0].mxu0 %v7391
      %v7550 = vpop.f32.mrb[0].mxu0
      %v7551 = vadd.f32 0.0, %v7550
      %v7552 = vpop.f32.mrb[0].mxu0
      %v7553 = vpop.f32.mrb[0].mxu0
      %v7554 = vadd.f32 0.0, %v7553
      %v7555 = vpop.f32.mrb[0].mxu0
      %7556 = vdwg.mxu0
      %v7557 = vadd.f32 %v7163, %v7431
      %v7558 = vadd.f32 %v7166, %v7434
      %v7559 = vadd.f32 %v7171, %v7439
      %v7560 = vadd.f32 %v7174, %v7442
      %v7561 = vadd.f32 %v7179, %v7447
      %v7562 = vadd.f32 %v7182, %v7450
      %v7563 = vadd.f32 %v7187, %v7455
      %v7564 = vadd.f32 %v7190, %v7458
      %v7565 = vadd.f32 %v7195, %v7463
      %v7566 = vadd.f32 %v7198, %v7466
      %v7567 = vadd.f32 %v7203, %v7471
      %v7568 = vadd.f32 %v7206, %v7474
      %v7569 = vadd.f32 %v7211, %v7479
      %v7570 = vadd.f32 %v7214, %v7482
      %v7571 = vadd.f32 %v7219, %v7487
      %v7572 = vadd.f32 %v7222, %v7490
      %v7573 = vadd.f32 %v7227, %v7495
      %v7574 = vadd.f32 %v7230, %v7498
      %v7575 = vadd.f32 %v7235, %v7503
      %v7576 = vadd.f32 %v7238, %v7506
      %v7577 = vadd.f32 %v7243, %v7511
      %v7578 = vadd.f32 %v7246, %v7514
      %v7579 = vadd.f32 %v7251, %v7519
      %v7580 = vadd.f32 %v7254, %v7522
      %v7581 = vadd.f32 %v7259, %v7527
      %v7582 = vadd.f32 %v7262, %v7530
      %v7583 = vadd.f32 %v7267, %v7535
      %v7584 = vadd.f32 %v7270, %v7538
      %v7585 = vadd.f32 %v7275, %v7543
      %v7586 = vadd.f32 %v7278, %v7546
      %v7587 = vadd.f32 %v7283, %v7551
      %v7588 = vadd.f32 %v7286, %v7554
      %v7589 = vld [vmem:[%s987] sm:$0xff]
      %v7590 = vld [vmem:[%s987 + $0x8] sm:$0xff]
      %v7591 = vld [vmem:[%s987 + $0x18] sm:$0xff]
      %v7592 = vld [vmem:[%s987 + $0x20] sm:$0xff]
      %v7593 = vld [vmem:[%s987 + $0x30] sm:$0xff]
      %v7594 = vld [vmem:[%s987 + $0x38] sm:$0xff]
      %v7595 = vld [vmem:[%s987 + $0x48] sm:$0xff]
      %v7596 = vld [vmem:[%s987 + $0x50] sm:$0xff]
      %v7597 = vld [vmem:[%s987 + $0x60] sm:$0xff]
      %v7598 = vld [vmem:[%s987 + $0x68] sm:$0xff]
      %v7599 = vld [vmem:[%s987 + $0x78] sm:$0xff]
      %v7600 = vld [vmem:[%s987 + $0x80] sm:$0xff]
      %v7601 = vld [vmem:[%s987 + $0x90] sm:$0xff]
      %v7602 = vld [vmem:[%s987 + $0x98] sm:$0xff]
      %v7603 = vld [vmem:[%s987 + $0xa8] sm:$0xff]
      %v7604 = vld [vmem:[%s987 + $0xb0] sm:$0xff]
      %v7605 = vld [vmem:[%s987 + $0xc0] sm:$0xff]
      %v7606 = vld [vmem:[%s987 + $0xc8] sm:$0xff]
      %v7607 = vld [vmem:[%s987 + $0xd8] sm:$0xff]
      %v7608 = vld [vmem:[%s987 + $0xe0] sm:$0xff]
      %v7609 = vld [vmem:[%s987 + $0xf0] sm:$0xff]
      %v7610 = vld [vmem:[%s987 + $0xf8] sm:$0xff]
      %v7611 = vld [vmem:[%s987 + $0x108] sm:$0xff]
      %v7612 = vld [vmem:[%s987 + $0x110] sm:$0xff]
      %v7613 = vld [vmem:[%s987 + $0x120] sm:$0xff]
      %v7614 = vld [vmem:[%s987 + $0x128] sm:$0xff]
      %v7615 = vld [vmem:[%s987 + $0x138] sm:$0xff]
      %v7616 = vld [vmem:[%s987 + $0x140] sm:$0xff]
      %v7617 = vld [vmem:[%s987 + $0x150] sm:$0xff]
      %v7618 = vld [vmem:[%s987 + $0x158] sm:$0xff]
      %v7619 = vld [vmem:[%s987 + $0x168] sm:$0xff]
      %v7620 = vld [vmem:[%s987 + $0x170] sm:$0xff]
      %v7621 = vpack.c.bf16 %v7590, %v7589
      %v7622 = vpack.c.bf16 %v7592, %v7591
      %v7623 = vpack.c.bf16 %v7594, %v7593
      %v7624 = vpack.c.bf16 %v7596, %v7595
      %v7625 = vpack.c.bf16 %v7598, %v7597
      %v7626 = vpack.c.bf16 %v7600, %v7599
      %v7627 = vpack.c.bf16 %v7602, %v7601
      %v7628 = vpack.c.bf16 %v7604, %v7603
      %v7629 = vpack.c.bf16 %v7606, %v7605
      %v7630 = vpack.c.bf16 %v7608, %v7607
      %v7631 = vpack.c.bf16 %v7610, %v7609
      %v7632 = vpack.c.bf16 %v7612, %v7611
      %v7633 = vpack.c.bf16 %v7614, %v7613
      %v7634 = vpack.c.bf16 %v7616, %v7615
      %v7635 = vpack.c.bf16 %v7618, %v7617
      %v7636 = vpack.c.bf16 %v7620, %v7619
      %s7637 = scalar_lea.vmem %s7, 24
      %v7638 = vld [vmem:[%s7637] sm:$0xf]
      %v7639 = vld [vmem:[%s7637 + $0x4] sm:$0x3]
      %v7642 = vunpack.c.l.b16 %v7638
      %v7643 = vunpack.c.l.b16 %v7639
      %v7644 = vpack.c.b16 %v7643, %v7642
      %v7646 = vsel %vm530, %v7621, 0
      %v7649 = vsel %vm530, %v7622, 0
      %v7652 = vsel %vm530, %v7623, 0
      %v7655 = vsel %vm530, %v7624, 0
      %v7658 = vsel %vm530, %v7625, 0
      %v7661 = vsel %vm530, %v7626, 0
      %v7664 = vsel %vm530, %v7627, 0
      %v7667 = vsel %vm530, %v7628, 0
      %v7670 = vsel %vm530, %v7629, 0
      %v7673 = vsel %vm530, %v7630, 0
      %v7676 = vsel %vm530, %v7631, 0
      %v7679 = vsel %vm530, %v7632, 0
      %v7682 = vsel %vm530, %v7633, 0
      %v7685 = vsel %vm530, %v7634, 0
      %v7688 = vsel %vm530, %v7635, 0
      %v7691 = vsel %vm530, %v7636, 0
      %v7694 = vsel %vm1174, %v7644, 0
      %7696 = vmatprep.subr.bf16.mxu0 0
      %7697 = vmatpush1.bf16.msra.mxu0 %v7694
      %7698 = vmatprep.subr.bf16.mxu0 0
      %7699 = vmatpush1.bf16.msra.mxu0 0
      %7700 = vmatprep.subr.bf16.mxu0 0
      %7701 = vmatpush1.bf16.msra.mxu0 0
      %7702 = vmatprep.subr.bf16.mxu0 0
      %7703 = vmatpush1.bf16.msra.mxu0 0
      %7704 = vmatprep.subr.bf16.mxu0 0
      %7705 = vmatpush1.bf16.msra.mxu0 0
      %7706 = vmatprep.subr.bf16.mxu0 0
      %7707 = vmatpush1.bf16.msra.mxu0 0
      %7708 = vmatprep.subr.bf16.mxu0 0
      %7709 = vmatpush1.bf16.msra.mxu0 0
      %7710 = vmatprep.subr.bf16.mxu0 0
      %7711 = vmatpush1.bf16.msra.mxu0 0
      %7712 = vmatprep.subr.bf16.mxu0 0
      %7713 = vmatpush1.bf16.msra.mxu0 0
      %7714 = vmatprep.subr.bf16.mxu0 0
      %7715 = vmatpush1.bf16.msra.mxu0 0
      %7716 = vmatprep.subr.bf16.mxu0 0
      %7717 = vmatpush1.bf16.msra.mxu0 0
      %7718 = vmatprep.subr.bf16.mxu0 0
      %7719 = vmatpush1.bf16.msra.mxu0 0
      %7720 = vmatprep.subr.bf16.mxu0 0
      %7721 = vmatpush1.bf16.msra.mxu0 0
      %7722 = vmatprep.subr.bf16.mxu0 0
      %7723 = vmatpush1.bf16.msra.mxu0 0
      %7724 = vmatprep.subr.bf16.mxu0 0
      %7725 = vmatpush1.bf16.msra.mxu0 0
      %7726 = vmatprep.subr.bf16.mxu0 0
      %7727 = vmatpush1.bf16.msra.mxu0 0
      %7728 = vmatprep.mubr.bf16.mxu0 0
      %7729 = vmatmul.mubr.bf16.gmra.mrb[0].mxu0 %v7646
      %v7730 = vpop.f32.mrb[0].mxu0
      %v7731 = vadd.f32 0.0, %v7730
      %v7732 = vpop.f32.mrb[0].mxu0
      %v7733 = vpop.f32.mrb[0].mxu0
      %v7734 = vadd.f32 0.0, %v7733
      %v7735 = vpop.f32.mrb[0].mxu0
      %7736 = vmatprep.mubr.bf16.mxu0 0
      %7737 = vmatmul.mubr.bf16.gmra.mrb[0].mxu0 %v7649
      %v7738 = vpop.f32.mrb[0].mxu0
      %v7739 = vadd.f32 0.0, %v7738
      %v7740 = vpop.f32.mrb[0].mxu0
      %v7741 = vpop.f32.mrb[0].mxu0
      %v7742 = vadd.f32 0.0, %v7741
      %v7743 = vpop.f32.mrb[0].mxu0
      %7744 = vmatprep.mubr.bf16.mxu0 0
      %7745 = vmatmul.mubr.bf16.gmra.mrb[0].mxu0 %v7652
      %v7746 = vpop.f32.mrb[0].mxu0
      %v7747 = vadd.f32 0.0, %v7746
      %v7748 = vpop.f32.mrb[0].mxu0
      %v7749 = vpop.f32.mrb[0].mxu0
      %v7750 = vadd.f32 0.0, %v7749
      %v7751 = vpop.f32.mrb[0].mxu0
      %7752 = vmatprep.mubr.bf16.mxu0 0
      %7753 = vmatmul.mubr.bf16.gmra.mrb[0].mxu0 %v7655
      %v7754 = vpop.f32.mrb[0].mxu0
      %v7755 = vadd.f32 0.0, %v7754
      %v7756 = vpop.f32.mrb[0].mxu0
      %v7757 = vpop.f32.mrb[0].mxu0
      %v7758 = vadd.f32 0.0, %v7757
      %v7759 = vpop.f32.mrb[0].mxu0
      %7760 = vmatprep.mubr.bf16.mxu0 0
      %7761 = vmatmul.mubr.bf16.gmra.mrb[0].mxu0 %v7658
      %v7762 = vpop.f32.mrb[0].mxu0
      %v7763 = vadd.f32 0.0, %v7762
      %v7764 = vpop.f32.mrb[0].mxu0
      %v7765 = vpop.f32.mrb[0].mxu0
      %v7766 = vadd.f32 0.0, %v7765
      %v7767 = vpop.f32.mrb[0].mxu0
      %7768 = vmatprep.mubr.bf16.mxu0 0
      %7769 = vmatmul.mubr.bf16.gmra.mrb[0].mxu0 %v7661
      %v7770 = vpop.f32.mrb[0].mxu0
      %v7771 = vadd.f32 0.0, %v7770
      %v7772 = vpop.f32.mrb[0].mxu0
      %v7773 = vpop.f32.mrb[0].mxu0
      %v7774 = vadd.f32 0.0, %v7773
      %v7775 = vpop.f32.mrb[0].mxu0
      %7776 = vmatprep.mubr.bf16.mxu0 0
      %7777 = vmatmul.mubr.bf16.gmra.mrb[0].mxu0 %v7664
      %v7778 = vpop.f32.mrb[0].mxu0
      %v7779 = vadd.f32 0.0, %v7778
      %v7780 = vpop.f32.mrb[0].mxu0
      %v7781 = vpop.f32.mrb[0].mxu0
      %v7782 = vadd.f32 0.0, %v7781
      %v7783 = vpop.f32.mrb[0].mxu0
      %7784 = vmatprep.mubr.bf16.mxu0 0
      %7785 = vmatmul.mubr.bf16.gmra.mrb[0].mxu0 %v7667
      %v7786 = vpop.f32.mrb[0].mxu0
      %v7787 = vadd.f32 0.0, %v7786
      %v7788 = vpop.f32.mrb[0].mxu0
      %v7789 = vpop.f32.mrb[0].mxu0
      %v7790 = vadd.f32 0.0, %v7789
      %v7791 = vpop.f32.mrb[0].mxu0
      %7792 = vmatprep.mubr.bf16.mxu0 0
      %7793 = vmatmul.mubr.bf16.gmra.mrb[0].mxu0 %v7670
      %v7794 = vpop.f32.mrb[0].mxu0
      %v7795 = vadd.f32 0.0, %v7794
      %v7796 = vpop.f32.mrb[0].mxu0
      %v7797 = vpop.f32.mrb[0].mxu0
      %v7798 = vadd.f32 0.0, %v7797
      %v7799 = vpop.f32.mrb[0].mxu0
      %7800 = vmatprep.mubr.bf16.mxu0 0
      %7801 = vmatmul.mubr.bf16.gmra.mrb[0].mxu0 %v7673
      %v7802 = vpop.f32.mrb[0].mxu0
      %v7803 = vadd.f32 0.0, %v7802
      %v7804 = vpop.f32.mrb[0].mxu0
      %v7805 = vpop.f32.mrb[0].mxu0
      %v7806 = vadd.f32 0.0, %v7805
      %v7807 = vpop.f32.mrb[0].mxu0
      %7808 = vmatprep.mubr.bf16.mxu0 0
      %7809 = vmatmul.mubr.bf16.gmra.mrb[0].mxu0 %v7676
      %v7810 = vpop.f32.mrb[0].mxu0
      %v7811 = vadd.f32 0.0, %v7810
      %v7812 = vpop.f32.mrb[0].mxu0
      %v7813 = vpop.f32.mrb[0].mxu0
      %v7814 = vadd.f32 0.0, %v7813
      %v7815 = vpop.f32.mrb[0].mxu0
      %7816 = vmatprep.mubr.bf16.mxu0 0
      %7817 = vmatmul.mubr.bf16.gmra.mrb[0].mxu0 %v7679
      %v7818 = vpop.f32.mrb[0].mxu0
      %v7819 = vadd.f32 0.0, %v7818
      %v7820 = vpop.f32.mrb[0].mxu0
      %v7821 = vpop.f32.mrb[0].mxu0
      %v7822 = vadd.f32 0.0, %v7821
      %v7823 = vpop.f32.mrb[0].mxu0
      %7824 = vmatprep.mubr.bf16.mxu0 0
      %7825 = vmatmul.mubr.bf16.gmra.mrb[0].mxu0 %v7682
      %v7826 = vpop.f32.mrb[0].mxu0
      %v7827 = vadd.f32 0.0, %v7826
      %v7828 = vpop.f32.mrb[0].mxu0
      %v7829 = vpop.f32.mrb[0].mxu0
      %v7830 = vadd.f32 0.0, %v7829
      %v7831 = vpop.f32.mrb[0].mxu0
      %7832 = vmatprep.mubr.bf16.mxu0 0
      %7833 = vmatmul.mubr.bf16.gmra.mrb[0].mxu0 %v7685
      %v7834 = vpop.f32.mrb[0].mxu0
      %v7835 = vadd.f32 0.0, %v7834
      %v7836 = vpop.f32.mrb[0].mxu0
      %v7837 = vpop.f32.mrb[0].mxu0
      %v7838 = vadd.f32 0.0, %v7837
      %v7839 = vpop.f32.mrb[0].mxu0
      %7840 = vmatprep.mubr.bf16.mxu0 0
      %7841 = vmatmul.mubr.bf16.gmra.mrb[0].mxu0 %v7688
      %v7842 = vpop.f32.mrb[0].mxu0
      %v7843 = vadd.f32 0.0, %v7842
      %v7844 = vpop.f32.mrb[0].mxu0
      %v7845 = vpop.f32.mrb[0].mxu0
      %v7846 = vadd.f32 0.0, %v7845
      %v7847 = vpop.f32.mrb[0].mxu0
      %7848 = vmatprep.mubr.bf16.mxu0 0
      %7849 = vmatmul.mubr.bf16.gmra.mrb[0].mxu0 %v7691
      %v7850 = vpop.f32.mrb[0].mxu0
      %v7851 = vadd.f32 0.0, %v7850
      %v7852 = vpop.f32.mrb[0].mxu0
      %v7853 = vpop.f32.mrb[0].mxu0
      %v7854 = vadd.f32 0.0, %v7853
      %v7855 = vpop.f32.mrb[0].mxu0
      %7856 = vdwg.mxu0
      %v7857 = vadd.f32 %v7557, %v7731
      %v7858 = vadd.f32 %v7558, %v7734
      %v7859 = vadd.f32 %v7559, %v7739
      %v7860 = vadd.f32 %v7560, %v7742
      %v7861 = vadd.f32 %v7561, %v7747
      %v7862 = vadd.f32 %v7562, %v7750
      %v7863 = vadd.f32 %v7563, %v7755
      %v7864 = vadd.f32 %v7564, %v7758
      %v7865 = vadd.f32 %v7565, %v7763
      %v7866 = vadd.f32 %v7566, %v7766
      %v7867 = vadd.f32 %v7567, %v7771
      %v7868 = vadd.f32 %v7568, %v7774
      %v7869 = vadd.f32 %v7569, %v7779
      %v7870 = vadd.f32 %v7570, %v7782
      %v7871 = vadd.f32 %v7571, %v7787
      %v7872 = vadd.f32 %v7572, %v7790
      %v7873 = vadd.f32 %v7573, %v7795
      %v7874 = vadd.f32 %v7574, %v7798
      %v7875 = vadd.f32 %v7575, %v7803
      %v7876 = vadd.f32 %v7576, %v7806
      %v7877 = vadd.f32 %v7577, %v7811
      %v7878 = vadd.f32 %v7578, %v7814
      %v7879 = vadd.f32 %v7579, %v7819
      %v7880 = vadd.f32 %v7580, %v7822
      %v7881 = vadd.f32 %v7581, %v7827
      %v7882 = vadd.f32 %v7582, %v7830
      %v7883 = vadd.f32 %v7583, %v7835
      %v7884 = vadd.f32 %v7584, %v7838
      %v7885 = vadd.f32 %v7585, %v7843
      %v7886 = vadd.f32 %v7586, %v7846
      %v7887 = vadd.f32 %v7587, %v7851
      %v7888 = vadd.f32 %v7588, %v7854
      %v7889 = vld [vmem:[%s987 + $0x1] sm:$0xff]
      %v7890 = vld [vmem:[%s987 + $0x9] sm:$0xff]
      %v7891 = vld [vmem:[%s987 + $0x19] sm:$0xff]
      %v7892 = vld [vmem:[%s987 + $0x21] sm:$0xff]
      %v7893 = vld [vmem:[%s987 + $0x31] sm:$0xff]
      %v7894 = vld [vmem:[%s987 + $0x39] sm:$0xff]
      %v7895 = vld [vmem:[%s987 + $0x49] sm:$0xff]
      %v7896 = vld [vmem:[%s987 + $0x51] sm:$0xff]
      %v7897 = vld [vmem:[%s987 + $0x61] sm:$0xff]
      %v7898 = vld [vmem:[%s987 + $0x69] sm:$0xff]
      %v7899 = vld [vmem:[%s987 + $0x79] sm:$0xff]
      %v7900 = vld [vmem:[%s987 + $0x81] sm:$0xff]
      %v7901 = vld [vmem:[%s987 + $0x91] sm:$0xff]
      %v7902 = vld [vmem:[%s987 + $0x99] sm:$0xff]
      %v7903 = vld [vmem:[%s987 + $0xa9] sm:$0xff]
      %v7904 = vld [vmem:[%s987 + $0xb1] sm:$0xff]
      %v7905 = vld [vmem:[%s987 + $0xc1] sm:$0xff]
      %v7906 = vld [vmem:[%s987 + $0xc9] sm:$0xff]
      %v7907 = vld [vmem:[%s987 + $0xd9] sm:$0xff]
      %v7908 = vld [vmem:[%s987 + $0xe1] sm:$0xff]
      %v7909 = vld [vmem:[%s987 + $0xf1] sm:$0xff]
      %v7910 = vld [vmem:[%s987 + $0xf9] sm:$0xff]
      %v7911 = vld [vmem:[%s987 + $0x109] sm:$0xff]
      %v7912 = vld [vmem:[%s987 + $0x111] sm:$0xff]
      %v7913 = vld [vmem:[%s987 + $0x121] sm:$0xff]
      %v7914 = vld [vmem:[%s987 + $0x129] sm:$0xff]
      %v7915 = vld [vmem:[%s987 + $0x139] sm:$0xff]
      %v7916 = vld [vmem:[%s987 + $0x141] sm:$0xff]
      %v7917 = vld [vmem:[%s987 + $0x151] sm:$0xff]
      %v7918 = vld [vmem:[%s987 + $0x159] sm:$0xff]
      %v7919 = vld [vmem:[%s987 + $0x169] sm:$0xff]
      %v7920 = vld [vmem:[%s987 + $0x171] sm:$0xff]
      %v7921 = vpack.c.bf16 %v7890, %v7889
      %v7922 = vpack.c.bf16 %v7892, %v7891
      %v7923 = vpack.c.bf16 %v7894, %v7893
      %v7924 = vpack.c.bf16 %v7896, %v7895
      %v7925 = vpack.c.bf16 %v7898, %v7897
      %v7926 = vpack.c.bf16 %v7900, %v7899
      %v7927 = vpack.c.bf16 %v7902, %v7901
      %v7928 = vpack.c.bf16 %v7904, %v7903
      %v7929 = vpack.c.bf16 %v7906, %v7905
      %v7930 = vpack.c.bf16 %v7908, %v7907
      %v7931 = vpack.c.bf16 %v7910, %v7909
      %v7932 = vpack.c.bf16 %v7912, %v7911
      %v7933 = vpack.c.bf16 %v7914, %v7913
      %v7934 = vpack.c.bf16 %v7916, %v7915
      %v7935 = vpack.c.bf16 %v7918, %v7917
      %v7936 = vpack.c.bf16 %v7920, %v7919
      %s7937 = scalar_lea.vmem %s7, 32
      %v7938 = vld [vmem:[%s7937] sm:$0xf]
      %v7939 = vld [vmem:[%s7937 + $0x4] sm:$0x3]
      %v7942 = vunpack.c.l.b16 %v7938
      %v7943 = vunpack.c.l.b16 %v7939
      %v7944 = vpack.c.b16 %v7943, %v7942
      %v7946 = vsel %vm530, %v7921, 0
      %v7949 = vsel %vm530, %v7922, 0
      %v7952 = vsel %vm530, %v7923, 0
      %v7955 = vsel %vm530, %v7924, 0
      %v7958 = vsel %vm530, %v7925, 0
      %v7961 = vsel %vm530, %v7926, 0
      %v7964 = vsel %vm530, %v7927, 0
      %v7967 = vsel %vm530, %v7928, 0
      %v7970 = vsel %vm530, %v7929, 0
      %v7973 = vsel %vm530, %v7930, 0
      %v7976 = vsel %vm530, %v7931, 0
      %v7979 = vsel %vm530, %v7932, 0
      %v7982 = vsel %vm530, %v7933, 0
      %v7985 = vsel %vm530, %v7934, 0
      %v7988 = vsel %vm530, %v7935, 0
      %v7991 = vsel %vm530, %v7936, 0
      %v7994 = vsel %vm1174, %v7944, 0
      %7996 = vmatprep.subr.bf16.mxu0 0
      %7997 = vmatpush1.bf16.msra.mxu0 %v7994
      %7998 = vmatprep.subr.bf16.mxu0 0
      %7999 = vmatpush1.bf16.msra.mxu0 0
      %8000 = vmatprep.subr.bf16.mxu0 0
      %8001 = vmatpush1.bf16.msra.mxu0 0
      %8002 = vmatprep.subr.bf16.mxu0 0
      %8003 = vmatpush1.bf16.msra.mxu0 0
      %8004 = vmatprep.subr.bf16.mxu0 0
      %8005 = vmatpush1.bf16.msra.mxu0 0
      %8006 = vmatprep.subr.bf16.mxu0 0
      %8007 = vmatpush1.bf16.msra.mxu0 0
      %8008 = vmatprep.subr.bf16.mxu0 0
      %8009 = vmatpush1.bf16.msra.mxu0 0
      %8010 = vmatprep.subr.bf16.mxu0 0
      %8011 = vmatpush1.bf16.msra.mxu0 0
      %8012 = vmatprep.subr.bf16.mxu0 0
      %8013 = vmatpush1.bf16.msra.mxu0 0
      %8014 = vmatprep.subr.bf16.mxu0 0
      %8015 = vmatpush1.bf16.msra.mxu0 0
      %8016 = vmatprep.subr.bf16.mxu0 0
      %8017 = vmatpush1.bf16.msra.mxu0 0
      %8018 = vmatprep.subr.bf16.mxu0 0
      %8019 = vmatpush1.bf16.msra.mxu0 0
      %8020 = vmatprep.subr.bf16.mxu0 0
      %8021 = vmatpush1.bf16.msra.mxu0 0
      %8022 = vmatprep.subr.bf16.mxu0 0
      %8023 = vmatpush1.bf16.msra.mxu0 0
      %8024 = vmatprep.subr.bf16.mxu0 0
      %8025 = vmatpush1.bf16.msra.mxu0 0
      %8026 = vmatprep.subr.bf16.mxu0 0
      %8027 = vmatpush1.bf16.msra.mxu0 0
      %8028 = vmatprep.mubr.bf16.mxu0 0
      %8029 = vmatmul.mubr.bf16.gmra.mrb[0].mxu0 %v7946
      %v8030 = vpop.f32.mrb[0].mxu0
      %v8031 = vadd.f32 0.0, %v8030
      %v8032 = vpop.f32.mrb[0].mxu0
      %v8033 = vpop.f32.mrb[0].mxu0
      %v8034 = vadd.f32 0.0, %v8033
      %v8035 = vpop.f32.mrb[0].mxu0
      %8036 = vmatprep.mubr.bf16.mxu0 0
      %8037 = vmatmul.mubr.bf16.gmra.mrb[0].mxu0 %v7949
      %v8038 = vpop.f32.mrb[0].mxu0
      %v8039 = vadd.f32 0.0, %v8038
      %v8040 = vpop.f32.mrb[0].mxu0
      %v8041 = vpop.f32.mrb[0].mxu0
      %v8042 = vadd.f32 0.0, %v8041
      %v8043 = vpop.f32.mrb[0].mxu0
      %8044 = vmatprep.mubr.bf16.mxu0 0
      %8045 = vmatmul.mubr.bf16.gmra.mrb[0].mxu0 %v7952
      %v8046 = vpop.f32.mrb[0].mxu0
      %v8047 = vadd.f32 0.0, %v8046
      %v8048 = vpop.f32.mrb[0].mxu0
      %v8049 = vpop.f32.mrb[0].mxu0
      %v8050 = vadd.f32 0.0, %v8049
      %v8051 = vpop.f32.mrb[0].mxu0
      %8052 = vmatprep.mubr.bf16.mxu0 0
      %8053 = vmatmul.mubr.bf16.gmra.mrb[0].mxu0 %v7955
      %v8054 = vpop.f32.mrb[0].mxu0
      %v8055 = vadd.f32 0.0, %v8054
      %v8056 = vpop.f32.mrb[0].mxu0
      %v8057 = vpop.f32.mrb[0].mxu0
      %v8058 = vadd.f32 0.0, %v8057
      %v8059 = vpop.f32.mrb[0].mxu0
      %8060 = vmatprep.mubr.bf16.mxu0 0
      %8061 = vmatmul.mubr.bf16.gmra.mrb[0].mxu0 %v7958
      %v8062 = vpop.f32.mrb[0].mxu0
      %v8063 = vadd.f32 0.0, %v8062
      %v8064 = vpop.f32.mrb[0].mxu0
      %v8065 = vpop.f32.mrb[0].mxu0
      %v8066 = vadd.f32 0.0, %v8065
      %v8067 = vpop.f32.mrb[0].mxu0
      %8068 = vmatprep.mubr.bf16.mxu0 0
      %8069 = vmatmul.mubr.bf16.gmra.mrb[0].mxu0 %v7961
      %v8070 = vpop.f32.mrb[0].mxu0
      %v8071 = vadd.f32 0.0, %v8070
      %v8072 = vpop.f32.mrb[0].mxu0
      %v8073 = vpop.f32.mrb[0].mxu0
      %v8074 = vadd.f32 0.0, %v8073
      %v8075 = vpop.f32.mrb[0].mxu0
      %8076 = vmatprep.mubr.bf16.mxu0 0
      %8077 = vmatmul.mubr.bf16.gmra.mrb[0].mxu0 %v7964
      %v8078 = vpop.f32.mrb[0].mxu0
      %v8079 = vadd.f32 0.0, %v8078
      %v8080 = vpop.f32.mrb[0].mxu0
      %v8081 = vpop.f32.mrb[0].mxu0
      %v8082 = vadd.f32 0.0, %v8081
      %v8083 = vpop.f32.mrb[0].mxu0
      %8084 = vmatprep.mubr.bf16.mxu0 0
      %8085 = vmatmul.mubr.bf16.gmra.mrb[0].mxu0 %v7967
      %v8086 = vpop.f32.mrb[0].mxu0
      %v8087 = vadd.f32 0.0, %v8086
      %v8088 = vpop.f32.mrb[0].mxu0
      %v8089 = vpop.f32.mrb[0].mxu0
      %v8090 = vadd.f32 0.0, %v8089
      %v8091 = vpop.f32.mrb[0].mxu0
      %8092 = vmatprep.mubr.bf16.mxu0 0
      %8093 = vmatmul.mubr.bf16.gmra.mrb[0].mxu0 %v7970
      %v8094 = vpop.f32.mrb[0].mxu0
      %v8095 = vadd.f32 0.0, %v8094
      %v8096 = vpop.f32.mrb[0].mxu0
      %v8097 = vpop.f32.mrb[0].mxu0
      %v8098 = vadd.f32 0.0, %v8097
      %v8099 = vpop.f32.mrb[0].mxu0
      %8100 = vmatprep.mubr.bf16.mxu0 0
      %8101 = vmatmul.mubr.bf16.gmra.mrb[0].mxu0 %v7973
      %v8102 = vpop.f32.mrb[0].mxu0
      %v8103 = vadd.f32 0.0, %v8102
      %v8104 = vpop.f32.mrb[0].mxu0
      %v8105 = vpop.f32.mrb[0].mxu0
      %v8106 = vadd.f32 0.0, %v8105
      %v8107 = vpop.f32.mrb[0].mxu0
      %8108 = vmatprep.mubr.bf16.mxu0 0
      %8109 = vmatmul.mubr.bf16.gmra.mrb[0].mxu0 %v7976
      %v8110 = vpop.f32.mrb[0].mxu0
      %v8111 = vadd.f32 0.0, %v8110
      %v8112 = vpop.f32.mrb[0].mxu0
      %v8113 = vpop.f32.mrb[0].mxu0
      %v8114 = vadd.f32 0.0, %v8113
      %v8115 = vpop.f32.mrb[0].mxu0
      %8116 = vmatprep.mubr.bf16.mxu0 0
      %8117 = vmatmul.mubr.bf16.gmra.mrb[0].mxu0 %v7979
      %v8118 = vpop.f32.mrb[0].mxu0
      %v8119 = vadd.f32 0.0, %v8118
      %v8120 = vpop.f32.mrb[0].mxu0
      %v8121 = vpop.f32.mrb[0].mxu0
      %v8122 = vadd.f32 0.0, %v8121
      %v8123 = vpop.f32.mrb[0].mxu0
      %8124 = vmatprep.mubr.bf16.mxu0 0
      %8125 = vmatmul.mubr.bf16.gmra.mrb[0].mxu0 %v7982
      %v8126 = vpop.f32.mrb[0].mxu0
      %v8127 = vadd.f32 0.0, %v8126
      %v8128 = vpop.f32.mrb[0].mxu0
      %v8129 = vpop.f32.mrb[0].mxu0
      %v8130 = vadd.f32 0.0, %v8129
      %v8131 = vpop.f32.mrb[0].mxu0
      %8132 = vmatprep.mubr.bf16.mxu0 0
      %8133 = vmatmul.mubr.bf16.gmra.mrb[0].mxu0 %v7985
      %v8134 = vpop.f32.mrb[0].mxu0
      %v8135 = vadd.f32 0.0, %v8134
      %v8136 = vpop.f32.mrb[0].mxu0
      %v8137 = vpop.f32.mrb[0].mxu0
      %v8138 = vadd.f32 0.0, %v8137
      %v8139 = vpop.f32.mrb[0].mxu0
      %8140 = vmatprep.mubr.bf16.mxu0 0
      %8141 = vmatmul.mubr.bf16.gmra.mrb[0].mxu0 %v7988
      %v8142 = vpop.f32.mrb[0].mxu0
      %v8143 = vadd.f32 0.0, %v8142
      %v8144 = vpop.f32.mrb[0].mxu0
      %v8145 = vpop.f32.mrb[0].mxu0
      %v8146 = vadd.f32 0.0, %v8145
      %v8147 = vpop.f32.mrb[0].mxu0
      %8148 = vmatprep.mubr.bf16.mxu0 0
      %8149 = vmatmul.mubr.bf16.gmra.mrb[0].mxu0 %v7991
      %v8150 = vpop.f32.mrb[0].mxu0
      %v8151 = vadd.f32 0.0, %v8150
      %v8152 = vpop.f32.mrb[0].mxu0
      %v8153 = vpop.f32.mrb[0].mxu0
      %v8154 = vadd.f32 0.0, %v8153
      %v8155 = vpop.f32.mrb[0].mxu0
      %8156 = vdwg.mxu0
      %v8157 = vadd.f32 %v7857, %v8031
      %v8158 = vadd.f32 %v7858, %v8034
      %v8159 = vadd.f32 %v7859, %v8039
      %v8160 = vadd.f32 %v7860, %v8042
      %v8161 = vadd.f32 %v7861, %v8047
      %v8162 = vadd.f32 %v7862, %v8050
      %v8163 = vadd.f32 %v7863, %v8055
      %v8164 = vadd.f32 %v7864, %v8058
      %v8165 = vadd.f32 %v7865, %v8063
      %v8166 = vadd.f32 %v7866, %v8066
      %v8167 = vadd.f32 %v7867, %v8071
      %v8168 = vadd.f32 %v7868, %v8074
      %v8169 = vadd.f32 %v7869, %v8079
      %v8170 = vadd.f32 %v7870, %v8082
      %v8171 = vadd.f32 %v7871, %v8087
      %v8172 = vadd.f32 %v7872, %v8090
      %v8173 = vadd.f32 %v7873, %v8095
      %v8174 = vadd.f32 %v7874, %v8098
      %v8175 = vadd.f32 %v7875, %v8103
      %v8176 = vadd.f32 %v7876, %v8106
      %v8177 = vadd.f32 %v7877, %v8111
      %v8178 = vadd.f32 %v7878, %v8114
      %v8179 = vadd.f32 %v7879, %v8119
      %v8180 = vadd.f32 %v7880, %v8122
      %v8181 = vadd.f32 %v7881, %v8127
      %v8182 = vadd.f32 %v7882, %v8130
      %v8183 = vadd.f32 %v7883, %v8135
      %v8184 = vadd.f32 %v7884, %v8138
      %v8185 = vadd.f32 %v7885, %v8143
      %v8186 = vadd.f32 %v7886, %v8146
      %v8187 = vadd.f32 %v7887, %v8151
      %v8188 = vadd.f32 %v7888, %v8154
      %v8189 = vld [vmem:[%s987 + $0x2] sm:$0xff]
      %v8190 = vld [vmem:[%s987 + $0xa] sm:$0xff]
      %v8191 = vld [vmem:[%s987 + $0x1a] sm:$0xff]
      %v8192 = vld [vmem:[%s987 + $0x22] sm:$0xff]
      %v8193 = vld [vmem:[%s987 + $0x32] sm:$0xff]
      %v8194 = vld [vmem:[%s987 + $0x3a] sm:$0xff]
      %v8195 = vld [vmem:[%s987 + $0x4a] sm:$0xff]
      %v8196 = vld [vmem:[%s987 + $0x52] sm:$0xff]
      %v8197 = vld [vmem:[%s987 + $0x62] sm:$0xff]
      %v8198 = vld [vmem:[%s987 + $0x6a] sm:$0xff]
      %v8199 = vld [vmem:[%s987 + $0x7a] sm:$0xff]
      %v8200 = vld [vmem:[%s987 + $0x82] sm:$0xff]
      %v8201 = vld [vmem:[%s987 + $0x92] sm:$0xff]
      %v8202 = vld [vmem:[%s987 + $0x9a] sm:$0xff]
      %v8203 = vld [vmem:[%s987 + $0xaa] sm:$0xff]
      %v8204 = vld [vmem:[%s987 + $0xb2] sm:$0xff]
      %v8205 = vld [vmem:[%s987 + $0xc2] sm:$0xff]
      %v8206 = vld [vmem:[%s987 + $0xca] sm:$0xff]
      %v8207 = vld [vmem:[%s987 + $0xda] sm:$0xff]
      %v8208 = vld [vmem:[%s987 + $0xe2] sm:$0xff]
      %v8209 = vld [vmem:[%s987 + $0xf2] sm:$0xff]
      %v8210 = vld [vmem:[%s987 + $0xfa] sm:$0xff]
      %v8211 = vld [vmem:[%s987 + $0x10a] sm:$0xff]
      %v8212 = vld [vmem:[%s987 + $0x112] sm:$0xff]
      %v8213 = vld [vmem:[%s987 + $0x122] sm:$0xff]
      %v8214 = vld [vmem:[%s987 + $0x12a] sm:$0xff]
      %v8215 = vld [vmem:[%s987 + $0x13a] sm:$0xff]
      %v8216 = vld [vmem:[%s987 + $0x142] sm:$0xff]
      %v8217 = vld [vmem:[%s987 + $0x152] sm:$0xff]
      %v8218 = vld [vmem:[%s987 + $0x15a] sm:$0xff]
      %v8219 = vld [vmem:[%s987 + $0x16a] sm:$0xff]
      %v8220 = vld [vmem:[%s987 + $0x172] sm:$0xff]
      %v8221 = vpack.c.bf16 %v8190, %v8189
      %v8222 = vpack.c.bf16 %v8192, %v8191
      %v8223 = vpack.c.bf16 %v8194, %v8193
      %v8224 = vpack.c.bf16 %v8196, %v8195
      %v8225 = vpack.c.bf16 %v8198, %v8197
      %v8226 = vpack.c.bf16 %v8200, %v8199
      %v8227 = vpack.c.bf16 %v8202, %v8201
      %v8228 = vpack.c.bf16 %v8204, %v8203
      %v8229 = vpack.c.bf16 %v8206, %v8205
      %v8230 = vpack.c.bf16 %v8208, %v8207
      %v8231 = vpack.c.bf16 %v8210, %v8209
      %v8232 = vpack.c.bf16 %v8212, %v8211
      %v8233 = vpack.c.bf16 %v8214, %v8213
      %v8234 = vpack.c.bf16 %v8216, %v8215
      %v8235 = vpack.c.bf16 %v8218, %v8217
      %v8236 = vpack.c.bf16 %v8220, %v8219
      %s8237 = scalar_lea.vmem %s7, 40
      %v8238 = vld [vmem:[%s8237] sm:$0xf]
      %v8239 = vld [vmem:[%s8237 + $0x4] sm:$0x3]
      %v8242 = vunpack.c.l.b16 %v8238
      %v8243 = vunpack.c.l.b16 %v8239
      %v8244 = vpack.c.b16 %v8243, %v8242
      %v8246 = vsel %vm530, %v8221, 0
      %v8249 = vsel %vm530, %v8222, 0
      %v8252 = vsel %vm530, %v8223, 0
      %v8255 = vsel %vm530, %v8224, 0
      %v8258 = vsel %vm530, %v8225, 0
      %v8261 = vsel %vm530, %v8226, 0
      %v8264 = vsel %vm530, %v8227, 0
      %v8267 = vsel %vm530, %v8228, 0
      %v8270 = vsel %vm530, %v8229, 0
      %v8273 = vsel %vm530, %v8230, 0
      %v8276 = vsel %vm530, %v8231, 0
      %v8279 = vsel %vm530, %v8232, 0
      %v8282 = vsel %vm530, %v8233, 0
      %v8285 = vsel %vm530, %v8234, 0
      %v8288 = vsel %vm530, %v8235, 0
      %v8291 = vsel %vm530, %v8236, 0
      %v8294 = vsel %vm1174, %v8244, 0
      %8296 = vmatprep.subr.bf16.mxu0 0
      %8297 = vmatpush1.bf16.msra.mxu0 %v8294
      %8298 = vmatprep.subr.bf16.mxu0 0
      %8299 = vmatpush1.bf16.msra.mxu0 0
      %8300 = vmatprep.subr.bf16.mxu0 0
      %8301 = vmatpush1.bf16.msra.mxu0 0
      %8302 = vmatprep.subr.bf16.mxu0 0
      %8303 = vmatpush1.bf16.msra.mxu0 0
      %8304 = vmatprep.subr.bf16.mxu0 0
      %8305 = vmatpush1.bf16.msra.mxu0 0
      %8306 = vmatprep.subr.bf16.mxu0 0
      %8307 = vmatpush1.bf16.msra.mxu0 0
      %8308 = vmatprep.subr.bf16.mxu0 0
      %8309 = vmatpush1.bf16.msra.mxu0 0
      %8310 = vmatprep.subr.bf16.mxu0 0
      %8311 = vmatpush1.bf16.msra.mxu0 0
      %8312 = vmatprep.subr.bf16.mxu0 0
      %8313 = vmatpush1.bf16.msra.mxu0 0
      %8314 = vmatprep.subr.bf16.mxu0 0
      %8315 = vmatpush1.bf16.msra.mxu0 0
      %8316 = vmatprep.subr.bf16.mxu0 0
      %8317 = vmatpush1.bf16.msra.mxu0 0
      %8318 = vmatprep.subr.bf16.mxu0 0
      %8319 = vmatpush1.bf16.msra.mxu0 0
      %8320 = vmatprep.subr.bf16.mxu0 0
      %8321 = vmatpush1.bf16.msra.mxu0 0
      %8322 = vmatprep.subr.bf16.mxu0 0
      %8323 = vmatpush1.bf16.msra.mxu0 0
      %8324 = vmatprep.subr.bf16.mxu0 0
      %8325 = vmatpush1.bf16.msra.mxu0 0
      %8326 = vmatprep.subr.bf16.mxu0 0
      %8327 = vmatpush1.bf16.msra.mxu0 0
      %8328 = vmatprep.mubr.bf16.mxu0 0
      %8329 = vmatmul.mubr.bf16.gmra.mrb[0].mxu0 %v8246
      %v8330 = vpop.f32.mrb[0].mxu0
      %v8331 = vadd.f32 0.0, %v8330
      %v8332 = vpop.f32.mrb[0].mxu0
      %v8333 = vpop.f32.mrb[0].mxu0
      %v8334 = vadd.f32 0.0, %v8333
      %v8335 = vpop.f32.mrb[0].mxu0
      %8336 = vmatprep.mubr.bf16.mxu0 0
      %8337 = vmatmul.mubr.bf16.gmra.mrb[0].mxu0 %v8249
      %v8338 = vpop.f32.mrb[0].mxu0
      %v8339 = vadd.f32 0.0, %v8338
      %v8340 = vpop.f32.mrb[0].mxu0
      %v8341 = vpop.f32.mrb[0].mxu0
      %v8342 = vadd.f32 0.0, %v8341
      %v8343 = vpop.f32.mrb[0].mxu0
      %8344 = vmatprep.mubr.bf16.mxu0 0
      %8345 = vmatmul.mubr.bf16.gmra.mrb[0].mxu0 %v8252
      %v8346 = vpop.f32.mrb[0].mxu0
      %v8347 = vadd.f32 0.0, %v8346
      %v8348 = vpop.f32.mrb[0].mxu0
      %v8349 = vpop.f32.mrb[0].mxu0
      %v8350 = vadd.f32 0.0, %v8349
      %v8351 = vpop.f32.mrb[0].mxu0
      %8352 = vmatprep.mubr.bf16.mxu0 0
      %8353 = vmatmul.mubr.bf16.gmra.mrb[0].mxu0 %v8255
      %v8354 = vpop.f32.mrb[0].mxu0
      %v8355 = vadd.f32 0.0, %v8354
      %v8356 = vpop.f32.mrb[0].mxu0
      %v8357 = vpop.f32.mrb[0].mxu0
      %v8358 = vadd.f32 0.0, %v8357
      %v8359 = vpop.f32.mrb[0].mxu0
      %8360 = vmatprep.mubr.bf16.mxu0 0
      %8361 = vmatmul.mubr.bf16.gmra.mrb[0].mxu0 %v8258
      %v8362 = vpop.f32.mrb[0].mxu0
      %v8363 = vadd.f32 0.0, %v8362
      %v8364 = vpop.f32.mrb[0].mxu0
      %v8365 = vpop.f32.mrb[0].mxu0
      %v8366 = vadd.f32 0.0, %v8365
      %v8367 = vpop.f32.mrb[0].mxu0
      %8368 = vmatprep.mubr.bf16.mxu0 0
      %8369 = vmatmul.mubr.bf16.gmra.mrb[0].mxu0 %v8261
      %v8370 = vpop.f32.mrb[0].mxu0
      %v8371 = vadd.f32 0.0, %v8370
      %v8372 = vpop.f32.mrb[0].mxu0
      %v8373 = vpop.f32.mrb[0].mxu0
      %v8374 = vadd.f32 0.0, %v8373
      %v8375 = vpop.f32.mrb[0].mxu0
      %8376 = vmatprep.mubr.bf16.mxu0 0
      %8377 = vmatmul.mubr.bf16.gmra.mrb[0].mxu0 %v8264
      %v8378 = vpop.f32.mrb[0].mxu0
      %v8379 = vadd.f32 0.0, %v8378
      %v8380 = vpop.f32.mrb[0].mxu0
      %v8381 = vpop.f32.mrb[0].mxu0
      %v8382 = vadd.f32 0.0, %v8381
      %v8383 = vpop.f32.mrb[0].mxu0
      %8384 = vmatprep.mubr.bf16.mxu0 0
      %8385 = vmatmul.mubr.bf16.gmra.mrb[0].mxu0 %v8267
      %v8386 = vpop.f32.mrb[0].mxu0
      %v8387 = vadd.f32 0.0, %v8386
      %v8388 = vpop.f32.mrb[0].mxu0
      %v8389 = vpop.f32.mrb[0].mxu0
      %v8390 = vadd.f32 0.0, %v8389
      %v8391 = vpop.f32.mrb[0].mxu0
      %8392 = vmatprep.mubr.bf16.mxu0 0
      %8393 = vmatmul.mubr.bf16.gmra.mrb[0].mxu0 %v8270
      %v8394 = vpop.f32.mrb[0].mxu0
      %v8395 = vadd.f32 0.0, %v8394
      %v8396 = vpop.f32.mrb[0].mxu0
      %v8397 = vpop.f32.mrb[0].mxu0
      %v8398 = vadd.f32 0.0, %v8397
      %v8399 = vpop.f32.mrb[0].mxu0
      %8400 = vmatprep.mubr.bf16.mxu0 0
      %8401 = vmatmul.mubr.bf16.gmra.mrb[0].mxu0 %v8273
      %v8402 = vpop.f32.mrb[0].mxu0
      %v8403 = vadd.f32 0.0, %v8402
      %v8404 = vpop.f32.mrb[0].mxu0
      %v8405 = vpop.f32.mrb[0].mxu0
      %v8406 = vadd.f32 0.0, %v8405
      %v8407 = vpop.f32.mrb[0].mxu0
      %8408 = vmatprep.mubr.bf16.mxu0 0
      %8409 = vmatmul.mubr.bf16.gmra.mrb[0].mxu0 %v8276
      %v8410 = vpop.f32.mrb[0].mxu0
      %v8411 = vadd.f32 0.0, %v8410
      %v8412 = vpop.f32.mrb[0].mxu0
      %v8413 = vpop.f32.mrb[0].mxu0
      %v8414 = vadd.f32 0.0, %v8413
      %v8415 = vpop.f32.mrb[0].mxu0
      %8416 = vmatprep.mubr.bf16.mxu0 0
      %8417 = vmatmul.mubr.bf16.gmra.mrb[0].mxu0 %v8279
      %v8418 = vpop.f32.mrb[0].mxu0
      %v8419 = vadd.f32 0.0, %v8418
      %v8420 = vpop.f32.mrb[0].mxu0
      %v8421 = vpop.f32.mrb[0].mxu0
      %v8422 = vadd.f32 0.0, %v8421
      %v8423 = vpop.f32.mrb[0].mxu0
      %8424 = vmatprep.mubr.bf16.mxu0 0
      %8425 = vmatmul.mubr.bf16.gmra.mrb[0].mxu0 %v8282
      %v8426 = vpop.f32.mrb[0].mxu0
      %v8427 = vadd.f32 0.0, %v8426
      %v8428 = vpop.f32.mrb[0].mxu0
      %v8429 = vpop.f32.mrb[0].mxu0
      %v8430 = vadd.f32 0.0, %v8429
      %v8431 = vpop.f32.mrb[0].mxu0
      %8432 = vmatprep.mubr.bf16.mxu0 0
      %8433 = vmatmul.mubr.bf16.gmra.mrb[0].mxu0 %v8285
      %v8434 = vpop.f32.mrb[0].mxu0
      %v8435 = vadd.f32 0.0, %v8434
      %v8436 = vpop.f32.mrb[0].mxu0
      %v8437 = vpop.f32.mrb[0].mxu0
      %v8438 = vadd.f32 0.0, %v8437
      %v8439 = vpop.f32.mrb[0].mxu0
      %8440 = vmatprep.mubr.bf16.mxu0 0
      %8441 = vmatmul.mubr.bf16.gmra.mrb[0].mxu0 %v8288
      %v8442 = vpop.f32.mrb[0].mxu0
      %v8443 = vadd.f32 0.0, %v8442
      %v8444 = vpop.f32.mrb[0].mxu0
      %v8445 = vpop.f32.mrb[0].mxu0
      %v8446 = vadd.f32 0.0, %v8445
      %v8447 = vpop.f32.mrb[0].mxu0
      %8448 = vmatprep.mubr.bf16.mxu0 0
      %8449 = vmatmul.mubr.bf16.gmra.mrb[0].mxu0 %v8291
      %v8450 = vpop.f32.mrb[0].mxu0
      %v8451 = vadd.f32 0.0, %v8450
      %v8452 = vpop.f32.mrb[0].mxu0
      %v8453 = vpop.f32.mrb[0].mxu0
      %v8454 = vadd.f32 0.0, %v8453
      %v8455 = vpop.f32.mrb[0].mxu0
      %8456 = vdwg.mxu0
      %v8457 = vadd.f32 %v8157, %v8331
      %v8458 = vadd.f32 %v8158, %v8334
      %v8459 = vadd.f32 %v8159, %v8339
      %v8460 = vadd.f32 %v8160, %v8342
      %v8461 = vadd.f32 %v8161, %v8347
      %v8462 = vadd.f32 %v8162, %v8350
      %v8463 = vadd.f32 %v8163, %v8355
      %v8464 = vadd.f32 %v8164, %v8358
      %v8465 = vadd.f32 %v8165, %v8363
      %v8466 = vadd.f32 %v8166, %v8366
      %v8467 = vadd.f32 %v8167, %v8371
      %v8468 = vadd.f32 %v8168, %v8374
      %v8469 = vadd.f32 %v8169, %v8379
      %v8470 = vadd.f32 %v8170, %v8382
      %v8471 = vadd.f32 %v8171, %v8387
      %v8472 = vadd.f32 %v8172, %v8390
      %v8473 = vadd.f32 %v8173, %v8395
      %v8474 = vadd.f32 %v8174, %v8398
      %v8475 = vadd.f32 %v8175, %v8403
      %v8476 = vadd.f32 %v8176, %v8406
      %v8477 = vadd.f32 %v8177, %v8411
      %v8478 = vadd.f32 %v8178, %v8414
      %v8479 = vadd.f32 %v8179, %v8419
      %v8480 = vadd.f32 %v8180, %v8422
      %v8481 = vadd.f32 %v8181, %v8427
      %v8482 = vadd.f32 %v8182, %v8430
      %v8483 = vadd.f32 %v8183, %v8435
      %v8484 = vadd.f32 %v8184, %v8438
      %v8485 = vadd.f32 %v8185, %v8443
      %v8486 = vadd.f32 %v8186, %v8446
      %v8487 = vadd.f32 %v8187, %v8451
      %v8488 = vadd.f32 %v8188, %v8454
      %v8489 = vld [vmem:[%s2756] sm:$0xff]
      %v8490 = vld [vmem:[%s2756 + $0x8] sm:$0xff]
      %v8491 = vld [vmem:[%s2756 + $0x18] sm:$0xff]
      %v8492 = vld [vmem:[%s2756 + $0x20] sm:$0xff]
      %v8493 = vld [vmem:[%s2756 + $0x30] sm:$0xff]
      %v8494 = vld [vmem:[%s2756 + $0x38] sm:$0xff]
      %v8495 = vld [vmem:[%s2756 + $0x48] sm:$0xff]
      %v8496 = vld [vmem:[%s2756 + $0x50] sm:$0xff]
      %v8497 = vld [vmem:[%s2756 + $0x60] sm:$0xff]
      %v8498 = vld [vmem:[%s2756 + $0x68] sm:$0xff]
      %v8499 = vld [vmem:[%s2756 + $0x78] sm:$0xff]
      %v8500 = vld [vmem:[%s2756 + $0x80] sm:$0xff]
      %v8501 = vld [vmem:[%s2756 + $0x90] sm:$0xff]
      %v8502 = vld [vmem:[%s2756 + $0x98] sm:$0xff]
      %v8503 = vld [vmem:[%s2756 + $0xa8] sm:$0xff]
      %v8504 = vld [vmem:[%s2756 + $0xb0] sm:$0xff]
      %v8505 = vld [vmem:[%s2756 + $0xc0] sm:$0xff]
      %v8506 = vld [vmem:[%s2756 + $0xc8] sm:$0xff]
      %v8507 = vld [vmem:[%s2756 + $0xd8] sm:$0xff]
      %v8508 = vld [vmem:[%s2756 + $0xe0] sm:$0xff]
      %v8509 = vld [vmem:[%s2756 + $0xf0] sm:$0xff]
      %v8510 = vld [vmem:[%s2756 + $0xf8] sm:$0xff]
      %v8511 = vld [vmem:[%s2756 + $0x108] sm:$0xff]
      %v8512 = vld [vmem:[%s2756 + $0x110] sm:$0xff]
      %v8513 = vld [vmem:[%s2756 + $0x120] sm:$0xff]
      %v8514 = vld [vmem:[%s2756 + $0x128] sm:$0xff]
      %v8515 = vld [vmem:[%s2756 + $0x138] sm:$0xff]
      %v8516 = vld [vmem:[%s2756 + $0x140] sm:$0xff]
      %v8517 = vld [vmem:[%s2756 + $0x150] sm:$0xff]
      %v8518 = vld [vmem:[%s2756 + $0x158] sm:$0xff]
      %v8519 = vld [vmem:[%s2756 + $0x168] sm:$0xff]
      %v8520 = vld [vmem:[%s2756 + $0x170] sm:$0xff]
      %v8521 = vpack.c.bf16 %v8490, %v8489
      %v8522 = vpack.c.bf16 %v8492, %v8491
      %v8523 = vpack.c.bf16 %v8494, %v8493
      %v8524 = vpack.c.bf16 %v8496, %v8495
      %v8525 = vpack.c.bf16 %v8498, %v8497
      %v8526 = vpack.c.bf16 %v8500, %v8499
      %v8527 = vpack.c.bf16 %v8502, %v8501
      %v8528 = vpack.c.bf16 %v8504, %v8503
      %v8529 = vpack.c.bf16 %v8506, %v8505
      %v8530 = vpack.c.bf16 %v8508, %v8507
      %v8531 = vpack.c.bf16 %v8510, %v8509
      %v8532 = vpack.c.bf16 %v8512, %v8511
      %v8533 = vpack.c.bf16 %v8514, %v8513
      %v8534 = vpack.c.bf16 %v8516, %v8515
      %v8535 = vpack.c.bf16 %v8518, %v8517
      %v8536 = vpack.c.bf16 %v8520, %v8519
      %s8537 = scalar_lea.vmem %s7, 48
      %v8538 = vld [vmem:[%s8537] sm:$0xf]
      %v8539 = vld [vmem:[%s8537 + $0x4] sm:$0x3]
      %v8542 = vunpack.c.l.b16 %v8538
      %v8543 = vunpack.c.l.b16 %v8539
      %v8544 = vpack.c.b16 %v8543, %v8542
      %v8546 = vsel %vm530, %v8521, 0
      %v8549 = vsel %vm530, %v8522, 0
      %v8552 = vsel %vm530, %v8523, 0
      %v8555 = vsel %vm530, %v8524, 0
      %v8558 = vsel %vm530, %v8525, 0
      %v8561 = vsel %vm530, %v8526, 0
      %v8564 = vsel %vm530, %v8527, 0
      %v8567 = vsel %vm530, %v8528, 0
      %v8570 = vsel %vm530, %v8529, 0
      %v8573 = vsel %vm530, %v8530, 0
      %v8576 = vsel %vm530, %v8531, 0
      %v8579 = vsel %vm530, %v8532, 0
      %v8582 = vsel %vm530, %v8533, 0
      %v8585 = vsel %vm530, %v8534, 0
      %v8588 = vsel %vm530, %v8535, 0
      %v8591 = vsel %vm530, %v8536, 0
      %v8594 = vsel %vm1174, %v8544, 0
      %8596 = vmatprep.subr.bf16.mxu0 0
      %8597 = vmatpush1.bf16.msra.mxu0 %v8594
      %8598 = vmatprep.subr.bf16.mxu0 0
      %8599 = vmatpush1.bf16.msra.mxu0 0
      %8600 = vmatprep.subr.bf16.mxu0 0
      %8601 = vmatpush1.bf16.msra.mxu0 0
      %8602 = vmatprep.subr.bf16.mxu0 0
      %8603 = vmatpush1.bf16.msra.mxu0 0
      %8604 = vmatprep.subr.bf16.mxu0 0
      %8605 = vmatpush1.bf16.msra.mxu0 0
      %8606 = vmatprep.subr.bf16.mxu0 0
      %8607 = vmatpush1.bf16.msra.mxu0 0
      %8608 = vmatprep.subr.bf16.mxu0 0
      %8609 = vmatpush1.bf16.msra.mxu0 0
      %8610 = vmatprep.subr.bf16.mxu0 0
      %8611 = vmatpush1.bf16.msra.mxu0 0
      %8612 = vmatprep.subr.bf16.mxu0 0
      %8613 = vmatpush1.bf16.msra.mxu0 0
      %8614 = vmatprep.subr.bf16.mxu0 0
      %8615 = vmatpush1.bf16.msra.mxu0 0
      %8616 = vmatprep.subr.bf16.mxu0 0
      %8617 = vmatpush1.bf16.msra.mxu0 0
      %8618 = vmatprep.subr.bf16.mxu0 0
      %8619 = vmatpush1.bf16.msra.mxu0 0
      %8620 = vmatprep.subr.bf16.mxu0 0
      %8621 = vmatpush1.bf16.msra.mxu0 0
      %8622 = vmatprep.subr.bf16.mxu0 0
      %8623 = vmatpush1.bf16.msra.mxu0 0
      %8624 = vmatprep.subr.bf16.mxu0 0
      %8625 = vmatpush1.bf16.msra.mxu0 0
      %8626 = vmatprep.subr.bf16.mxu0 0
      %8627 = vmatpush1.bf16.msra.mxu0 0
      %8628 = vmatprep.mubr.bf16.mxu0 0
      %8629 = vmatmul.mubr.bf16.gmra.mrb[0].mxu0 %v8546
      %v8630 = vpop.f32.mrb[0].mxu0
      %v8631 = vadd.f32 0.0, %v8630
      %v8632 = vpop.f32.mrb[0].mxu0
      %v8633 = vpop.f32.mrb[0].mxu0
      %v8634 = vadd.f32 0.0, %v8633
      %v8635 = vpop.f32.mrb[0].mxu0
      %8636 = vmatprep.mubr.bf16.mxu0 0
      %8637 = vmatmul.mubr.bf16.gmra.mrb[0].mxu0 %v8549
      %v8638 = vpop.f32.mrb[0].mxu0
      %v8639 = vadd.f32 0.0, %v8638
      %v8640 = vpop.f32.mrb[0].mxu0
      %v8641 = vpop.f32.mrb[0].mxu0
      %v8642 = vadd.f32 0.0, %v8641
      %v8643 = vpop.f32.mrb[0].mxu0
      %8644 = vmatprep.mubr.bf16.mxu0 0
      %8645 = vmatmul.mubr.bf16.gmra.mrb[0].mxu0 %v8552
      %v8646 = vpop.f32.mrb[0].mxu0
      %v8647 = vadd.f32 0.0, %v8646
      %v8648 = vpop.f32.mrb[0].mxu0
      %v8649 = vpop.f32.mrb[0].mxu0
      %v8650 = vadd.f32 0.0, %v8649
      %v8651 = vpop.f32.mrb[0].mxu0
      %8652 = vmatprep.mubr.bf16.mxu0 0
      %8653 = vmatmul.mubr.bf16.gmra.mrb[0].mxu0 %v8555
      %v8654 = vpop.f32.mrb[0].mxu0
      %v8655 = vadd.f32 0.0, %v8654
      %v8656 = vpop.f32.mrb[0].mxu0
      %v8657 = vpop.f32.mrb[0].mxu0
      %v8658 = vadd.f32 0.0, %v8657
      %v8659 = vpop.f32.mrb[0].mxu0
      %8660 = vmatprep.mubr.bf16.mxu0 0
      %8661 = vmatmul.mubr.bf16.gmra.mrb[0].mxu0 %v8558
      %v8662 = vpop.f32.mrb[0].mxu0
      %v8663 = vadd.f32 0.0, %v8662
      %v8664 = vpop.f32.mrb[0].mxu0
      %v8665 = vpop.f32.mrb[0].mxu0
      %v8666 = vadd.f32 0.0, %v8665
      %v8667 = vpop.f32.mrb[0].mxu0
      %8668 = vmatprep.mubr.bf16.mxu0 0
      %8669 = vmatmul.mubr.bf16.gmra.mrb[0].mxu0 %v8561
      %v8670 = vpop.f32.mrb[0].mxu0
      %v8671 = vadd.f32 0.0, %v8670
      %v8672 = vpop.f32.mrb[0].mxu0
      %v8673 = vpop.f32.mrb[0].mxu0
      %v8674 = vadd.f32 0.0, %v8673
      %v8675 = vpop.f32.mrb[0].mxu0
      %8676 = vmatprep.mubr.bf16.mxu0 0
      %8677 = vmatmul.mubr.bf16.gmra.mrb[0].mxu0 %v8564
      %v8678 = vpop.f32.mrb[0].mxu0
      %v8679 = vadd.f32 0.0, %v8678
      %v8680 = vpop.f32.mrb[0].mxu0
      %v8681 = vpop.f32.mrb[0].mxu0
      %v8682 = vadd.f32 0.0, %v8681
      %v8683 = vpop.f32.mrb[0].mxu0
      %8684 = vmatprep.mubr.bf16.mxu0 0
      %8685 = vmatmul.mubr.bf16.gmra.mrb[0].mxu0 %v8567
      %v8686 = vpop.f32.mrb[0].mxu0
      %v8687 = vadd.f32 0.0, %v8686
      %v8688 = vpop.f32.mrb[0].mxu0
      %v8689 = vpop.f32.mrb[0].mxu0
      %v8690 = vadd.f32 0.0, %v8689
      %v8691 = vpop.f32.mrb[0].mxu0
      %8692 = vmatprep.mubr.bf16.mxu0 0
      %8693 = vmatmul.mubr.bf16.gmra.mrb[0].mxu0 %v8570
      %v8694 = vpop.f32.mrb[0].mxu0
      %v8695 = vadd.f32 0.0, %v8694
      %v8696 = vpop.f32.mrb[0].mxu0
      %v8697 = vpop.f32.mrb[0].mxu0
      %v8698 = vadd.f32 0.0, %v8697
      %v8699 = vpop.f32.mrb[0].mxu0
      %8700 = vmatprep.mubr.bf16.mxu0 0
      %8701 = vmatmul.mubr.bf16.gmra.mrb[0].mxu0 %v8573
      %v8702 = vpop.f32.mrb[0].mxu0
      %v8703 = vadd.f32 0.0, %v8702
      %v8704 = vpop.f32.mrb[0].mxu0
      %v8705 = vpop.f32.mrb[0].mxu0
      %v8706 = vadd.f32 0.0, %v8705
      %v8707 = vpop.f32.mrb[0].mxu0
      %8708 = vmatprep.mubr.bf16.mxu0 0
      %8709 = vmatmul.mubr.bf16.gmra.mrb[0].mxu0 %v8576
      %v8710 = vpop.f32.mrb[0].mxu0
      %v8711 = vadd.f32 0.0, %v8710
      %v8712 = vpop.f32.mrb[0].mxu0
      %v8713 = vpop.f32.mrb[0].mxu0
      %v8714 = vadd.f32 0.0, %v8713
      %v8715 = vpop.f32.mrb[0].mxu0
      %8716 = vmatprep.mubr.bf16.mxu0 0
      %8717 = vmatmul.mubr.bf16.gmra.mrb[0].mxu0 %v8579
      %v8718 = vpop.f32.mrb[0].mxu0
      %v8719 = vadd.f32 0.0, %v8718
      %v8720 = vpop.f32.mrb[0].mxu0
      %v8721 = vpop.f32.mrb[0].mxu0
      %v8722 = vadd.f32 0.0, %v8721
      %v8723 = vpop.f32.mrb[0].mxu0
      %8724 = vmatprep.mubr.bf16.mxu0 0
      %8725 = vmatmul.mubr.bf16.gmra.mrb[0].mxu0 %v8582
      %v8726 = vpop.f32.mrb[0].mxu0
      %v8727 = vadd.f32 0.0, %v8726
      %v8728 = vpop.f32.mrb[0].mxu0
      %v8729 = vpop.f32.mrb[0].mxu0
      %v8730 = vadd.f32 0.0, %v8729
      %v8731 = vpop.f32.mrb[0].mxu0
      %8732 = vmatprep.mubr.bf16.mxu0 0
      %8733 = vmatmul.mubr.bf16.gmra.mrb[0].mxu0 %v8585
      %v8734 = vpop.f32.mrb[0].mxu0
      %v8735 = vadd.f32 0.0, %v8734
      %v8736 = vpop.f32.mrb[0].mxu0
      %v8737 = vpop.f32.mrb[0].mxu0
      %v8738 = vadd.f32 0.0, %v8737
      %v8739 = vpop.f32.mrb[0].mxu0
      %8740 = vmatprep.mubr.bf16.mxu0 0
      %8741 = vmatmul.mubr.bf16.gmra.mrb[0].mxu0 %v8588
      %v8742 = vpop.f32.mrb[0].mxu0
      %v8743 = vadd.f32 0.0, %v8742
      %v8744 = vpop.f32.mrb[0].mxu0
      %v8745 = vpop.f32.mrb[0].mxu0
      %v8746 = vadd.f32 0.0, %v8745
      %v8747 = vpop.f32.mrb[0].mxu0
      %8748 = vmatprep.mubr.bf16.mxu0 0
      %8749 = vmatmul.mubr.bf16.gmra.mrb[0].mxu0 %v8591
      %v8750 = vpop.f32.mrb[0].mxu0
      %v8751 = vadd.f32 0.0, %v8750
      %v8752 = vpop.f32.mrb[0].mxu0
      %v8753 = vpop.f32.mrb[0].mxu0
      %v8754 = vadd.f32 0.0, %v8753
      %v8755 = vpop.f32.mrb[0].mxu0
      %8756 = vdwg.mxu0
      %v8757 = vadd.f32 %v8457, %v8631
      %v8758 = vadd.f32 %v8458, %v8634
      %v8759 = vadd.f32 %v8459, %v8639
      %v8760 = vadd.f32 %v8460, %v8642
      %v8761 = vadd.f32 %v8461, %v8647
      %v8762 = vadd.f32 %v8462, %v8650
      %v8763 = vadd.f32 %v8463, %v8655
      %v8764 = vadd.f32 %v8464, %v8658
      %v8765 = vadd.f32 %v8465, %v8663
      %v8766 = vadd.f32 %v8466, %v8666
      %v8767 = vadd.f32 %v8467, %v8671
      %v8768 = vadd.f32 %v8468, %v8674
      %v8769 = vadd.f32 %v8469, %v8679
      %v8770 = vadd.f32 %v8470, %v8682
      %v8771 = vadd.f32 %v8471, %v8687
      %v8772 = vadd.f32 %v8472, %v8690
      %v8773 = vadd.f32 %v8473, %v8695
      %v8774 = vadd.f32 %v8474, %v8698
      %v8775 = vadd.f32 %v8475, %v8703
      %v8776 = vadd.f32 %v8476, %v8706
      %v8777 = vadd.f32 %v8477, %v8711
      %v8778 = vadd.f32 %v8478, %v8714
      %v8779 = vadd.f32 %v8479, %v8719
      %v8780 = vadd.f32 %v8480, %v8722
      %v8781 = vadd.f32 %v8481, %v8727
      %v8782 = vadd.f32 %v8482, %v8730
      %v8783 = vadd.f32 %v8483, %v8735
      %v8784 = vadd.f32 %v8484, %v8738
      %v8785 = vadd.f32 %v8485, %v8743
      %v8786 = vadd.f32 %v8486, %v8746
      %v8787 = vadd.f32 %v8487, %v8751
      %v8788 = vadd.f32 %v8488, %v8754
      %v8789 = vld [vmem:[%s2756 + $0x1] sm:$0xff]
      %v8790 = vld [vmem:[%s2756 + $0x9] sm:$0xff]
      %v8791 = vld [vmem:[%s2756 + $0x19] sm:$0xff]
      %v8792 = vld [vmem:[%s2756 + $0x21] sm:$0xff]
      %v8793 = vld [vmem:[%s2756 + $0x31] sm:$0xff]
      %v8794 = vld [vmem:[%s2756 + $0x39] sm:$0xff]
      %v8795 = vld [vmem:[%s2756 + $0x49] sm:$0xff]
      %v8796 = vld [vmem:[%s2756 + $0x51] sm:$0xff]
      %v8797 = vld [vmem:[%s2756 + $0x61] sm:$0xff]
      %v8798 = vld [vmem:[%s2756 + $0x69] sm:$0xff]
      %v8799 = vld [vmem:[%s2756 + $0x79] sm:$0xff]
      %v8800 = vld [vmem:[%s2756 + $0x81] sm:$0xff]
      %v8801 = vld [vmem:[%s2756 + $0x91] sm:$0xff]
      %v8802 = vld [vmem:[%s2756 + $0x99] sm:$0xff]
      %v8803 = vld [vmem:[%s2756 + $0xa9] sm:$0xff]
      %v8804 = vld [vmem:[%s2756 + $0xb1] sm:$0xff]
      %v8805 = vld [vmem:[%s2756 + $0xc1] sm:$0xff]
      %v8806 = vld [vmem:[%s2756 + $0xc9] sm:$0xff]
      %v8807 = vld [vmem:[%s2756 + $0xd9] sm:$0xff]
      %v8808 = vld [vmem:[%s2756 + $0xe1] sm:$0xff]
      %v8809 = vld [vmem:[%s2756 + $0xf1] sm:$0xff]
      %v8810 = vld [vmem:[%s2756 + $0xf9] sm:$0xff]
      %v8811 = vld [vmem:[%s2756 + $0x109] sm:$0xff]
      %v8812 = vld [vmem:[%s2756 + $0x111] sm:$0xff]
      %v8813 = vld [vmem:[%s2756 + $0x121] sm:$0xff]
      %v8814 = vld [vmem:[%s2756 + $0x129] sm:$0xff]
      %v8815 = vld [vmem:[%s2756 + $0x139] sm:$0xff]
      %v8816 = vld [vmem:[%s2756 + $0x141] sm:$0xff]
      %v8817 = vld [vmem:[%s2756 + $0x151] sm:$0xff]
      %v8818 = vld [vmem:[%s2756 + $0x159] sm:$0xff]
      %v8819 = vld [vmem:[%s2756 + $0x169] sm:$0xff]
      %v8820 = vld [vmem:[%s2756 + $0x171] sm:$0xff]
      %v8821 = vpack.c.bf16 %v8790, %v8789
      %v8822 = vpack.c.bf16 %v8792, %v8791
      %v8823 = vpack.c.bf16 %v8794, %v8793
      %v8824 = vpack.c.bf16 %v8796, %v8795
      %v8825 = vpack.c.bf16 %v8798, %v8797
      %v8826 = vpack.c.bf16 %v8800, %v8799
      %v8827 = vpack.c.bf16 %v8802, %v8801
      %v8828 = vpack.c.bf16 %v8804, %v8803
      %v8829 = vpack.c.bf16 %v8806, %v8805
      %v8830 = vpack.c.bf16 %v8808, %v8807
      %v8831 = vpack.c.bf16 %v8810, %v8809
      %v8832 = vpack.c.bf16 %v8812, %v8811
      %v8833 = vpack.c.bf16 %v8814, %v8813
      %v8834 = vpack.c.bf16 %v8816, %v8815
      %v8835 = vpack.c.bf16 %v8818, %v8817
      %v8836 = vpack.c.bf16 %v8820, %v8819
      %s8837 = scalar_lea.vmem %s7, 56
      %v8838 = vld [vmem:[%s8837] sm:$0xf]
      %v8839 = vld [vmem:[%s8837 + $0x4] sm:$0x3]
      %v8842 = vunpack.c.l.b16 %v8838
      %v8843 = vunpack.c.l.b16 %v8839
      %v8844 = vpack.c.b16 %v8843, %v8842
      %v8846 = vsel %vm530, %v8821, 0
      %v8849 = vsel %vm530, %v8822, 0
      %v8852 = vsel %vm530, %v8823, 0
      %v8855 = vsel %vm530, %v8824, 0
      %v8858 = vsel %vm530, %v8825, 0
      %v8861 = vsel %vm530, %v8826, 0
      %v8864 = vsel %vm530, %v8827, 0
      %v8867 = vsel %vm530, %v8828, 0
      %v8870 = vsel %vm530, %v8829, 0
      %v8873 = vsel %vm530, %v8830, 0
      %v8876 = vsel %vm530, %v8831, 0
      %v8879 = vsel %vm530, %v8832, 0
      %v8882 = vsel %vm530, %v8833, 0
      %v8885 = vsel %vm530, %v8834, 0
      %v8888 = vsel %vm530, %v8835, 0
      %v8891 = vsel %vm530, %v8836, 0
      %v8894 = vsel %vm1174, %v8844, 0
      %8896 = vmatprep.subr.bf16.mxu0 0
      %8897 = vmatpush1.bf16.msra.mxu0 %v8894
      %8898 = vmatprep.subr.bf16.mxu0 0
      %8899 = vmatpush1.bf16.msra.mxu0 0
      %8900 = vmatprep.subr.bf16.mxu0 0
      %8901 = vmatpush1.bf16.msra.mxu0 0
      %8902 = vmatprep.subr.bf16.mxu0 0
      %8903 = vmatpush1.bf16.msra.mxu0 0
      %8904 = vmatprep.subr.bf16.mxu0 0
      %8905 = vmatpush1.bf16.msra.mxu0 0
      %8906 = vmatprep.subr.bf16.mxu0 0
      %8907 = vmatpush1.bf16.msra.mxu0 0
      %8908 = vmatprep.subr.bf16.mxu0 0
      %8909 = vmatpush1.bf16.msra.mxu0 0
      %8910 = vmatprep.subr.bf16.mxu0 0
      %8911 = vmatpush1.bf16.msra.mxu0 0
      %8912 = vmatprep.subr.bf16.mxu0 0
      %8913 = vmatpush1.bf16.msra.mxu0 0
      %8914 = vmatprep.subr.bf16.mxu0 0
      %8915 = vmatpush1.bf16.msra.mxu0 0
      %8916 = vmatprep.subr.bf16.mxu0 0
      %8917 = vmatpush1.bf16.msra.mxu0 0
      %8918 = vmatprep.subr.bf16.mxu0 0
      %8919 = vmatpush1.bf16.msra.mxu0 0
      %8920 = vmatprep.subr.bf16.mxu0 0
      %8921 = vmatpush1.bf16.msra.mxu0 0
      %8922 = vmatprep.subr.bf16.mxu0 0
      %8923 = vmatpush1.bf16.msra.mxu0 0
      %8924 = vmatprep.subr.bf16.mxu0 0
      %8925 = vmatpush1.bf16.msra.mxu0 0
      %8926 = vmatprep.subr.bf16.mxu0 0
      %8927 = vmatpush1.bf16.msra.mxu0 0
      %8928 = vmatprep.mubr.bf16.mxu0 0
      %8929 = vmatmul.mubr.bf16.gmra.mrb[0].mxu0 %v8846
      %v8930 = vpop.f32.mrb[0].mxu0
      %v8931 = vadd.f32 0.0, %v8930
      %v8932 = vpop.f32.mrb[0].mxu0
      %v8933 = vpop.f32.mrb[0].mxu0
      %v8934 = vadd.f32 0.0, %v8933
      %v8935 = vpop.f32.mrb[0].mxu0
      %8936 = vmatprep.mubr.bf16.mxu0 0
      %8937 = vmatmul.mubr.bf16.gmra.mrb[0].mxu0 %v8849
      %v8938 = vpop.f32.mrb[0].mxu0
      %v8939 = vadd.f32 0.0, %v8938
      %v8940 = vpop.f32.mrb[0].mxu0
      %v8941 = vpop.f32.mrb[0].mxu0
      %v8942 = vadd.f32 0.0, %v8941
      %v8943 = vpop.f32.mrb[0].mxu0
      %8944 = vmatprep.mubr.bf16.mxu0 0
      %8945 = vmatmul.mubr.bf16.gmra.mrb[0].mxu0 %v8852
      %v8946 = vpop.f32.mrb[0].mxu0
      %v8947 = vadd.f32 0.0, %v8946
      %v8948 = vpop.f32.mrb[0].mxu0
      %v8949 = vpop.f32.mrb[0].mxu0
      %v8950 = vadd.f32 0.0, %v8949
      %v8951 = vpop.f32.mrb[0].mxu0
      %8952 = vmatprep.mubr.bf16.mxu0 0
      %8953 = vmatmul.mubr.bf16.gmra.mrb[0].mxu0 %v8855
      %v8954 = vpop.f32.mrb[0].mxu0
      %v8955 = vadd.f32 0.0, %v8954
      %v8956 = vpop.f32.mrb[0].mxu0
      %v8957 = vpop.f32.mrb[0].mxu0
      %v8958 = vadd.f32 0.0, %v8957
      %v8959 = vpop.f32.mrb[0].mxu0
      %8960 = vmatprep.mubr.bf16.mxu0 0
      %8961 = vmatmul.mubr.bf16.gmra.mrb[0].mxu0 %v8858
      %v8962 = vpop.f32.mrb[0].mxu0
      %v8963 = vadd.f32 0.0, %v8962
      %v8964 = vpop.f32.mrb[0].mxu0
      %v8965 = vpop.f32.mrb[0].mxu0
      %v8966 = vadd.f32 0.0, %v8965
      %v8967 = vpop.f32.mrb[0].mxu0
      %8968 = vmatprep.mubr.bf16.mxu0 0
      %8969 = vmatmul.mubr.bf16.gmra.mrb[0].mxu0 %v8861
      %v8970 = vpop.f32.mrb[0].mxu0
      %v8971 = vadd.f32 0.0, %v8970
      %v8972 = vpop.f32.mrb[0].mxu0
      %v8973 = vpop.f32.mrb[0].mxu0
      %v8974 = vadd.f32 0.0, %v8973
      %v8975 = vpop.f32.mrb[0].mxu0
      %8976 = vmatprep.mubr.bf16.mxu0 0
      %8977 = vmatmul.mubr.bf16.gmra.mrb[0].mxu0 %v8864
      %v8978 = vpop.f32.mrb[0].mxu0
      %v8979 = vadd.f32 0.0, %v8978
      %v8980 = vpop.f32.mrb[0].mxu0
      %v8981 = vpop.f32.mrb[0].mxu0
      %v8982 = vadd.f32 0.0, %v8981
      %v8983 = vpop.f32.mrb[0].mxu0
      %8984 = vmatprep.mubr.bf16.mxu0 0
      %8985 = vmatmul.mubr.bf16.gmra.mrb[0].mxu0 %v8867
      %v8986 = vpop.f32.mrb[0].mxu0
      %v8987 = vadd.f32 0.0, %v8986
      %v8988 = vpop.f32.mrb[0].mxu0
      %v8989 = vpop.f32.mrb[0].mxu0
      %v8990 = vadd.f32 0.0, %v8989
      %v8991 = vpop.f32.mrb[0].mxu0
      %8992 = vmatprep.mubr.bf16.mxu0 0
      %8993 = vmatmul.mubr.bf16.gmra.mrb[0].mxu0 %v8870
      %v8994 = vpop.f32.mrb[0].mxu0
      %v8995 = vadd.f32 0.0, %v8994
      %v8996 = vpop.f32.mrb[0].mxu0
      %v8997 = vpop.f32.mrb[0].mxu0
      %v8998 = vadd.f32 0.0, %v8997
      %v8999 = vpop.f32.mrb[0].mxu0
      %9000 = vmatprep.mubr.bf16.mxu0 0
      %9001 = vmatmul.mubr.bf16.gmra.mrb[0].mxu0 %v8873
      %v9002 = vpop.f32.mrb[0].mxu0
      %v9003 = vadd.f32 0.0, %v9002
      %v9004 = vpop.f32.mrb[0].mxu0
      %v9005 = vpop.f32.mrb[0].mxu0
      %v9006 = vadd.f32 0.0, %v9005
      %v9007 = vpop.f32.mrb[0].mxu0
      %9008 = vmatprep.mubr.bf16.mxu0 0
      %9009 = vmatmul.mubr.bf16.gmra.mrb[0].mxu0 %v8876
      %v9010 = vpop.f32.mrb[0].mxu0
      %v9011 = vadd.f32 0.0, %v9010
      %v9012 = vpop.f32.mrb[0].mxu0
      %v9013 = vpop.f32.mrb[0].mxu0
      %v9014 = vadd.f32 0.0, %v9013
      %v9015 = vpop.f32.mrb[0].mxu0
      %9016 = vmatprep.mubr.bf16.mxu0 0
      %9017 = vmatmul.mubr.bf16.gmra.mrb[0].mxu0 %v8879
      %v9018 = vpop.f32.mrb[0].mxu0
      %v9019 = vadd.f32 0.0, %v9018
      %v9020 = vpop.f32.mrb[0].mxu0
      %v9021 = vpop.f32.mrb[0].mxu0
      %v9022 = vadd.f32 0.0, %v9021
      %v9023 = vpop.f32.mrb[0].mxu0
      %9024 = vmatprep.mubr.bf16.mxu0 0
      %9025 = vmatmul.mubr.bf16.gmra.mrb[0].mxu0 %v8882
      %v9026 = vpop.f32.mrb[0].mxu0
      %v9027 = vadd.f32 0.0, %v9026
      %v9028 = vpop.f32.mrb[0].mxu0
      %v9029 = vpop.f32.mrb[0].mxu0
      %v9030 = vadd.f32 0.0, %v9029
      %v9031 = vpop.f32.mrb[0].mxu0
      %9032 = vmatprep.mubr.bf16.mxu0 0
      %9033 = vmatmul.mubr.bf16.gmra.mrb[0].mxu0 %v8885
      %v9034 = vpop.f32.mrb[0].mxu0
      %v9035 = vadd.f32 0.0, %v9034
      %v9036 = vpop.f32.mrb[0].mxu0
      %v9037 = vpop.f32.mrb[0].mxu0
      %v9038 = vadd.f32 0.0, %v9037
      %v9039 = vpop.f32.mrb[0].mxu0
      %9040 = vmatprep.mubr.bf16.mxu0 0
      %9041 = vmatmul.mubr.bf16.gmra.mrb[0].mxu0 %v8888
      %v9042 = vpop.f32.mrb[0].mxu0
      %v9043 = vadd.f32 0.0, %v9042
      %v9044 = vpop.f32.mrb[0].mxu0
      %v9045 = vpop.f32.mrb[0].mxu0
      %v9046 = vadd.f32 0.0, %v9045
      %v9047 = vpop.f32.mrb[0].mxu0
      %9048 = vmatprep.mubr.bf16.mxu0 0
      %9049 = vmatmul.mubr.bf16.gmra.mrb[0].mxu0 %v8891
      %v9050 = vpop.f32.mrb[0].mxu0
      %v9051 = vadd.f32 0.0, %v9050
      %v9052 = vpop.f32.mrb[0].mxu0
      %v9053 = vpop.f32.mrb[0].mxu0
      %v9054 = vadd.f32 0.0, %v9053
      %v9055 = vpop.f32.mrb[0].mxu0
      %9056 = vdwg.mxu0
      %v9057 = vadd.f32 %v8757, %v8931
      %v9058 = vadd.f32 %v8758, %v8934
      %v9059 = vadd.f32 %v8759, %v8939
      %v9060 = vadd.f32 %v8760, %v8942
      %v9061 = vadd.f32 %v8761, %v8947
      %v9062 = vadd.f32 %v8762, %v8950
      %v9063 = vadd.f32 %v8763, %v8955
      %v9064 = vadd.f32 %v8764, %v8958
      %v9065 = vadd.f32 %v8765, %v8963
      %v9066 = vadd.f32 %v8766, %v8966
      %v9067 = vadd.f32 %v8767, %v8971
      %v9068 = vadd.f32 %v8768, %v8974
      %v9069 = vadd.f32 %v8769, %v8979
      %v9070 = vadd.f32 %v8770, %v8982
      %v9071 = vadd.f32 %v8771, %v8987
      %v9072 = vadd.f32 %v8772, %v8990
      %v9073 = vadd.f32 %v8773, %v8995
      %v9074 = vadd.f32 %v8774, %v8998
      %v9075 = vadd.f32 %v8775, %v9003
      %v9076 = vadd.f32 %v8776, %v9006
      %v9077 = vadd.f32 %v8777, %v9011
      %v9078 = vadd.f32 %v8778, %v9014
      %v9079 = vadd.f32 %v8779, %v9019
      %v9080 = vadd.f32 %v8780, %v9022
      %v9081 = vadd.f32 %v8781, %v9027
      %v9082 = vadd.f32 %v8782, %v9030
      %v9083 = vadd.f32 %v8783, %v9035
      %v9084 = vadd.f32 %v8784, %v9038
      %v9085 = vadd.f32 %v8785, %v9043
      %v9086 = vadd.f32 %v8786, %v9046
      %v9087 = vadd.f32 %v8787, %v9051
      %v9088 = vadd.f32 %v8788, %v9054
      %v9089 = vld [vmem:[%s2756 + $0x2] sm:$0xff]
      %v9090 = vld [vmem:[%s2756 + $0xa] sm:$0xff]
      %v9091 = vld [vmem:[%s2756 + $0x1a] sm:$0xff]
      %v9092 = vld [vmem:[%s2756 + $0x22] sm:$0xff]
      %v9093 = vld [vmem:[%s2756 + $0x32] sm:$0xff]
      %v9094 = vld [vmem:[%s2756 + $0x3a] sm:$0xff]
      %v9095 = vld [vmem:[%s2756 + $0x4a] sm:$0xff]
      %v9096 = vld [vmem:[%s2756 + $0x52] sm:$0xff]
      %v9097 = vld [vmem:[%s2756 + $0x62] sm:$0xff]
      %v9098 = vld [vmem:[%s2756 + $0x6a] sm:$0xff]
      %v9099 = vld [vmem:[%s2756 + $0x7a] sm:$0xff]
      %v9100 = vld [vmem:[%s2756 + $0x82] sm:$0xff]
      %v9101 = vld [vmem:[%s2756 + $0x92] sm:$0xff]
      %v9102 = vld [vmem:[%s2756 + $0x9a] sm:$0xff]
      %v9103 = vld [vmem:[%s2756 + $0xaa] sm:$0xff]
      %v9104 = vld [vmem:[%s2756 + $0xb2] sm:$0xff]
      %v9105 = vld [vmem:[%s2756 + $0xc2] sm:$0xff]
      %v9106 = vld [vmem:[%s2756 + $0xca] sm:$0xff]
      %v9107 = vld [vmem:[%s2756 + $0xda] sm:$0xff]
      %v9108 = vld [vmem:[%s2756 + $0xe2] sm:$0xff]
      %v9109 = vld [vmem:[%s2756 + $0xf2] sm:$0xff]
      %v9110 = vld [vmem:[%s2756 + $0xfa] sm:$0xff]
      %v9111 = vld [vmem:[%s2756 + $0x10a] sm:$0xff]
      %v9112 = vld [vmem:[%s2756 + $0x112] sm:$0xff]
      %v9113 = vld [vmem:[%s2756 + $0x122] sm:$0xff]
      %v9114 = vld [vmem:[%s2756 + $0x12a] sm:$0xff]
      %v9115 = vld [vmem:[%s2756 + $0x13a] sm:$0xff]
      %v9116 = vld [vmem:[%s2756 + $0x142] sm:$0xff]
      %v9117 = vld [vmem:[%s2756 + $0x152] sm:$0xff]
      %v9118 = vld [vmem:[%s2756 + $0x15a] sm:$0xff]
      %v9119 = vld [vmem:[%s2756 + $0x16a] sm:$0xff]
      %v9120 = vld [vmem:[%s2756 + $0x172] sm:$0xff]
      %v9121 = vpack.c.bf16 %v9090, %v9089
      %v9122 = vpack.c.bf16 %v9092, %v9091
      %v9123 = vpack.c.bf16 %v9094, %v9093
      %v9124 = vpack.c.bf16 %v9096, %v9095
      %v9125 = vpack.c.bf16 %v9098, %v9097
      %v9126 = vpack.c.bf16 %v9100, %v9099
      %v9127 = vpack.c.bf16 %v9102, %v9101
      %v9128 = vpack.c.bf16 %v9104, %v9103
      %v9129 = vpack.c.bf16 %v9106, %v9105
      %v9130 = vpack.c.bf16 %v9108, %v9107
      %v9131 = vpack.c.bf16 %v9110, %v9109
      %v9132 = vpack.c.bf16 %v9112, %v9111
      %v9133 = vpack.c.bf16 %v9114, %v9113
      %v9134 = vpack.c.bf16 %v9116, %v9115
      %v9135 = vpack.c.bf16 %v9118, %v9117
      %v9136 = vpack.c.bf16 %v9120, %v9119
      %s9137 = scalar_lea.vmem %s7, 64
      %v9138 = vld [vmem:[%s9137] sm:$0xf]
      %v9139 = vld [vmem:[%s9137 + $0x4] sm:$0x3]
      %v9142 = vunpack.c.l.b16 %v9138
      %v9143 = vunpack.c.l.b16 %v9139
      %v9144 = vpack.c.b16 %v9143, %v9142
      %v9146 = vsel %vm530, %v9121, 0
      %v9149 = vsel %vm530, %v9122, 0
      %v9152 = vsel %vm530, %v9123, 0
      %v9155 = vsel %vm530, %v9124, 0
      %v9158 = vsel %vm530, %v9125, 0
      %v9161 = vsel %vm530, %v9126, 0
      %v9164 = vsel %vm530, %v9127, 0
      %v9167 = vsel %vm530, %v9128, 0
      %v9170 = vsel %vm530, %v9129, 0
      %v9173 = vsel %vm530, %v9130, 0
      %v9176 = vsel %vm530, %v9131, 0
      %v9179 = vsel %vm530, %v9132, 0
      %v9182 = vsel %vm530, %v9133, 0
      %v9185 = vsel %vm530, %v9134, 0
      %v9188 = vsel %vm530, %v9135, 0
      %v9191 = vsel %vm530, %v9136, 0
      %v9194 = vsel %vm1174, %v9144, 0
      %9196 = vmatprep.subr.bf16.mxu0 0
      %9197 = vmatpush1.bf16.msra.mxu0 %v9194
      %9198 = vmatprep.subr.bf16.mxu0 0
      %9199 = vmatpush1.bf16.msra.mxu0 0
      %9200 = vmatprep.subr.bf16.mxu0 0
      %9201 = vmatpush1.bf16.msra.mxu0 0
      %9202 = vmatprep.subr.bf16.mxu0 0
      %9203 = vmatpush1.bf16.msra.mxu0 0
      %9204 = vmatprep.subr.bf16.mxu0 0
      %9205 = vmatpush1.bf16.msra.mxu0 0
      %9206 = vmatprep.subr.bf16.mxu0 0
      %9207 = vmatpush1.bf16.msra.mxu0 0
      %9208 = vmatprep.subr.bf16.mxu0 0
      %9209 = vmatpush1.bf16.msra.mxu0 0
      %9210 = vmatprep.subr.bf16.mxu0 0
      %9211 = vmatpush1.bf16.msra.mxu0 0
      %9212 = vmatprep.subr.bf16.mxu0 0
      %9213 = vmatpush1.bf16.msra.mxu0 0
      %9214 = vmatprep.subr.bf16.mxu0 0
      %9215 = vmatpush1.bf16.msra.mxu0 0
      %9216 = vmatprep.subr.bf16.mxu0 0
      %9217 = vmatpush1.bf16.msra.mxu0 0
      %9218 = vmatprep.subr.bf16.mxu0 0
      %9219 = vmatpush1.bf16.msra.mxu0 0
      %9220 = vmatprep.subr.bf16.mxu0 0
      %9221 = vmatpush1.bf16.msra.mxu0 0
      %9222 = vmatprep.subr.bf16.mxu0 0
      %9223 = vmatpush1.bf16.msra.mxu0 0
      %9224 = vmatprep.subr.bf16.mxu0 0
      %9225 = vmatpush1.bf16.msra.mxu0 0
      %9226 = vmatprep.subr.bf16.mxu0 0
      %9227 = vmatpush1.bf16.msra.mxu0 0
      %9228 = vmatprep.mubr.bf16.mxu0 0
      %9229 = vmatmul.mubr.bf16.gmra.mrb[0].mxu0 %v9146
      %v9230 = vpop.f32.mrb[0].mxu0
      %v9231 = vadd.f32 0.0, %v9230
      %v9232 = vpop.f32.mrb[0].mxu0
      %v9233 = vpop.f32.mrb[0].mxu0
      %v9234 = vadd.f32 0.0, %v9233
      %v9235 = vpop.f32.mrb[0].mxu0
      %9236 = vmatprep.mubr.bf16.mxu0 0
      %9237 = vmatmul.mubr.bf16.gmra.mrb[0].mxu0 %v9149
      %v9238 = vpop.f32.mrb[0].mxu0
      %v9239 = vadd.f32 0.0, %v9238
      %v9240 = vpop.f32.mrb[0].mxu0
      %v9241 = vpop.f32.mrb[0].mxu0
      %v9242 = vadd.f32 0.0, %v9241
      %v9243 = vpop.f32.mrb[0].mxu0
      %9244 = vmatprep.mubr.bf16.mxu0 0
      %9245 = vmatmul.mubr.bf16.gmra.mrb[0].mxu0 %v9152
      %v9246 = vpop.f32.mrb[0].mxu0
      %v9247 = vadd.f32 0.0, %v9246
      %v9248 = vpop.f32.mrb[0].mxu0
      %v9249 = vpop.f32.mrb[0].mxu0
      %v9250 = vadd.f32 0.0, %v9249
      %v9251 = vpop.f32.mrb[0].mxu0
      %9252 = vmatprep.mubr.bf16.mxu0 0
      %9253 = vmatmul.mubr.bf16.gmra.mrb[0].mxu0 %v9155
      %v9254 = vpop.f32.mrb[0].mxu0
      %v9255 = vadd.f32 0.0, %v9254
      %v9256 = vpop.f32.mrb[0].mxu0
      %v9257 = vpop.f32.mrb[0].mxu0
      %v9258 = vadd.f32 0.0, %v9257
      %v9259 = vpop.f32.mrb[0].mxu0
      %9260 = vmatprep.mubr.bf16.mxu0 0
      %9261 = vmatmul.mubr.bf16.gmra.mrb[0].mxu0 %v9158
      %v9262 = vpop.f32.mrb[0].mxu0
      %v9263 = vadd.f32 0.0, %v9262
      %v9264 = vpop.f32.mrb[0].mxu0
      %v9265 = vpop.f32.mrb[0].mxu0
      %v9266 = vadd.f32 0.0, %v9265
      %v9267 = vpop.f32.mrb[0].mxu0
      %9268 = vmatprep.mubr.bf16.mxu0 0
      %9269 = vmatmul.mubr.bf16.gmra.mrb[0].mxu0 %v9161
      %v9270 = vpop.f32.mrb[0].mxu0
      %v9271 = vadd.f32 0.0, %v9270
      %v9272 = vpop.f32.mrb[0].mxu0
      %v9273 = vpop.f32.mrb[0].mxu0
      %v9274 = vadd.f32 0.0, %v9273
      %v9275 = vpop.f32.mrb[0].mxu0
      %9276 = vmatprep.mubr.bf16.mxu0 0
      %9277 = vmatmul.mubr.bf16.gmra.mrb[0].mxu0 %v9164
      %v9278 = vpop.f32.mrb[0].mxu0
      %v9279 = vadd.f32 0.0, %v9278
      %v9280 = vpop.f32.mrb[0].mxu0
      %v9281 = vpop.f32.mrb[0].mxu0
      %v9282 = vadd.f32 0.0, %v9281
      %v9283 = vpop.f32.mrb[0].mxu0
      %9284 = vmatprep.mubr.bf16.mxu0 0
      %9285 = vmatmul.mubr.bf16.gmra.mrb[0].mxu0 %v9167
      %v9286 = vpop.f32.mrb[0].mxu0
      %v9287 = vadd.f32 0.0, %v9286
      %v9288 = vpop.f32.mrb[0].mxu0
      %v9289 = vpop.f32.mrb[0].mxu0
      %v9290 = vadd.f32 0.0, %v9289
      %v9291 = vpop.f32.mrb[0].mxu0
      %9292 = vmatprep.mubr.bf16.mxu0 0
      %9293 = vmatmul.mubr.bf16.gmra.mrb[0].mxu0 %v9170
      %v9294 = vpop.f32.mrb[0].mxu0
      %v9295 = vadd.f32 0.0, %v9294
      %v9296 = vpop.f32.mrb[0].mxu0
      %v9297 = vpop.f32.mrb[0].mxu0
      %v9298 = vadd.f32 0.0, %v9297
      %v9299 = vpop.f32.mrb[0].mxu0
      %9300 = vmatprep.mubr.bf16.mxu0 0
      %9301 = vmatmul.mubr.bf16.gmra.mrb[0].mxu0 %v9173
      %v9302 = vpop.f32.mrb[0].mxu0
      %v9303 = vadd.f32 0.0, %v9302
      %v9304 = vpop.f32.mrb[0].mxu0
      %v9305 = vpop.f32.mrb[0].mxu0
      %v9306 = vadd.f32 0.0, %v9305
      %v9307 = vpop.f32.mrb[0].mxu0
      %9308 = vmatprep.mubr.bf16.mxu0 0
      %9309 = vmatmul.mubr.bf16.gmra.mrb[0].mxu0 %v9176
      %v9310 = vpop.f32.mrb[0].mxu0
      %v9311 = vadd.f32 0.0, %v9310
      %v9312 = vpop.f32.mrb[0].mxu0
      %v9313 = vpop.f32.mrb[0].mxu0
      %v9314 = vadd.f32 0.0, %v9313
      %v9315 = vpop.f32.mrb[0].mxu0
      %9316 = vmatprep.mubr.bf16.mxu0 0
      %9317 = vmatmul.mubr.bf16.gmra.mrb[0].mxu0 %v9179
      %v9318 = vpop.f32.mrb[0].mxu0
      %v9319 = vadd.f32 0.0, %v9318
      %v9320 = vpop.f32.mrb[0].mxu0
      %v9321 = vpop.f32.mrb[0].mxu0
      %v9322 = vadd.f32 0.0, %v9321
      %v9323 = vpop.f32.mrb[0].mxu0
      %9324 = vmatprep.mubr.bf16.mxu0 0
      %9325 = vmatmul.mubr.bf16.gmra.mrb[0].mxu0 %v9182
      %v9326 = vpop.f32.mrb[0].mxu0
      %v9327 = vadd.f32 0.0, %v9326
      %v9328 = vpop.f32.mrb[0].mxu0
      %v9329 = vpop.f32.mrb[0].mxu0
      %v9330 = vadd.f32 0.0, %v9329
      %v9331 = vpop.f32.mrb[0].mxu0
      %9332 = vmatprep.mubr.bf16.mxu0 0
      %9333 = vmatmul.mubr.bf16.gmra.mrb[0].mxu0 %v9185
      %v9334 = vpop.f32.mrb[0].mxu0
      %v9335 = vadd.f32 0.0, %v9334
      %v9336 = vpop.f32.mrb[0].mxu0
      %v9337 = vpop.f32.mrb[0].mxu0
      %v9338 = vadd.f32 0.0, %v9337
      %v9339 = vpop.f32.mrb[0].mxu0
      %9340 = vmatprep.mubr.bf16.mxu0 0
      %9341 = vmatmul.mubr.bf16.gmra.mrb[0].mxu0 %v9188
      %v9342 = vpop.f32.mrb[0].mxu0
      %v9343 = vadd.f32 0.0, %v9342
      %v9344 = vpop.f32.mrb[0].mxu0
      %v9345 = vpop.f32.mrb[0].mxu0
      %v9346 = vadd.f32 0.0, %v9345
      %v9347 = vpop.f32.mrb[0].mxu0
      %9348 = vmatprep.mubr.bf16.mxu0 0
      %9349 = vmatmul.mubr.bf16.gmra.mrb[0].mxu0 %v9191
      %v9350 = vpop.f32.mrb[0].mxu0
      %v9351 = vadd.f32 0.0, %v9350
      %v9352 = vpop.f32.mrb[0].mxu0
      %v9353 = vpop.f32.mrb[0].mxu0
      %v9354 = vadd.f32 0.0, %v9353
      %v9355 = vpop.f32.mrb[0].mxu0
      %9356 = vdwg.mxu0
      %v9357 = vadd.f32 %v9057, %v9231
      %v9358 = vadd.f32 %v9058, %v9234
      %v9359 = vadd.f32 %v9059, %v9239
      %v9360 = vadd.f32 %v9060, %v9242
      %v9361 = vadd.f32 %v9061, %v9247
      %v9362 = vadd.f32 %v9062, %v9250
      %v9363 = vadd.f32 %v9063, %v9255
      %v9364 = vadd.f32 %v9064, %v9258
      %v9365 = vadd.f32 %v9065, %v9263
      %v9366 = vadd.f32 %v9066, %v9266
      %v9367 = vadd.f32 %v9067, %v9271
      %v9368 = vadd.f32 %v9068, %v9274
      %v9369 = vadd.f32 %v9069, %v9279
      %v9370 = vadd.f32 %v9070, %v9282
      %v9371 = vadd.f32 %v9071, %v9287
      %v9372 = vadd.f32 %v9072, %v9290
      %v9373 = vadd.f32 %v9073, %v9295
      %v9374 = vadd.f32 %v9074, %v9298
      %v9375 = vadd.f32 %v9075, %v9303
      %v9376 = vadd.f32 %v9076, %v9306
      %v9377 = vadd.f32 %v9077, %v9311
      %v9378 = vadd.f32 %v9078, %v9314
      %v9379 = vadd.f32 %v9079, %v9319
      %v9380 = vadd.f32 %v9080, %v9322
      %v9381 = vadd.f32 %v9081, %v9327
      %v9382 = vadd.f32 %v9082, %v9330
      %v9383 = vadd.f32 %v9083, %v9335
      %v9384 = vadd.f32 %v9084, %v9338
      %v9385 = vadd.f32 %v9085, %v9343
      %v9386 = vadd.f32 %v9086, %v9346
      %v9387 = vadd.f32 %v9087, %v9351
      %v9388 = vadd.f32 %v9088, %v9354
      %v9389 = vld [vmem:[%s8] sm:$0x1]
      %v9391 = vlaneseq
      %v9392 = vshrl.u32 %v9391, 7
      %v9393 = vsub.s32 0, %v9392
      %v9394 = vrot.slane %v9389, %v9393
      %v9396 = vadd.f32 %v9357, %v9394
      %v9397 = vadd.f32 %v9358, %v9394
      %v9398 = vadd.f32 %v9359, %v9394
      %v9399 = vadd.f32 %v9360, %v9394
      %v9400 = vadd.f32 %v9361, %v9394
      %v9401 = vadd.f32 %v9362, %v9394
      %v9402 = vadd.f32 %v9363, %v9394
      %v9403 = vadd.f32 %v9364, %v9394
      %v9404 = vadd.f32 %v9365, %v9394
      %v9405 = vadd.f32 %v9366, %v9394
      %v9406 = vadd.f32 %v9367, %v9394
      %v9407 = vadd.f32 %v9368, %v9394
      %v9408 = vadd.f32 %v9369, %v9394
      %v9409 = vadd.f32 %v9370, %v9394
      %v9410 = vadd.f32 %v9371, %v9394
      %v9411 = vadd.f32 %v9372, %v9394
      %v9412 = vadd.f32 %v9373, %v9394
      %v9413 = vadd.f32 %v9374, %v9394
      %v9414 = vadd.f32 %v9375, %v9394
      %v9415 = vadd.f32 %v9376, %v9394
      %v9416 = vadd.f32 %v9377, %v9394
      %v9417 = vadd.f32 %v9378, %v9394
      %v9418 = vadd.f32 %v9379, %v9394
      %v9419 = vadd.f32 %v9380, %v9394
      %v9420 = vadd.f32 %v9381, %v9394
      %v9421 = vadd.f32 %v9382, %v9394
      %v9422 = vadd.f32 %v9383, %v9394
      %v9423 = vadd.f32 %v9384, %v9394
      %v9424 = vadd.f32 %v9385, %v9394
      %v9425 = vadd.f32 %v9386, %v9394
      %v9426 = vadd.f32 %v9387, %v9394
      %v9427 = vadd.f32 %v9388, %v9394
      %9428 = vrot.lane.b32.xlu0 %v3696, 4
      %v9429 = vpop.permute.xlu0 %9428
      %9430 = vrot.lane.b32.xlu0 %v3697, 4
      %v9431 = vpop.permute.xlu0 %9430
      %9432 = vrot.lane.b32.xlu0 %v3698, 4
      %v9433 = vpop.permute.xlu0 %9432
      %9434 = vrot.lane.b32.xlu0 %v3699, 4
      %v9435 = vpop.permute.xlu0 %9434
      %9436 = vrot.lane.b32.xlu0 %v3700, 4
      %v9437 = vpop.permute.xlu0 %9436
      %9438 = vrot.lane.b32.xlu0 %v3701, 4
      %v9439 = vpop.permute.xlu0 %9438
      %9440 = vrot.lane.b32.xlu0 %v3702, 4
      %v9441 = vpop.permute.xlu0 %9440
      %9442 = vrot.lane.b32.xlu0 %v3703, 4
      %v9443 = vpop.permute.xlu0 %9442
      %9444 = vrot.lane.b32.xlu0 %v3704, 4
      %v9445 = vpop.permute.xlu0 %9444
      %9446 = vrot.lane.b32.xlu0 %v3705, 4
      %v9447 = vpop.permute.xlu0 %9446
      %9448 = vrot.lane.b32.xlu0 %v3706, 4
      %v9449 = vpop.permute.xlu0 %9448
      %9450 = vrot.lane.b32.xlu0 %v3707, 4
      %v9451 = vpop.permute.xlu0 %9450
      %9452 = vrot.lane.b32.xlu0 %v3708, 4
      %v9453 = vpop.permute.xlu0 %9452
      %9454 = vrot.lane.b32.xlu0 %v3709, 4
      %v9455 = vpop.permute.xlu0 %9454
      %9456 = vrot.lane.b32.xlu0 %v3710, 4
      %v9457 = vpop.permute.xlu0 %9456
      %9458 = vrot.lane.b32.xlu0 %v3711, 4
      %v9459 = vpop.permute.xlu0 %9458
      %9460 = vrot.lane.b32.xlu0 %v3712, 4
      %v9461 = vpop.permute.xlu0 %9460
      %9462 = vrot.lane.b32.xlu0 %v3713, 4
      %v9463 = vpop.permute.xlu0 %9462
      %9464 = vrot.lane.b32.xlu0 %v3714, 4
      %v9465 = vpop.permute.xlu0 %9464
      %9466 = vrot.lane.b32.xlu0 %v3715, 4
      %v9467 = vpop.permute.xlu0 %9466
      %9468 = vrot.lane.b32.xlu0 %v3716, 4
      %v9469 = vpop.permute.xlu0 %9468
      %9470 = vrot.lane.b32.xlu0 %v3717, 4
      %v9471 = vpop.permute.xlu0 %9470
      %9472 = vrot.lane.b32.xlu0 %v3718, 4
      %v9473 = vpop.permute.xlu0 %9472
      %9474 = vrot.lane.b32.xlu0 %v3719, 4
      %v9475 = vpop.permute.xlu0 %9474
      %9476 = vrot.lane.b32.xlu0 %v3720, 4
      %v9477 = vpop.permute.xlu0 %9476
      %9478 = vrot.lane.b32.xlu0 %v3721, 4
      %v9479 = vpop.permute.xlu0 %9478
      %9480 = vrot.lane.b32.xlu0 %v3722, 4
      %v9481 = vpop.permute.xlu0 %9480
      %9482 = vrot.lane.b32.xlu0 %v3723, 4
      %v9483 = vpop.permute.xlu0 %9482
      %9484 = vrot.lane.b32.xlu0 %v3724, 4
      %v9485 = vpop.permute.xlu0 %9484
      %9486 = vrot.lane.b32.xlu0 %v3725, 4
      %v9487 = vpop.permute.xlu0 %9486
      %9488 = vrot.lane.b32.xlu0 %v3726, 4
      %v9489 = vpop.permute.xlu0 %9488
      %9490 = vrot.lane.b32.xlu0 %v3727, 4
      %v9491 = vpop.permute.xlu0 %9490
      %9524 = vrot.lane.b32.xlu0 %v6562, 8
      %v9525 = vpop.permute.xlu0 %9524
      %9526 = vrot.lane.b32.xlu0 %v6563, 8
      %v9527 = vpop.permute.xlu0 %9526
      %9528 = vrot.lane.b32.xlu0 %v6564, 8
      %v9529 = vpop.permute.xlu0 %9528
      %9530 = vrot.lane.b32.xlu0 %v6565, 8
      %v9531 = vpop.permute.xlu0 %9530
      %9532 = vrot.lane.b32.xlu0 %v6566, 8
      %v9533 = vpop.permute.xlu0 %9532
      %9534 = vrot.lane.b32.xlu0 %v6567, 8
      %v9535 = vpop.permute.xlu0 %9534
      %9536 = vrot.lane.b32.xlu0 %v6568, 8
      %v9537 = vpop.permute.xlu0 %9536
      %9538 = vrot.lane.b32.xlu0 %v6569, 8
      %v9539 = vpop.permute.xlu0 %9538
      %9540 = vrot.lane.b32.xlu0 %v6570, 8
      %v9541 = vpop.permute.xlu0 %9540
      %9542 = vrot.lane.b32.xlu0 %v6571, 8
      %v9543 = vpop.permute.xlu0 %9542
      %9544 = vrot.lane.b32.xlu0 %v6572, 8
      %v9545 = vpop.permute.xlu0 %9544
      %9546 = vrot.lane.b32.xlu0 %v6573, 8
      %v9547 = vpop.permute.xlu0 %9546
      %9548 = vrot.lane.b32.xlu0 %v6574, 8
      %v9549 = vpop.permute.xlu0 %9548
      %9550 = vrot.lane.b32.xlu0 %v6575, 8
      %v9551 = vpop.permute.xlu0 %9550
      %9552 = vrot.lane.b32.xlu0 %v6576, 8
      %v9553 = vpop.permute.xlu0 %9552
      %9554 = vrot.lane.b32.xlu0 %v6577, 8
      %v9555 = vpop.permute.xlu0 %9554
      %9556 = vrot.lane.b32.xlu0 %v6578, 8
      %v9557 = vpop.permute.xlu0 %9556
      %9558 = vrot.lane.b32.xlu0 %v6579, 8
      %v9559 = vpop.permute.xlu0 %9558
      %9560 = vrot.lane.b32.xlu0 %v6580, 8
      %v9561 = vpop.permute.xlu0 %9560
      %9562 = vrot.lane.b32.xlu0 %v6581, 8
      %v9563 = vpop.permute.xlu0 %9562
      %9564 = vrot.lane.b32.xlu0 %v6582, 8
      %v9565 = vpop.permute.xlu0 %9564
      %9566 = vrot.lane.b32.xlu0 %v6583, 8
      %v9567 = vpop.permute.xlu0 %9566
      %9568 = vrot.lane.b32.xlu0 %v6584, 8
      %v9569 = vpop.permute.xlu0 %9568
      %9570 = vrot.lane.b32.xlu0 %v6585, 8
      %v9571 = vpop.permute.xlu0 %9570
      %9572 = vrot.lane.b32.xlu0 %v6586, 8
      %v9573 = vpop.permute.xlu0 %9572
      %9574 = vrot.lane.b32.xlu0 %v6587, 8
      %v9575 = vpop.permute.xlu0 %9574
      %9576 = vrot.lane.b32.xlu0 %v6588, 8
      %v9577 = vpop.permute.xlu0 %9576
      %9578 = vrot.lane.b32.xlu0 %v6589, 8
      %v9579 = vpop.permute.xlu0 %9578
      %9580 = vrot.lane.b32.xlu0 %v6590, 8
      %v9581 = vpop.permute.xlu0 %9580
      %9582 = vrot.lane.b32.xlu0 %v6591, 8
      %v9583 = vpop.permute.xlu0 %9582
      %9584 = vrot.lane.b32.xlu0 %v6592, 8
      %v9585 = vpop.permute.xlu0 %9584
      %9586 = vrot.lane.b32.xlu0 %v6593, 8
      %v9587 = vpop.permute.xlu0 %9586
      %9652 = vrot.lane.b32.xlu0 %v9396, 12
      %v9653 = vpop.permute.xlu0 %9652
      %9654 = vrot.lane.b32.xlu0 %v9397, 12
      %v9655 = vpop.permute.xlu0 %9654
      %9656 = vrot.lane.b32.xlu0 %v9398, 12
      %v9657 = vpop.permute.xlu0 %9656
      %9658 = vrot.lane.b32.xlu0 %v9399, 12
      %v9659 = vpop.permute.xlu0 %9658
      %9660 = vrot.lane.b32.xlu0 %v9400, 12
      %v9661 = vpop.permute.xlu0 %9660
      %9662 = vrot.lane.b32.xlu0 %v9401, 12
      %v9663 = vpop.permute.xlu0 %9662
      %9664 = vrot.lane.b32.xlu0 %v9402, 12
      %v9665 = vpop.permute.xlu0 %9664
      %9666 = vrot.lane.b32.xlu0 %v9403, 12
      %v9667 = vpop.permute.xlu0 %9666
      %9668 = vrot.lane.b32.xlu0 %v9404, 12
      %v9669 = vpop.permute.xlu0 %9668
      %9670 = vrot.lane.b32.xlu0 %v9405, 12
      %v9671 = vpop.permute.xlu0 %9670
      %9672 = vrot.lane.b32.xlu0 %v9406, 12
      %v9673 = vpop.permute.xlu0 %9672
      %9674 = vrot.lane.b32.xlu0 %v9407, 12
      %v9675 = vpop.permute.xlu0 %9674
      %9676 = vrot.lane.b32.xlu0 %v9408, 12
      %v9677 = vpop.permute.xlu0 %9676
      %9678 = vrot.lane.b32.xlu0 %v9409, 12
      %v9679 = vpop.permute.xlu0 %9678
      %9680 = vrot.lane.b32.xlu0 %v9410, 12
      %v9681 = vpop.permute.xlu0 %9680
      %9682 = vrot.lane.b32.xlu0 %v9411, 12
      %v9683 = vpop.permute.xlu0 %9682
      %9684 = vrot.lane.b32.xlu0 %v9412, 12
      %v9685 = vpop.permute.xlu0 %9684
      %9686 = vrot.lane.b32.xlu0 %v9413, 12
      %v9687 = vpop.permute.xlu0 %9686
      %9688 = vrot.lane.b32.xlu0 %v9414, 12
      %v9689 = vpop.permute.xlu0 %9688
      %9690 = vrot.lane.b32.xlu0 %v9415, 12
      %v9691 = vpop.permute.xlu0 %9690
      %9692 = vrot.lane.b32.xlu0 %v9416, 12
      %v9693 = vpop.permute.xlu0 %9692
      %9694 = vrot.lane.b32.xlu0 %v9417, 12
      %v9695 = vpop.permute.xlu0 %9694
      %9696 = vrot.lane.b32.xlu0 %v9418, 12
      %v9697 = vpop.permute.xlu0 %9696
      %9698 = vrot.lane.b32.xlu0 %v9419, 12
      %v9699 = vpop.permute.xlu0 %9698
      %9700 = vrot.lane.b32.xlu0 %v9420, 12
      %v9701 = vpop.permute.xlu0 %9700
      %9702 = vrot.lane.b32.xlu0 %v9421, 12
      %v9703 = vpop.permute.xlu0 %9702
      %9704 = vrot.lane.b32.xlu0 %v9422, 12
      %v9705 = vpop.permute.xlu0 %9704
      %9706 = vrot.lane.b32.xlu0 %v9423, 12
      %v9707 = vpop.permute.xlu0 %9706
      %9708 = vrot.lane.b32.xlu0 %v9424, 12
      %v9709 = vpop.permute.xlu0 %9708
      %9710 = vrot.lane.b32.xlu0 %v9425, 12
      %v9711 = vpop.permute.xlu0 %9710
      %9712 = vrot.lane.b32.xlu0 %v9426, 12
      %v9713 = vpop.permute.xlu0 %9712
      %9714 = vrot.lane.b32.xlu0 %v9427, 12
      %v9715 = vpop.permute.xlu0 %9714
      %vm9748 = vcmask 31744
      %v9749 = vsel %vm9748, %v827, %v9429
      %v9750 = vsel %vm9748, %v828, %v9431
      %v9751 = vsel %vm9748, %v829, %v9433
      %v9752 = vsel %vm9748, %v830, %v9435
      %v9753 = vsel %vm9748, %v831, %v9437
      %v9754 = vsel %vm9748, %v832, %v9439
      %v9755 = vsel %vm9748, %v833, %v9441
      %v9756 = vsel %vm9748, %v834, %v9443
      %v9757 = vsel %vm9748, %v835, %v9445
      %v9758 = vsel %vm9748, %v836, %v9447
      %v9759 = vsel %vm9748, %v837, %v9449
      %v9760 = vsel %vm9748, %v838, %v9451
      %v9761 = vsel %vm9748, %v839, %v9453
      %v9762 = vsel %vm9748, %v840, %v9455
      %v9763 = vsel %vm9748, %v841, %v9457
      %v9764 = vsel %vm9748, %v842, %v9459
      %v9765 = vsel %vm9748, %v843, %v9461
      %v9766 = vsel %vm9748, %v844, %v9463
      %v9767 = vsel %vm9748, %v845, %v9465
      %v9768 = vsel %vm9748, %v846, %v9467
      %v9769 = vsel %vm9748, %v847, %v9469
      %v9770 = vsel %vm9748, %v848, %v9471
      %v9771 = vsel %vm9748, %v849, %v9473
      %v9772 = vsel %vm9748, %v850, %v9475
      %v9773 = vsel %vm9748, %v851, %v9477
      %v9774 = vsel %vm9748, %v852, %v9479
      %v9775 = vsel %vm9748, %v853, %v9481
      %v9776 = vsel %vm9748, %v854, %v9483
      %v9777 = vsel %vm9748, %v855, %v9485
      %v9778 = vsel %vm9748, %v856, %v9487
      %v9779 = vsel %vm9748, %v857, %v9489
      %v9780 = vsel %vm9748, %v858, %v9491
      %vm9781 = vcmask 64512
      %v9782 = vsel %vm9781, %v9749, %v9525
      %v9783 = vsel %vm9781, %v9750, %v9527
      %v9784 = vsel %vm9781, %v9751, %v9529
      %v9785 = vsel %vm9781, %v9752, %v9531
      %v9786 = vsel %vm9781, %v9753, %v9533
      %v9787 = vsel %vm9781, %v9754, %v9535
      %v9788 = vsel %vm9781, %v9755, %v9537
      %v9789 = vsel %vm9781, %v9756, %v9539
      %v9790 = vsel %vm9781, %v9757, %v9541
      %v9791 = vsel %vm9781, %v9758, %v9543
      %v9792 = vsel %vm9781, %v9759, %v9545
      %v9793 = vsel %vm9781, %v9760, %v9547
      %v9794 = vsel %vm9781, %v9761, %v9549
      %v9795 = vsel %vm9781, %v9762, %v9551
      %v9796 = vsel %vm9781, %v9763, %v9553
      %v9797 = vsel %vm9781, %v9764, %v9555
      %v9798 = vsel %vm9781, %v9765, %v9557
      %v9799 = vsel %vm9781, %v9766, %v9559
      %v9800 = vsel %vm9781, %v9767, %v9561
      %v9801 = vsel %vm9781, %v9768, %v9563
      %v9802 = vsel %vm9781, %v9769, %v9565
      %v9803 = vsel %vm9781, %v9770, %v9567
      %v9804 = vsel %vm9781, %v9771, %v9569
      %v9805 = vsel %vm9781, %v9772, %v9571
      %v9806 = vsel %vm9781, %v9773, %v9573
      %v9807 = vsel %vm9781, %v9774, %v9575
      %v9808 = vsel %vm9781, %v9775, %v9577
      %v9809 = vsel %vm9781, %v9776, %v9579
      %v9810 = vsel %vm9781, %v9777, %v9581
      %v9811 = vsel %vm9781, %v9778, %v9583
      %v9812 = vsel %vm9781, %v9779, %v9585
      %v9813 = vsel %vm9781, %v9780, %v9587
      %v9814 = vsel %vm530, %v9782, %v9653
      %v9815 = vsel %vm530, %v9783, %v9655
      %v9816 = vsel %vm530, %v9784, %v9657
      %v9817 = vsel %vm530, %v9785, %v9659
      %v9818 = vsel %vm530, %v9786, %v9661
      %v9819 = vsel %vm530, %v9787, %v9663
      %v9820 = vsel %vm530, %v9788, %v9665
      %v9821 = vsel %vm530, %v9789, %v9667
      %v9822 = vsel %vm530, %v9790, %v9669
      %v9823 = vsel %vm530, %v9791, %v9671
      %v9824 = vsel %vm530, %v9792, %v9673
      %v9825 = vsel %vm530, %v9793, %v9675
      %v9826 = vsel %vm530, %v9794, %v9677
      %v9827 = vsel %vm530, %v9795, %v9679
      %v9828 = vsel %vm530, %v9796, %v9681
      %v9829 = vsel %vm530, %v9797, %v9683
      %v9830 = vsel %vm530, %v9798, %v9685
      %v9831 = vsel %vm530, %v9799, %v9687
      %v9832 = vsel %vm530, %v9800, %v9689
      %v9833 = vsel %vm530, %v9801, %v9691
      %v9834 = vsel %vm530, %v9802, %v9693
      %v9835 = vsel %vm530, %v9803, %v9695
      %v9836 = vsel %vm530, %v9804, %v9697
      %v9837 = vsel %vm530, %v9805, %v9699
      %v9838 = vsel %vm530, %v9806, %v9701
      %v9839 = vsel %vm530, %v9807, %v9703
      %v9840 = vsel %vm530, %v9808, %v9705
      %v9841 = vsel %vm530, %v9809, %v9707
      %v9842 = vsel %vm530, %v9810, %v9709
      %v9843 = vsel %vm530, %v9811, %v9711
      %v9844 = vsel %vm530, %v9812, %v9713
      %v9845 = vsel %vm530, %v9813, %v9715
      %v9846 = vsel %vm617, %v9814, 0.0
      %v9847 = vsel %vm617, %v9815, 0.0
      %v9848 = vadd.f32 %v9846, %v9847
      %v9849 = vsel %vm617, %v9816, 0.0
      %v9850 = vadd.f32 %v9848, %v9849
      %v9851 = vsel %vm617, %v9817, 0.0
      %v9852 = vadd.f32 %v9850, %v9851
      %v9853 = vsel %vm617, %v9818, 0.0
      %v9854 = vadd.f32 %v9852, %v9853
      %v9855 = vsel %vm617, %v9819, 0.0
      %v9856 = vadd.f32 %v9854, %v9855
      %v9857 = vsel %vm617, %v9820, 0.0
      %v9858 = vadd.f32 %v9856, %v9857
      %v9859 = vsel %vm617, %v9821, 0.0
      %v9860 = vadd.f32 %v9858, %v9859
      %v9861 = vsel %vm617, %v9822, 0.0
      %v9862 = vadd.f32 %v9860, %v9861
      %v9863 = vsel %vm617, %v9823, 0.0
      %v9864 = vadd.f32 %v9862, %v9863
      %v9865 = vsel %vm617, %v9824, 0.0
      %v9866 = vadd.f32 %v9864, %v9865
      %v9867 = vsel %vm617, %v9825, 0.0
      %v9868 = vadd.f32 %v9866, %v9867
      %v9869 = vsel %vm617, %v9826, 0.0
      %v9870 = vadd.f32 %v9868, %v9869
      %v9871 = vsel %vm617, %v9827, 0.0
      %v9872 = vadd.f32 %v9870, %v9871
      %v9873 = vsel %vm617, %v9828, 0.0
      %v9874 = vadd.f32 %v9872, %v9873
      %v9875 = vsel %vm617, %v9829, 0.0
      %v9876 = vadd.f32 %v9874, %v9875
      %v9877 = vsel %vm617, %v9830, 0.0
      %v9878 = vadd.f32 %v9876, %v9877
      %v9879 = vsel %vm617, %v9831, 0.0
      %v9880 = vadd.f32 %v9878, %v9879
      %v9881 = vsel %vm617, %v9832, 0.0
      %v9882 = vadd.f32 %v9880, %v9881
      %v9883 = vsel %vm617, %v9833, 0.0
      %v9884 = vadd.f32 %v9882, %v9883
      %v9885 = vsel %vm617, %v9834, 0.0
      %v9886 = vadd.f32 %v9884, %v9885
      %v9887 = vsel %vm617, %v9835, 0.0
      %v9888 = vadd.f32 %v9886, %v9887
      %v9889 = vsel %vm617, %v9836, 0.0
      %v9890 = vadd.f32 %v9888, %v9889
      %v9891 = vsel %vm617, %v9837, 0.0
      %v9892 = vadd.f32 %v9890, %v9891
      %v9893 = vsel %vm617, %v9838, 0.0
      %v9894 = vadd.f32 %v9892, %v9893
      %v9895 = vsel %vm617, %v9839, 0.0
      %v9896 = vadd.f32 %v9894, %v9895
      %v9897 = vsel %vm617, %v9840, 0.0
      %v9898 = vadd.f32 %v9896, %v9897
      %v9899 = vsel %vm617, %v9841, 0.0
      %v9900 = vadd.f32 %v9898, %v9899
      %v9901 = vsel %vm617, %v9842, 0.0
      %v9902 = vadd.f32 %v9900, %v9901
      %v9903 = vsel %vm617, %v9843, 0.0
      %v9904 = vadd.f32 %v9902, %v9903
      %v9905 = vsel %vm617, %v9844, 0.0
      %v9906 = vadd.f32 %v9904, %v9905
      %v9907 = vsel %vm617, %v9845, 0.0
      %v9908 = vadd.f32 %v9906, %v9907
      %v9909 = vrot.slane %v9908, 4
      %v9910 = vadd.f32 %v9908, %v9909
      %v9911 = vrot.slane %v9910, 2
      %v9912 = vadd.f32 %v9910, %v9911
      %v9913 = vrot.slane %v9912, 1
      %v9914 = vadd.f32 %v9912, %v9913
      %v9915 = vmul.f32 %v9814, %v9814
      %v9916 = vmul.f32 %v9815, %v9815
      %v9917 = vmul.f32 %v9816, %v9816
      %v9918 = vmul.f32 %v9817, %v9817
      %v9919 = vmul.f32 %v9818, %v9818
      %v9920 = vmul.f32 %v9819, %v9819
      %v9921 = vmul.f32 %v9820, %v9820
      %v9922 = vmul.f32 %v9821, %v9821
      %v9923 = vmul.f32 %v9822, %v9822
      %v9924 = vmul.f32 %v9823, %v9823
      %v9925 = vmul.f32 %v9824, %v9824
      %v9926 = vmul.f32 %v9825, %v9825
      %v9927 = vmul.f32 %v9826, %v9826
      %v9928 = vmul.f32 %v9827, %v9827
      %v9929 = vmul.f32 %v9828, %v9828
      %v9930 = vmul.f32 %v9829, %v9829
      %v9931 = vmul.f32 %v9830, %v9830
      %v9932 = vmul.f32 %v9831, %v9831
      %v9933 = vmul.f32 %v9832, %v9832
      %v9934 = vmul.f32 %v9833, %v9833
      %v9935 = vmul.f32 %v9834, %v9834
      %v9936 = vmul.f32 %v9835, %v9835
      %v9937 = vmul.f32 %v9836, %v9836
      %v9938 = vmul.f32 %v9837, %v9837
      %v9939 = vmul.f32 %v9838, %v9838
      %v9940 = vmul.f32 %v9839, %v9839
      %v9941 = vmul.f32 %v9840, %v9840
      %v9942 = vmul.f32 %v9841, %v9841
      %v9943 = vmul.f32 %v9842, %v9842
      %v9944 = vmul.f32 %v9843, %v9843
      %v9945 = vmul.f32 %v9844, %v9844
      %v9946 = vmul.f32 %v9845, %v9845
      %v9947 = vsel %vm617, %v9915, 0.0
      %v9948 = vsel %vm617, %v9916, 0.0
      %v9949 = vadd.f32 %v9947, %v9948
      %v9950 = vsel %vm617, %v9917, 0.0
      %v9951 = vadd.f32 %v9949, %v9950
      %v9952 = vsel %vm617, %v9918, 0.0
      %v9953 = vadd.f32 %v9951, %v9952
      %v9954 = vsel %vm617, %v9919, 0.0
      %v9955 = vadd.f32 %v9953, %v9954
      %v9956 = vsel %vm617, %v9920, 0.0
      %v9957 = vadd.f32 %v9955, %v9956
      %v9958 = vsel %vm617, %v9921, 0.0
      %v9959 = vadd.f32 %v9957, %v9958
      %v9960 = vsel %vm617, %v9922, 0.0
      %v9961 = vadd.f32 %v9959, %v9960
      %v9962 = vsel %vm617, %v9923, 0.0
      %v9963 = vadd.f32 %v9961, %v9962
      %v9964 = vsel %vm617, %v9924, 0.0
      %v9965 = vadd.f32 %v9963, %v9964
      %v9966 = vsel %vm617, %v9925, 0.0
      %v9967 = vadd.f32 %v9965, %v9966
      %v9968 = vsel %vm617, %v9926, 0.0
      %v9969 = vadd.f32 %v9967, %v9968
      %v9970 = vsel %vm617, %v9927, 0.0
      %v9971 = vadd.f32 %v9969, %v9970
      %v9972 = vsel %vm617, %v9928, 0.0
      %v9973 = vadd.f32 %v9971, %v9972
      %v9974 = vsel %vm617, %v9929, 0.0
      %v9975 = vadd.f32 %v9973, %v9974
      %v9976 = vsel %vm617, %v9930, 0.0
      %v9977 = vadd.f32 %v9975, %v9976
      %v9978 = vsel %vm617, %v9931, 0.0
      %v9979 = vadd.f32 %v9977, %v9978
      %v9980 = vsel %vm617, %v9932, 0.0
      %v9981 = vadd.f32 %v9979, %v9980
      %v9982 = vsel %vm617, %v9933, 0.0
      %v9983 = vadd.f32 %v9981, %v9982
      %v9984 = vsel %vm617, %v9934, 0.0
      %v9985 = vadd.f32 %v9983, %v9984
      %v9986 = vsel %vm617, %v9935, 0.0
      %v9987 = vadd.f32 %v9985, %v9986
      %v9988 = vsel %vm617, %v9936, 0.0
      %v9989 = vadd.f32 %v9987, %v9988
      %v9990 = vsel %vm617, %v9937, 0.0
      %v9991 = vadd.f32 %v9989, %v9990
      %v9992 = vsel %vm617, %v9938, 0.0
      %v9993 = vadd.f32 %v9991, %v9992
      %v9994 = vsel %vm617, %v9939, 0.0
      %v9995 = vadd.f32 %v9993, %v9994
      %v9996 = vsel %vm617, %v9940, 0.0
      %v9997 = vadd.f32 %v9995, %v9996
      %v9998 = vsel %vm617, %v9941, 0.0
      %v9999 = vadd.f32 %v9997, %v9998
      %v10000 = vsel %vm617, %v9942, 0.0
      %v10001 = vadd.f32 %v9999, %v10000
      %v10002 = vsel %vm617, %v9943, 0.0
      %v10003 = vadd.f32 %v10001, %v10002
      %v10004 = vsel %vm617, %v9944, 0.0
      %v10005 = vadd.f32 %v10003, %v10004
      %v10006 = vsel %vm617, %v9945, 0.0
      %v10007 = vadd.f32 %v10005, %v10006
      %v10008 = vsel %vm617, %v9946, 0.0
      %v10009 = vadd.f32 %v10007, %v10008
      %v10010 = vrot.slane %v10009, 4
      %v10011 = vadd.f32 %v10009, %v10010
      %v10012 = vrot.slane %v10011, 2
      %v10013 = vadd.f32 %v10011, %v10012
      %v10014 = vrot.slane %v10013, 1
      %v10015 = vadd.f32 %v10013, %v10014
      %v10016 = vmul.f32 %v9914, 0.00390625
      %v10017 = vmul.f32 %v10015, 0.00390625
      %v10018 = vmul.f32 %v10016, %v10016
      %v10019 = vsub.f32 %v10017, %v10018
      %v10020 = vmax.f32 %v10019, 0.0
      %v10021 = vrsqrt.pop %v10020
      %v10022 = vmul.f32 %v10020, %v10021
      %vm10023 = vcmp.eq.f32.partialorder %v10020, inf
      %v10024 = vsel %vm10023, %v10020, %v10022
      %vm10025 = vcmp.eq.f32.partialorder %v10020, 0.0
      %v10026 = vand.u32 %v10020, 2147483648
      %v10027 = vsel %vm10025, %v10026, %v10024
      %v10028 = vadd.f32 %v10027, %v10016
      %v10029 = vld [vmem:[%s11] sm:$0x1]
      %v10030 = vmul.f32 %v10029, %v10028
      %vm10031 = vcmask 122880
      %v10032 = vsel %vm10031, %v10030, 0.0
      %10033 = vadd.xlane.f32.xlu0 %v10032
      %v10034 = vpop.xlane.xlu0 %10033
      %v10035 = vld [vmem:[#allocation3] sm:$0x1]
      %v10036 = vadd.f32 %v10034, %v10035
      %v10037 = vmax.f32 %v10036, 0.0
      %v10038 = vld [vmem:[%s13] sm:$0x1]
      %10040 = vset.pattern.permute.xlu0 0
      %10041 = vperm.xlu0 %10040, %v10037
      %v10042 = vpop.permute.xlu0 %10041
      %v10044 = vmul.f32 %v10042, %v10038
      %v10045 = vadd.f32 %v10044, 0.0
      %v10046 = vld [vmem:[%s14] sm:$0x1]
      %v10047 = vadd.f32 %v10045, %v10046
      %v10048 = vxor.u32 %v10047, 2147483648
      %v10049 = vmul.f32 %v10048, 1.442695
      %v10050 = vpow.pop %v10049
      %v10051 = vadd.f32 %v10050, 1.0
      %v10052 = vrcp.pop %v10051
      %v10053 = vmul.f32 1.0, %v10052
      %v10054 = vlaneseq
      %v10055 = vshrl.u32 %v10054, 7
      %v10056 = vsub.s32 0, %v10055
      %v10057 = vrot.slane %v10053, %v10056
      %v10058 = vmul.f32 %v9814, %v10057
      %v10059 = vmul.f32 %v9815, %v10057
      %v10060 = vmul.f32 %v9816, %v10057
      %v10061 = vmul.f32 %v9817, %v10057
      %v10062 = vmul.f32 %v9818, %v10057
      %v10063 = vmul.f32 %v9819, %v10057
      %v10064 = vmul.f32 %v9820, %v10057
      %v10065 = vmul.f32 %v9821, %v10057
      %v10066 = vmul.f32 %v9822, %v10057
      %v10067 = vmul.f32 %v9823, %v10057
      %v10068 = vmul.f32 %v9824, %v10057
      %v10069 = vmul.f32 %v9825, %v10057
      %v10070 = vmul.f32 %v9826, %v10057
      %v10071 = vmul.f32 %v9827, %v10057
      %v10072 = vmul.f32 %v9828, %v10057
      %v10073 = vmul.f32 %v9829, %v10057
      %v10074 = vmul.f32 %v9830, %v10057
      %v10075 = vmul.f32 %v9831, %v10057
      %v10076 = vmul.f32 %v9832, %v10057
      %v10077 = vmul.f32 %v9833, %v10057
      %v10078 = vmul.f32 %v9834, %v10057
      %v10079 = vmul.f32 %v9835, %v10057
      %v10080 = vmul.f32 %v9836, %v10057
      %v10081 = vmul.f32 %v9837, %v10057
      %v10082 = vmul.f32 %v9838, %v10057
      %v10083 = vmul.f32 %v9839, %v10057
      %v10084 = vmul.f32 %v9840, %v10057
      %v10085 = vmul.f32 %v9841, %v10057
      %v10086 = vmul.f32 %v9842, %v10057
      %v10087 = vmul.f32 %v9843, %v10057
      %v10088 = vmul.f32 %v9844, %v10057
      %v10089 = vmul.f32 %v9845, %v10057
      %v10090 = vpack.c.bf16 %v10059, %v10058
      %v10091 = vpack.c.bf16 %v10061, %v10060
      %v10092 = vpack.c.bf16 %v10063, %v10062
      %v10093 = vpack.c.bf16 %v10065, %v10064
      %v10094 = vpack.c.bf16 %v10067, %v10066
      %v10095 = vpack.c.bf16 %v10069, %v10068
      %v10096 = vpack.c.bf16 %v10071, %v10070
      %v10097 = vpack.c.bf16 %v10073, %v10072
      %v10098 = vpack.c.bf16 %v10075, %v10074
      %v10099 = vpack.c.bf16 %v10077, %v10076
      %v10100 = vpack.c.bf16 %v10079, %v10078
      %v10101 = vpack.c.bf16 %v10081, %v10080
      %v10102 = vpack.c.bf16 %v10083, %v10082
      %v10103 = vpack.c.bf16 %v10085, %v10084
      %v10104 = vpack.c.bf16 %v10087, %v10086
      %v10105 = vpack.c.bf16 %v10089, %v10088
      %v10106 = vld [vmem:[%s9] sm:$0xf]
      %v10107 = vld [vmem:[%s9 + $0x4] sm:$0xf]
      %v10108 = vld [vmem:[%s10] sm:$0x1]
      %v10110 = vlaneseq
      %v10111 = vshrl.u32 %v10110, 7
      %v10112 = vsub.s32 0, %v10111
      %v10113 = vrot.slane %v10108, %v10112
      %v10117 = vunpack.c.l.b16 %v10106
      %v10118 = vunpack.c.l.b16 %v10107
      %v10119 = vpack.c.b16 %v10118, %v10117
      %v10122 = vsel %vm617, %v10090, 0
      %v10125 = vsel %vm617, %v10091, 0
      %v10128 = vsel %vm617, %v10092, 0
      %v10131 = vsel %vm617, %v10093, 0
      %v10134 = vsel %vm617, %v10094, 0
      %v10137 = vsel %vm617, %v10095, 0
      %v10140 = vsel %vm617, %v10096, 0
      %v10143 = vsel %vm617, %v10097, 0
      %v10146 = vsel %vm617, %v10098, 0
      %v10149 = vsel %vm617, %v10099, 0
      %v10152 = vsel %vm617, %v10100, 0
      %v10155 = vsel %vm617, %v10101, 0
      %v10158 = vsel %vm617, %v10102, 0
      %v10161 = vsel %vm617, %v10103, 0
      %v10164 = vsel %vm617, %v10104, 0
      %v10167 = vsel %vm617, %v10105, 0
      %10169 = vmatprep.subr.bf16.mxu0 0
      %10170 = vmatpush1.bf16.msra.mxu0 %v10119
      %10171 = vmatprep.subr.bf16.mxu0 0
      %10172 = vmatpush1.bf16.msra.mxu0 0
      %10173 = vmatprep.subr.bf16.mxu0 0
      %10174 = vmatpush1.bf16.msra.mxu0 0
      %10175 = vmatprep.subr.bf16.mxu0 0
      %10176 = vmatpush1.bf16.msra.mxu0 0
      %10177 = vmatprep.subr.bf16.mxu0 0
      %10178 = vmatpush1.bf16.msra.mxu0 0
      %10179 = vmatprep.subr.bf16.mxu0 0
      %10180 = vmatpush1.bf16.msra.mxu0 0
      %10181 = vmatprep.subr.bf16.mxu0 0
      %10182 = vmatpush1.bf16.msra.mxu0 0
      %10183 = vmatprep.subr.bf16.mxu0 0
      %10184 = vmatpush1.bf16.msra.mxu0 0
      %10185 = vmatprep.subr.bf16.mxu0 0
      %10186 = vmatpush1.bf16.msra.mxu0 0
      %10187 = vmatprep.subr.bf16.mxu0 0
      %10188 = vmatpush1.bf16.msra.mxu0 0
      %10189 = vmatprep.subr.bf16.mxu0 0
      %10190 = vmatpush1.bf16.msra.mxu0 0
      %10191 = vmatprep.subr.bf16.mxu0 0
      %10192 = vmatpush1.bf16.msra.mxu0 0
      %10193 = vmatprep.subr.bf16.mxu0 0
      %10194 = vmatpush1.bf16.msra.mxu0 0
      %10195 = vmatprep.subr.bf16.mxu0 0
      %10196 = vmatpush1.bf16.msra.mxu0 0
      %10197 = vmatprep.subr.bf16.mxu0 0
      %10198 = vmatpush1.bf16.msra.mxu0 0
      %10199 = vmatprep.subr.bf16.mxu0 0
      %10200 = vmatpush1.bf16.msra.mxu0 0
      %10201 = vmatprep.mubr.bf16.mxu0 0
      %10202 = vmatmul.mubr.bf16.gmra.mrb[0].mxu0 %v10122
      %v10203 = vpop.f32.mrb[0].mxu0
      %v10204 = vadd.f32 %v10113, %v10203
      %v10205 = vpop.f32.mrb[0].mxu0
      %v10206 = vpop.f32.mrb[0].mxu0
      %v10207 = vadd.f32 %v10113, %v10206
      %v10208 = vpop.f32.mrb[0].mxu0
      %10209 = vmatprep.mubr.bf16.mxu0 0
      %10210 = vmatmul.mubr.bf16.gmra.mrb[0].mxu0 %v10125
      %v10211 = vpop.f32.mrb[0].mxu0
      %v10212 = vadd.f32 %v10113, %v10211
      %v10213 = vpop.f32.mrb[0].mxu0
      %v10214 = vpop.f32.mrb[0].mxu0
      %v10215 = vadd.f32 %v10113, %v10214
      %v10216 = vpop.f32.mrb[0].mxu0
      %10217 = vmatprep.mubr.bf16.mxu0 0
      %10218 = vmatmul.mubr.bf16.gmra.mrb[0].mxu0 %v10128
      %v10219 = vpop.f32.mrb[0].mxu0
      %v10220 = vadd.f32 %v10113, %v10219
      %v10221 = vpop.f32.mrb[0].mxu0
      %v10222 = vpop.f32.mrb[0].mxu0
      %v10223 = vadd.f32 %v10113, %v10222
      %v10224 = vpop.f32.mrb[0].mxu0
      %10225 = vmatprep.mubr.bf16.mxu0 0
      %10226 = vmatmul.mubr.bf16.gmra.mrb[0].mxu0 %v10131
      %v10227 = vpop.f32.mrb[0].mxu0
      %v10228 = vadd.f32 %v10113, %v10227
      %v10229 = vpop.f32.mrb[0].mxu0
      %v10230 = vpop.f32.mrb[0].mxu0
      %v10231 = vadd.f32 %v10113, %v10230
      %v10232 = vpop.f32.mrb[0].mxu0
      %10233 = vmatprep.mubr.bf16.mxu0 0
      %10234 = vmatmul.mubr.bf16.gmra.mrb[0].mxu0 %v10134
      %v10235 = vpop.f32.mrb[0].mxu0
      %v10236 = vadd.f32 %v10113, %v10235
      %v10237 = vpop.f32.mrb[0].mxu0
      %v10238 = vpop.f32.mrb[0].mxu0
      %v10239 = vadd.f32 %v10113, %v10238
      %v10240 = vpop.f32.mrb[0].mxu0
      %10241 = vmatprep.mubr.bf16.mxu0 0
      %10242 = vmatmul.mubr.bf16.gmra.mrb[0].mxu0 %v10137
      %v10243 = vpop.f32.mrb[0].mxu0
      %v10244 = vadd.f32 %v10113, %v10243
      %v10245 = vpop.f32.mrb[0].mxu0
      %v10246 = vpop.f32.mrb[0].mxu0
      %v10247 = vadd.f32 %v10113, %v10246
      %v10248 = vpop.f32.mrb[0].mxu0
      %10249 = vmatprep.mubr.bf16.mxu0 0
      %10250 = vmatmul.mubr.bf16.gmra.mrb[0].mxu0 %v10140
      %v10251 = vpop.f32.mrb[0].mxu0
      %v10252 = vadd.f32 %v10113, %v10251
      %v10253 = vpop.f32.mrb[0].mxu0
      %v10254 = vpop.f32.mrb[0].mxu0
      %v10255 = vadd.f32 %v10113, %v10254
      %v10256 = vpop.f32.mrb[0].mxu0
      %10257 = vmatprep.mubr.bf16.mxu0 0
      %10258 = vmatmul.mubr.bf16.gmra.mrb[0].mxu0 %v10143
      %v10259 = vpop.f32.mrb[0].mxu0
      %v10260 = vadd.f32 %v10113, %v10259
      %v10261 = vpop.f32.mrb[0].mxu0
      %v10262 = vpop.f32.mrb[0].mxu0
      %v10263 = vadd.f32 %v10113, %v10262
      %v10264 = vpop.f32.mrb[0].mxu0
      %10265 = vmatprep.mubr.bf16.mxu0 0
      %10266 = vmatmul.mubr.bf16.gmra.mrb[0].mxu0 %v10146
      %v10267 = vpop.f32.mrb[0].mxu0
      %v10268 = vadd.f32 %v10113, %v10267
      %v10269 = vpop.f32.mrb[0].mxu0
      %v10270 = vpop.f32.mrb[0].mxu0
      %v10271 = vadd.f32 %v10113, %v10270
      %v10272 = vpop.f32.mrb[0].mxu0
      %10273 = vmatprep.mubr.bf16.mxu0 0
      %10274 = vmatmul.mubr.bf16.gmra.mrb[0].mxu0 %v10149
      %v10275 = vpop.f32.mrb[0].mxu0
      %v10276 = vadd.f32 %v10113, %v10275
      %v10277 = vpop.f32.mrb[0].mxu0
      %v10278 = vpop.f32.mrb[0].mxu0
      %v10279 = vadd.f32 %v10113, %v10278
      %v10280 = vpop.f32.mrb[0].mxu0
      %10281 = vmatprep.mubr.bf16.mxu0 0
      %10282 = vmatmul.mubr.bf16.gmra.mrb[0].mxu0 %v10152
      %v10283 = vpop.f32.mrb[0].mxu0
      %v10284 = vadd.f32 %v10113, %v10283
      %v10285 = vpop.f32.mrb[0].mxu0
      %v10286 = vpop.f32.mrb[0].mxu0
      %v10287 = vadd.f32 %v10113, %v10286
      %v10288 = vpop.f32.mrb[0].mxu0
      %10289 = vmatprep.mubr.bf16.mxu0 0
      %10290 = vmatmul.mubr.bf16.gmra.mrb[0].mxu0 %v10155
      %v10291 = vpop.f32.mrb[0].mxu0
      %v10292 = vadd.f32 %v10113, %v10291
      %v10293 = vpop.f32.mrb[0].mxu0
      %v10294 = vpop.f32.mrb[0].mxu0
      %v10295 = vadd.f32 %v10113, %v10294
      %v10296 = vpop.f32.mrb[0].mxu0
      %10297 = vmatprep.mubr.bf16.mxu0 0
      %10298 = vmatmul.mubr.bf16.gmra.mrb[0].mxu0 %v10158
      %v10299 = vpop.f32.mrb[0].mxu0
      %v10300 = vadd.f32 %v10113, %v10299
      %v10301 = vpop.f32.mrb[0].mxu0
      %v10302 = vpop.f32.mrb[0].mxu0
      %v10303 = vadd.f32 %v10113, %v10302
      %v10304 = vpop.f32.mrb[0].mxu0
      %10305 = vmatprep.mubr.bf16.mxu0 0
      %10306 = vmatmul.mubr.bf16.gmra.mrb[0].mxu0 %v10161
      %v10307 = vpop.f32.mrb[0].mxu0
      %v10308 = vadd.f32 %v10113, %v10307
      %v10309 = vpop.f32.mrb[0].mxu0
      %v10310 = vpop.f32.mrb[0].mxu0
      %v10311 = vadd.f32 %v10113, %v10310
      %v10312 = vpop.f32.mrb[0].mxu0
      %10313 = vmatprep.mubr.bf16.mxu0 0
      %10314 = vmatmul.mubr.bf16.gmra.mrb[0].mxu0 %v10164
      %v10315 = vpop.f32.mrb[0].mxu0
      %v10316 = vadd.f32 %v10113, %v10315
      %v10317 = vpop.f32.mrb[0].mxu0
      %v10318 = vpop.f32.mrb[0].mxu0
      %v10319 = vadd.f32 %v10113, %v10318
      %v10320 = vpop.f32.mrb[0].mxu0
      %10321 = vmatprep.mubr.bf16.mxu0 0
      %10322 = vmatmul.mubr.bf16.gmra.mrb[0].mxu0 %v10167
      %v10323 = vpop.f32.mrb[0].mxu0
      %v10324 = vadd.f32 %v10113, %v10323
      %v10325 = vpop.f32.mrb[0].mxu0
      %v10326 = vpop.f32.mrb[0].mxu0
      %v10327 = vadd.f32 %v10113, %v10326
      %v10328 = vpop.f32.mrb[0].mxu0
      %10329 = vdwg.mxu0
      %v10330 = vadd.f32 %v10204, %v498
      %v10331 = vadd.f32 %v10207, %v499
      %v10332 = vadd.f32 %v10212, %v500
      %v10333 = vadd.f32 %v10215, %v501
      %v10334 = vadd.f32 %v10220, %v502
      %v10335 = vadd.f32 %v10223, %v503
      %v10336 = vadd.f32 %v10228, %v504
      %v10337 = vadd.f32 %v10231, %v505
      %v10338 = vadd.f32 %v10236, %v506
      %v10339 = vadd.f32 %v10239, %v507
      %v10340 = vadd.f32 %v10244, %v508
      %v10341 = vadd.f32 %v10247, %v509
      %v10342 = vadd.f32 %v10252, %v510
      %v10343 = vadd.f32 %v10255, %v511
      %v10344 = vadd.f32 %v10260, %v512
      %v10345 = vadd.f32 %v10263, %v513
      %v10346 = vadd.f32 %v10268, %v514
      %v10347 = vadd.f32 %v10271, %v515
      %v10348 = vadd.f32 %v10276, %v516
      %v10349 = vadd.f32 %v10279, %v517
      %v10350 = vadd.f32 %v10284, %v518
      %v10351 = vadd.f32 %v10287, %v519
      %v10352 = vadd.f32 %v10292, %v520
      %v10353 = vadd.f32 %v10295, %v521
      %v10354 = vadd.f32 %v10300, %v522
      %v10355 = vadd.f32 %v10303, %v523
      %v10356 = vadd.f32 %v10308, %v524
      %v10357 = vadd.f32 %v10311, %v525
      %v10358 = vadd.f32 %v10316, %v526
      %v10359 = vadd.f32 %v10319, %v527
      %v10360 = vadd.f32 %v10324, %v528
      %v10361 = vadd.f32 %v10327, %v529
      %10362 = vst.msk [vmem:[%s496] sm:$0xff] %vm617, %v10330
      %10363 = vst.msk [vmem:[%s496 + $0x8] sm:$0xff] %vm617, %v10331
      %10364 = vst.msk [vmem:[%s496 + $0x10] sm:$0xff] %vm617, %v10332
      %10365 = vst.msk [vmem:[%s496 + $0x18] sm:$0xff] %vm617, %v10333
      %10366 = vst.msk [vmem:[%s496 + $0x20] sm:$0xff] %vm617, %v10334
      %10367 = vst.msk [vmem:[%s496 + $0x28] sm:$0xff] %vm617, %v10335
      %10368 = vst.msk [vmem:[%s496 + $0x30] sm:$0xff] %vm617, %v10336
      %10369 = vst.msk [vmem:[%s496 + $0x38] sm:$0xff] %vm617, %v10337
      %10370 = vst.msk [vmem:[%s496 + $0x40] sm:$0xff] %vm617, %v10338
      %10371 = vst.msk [vmem:[%s496 + $0x48] sm:$0xff] %vm617, %v10339
      %10372 = vst.msk [vmem:[%s496 + $0x50] sm:$0xff] %vm617, %v10340
      %10373 = vst.msk [vmem:[%s496 + $0x58] sm:$0xff] %vm617, %v10341
      %10374 = vst.msk [vmem:[%s496 + $0x60] sm:$0xff] %vm617, %v10342
      %10375 = vst.msk [vmem:[%s496 + $0x68] sm:$0xff] %vm617, %v10343
      %10376 = vst.msk [vmem:[%s496 + $0x70] sm:$0xff] %vm617, %v10344
      %10377 = vst.msk [vmem:[%s496 + $0x78] sm:$0xff] %vm617, %v10345
      %10378 = vst.msk [vmem:[%s496 + $0x80] sm:$0xff] %vm617, %v10346
      %10379 = vst.msk [vmem:[%s496 + $0x88] sm:$0xff] %vm617, %v10347
      %10380 = vst.msk [vmem:[%s496 + $0x90] sm:$0xff] %vm617, %v10348
      %10381 = vst.msk [vmem:[%s496 + $0x98] sm:$0xff] %vm617, %v10349
      %10382 = vst.msk [vmem:[%s496 + $0xa0] sm:$0xff] %vm617, %v10350
      %10383 = vst.msk [vmem:[%s496 + $0xa8] sm:$0xff] %vm617, %v10351
      %10384 = vst.msk [vmem:[%s496 + $0xb0] sm:$0xff] %vm617, %v10352
      %10385 = vst.msk [vmem:[%s496 + $0xb8] sm:$0xff] %vm617, %v10353
      %10386 = vst.msk [vmem:[%s496 + $0xc0] sm:$0xff] %vm617, %v10354
      %10387 = vst.msk [vmem:[%s496 + $0xc8] sm:$0xff] %vm617, %v10355
      %10388 = vst.msk [vmem:[%s496 + $0xd0] sm:$0xff] %vm617, %v10356
      %10389 = vst.msk [vmem:[%s496 + $0xd8] sm:$0xff] %vm617, %v10357
      %10390 = vst.msk [vmem:[%s496 + $0xe0] sm:$0xff] %vm617, %v10358
      %10391 = vst.msk [vmem:[%s496 + $0xe8] sm:$0xff] %vm617, %v10359
      %10392 = vst.msk [vmem:[%s496 + $0xf0] sm:$0xff] %vm617, %v10360
      %10393 = vst.msk [vmem:[%s496 + $0xf8] sm:$0xff] %vm617, %v10361
      %p10394 = scmp.lt.s32.totalorder %s28, 1
      %s10395 = scalar_select %p10394, %s28, 1
      %s10396 = smul.addr %s10395, 32
      %s10397 = smul.addr %s10396, 8
      %s10398 = scalar_lea.vmem %s15, %s10397
      // Predicated region
      $region81: #{_lambda_.1} parent=79 // pred_check
        %p10399 = pneg %p366
      $region82: #{_lambda_.1} parent=79 // pred_check_branch
        %10401 = sbr.rel (%p10399) target = $region84
      $region83: #{_lambda_.1} parent=79 // pred_region
        _
      $region84: #{_lambda_.1} parent=79 // pred_fallthru
        _
    $region80: #{_lambda_.1} parent=5 // pred_fallthru
      _
    %p10402 = scmp.le.s32.totalorder 2, %s23
    // Predicated region
    $region85: #{_lambda_.1} parent=5 // pred_check
      %p10403 = pneg %p10402
    $region86: #{_lambda_.1} parent=5 // pred_check_branch
      %10405 = sbr.rel (%p10403) target = $region88
    $region87: #{_lambda_.1} parent=5 // pred_region
      %s10406 = ssub.s32 %s23, 2
      // Predicated region
      $region89: #{_lambda_.1} parent=87 // pred_check
        %p10407 = pneg %p372
      $region90: #{_lambda_.1} parent=87 // pred_check_branch
        %10409 = sbr.rel (%p10407) target = $region92
      $region91: #{_lambda_.1} parent=87 // pred_region
        %p10410 = scmp.lt.s32.totalorder %s29, 1
        %s10411 = scalar_select %p10410, %s29, 1
        %s10412 = smul.addr %s10411, 32
        %s10413 = smul.addr %s10412, 8
        %s10414 = scalar_lea.vmem %s15, %s10413
      $region92: #{_lambda_.1} parent=87 // pred_fallthru
        _
    $region88: #{_lambda_.1} parent=5 // pred_fallthru
      _
  $region6: #{_lambda_.1} parent=0 // loop_footer
    %s27 = sadd.s32 1, %s23
  $region7: #{_lambda_.1} parent=0 // loop_footer_branch
    %22 = sbr.rel target = $region3
  $region8: #{_lambda_.1} parent=0 // loop_exit
    _

</llo_original>
